<compile_context>
chip_gen: v7x
topology: tpu7x:2x2x1
jax: 0.10.0
libtpu: 0.0.40
codegen_flags: <defaults>
</compile_context>

<pallas_src>
import functools
import numpy as np
import jax
import jax.numpy as jnp
from jax import lax
from jax.experimental import pallas as pl
from jax.experimental.pallas import tpu as pltpu

# ----------------- configuration (small, consistent with the module) -----------------
N = 2            # batch
IN_C = 4         # in_channels
T = 8            # seq_len
DIM_F = 32       # dim_feature
DIM_HID = 16     # theta_reg hidden (hardcoded 16 in the module; == dim_theta_reg)
NC = 6           # tess = (6,)
THETA_D = NC - 1 # 1D CPA, zero_boundary=True  -> theta dim = nC - 1 = 5
THETA_SCALE = 0.5
NSTEP = 50       # libcpab default nstepsolver
DT = 1.0 / NSTEP
LN_EPS = 1e-5


# --------------------------------- fused kernel ----------------------------------------
def _ssavf_kernel(x_nct_ref, x_ntc_ref, theta_shift_ref,
                  basis_a_ref, basis_b_ref,
                  ln1_g, ln1_b, w1, b1, w2, b2, ln2_g, ln2_b,
                  tw1o, tw1s, tb1, tw2, tb2,
                  x_aligned_ref, x_shift_ref, theta_pred_ref):
    x_nct = x_nct_ref[...]                                  # (N, C, T)

    # ---------- CPAB: theta -> warped-grid interpolation weights (N, Tout, Tin) --------
    def warp_weights(theta):
        # per-cell affine velocity (a, b) and the one-substep exact exponential map
        a = jnp.dot(theta, basis_a_ref[...], preferred_element_type=jnp.float32)  # (N, NC)
        b = jnp.dot(theta, basis_b_ref[...], preferred_element_type=jnp.float32)  # (N, NC)
        ea = jnp.exp(a * DT)                                  # EUP
        small = jnp.abs(a) < 1e-8
        safe_a = jnp.where(small, 1.0, a)
        eb = jnp.where(small, b * DT, (b / safe_a) * (ea - 1.0))
        # hoist per-cell broadcasts out of the (unrolled) integration loop
        ea_b = [jnp.broadcast_to(ea[:, c:c + 1], (N, T)) for c in range(NC)]
        eb_b = [jnp.broadcast_to(eb[:, c:c + 1], (N, T)) for c in range(NC)]

        # uniform grid in [0, 1]
        p = (lax.broadcasted_iota(jnp.int32, (N, T), 1).astype(jnp.float32)
             / float(T - 1))

        # fully-unrolled numeric integration; cell lookup as a monotone VPU select chain
        for _ in range(NSTEP):
            aa = ea_b[0]
            bb = eb_b[0]
            for c in range(1, NC):
                m = p >= (c / NC)
                aa = jnp.where(m, ea_b[c], aa)
                bb = jnp.where(m, eb_b[c], bb)
            p = aa * p + bb

        # linear interpolation weights (libcpab interpolate1D semantics)
        xg = p * (T - 1)
        x0 = jnp.floor(xg)
        x0c = jnp.clip(x0, 0.0, float(T - 1))
        x1c = jnp.clip(x0 + 1.0, 0.0, float(T - 1))
        w = xg - x0c
        t_idx = lax.broadcasted_iota(jnp.int32, (N, T, T), 2).astype(jnp.float32)
        wv = w[:, :, None]
        oh = (jnp.where(x0c[:, :, None] == t_idx, 1.0 - wv, 0.0)
              + jnp.where(x1c[:, :, None] == t_idx, wv, 0.0))
        return oh                                            # (N, Tout, Tin)

    # ---------- warp #1: random shift ---------------------------------------------------
    oh_shift = warp_weights(theta_shift_ref[...])
    x_shift_nct = jnp.einsum('ncj,ntj->nct', x_nct, oh_shift,
                             preferred_element_type=jnp.float32)
    x_shift_ntc = jnp.einsum('ntj,ncj->ntc', oh_shift, x_nct,
                             preferred_element_type=jnp.float32)
    x_shift_ref[...] = x_shift_nct

    # ---------- localise (original + shifted batched together) --------------------------
    x_both = jnp.concatenate([x_ntc_ref[...], x_shift_ntc], axis=0)     # (2N, T, C)
    x2 = x_both.reshape(2 * N * T, IN_C)
    mu = jnp.mean(x2, axis=-1, keepdims=True)
    var = jnp.mean((x2 - mu) ** 2, axis=-1, keepdims=True)
    xn = (x2 - mu) * lax.rsqrt(var + LN_EPS) * ln1_g[...] + ln1_b[...]
    h = jnp.maximum(jnp.dot(xn, w1[...], preferred_element_type=jnp.float32) + b1[...], 0.0)
    h = jnp.maximum(jnp.dot(h, w2[...], preferred_element_type=jnp.float32) + b2[...], 0.0)
    mu2 = jnp.mean(h, axis=-1, keepdims=True)
    var2 = jnp.mean((h - mu2) ** 2, axis=-1, keepdims=True)
    hn = (h - mu2) * lax.rsqrt(var2 + LN_EPS) * ln2_g[...] + ln2_b[...]
    loc = hn.reshape(2 * N, T, DIM_F)
    orig_loc = loc[:N]                                       # (N, T, F)
    shift_loc = loc[N:]                                      # (N, T, F)

    # ---------- theta_reg (torch cat + .view folded into per-timestep matmuls) ----------
    w1o = tw1o[...]                                          # (T, F, H)
    w1s = tw1s[...]                                          # (T, F, H)
    h1 = jnp.broadcast_to(tb1[...], (N, DIM_HID))
    for t in range(T):
        h1 = h1 + jnp.dot(orig_loc[:, t, :], w1o[t], preferred_element_type=jnp.float32)
        h1 = h1 + jnp.dot(shift_loc[:, t, :], w1s[t], preferred_element_type=jnp.float32)
    h1 = jnp.maximum(h1, 0.0)
    theta_pred = jnp.tanh(jnp.dot(h1, tw2[...], preferred_element_type=jnp.float32)
                          + tb2[...])
    theta_pred_ref[...] = theta_pred

    # ---------- warp #2: align with predicted theta --------------------------------------
    oh_align = warp_weights(theta_pred)
    x_aligned_ref[...] = jnp.einsum('ncj,ntj->nct', x_nct, oh_align,
                                    preferred_element_type=jnp.float32)


# ------------------------------- wrappers / glue ---------------------------------------
def _vmem_spec():
    return pl.BlockSpec(memory_space=pltpu.MemorySpace.VMEM)


def ssavf_forward(x, key, params, basis_a, basis_b):
    # shift_data: theta_shift = theta_scale * sample_transformation(N)   (RNG stays in XLA)
    theta_shift = THETA_SCALE * jax.random.normal(key, (N, THETA_D), dtype=jnp.float32)
    x_ntc = jnp.transpose(x, (0, 2, 1))                      # single cheap XLA transpose
    args = (x, x_ntc, theta_shift, basis_a, basis_b,
            params['ln1_g'], params['ln1_b'], params['w1'], params['b1'],
            params['w2'], params['b2'], params['ln2_g'], params['ln2_b'],
            params['tw1o'], params['tw1s'], params['tb1'],
            params['tw2'], params['tb2'])
    out_shape = (jax.ShapeDtypeStruct((N, IN_C, T), jnp.float32),   # x_aligned
                 jax.ShapeDtypeStruct((N, IN_C, T), jnp.float32),   # x_shift
                 jax.ShapeDtypeStruct((N, THETA_D), jnp.float32))   # theta_pred
    x_aligned, x_shift, theta_pred = pl.pallas_call(
        _ssavf_kernel,
        out_shape=out_shape,
        in_specs=[_vmem_spec() for _ in args],
        out_specs=tuple(_vmem_spec() for _ in out_shape),
        cost_estimate=pl.CostEstimate(flops=150_000, transcendentals=128,
                                      bytes_accessed=48_000),
    )(*args)
    return x_aligned, x_shift, theta_pred, theta_shift


# ------------------------------- parameter setup ---------------------------------------
def cpa_basis_1d(nC):
    """Orthonormal null-space basis of the 1D CPA constraint matrix (zero boundary),
    pre-split into the 'a' and 'b' rows so the kernel gets a/b directly from theta."""
    L = np.zeros((nC + 1, 2 * nC), dtype=np.float64)
    for k in range(1, nC):                               # continuity at internal knots
        xk = k / nC
        L[k - 1, 2 * (k - 1)] = xk
        L[k - 1, 2 * (k - 1) + 1] = 1.0
        L[k - 1, 2 * k] = -xk
        L[k - 1, 2 * k + 1] = -1.0
    L[nC - 1, 1] = 1.0                                   # v(0) = 0
    L[nC, 2 * (nC - 1)] = 1.0                            # v(1) = 0
    L[nC, 2 * (nC - 1) + 1] = 1.0
    _, s, vt = np.linalg.svd(L)
    rank = int(np.sum(s > 1e-10))
    B = vt[rank:].T                                      # (2*nC, nC-1)
    basis_a = jnp.asarray(B[0::2].T, jnp.float32)        # (theta_d, nC): theta @ Ba -> a_c
    basis_b = jnp.asarray(B[1::2].T, jnp.float32)        # (theta_d, nC): theta @ Bb -> b_c
    return basis_a, basis_b


def init_params(key):
    ks = jax.random.split(key, 7)

    def rnd(k, shape, scale):
        return (scale * jax.random.normal(k, shape)).astype(jnp.float32)

    return {
        # LayerNorms: PyTorch default init (weight=1, bias=0)
        'ln1_g': jnp.ones((1, IN_C), jnp.float32),
        'ln1_b': jnp.zeros((1, IN_C), jnp.float32),
        'ln2_g': jnp.ones((1, DIM_F), jnp.float32),
        'ln2_b': jnp.zeros((1, DIM_F), jnp.float32),
        # NConvBlock (n_conv=2, kernel_size=1) as channel matmuls
        'w1': rnd(ks[0], (IN_C, DIM_F), 1.0 / np.sqrt(IN_C)),
        'b1': rnd(ks[1], (1, DIM_F), 0.01),
        'w2': rnd(ks[2], (DIM_F, DIM_F), 1.0 / np.sqrt(DIM_F)),
        'b2': rnd(ks[3], (1, DIM_F), 0.01),
        # theta_reg Linear(2*F*T, 16) weight stored per-timestep / per-half
        # ((T, F, H) for the original half and the shifted half).  This is a fixed
        # permutation of the randomly-initialised torch weight rows, so the module
        # semantics are unchanged while letting the kernel skip the cat + flatten.
        'tw1o': rnd(ks[4], (T, DIM_F, DIM_HID), 1.0 / np.sqrt(2 * DIM_F * T)),
        'tw1s': rnd(ks[5], (T, DIM_F, DIM_HID), 1.0 / np.sqrt(2 * DIM_F * T)),
        'tb1': rnd(ks[6], (1, DIM_HID), 0.01),
        # module __init__: last linear weight zeroed, bias = T.identity(epsilon=1e-3)
        'tw2': jnp.zeros((DIM_HID, THETA_D), jnp.float32),
        'tb2': jnp.full((1, THETA_D), 1e-3, jnp.float32),
    }


if __name__ == "__main__":
    key = jax.random.PRNGKey(0)
    kx, kp, ks = jax.random.split(key, 3)
    x = jax.random.normal(kx, (N, IN_C, T), dtype=jnp.float32)   # (batch, in_channels, seq_len)
    params = init_params(kp)
    basis_a, basis_b = cpa_basis_1d(NC)

    fwd = jax.jit(functools.partial(ssavf_forward, params=params,
                                    basis_a=basis_a, basis_b=basis_b))
    out = fwd(x, ks)
    jax.block_until_ready(out)
    x_aligned, x_shift, theta_pred, theta_shift = out
    assert x_aligned.shape == (N, IN_C, T)
    assert x_shift.shape == (N, IN_C, T)
    assert theta_pred.shape == (N, THETA_D)
    assert theta_shift.shape == (N, THETA_D)
    print("KERNEL_OK")
</pallas_src>

<mosaic_0001>
module attributes {stable_mosaic.version = 11 : i64} {
  func.func @_ssavf_kernel(%arg0: memref<2x4x8xf32, #tpu.memory_space<vmem>>, %arg1: memref<2x8x4xf32, #tpu.memory_space<vmem>>, %arg2: memref<2x5xf32, #tpu.memory_space<vmem>>, %arg3: memref<5x6xf32, #tpu.memory_space<vmem>>, %arg4: memref<5x6xf32, #tpu.memory_space<vmem>>, %arg5: memref<1x4xf32, #tpu.memory_space<vmem>>, %arg6: memref<1x4xf32, #tpu.memory_space<vmem>>, %arg7: memref<4x32xf32, #tpu.memory_space<vmem>>, %arg8: memref<1x32xf32, #tpu.memory_space<vmem>>, %arg9: memref<32x32xf32, #tpu.memory_space<vmem>>, %arg10: memref<1x32xf32, #tpu.memory_space<vmem>>, %arg11: memref<1x32xf32, #tpu.memory_space<vmem>>, %arg12: memref<1x32xf32, #tpu.memory_space<vmem>>, %arg13: memref<8x32x16xf32, #tpu.memory_space<vmem>>, %arg14: memref<8x32x16xf32, #tpu.memory_space<vmem>>, %arg15: memref<1x16xf32, #tpu.memory_space<vmem>>, %arg16: memref<16x5xf32, #tpu.memory_space<vmem>>, %arg17: memref<1x5xf32, #tpu.memory_space<vmem>>, %arg18: memref<2x4x8xf32, #tpu.memory_space<vmem>>, %arg19: memref<2x4x8xf32, #tpu.memory_space<vmem>>, %arg20: memref<2x5xf32, #tpu.memory_space<vmem>>) attributes {dimension_semantics = [], scalar_prefetch = 0 : i64, scratch_operands = 0 : i64, tpu.core_type = #tpu.core_type<tc>} {
    %c0 = arith.constant 0 : index
    %c0_0 = arith.constant 0 : index
    %c0_1 = arith.constant 0 : index
    %0 = vector.load %arg0[%c0, %c0_0, %c0_1] : memref<2x4x8xf32, #tpu.memory_space<vmem>>, vector<2x4x8xf32>
    %c0_2 = arith.constant 0 : index
    %c0_3 = arith.constant 0 : index
    %1 = vector.load %arg2[%c0_2, %c0_3] : memref<2x5xf32, #tpu.memory_space<vmem>>, vector<2x5xf32>
    %c0_4 = arith.constant 0 : index
    %c0_5 = arith.constant 0 : index
    %2 = vector.load %arg3[%c0_4, %c0_5] : memref<5x6xf32, #tpu.memory_space<vmem>>, vector<5x6xf32>
    %cst = arith.constant dense<0.000000e+00> : vector<2x6xf32>
    %3 = tpu.matmul %1, %2, %cst {dimension_numbers = #tpu.dot_dimension_numbers<[1], [0], [0], [1], [0, 0, 1, 1], [], []>} : vector<2x5xf32>, vector<5x6xf32>, vector<2x6xf32> -> vector<2x6xf32>
    %c0_6 = arith.constant 0 : index
    %c0_7 = arith.constant 0 : index
    %4 = vector.load %arg4[%c0_6, %c0_7] : memref<5x6xf32, #tpu.memory_space<vmem>>, vector<5x6xf32>
    %cst_8 = arith.constant dense<0.000000e+00> : vector<2x6xf32>
    %5 = tpu.matmul %1, %4, %cst_8 {dimension_numbers = #tpu.dot_dimension_numbers<[1], [0], [0], [1], [0, 0, 1, 1], [], []>} : vector<2x5xf32>, vector<5x6xf32>, vector<2x6xf32> -> vector<2x6xf32>
    %cst_9 = arith.constant 2.000000e-02 : f32
    %6 = vector.broadcast %cst_9 : f32 to vector<2x6xf32>
    %7 = arith.mulf %3, %6 : vector<2x6xf32>
    %8 = math.exp %7 : vector<2x6xf32>
    %9 = math.absf %3 : vector<2x6xf32>
    %cst_10 = arith.constant 9.99999993E-9 : f32
    %10 = vector.broadcast %cst_10 : f32 to vector<2x6xf32>
    %11 = arith.cmpf olt, %9, %10 : vector<2x6xf32>
    %cst_11 = arith.constant 1.000000e+00 : f32
    %12 = vector.broadcast %cst_11 : f32 to vector<2x6xf32>
    %13 = arith.select %11, %12, %3 : vector<2x6xi1>, vector<2x6xf32>
    %cst_12 = arith.constant 2.000000e-02 : f32
    %14 = vector.broadcast %cst_12 : f32 to vector<2x6xf32>
    %15 = arith.mulf %5, %14 : vector<2x6xf32>
    %16 = arith.divf %5, %13 : vector<2x6xf32>
    %cst_13 = arith.constant 1.000000e+00 : f32
    %17 = vector.broadcast %cst_13 : f32 to vector<2x6xf32>
    %18 = arith.subf %8, %17 : vector<2x6xf32>
    %19 = arith.mulf %16, %18 : vector<2x6xf32>
    %20 = arith.select %11, %15, %19 : vector<2x6xi1>, vector<2x6xf32>
    %21 = vector.extract_strided_slice %8 {offsets = [0, 0], sizes = [2, 1], strides = [1, 1]} : vector<2x6xf32> to vector<2x1xf32>
    %22 = vector.shape_cast %21 : vector<2x1xf32> to vector<2x1xf32>
    %23 = vector.broadcast %22 : vector<2x1xf32> to vector<2x8xf32>
    %24 = vector.extract_strided_slice %8 {offsets = [0, 1], sizes = [2, 1], strides = [1, 1]} : vector<2x6xf32> to vector<2x1xf32>
    %25 = vector.shape_cast %24 : vector<2x1xf32> to vector<2x1xf32>
    %26 = vector.broadcast %25 : vector<2x1xf32> to vector<2x8xf32>
    %27 = vector.extract_strided_slice %8 {offsets = [0, 2], sizes = [2, 1], strides = [1, 1]} : vector<2x6xf32> to vector<2x1xf32>
    %28 = vector.shape_cast %27 : vector<2x1xf32> to vector<2x1xf32>
    %29 = vector.broadcast %28 : vector<2x1xf32> to vector<2x8xf32>
    %30 = vector.extract_strided_slice %8 {offsets = [0, 3], sizes = [2, 1], strides = [1, 1]} : vector<2x6xf32> to vector<2x1xf32>
    %31 = vector.shape_cast %30 : vector<2x1xf32> to vector<2x1xf32>
    %32 = vector.broadcast %31 : vector<2x1xf32> to vector<2x8xf32>
    %33 = vector.extract_strided_slice %8 {offsets = [0, 4], sizes = [2, 1], strides = [1, 1]} : vector<2x6xf32> to vector<2x1xf32>
    %34 = vector.shape_cast %33 : vector<2x1xf32> to vector<2x1xf32>
    %35 = vector.broadcast %34 : vector<2x1xf32> to vector<2x8xf32>
    %36 = vector.extract_strided_slice %8 {offsets = [0, 5], sizes = [2, 1], strides = [1, 1]} : vector<2x6xf32> to vector<2x1xf32>
    %37 = vector.shape_cast %36 : vector<2x1xf32> to vector<2x1xf32>
    %38 = vector.broadcast %37 : vector<2x1xf32> to vector<2x8xf32>
    %39 = vector.extract_strided_slice %20 {offsets = [0, 0], sizes = [2, 1], strides = [1, 1]} : vector<2x6xf32> to vector<2x1xf32>
    %40 = vector.shape_cast %39 : vector<2x1xf32> to vector<2x1xf32>
    %41 = vector.broadcast %40 : vector<2x1xf32> to vector<2x8xf32>
    %42 = vector.extract_strided_slice %20 {offsets = [0, 1], sizes = [2, 1], strides = [1, 1]} : vector<2x6xf32> to vector<2x1xf32>
    %43 = vector.shape_cast %42 : vector<2x1xf32> to vector<2x1xf32>
    %44 = vector.broadcast %43 : vector<2x1xf32> to vector<2x8xf32>
    %45 = vector.extract_strided_slice %20 {offsets = [0, 2], sizes = [2, 1], strides = [1, 1]} : vector<2x6xf32> to vector<2x1xf32>
    %46 = vector.shape_cast %45 : vector<2x1xf32> to vector<2x1xf32>
    %47 = vector.broadcast %46 : vector<2x1xf32> to vector<2x8xf32>
    %48 = vector.extract_strided_slice %20 {offsets = [0, 3], sizes = [2, 1], strides = [1, 1]} : vector<2x6xf32> to vector<2x1xf32>
    %49 = vector.shape_cast %48 : vector<2x1xf32> to vector<2x1xf32>
    %50 = vector.broadcast %49 : vector<2x1xf32> to vector<2x8xf32>
    %51 = vector.extract_strided_slice %20 {offsets = [0, 4], sizes = [2, 1], strides = [1, 1]} : vector<2x6xf32> to vector<2x1xf32>
    %52 = vector.shape_cast %51 : vector<2x1xf32> to vector<2x1xf32>
    %53 = vector.broadcast %52 : vector<2x1xf32> to vector<2x8xf32>
    %54 = vector.extract_strided_slice %20 {offsets = [0, 5], sizes = [2, 1], strides = [1, 1]} : vector<2x6xf32> to vector<2x1xf32>
    %55 = vector.shape_cast %54 : vector<2x1xf32> to vector<2x1xf32>
    %56 = vector.broadcast %55 : vector<2x1xf32> to vector<2x8xf32>
    %57 = tpu.iota {dimensions = array<i32: 1>} : vector<2x8xi32>
    %58 = arith.sitofp %57 : vector<2x8xi32> to vector<2x8xf32>
    %cst_14 = arith.constant 7.000000e+00 : f32
    %59 = vector.broadcast %cst_14 : f32 to vector<2x8xf32>
    %60 = arith.divf %58, %59 : vector<2x8xf32>
    %cst_15 = arith.constant 0.166666672 : f32
    %61 = vector.broadcast %cst_15 : f32 to vector<2x8xf32>
    %62 = arith.cmpf oge, %60, %61 : vector<2x8xf32>
    %63 = arith.select %62, %26, %23 : vector<2x8xi1>, vector<2x8xf32>
    %64 = arith.select %62, %44, %41 : vector<2x8xi1>, vector<2x8xf32>
    %cst_16 = arith.constant 0.333333343 : f32
    %65 = vector.broadcast %cst_16 : f32 to vector<2x8xf32>
    %66 = arith.cmpf oge, %60, %65 : vector<2x8xf32>
    %67 = arith.select %66, %29, %63 : vector<2x8xi1>, vector<2x8xf32>
    %68 = arith.select %66, %47, %64 : vector<2x8xi1>, vector<2x8xf32>
    %cst_17 = arith.constant 5.000000e-01 : f32
    %69 = vector.broadcast %cst_17 : f32 to vector<2x8xf32>
    %70 = arith.cmpf oge, %60, %69 : vector<2x8xf32>
    %71 = arith.select %70, %32, %67 : vector<2x8xi1>, vector<2x8xf32>
    %72 = arith.select %70, %50, %68 : vector<2x8xi1>, vector<2x8xf32>
    %cst_18 = arith.constant 0.666666686 : f32
    %73 = vector.broadcast %cst_18 : f32 to vector<2x8xf32>
    %74 = arith.cmpf oge, %60, %73 : vector<2x8xf32>
    %75 = arith.select %74, %35, %71 : vector<2x8xi1>, vector<2x8xf32>
    %76 = arith.select %74, %53, %72 : vector<2x8xi1>, vector<2x8xf32>
    %cst_19 = arith.constant 0.833333313 : f32
    %77 = vector.broadcast %cst_19 : f32 to vector<2x8xf32>
    %78 = arith.cmpf oge, %60, %77 : vector<2x8xf32>
    %79 = arith.select %78, %38, %75 : vector<2x8xi1>, vector<2x8xf32>
    %80 = arith.select %78, %56, %76 : vector<2x8xi1>, vector<2x8xf32>
    %81 = arith.mulf %79, %60 : vector<2x8xf32>
    %82 = arith.addf %81, %80 : vector<2x8xf32>
    %cst_20 = arith.constant 0.166666672 : f32
    %83 = vector.broadcast %cst_20 : f32 to vector<2x8xf32>
    %84 = arith.cmpf oge, %82, %83 : vector<2x8xf32>
    %85 = arith.select %84, %26, %23 : vector<2x8xi1>, vector<2x8xf32>
    %86 = arith.select %84, %44, %41 : vector<2x8xi1>, vector<2x8xf32>
    %cst_21 = arith.constant 0.333333343 : f32
    %87 = vector.broadcast %cst_21 : f32 to vector<2x8xf32>
    %88 = arith.cmpf oge, %82, %87 : vector<2x8xf32>
    %89 = arith.select %88, %29, %85 : vector<2x8xi1>, vector<2x8xf32>
    %90 = arith.select %88, %47, %86 : vector<2x8xi1>, vector<2x8xf32>
    %cst_22 = arith.constant 5.000000e-01 : f32
    %91 = vector.broadcast %cst_22 : f32 to vector<2x8xf32>
    %92 = arith.cmpf oge, %82, %91 : vector<2x8xf32>
    %93 = arith.select %92, %32, %89 : vector<2x8xi1>, vector<2x8xf32>
    %94 = arith.select %92, %50, %90 : vector<2x8xi1>, vector<2x8xf32>
    %cst_23 = arith.constant 0.666666686 : f32
    %95 = vector.broadcast %cst_23 : f32 to vector<2x8xf32>
    %96 = arith.cmpf oge, %82, %95 : vector<2x8xf32>
    %97 = arith.select %96, %35, %93 : vector<2x8xi1>, vector<2x8xf32>
    %98 = arith.select %96, %53, %94 : vector<2x8xi1>, vector<2x8xf32>
    %cst_24 = arith.constant 0.833333313 : f32
    %99 = vector.broadcast %cst_24 : f32 to vector<2x8xf32>
    %100 = arith.cmpf oge, %82, %99 : vector<2x8xf32>
    %101 = arith.select %100, %38, %97 : vector<2x8xi1>, vector<2x8xf32>
    %102 = arith.select %100, %56, %98 : vector<2x8xi1>, vector<2x8xf32>
    %103 = arith.mulf %101, %82 : vector<2x8xf32>
    %104 = arith.addf %103, %102 : vector<2x8xf32>
    %cst_25 = arith.constant 0.166666672 : f32
    %105 = vector.broadcast %cst_25 : f32 to vector<2x8xf32>
    %106 = arith.cmpf oge, %104, %105 : vector<2x8xf32>
    %107 = arith.select %106, %26, %23 : vector<2x8xi1>, vector<2x8xf32>
    %108 = arith.select %106, %44, %41 : vector<2x8xi1>, vector<2x8xf32>
    %cst_26 = arith.constant 0.333333343 : f32
    %109 = vector.broadcast %cst_26 : f32 to vector<2x8xf32>
    %110 = arith.cmpf oge, %104, %109 : vector<2x8xf32>
    %111 = arith.select %110, %29, %107 : vector<2x8xi1>, vector<2x8xf32>
    %112 = arith.select %110, %47, %108 : vector<2x8xi1>, vector<2x8xf32>
    %cst_27 = arith.constant 5.000000e-01 : f32
    %113 = vector.broadcast %cst_27 : f32 to vector<2x8xf32>
    %114 = arith.cmpf oge, %104, %113 : vector<2x8xf32>
    %115 = arith.select %114, %32, %111 : vector<2x8xi1>, vector<2x8xf32>
    %116 = arith.select %114, %50, %112 : vector<2x8xi1>, vector<2x8xf32>
    %cst_28 = arith.constant 0.666666686 : f32
    %117 = vector.broadcast %cst_28 : f32 to vector<2x8xf32>
    %118 = arith.cmpf oge, %104, %117 : vector<2x8xf32>
    %119 = arith.select %118, %35, %115 : vector<2x8xi1>, vector<2x8xf32>
    %120 = arith.select %118, %53, %116 : vector<2x8xi1>, vector<2x8xf32>
    %cst_29 = arith.constant 0.833333313 : f32
    %121 = vector.broadcast %cst_29 : f32 to vector<2x8xf32>
    %122 = arith.cmpf oge, %104, %121 : vector<2x8xf32>
    %123 = arith.select %122, %38, %119 : vector<2x8xi1>, vector<2x8xf32>
    %124 = arith.select %122, %56, %120 : vector<2x8xi1>, vector<2x8xf32>
    %125 = arith.mulf %123, %104 : vector<2x8xf32>
    %126 = arith.addf %125, %124 : vector<2x8xf32>
    %cst_30 = arith.constant 0.166666672 : f32
    %127 = vector.broadcast %cst_30 : f32 to vector<2x8xf32>
    %128 = arith.cmpf oge, %126, %127 : vector<2x8xf32>
    %129 = arith.select %128, %26, %23 : vector<2x8xi1>, vector<2x8xf32>
    %130 = arith.select %128, %44, %41 : vector<2x8xi1>, vector<2x8xf32>
    %cst_31 = arith.constant 0.333333343 : f32
    %131 = vector.broadcast %cst_31 : f32 to vector<2x8xf32>
    %132 = arith.cmpf oge, %126, %131 : vector<2x8xf32>
    %133 = arith.select %132, %29, %129 : vector<2x8xi1>, vector<2x8xf32>
    %134 = arith.select %132, %47, %130 : vector<2x8xi1>, vector<2x8xf32>
    %cst_32 = arith.constant 5.000000e-01 : f32
    %135 = vector.broadcast %cst_32 : f32 to vector<2x8xf32>
    %136 = arith.cmpf oge, %126, %135 : vector<2x8xf32>
    %137 = arith.select %136, %32, %133 : vector<2x8xi1>, vector<2x8xf32>
    %138 = arith.select %136, %50, %134 : vector<2x8xi1>, vector<2x8xf32>
    %cst_33 = arith.constant 0.666666686 : f32
    %139 = vector.broadcast %cst_33 : f32 to vector<2x8xf32>
    %140 = arith.cmpf oge, %126, %139 : vector<2x8xf32>
    %141 = arith.select %140, %35, %137 : vector<2x8xi1>, vector<2x8xf32>
    %142 = arith.select %140, %53, %138 : vector<2x8xi1>, vector<2x8xf32>
    %cst_34 = arith.constant 0.833333313 : f32
    %143 = vector.broadcast %cst_34 : f32 to vector<2x8xf32>
    %144 = arith.cmpf oge, %126, %143 : vector<2x8xf32>
    %145 = arith.select %144, %38, %141 : vector<2x8xi1>, vector<2x8xf32>
    %146 = arith.select %144, %56, %142 : vector<2x8xi1>, vector<2x8xf32>
    %147 = arith.mulf %145, %126 : vector<2x8xf32>
    %148 = arith.addf %147, %146 : vector<2x8xf32>
    %cst_35 = arith.constant 0.166666672 : f32
    %149 = vector.broadcast %cst_35 : f32 to vector<2x8xf32>
    %150 = arith.cmpf oge, %148, %149 : vector<2x8xf32>
    %151 = arith.select %150, %26, %23 : vector<2x8xi1>, vector<2x8xf32>
    %152 = arith.select %150, %44, %41 : vector<2x8xi1>, vector<2x8xf32>
    %cst_36 = arith.constant 0.333333343 : f32
    %153 = vector.broadcast %cst_36 : f32 to vector<2x8xf32>
    %154 = arith.cmpf oge, %148, %153 : vector<2x8xf32>
    %155 = arith.select %154, %29, %151 : vector<2x8xi1>, vector<2x8xf32>
    %156 = arith.select %154, %47, %152 : vector<2x8xi1>, vector<2x8xf32>
    %cst_37 = arith.constant 5.000000e-01 : f32
    %157 = vector.broadcast %cst_37 : f32 to vector<2x8xf32>
    %158 = arith.cmpf oge, %148, %157 : vector<2x8xf32>
    %159 = arith.select %158, %32, %155 : vector<2x8xi1>, vector<2x8xf32>
    %160 = arith.select %158, %50, %156 : vector<2x8xi1>, vector<2x8xf32>
    %cst_38 = arith.constant 0.666666686 : f32
    %161 = vector.broadcast %cst_38 : f32 to vector<2x8xf32>
    %162 = arith.cmpf oge, %148, %161 : vector<2x8xf32>
    %163 = arith.select %162, %35, %159 : vector<2x8xi1>, vector<2x8xf32>
    %164 = arith.select %162, %53, %160 : vector<2x8xi1>, vector<2x8xf32>
    %cst_39 = arith.constant 0.833333313 : f32
    %165 = vector.broadcast %cst_39 : f32 to vector<2x8xf32>
    %166 = arith.cmpf oge, %148, %165 : vector<2x8xf32>
    %167 = arith.select %166, %38, %163 : vector<2x8xi1>, vector<2x8xf32>
    %168 = arith.select %166, %56, %164 : vector<2x8xi1>, vector<2x8xf32>
    %169 = arith.mulf %167, %148 : vector<2x8xf32>
    %170 = arith.addf %169, %168 : vector<2x8xf32>
    %cst_40 = arith.constant 0.166666672 : f32
    %171 = vector.broadcast %cst_40 : f32 to vector<2x8xf32>
    %172 = arith.cmpf oge, %170, %171 : vector<2x8xf32>
    %173 = arith.select %172, %26, %23 : vector<2x8xi1>, vector<2x8xf32>
    %174 = arith.select %172, %44, %41 : vector<2x8xi1>, vector<2x8xf32>
    %cst_41 = arith.constant 0.333333343 : f32
    %175 = vector.broadcast %cst_41 : f32 to vector<2x8xf32>
    %176 = arith.cmpf oge, %170, %175 : vector<2x8xf32>
    %177 = arith.select %176, %29, %173 : vector<2x8xi1>, vector<2x8xf32>
    %178 = arith.select %176, %47, %174 : vector<2x8xi1>, vector<2x8xf32>
    %cst_42 = arith.constant 5.000000e-01 : f32
    %179 = vector.broadcast %cst_42 : f32 to vector<2x8xf32>
    %180 = arith.cmpf oge, %170, %179 : vector<2x8xf32>
    %181 = arith.select %180, %32, %177 : vector<2x8xi1>, vector<2x8xf32>
    %182 = arith.select %180, %50, %178 : vector<2x8xi1>, vector<2x8xf32>
    %cst_43 = arith.constant 0.666666686 : f32
    %183 = vector.broadcast %cst_43 : f32 to vector<2x8xf32>
    %184 = arith.cmpf oge, %170, %183 : vector<2x8xf32>
    %185 = arith.select %184, %35, %181 : vector<2x8xi1>, vector<2x8xf32>
    %186 = arith.select %184, %53, %182 : vector<2x8xi1>, vector<2x8xf32>
    %cst_44 = arith.constant 0.833333313 : f32
    %187 = vector.broadcast %cst_44 : f32 to vector<2x8xf32>
    %188 = arith.cmpf oge, %170, %187 : vector<2x8xf32>
    %189 = arith.select %188, %38, %185 : vector<2x8xi1>, vector<2x8xf32>
    %190 = arith.select %188, %56, %186 : vector<2x8xi1>, vector<2x8xf32>
    %191 = arith.mulf %189, %170 : vector<2x8xf32>
    %192 = arith.addf %191, %190 : vector<2x8xf32>
    %cst_45 = arith.constant 0.166666672 : f32
    %193 = vector.broadcast %cst_45 : f32 to vector<2x8xf32>
    %194 = arith.cmpf oge, %192, %193 : vector<2x8xf32>
    %195 = arith.select %194, %26, %23 : vector<2x8xi1>, vector<2x8xf32>
    %196 = arith.select %194, %44, %41 : vector<2x8xi1>, vector<2x8xf32>
    %cst_46 = arith.constant 0.333333343 : f32
    %197 = vector.broadcast %cst_46 : f32 to vector<2x8xf32>
    %198 = arith.cmpf oge, %192, %197 : vector<2x8xf32>
    %199 = arith.select %198, %29, %195 : vector<2x8xi1>, vector<2x8xf32>
    %200 = arith.select %198, %47, %196 : vector<2x8xi1>, vector<2x8xf32>
    %cst_47 = arith.constant 5.000000e-01 : f32
    %201 = vector.broadcast %cst_47 : f32 to vector<2x8xf32>
    %202 = arith.cmpf oge, %192, %201 : vector<2x8xf32>
    %203 = arith.select %202, %32, %199 : vector<2x8xi1>, vector<2x8xf32>
    %204 = arith.select %202, %50, %200 : vector<2x8xi1>, vector<2x8xf32>
    %cst_48 = arith.constant 0.666666686 : f32
    %205 = vector.broadcast %cst_48 : f32 to vector<2x8xf32>
    %206 = arith.cmpf oge, %192, %205 : vector<2x8xf32>
    %207 = arith.select %206, %35, %203 : vector<2x8xi1>, vector<2x8xf32>
    %208 = arith.select %206, %53, %204 : vector<2x8xi1>, vector<2x8xf32>
    %cst_49 = arith.constant 0.833333313 : f32
    %209 = vector.broadcast %cst_49 : f32 to vector<2x8xf32>
    %210 = arith.cmpf oge, %192, %209 : vector<2x8xf32>
    %211 = arith.select %210, %38, %207 : vector<2x8xi1>, vector<2x8xf32>
    %212 = arith.select %210, %56, %208 : vector<2x8xi1>, vector<2x8xf32>
    %213 = arith.mulf %211, %192 : vector<2x8xf32>
    %214 = arith.addf %213, %212 : vector<2x8xf32>
    %cst_50 = arith.constant 0.166666672 : f32
    %215 = vector.broadcast %cst_50 : f32 to vector<2x8xf32>
    %216 = arith.cmpf oge, %214, %215 : vector<2x8xf32>
    %217 = arith.select %216, %26, %23 : vector<2x8xi1>, vector<2x8xf32>
    %218 = arith.select %216, %44, %41 : vector<2x8xi1>, vector<2x8xf32>
    %cst_51 = arith.constant 0.333333343 : f32
    %219 = vector.broadcast %cst_51 : f32 to vector<2x8xf32>
    %220 = arith.cmpf oge, %214, %219 : vector<2x8xf32>
    %221 = arith.select %220, %29, %217 : vector<2x8xi1>, vector<2x8xf32>
    %222 = arith.select %220, %47, %218 : vector<2x8xi1>, vector<2x8xf32>
    %cst_52 = arith.constant 5.000000e-01 : f32
    %223 = vector.broadcast %cst_52 : f32 to vector<2x8xf32>
    %224 = arith.cmpf oge, %214, %223 : vector<2x8xf32>
    %225 = arith.select %224, %32, %221 : vector<2x8xi1>, vector<2x8xf32>
    %226 = arith.select %224, %50, %222 : vector<2x8xi1>, vector<2x8xf32>
    %cst_53 = arith.constant 0.666666686 : f32
    %227 = vector.broadcast %cst_53 : f32 to vector<2x8xf32>
    %228 = arith.cmpf oge, %214, %227 : vector<2x8xf32>
    %229 = arith.select %228, %35, %225 : vector<2x8xi1>, vector<2x8xf32>
    %230 = arith.select %228, %53, %226 : vector<2x8xi1>, vector<2x8xf32>
    %cst_54 = arith.constant 0.833333313 : f32
    %231 = vector.broadcast %cst_54 : f32 to vector<2x8xf32>
    %232 = arith.cmpf oge, %214, %231 : vector<2x8xf32>
    %233 = arith.select %232, %38, %229 : vector<2x8xi1>, vector<2x8xf32>
    %234 = arith.select %232, %56, %230 : vector<2x8xi1>, vector<2x8xf32>
    %235 = arith.mulf %233, %214 : vector<2x8xf32>
    %236 = arith.addf %235, %234 : vector<2x8xf32>
    %cst_55 = arith.constant 0.166666672 : f32
    %237 = vector.broadcast %cst_55 : f32 to vector<2x8xf32>
    %238 = arith.cmpf oge, %236, %237 : vector<2x8xf32>
    %239 = arith.select %238, %26, %23 : vector<2x8xi1>, vector<2x8xf32>
    %240 = arith.select %238, %44, %41 : vector<2x8xi1>, vector<2x8xf32>
    %cst_56 = arith.constant 0.333333343 : f32
    %241 = vector.broadcast %cst_56 : f32 to vector<2x8xf32>
    %242 = arith.cmpf oge, %236, %241 : vector<2x8xf32>
    %243 = arith.select %242, %29, %239 : vector<2x8xi1>, vector<2x8xf32>
    %244 = arith.select %242, %47, %240 : vector<2x8xi1>, vector<2x8xf32>
    %cst_57 = arith.constant 5.000000e-01 : f32
    %245 = vector.broadcast %cst_57 : f32 to vector<2x8xf32>
    %246 = arith.cmpf oge, %236, %245 : vector<2x8xf32>
    %247 = arith.select %246, %32, %243 : vector<2x8xi1>, vector<2x8xf32>
    %248 = arith.select %246, %50, %244 : vector<2x8xi1>, vector<2x8xf32>
    %cst_58 = arith.constant 0.666666686 : f32
    %249 = vector.broadcast %cst_58 : f32 to vector<2x8xf32>
    %250 = arith.cmpf oge, %236, %249 : vector<2x8xf32>
    %251 = arith.select %250, %35, %247 : vector<2x8xi1>, vector<2x8xf32>
    %252 = arith.select %250, %53, %248 : vector<2x8xi1>, vector<2x8xf32>
    %cst_59 = arith.constant 0.833333313 : f32
    %253 = vector.broadcast %cst_59 : f32 to vector<2x8xf32>
    %254 = arith.cmpf oge, %236, %253 : vector<2x8xf32>
    %255 = arith.select %254, %38, %251 : vector<2x8xi1>, vector<2x8xf32>
    %256 = arith.select %254, %56, %252 : vector<2x8xi1>, vector<2x8xf32>
    %257 = arith.mulf %255, %236 : vector<2x8xf32>
    %258 = arith.addf %257, %256 : vector<2x8xf32>
    %cst_60 = arith.constant 0.166666672 : f32
    %259 = vector.broadcast %cst_60 : f32 to vector<2x8xf32>
    %260 = arith.cmpf oge, %258, %259 : vector<2x8xf32>
    %261 = arith.select %260, %26, %23 : vector<2x8xi1>, vector<2x8xf32>
    %262 = arith.select %260, %44, %41 : vector<2x8xi1>, vector<2x8xf32>
    %cst_61 = arith.constant 0.333333343 : f32
    %263 = vector.broadcast %cst_61 : f32 to vector<2x8xf32>
    %264 = arith.cmpf oge, %258, %263 : vector<2x8xf32>
    %265 = arith.select %264, %29, %261 : vector<2x8xi1>, vector<2x8xf32>
    %266 = arith.select %264, %47, %262 : vector<2x8xi1>, vector<2x8xf32>
    %cst_62 = arith.constant 5.000000e-01 : f32
    %267 = vector.broadcast %cst_62 : f32 to vector<2x8xf32>
    %268 = arith.cmpf oge, %258, %267 : vector<2x8xf32>
    %269 = arith.select %268, %32, %265 : vector<2x8xi1>, vector<2x8xf32>
    %270 = arith.select %268, %50, %266 : vector<2x8xi1>, vector<2x8xf32>
    %cst_63 = arith.constant 0.666666686 : f32
    %271 = vector.broadcast %cst_63 : f32 to vector<2x8xf32>
    %272 = arith.cmpf oge, %258, %271 : vector<2x8xf32>
    %273 = arith.select %272, %35, %269 : vector<2x8xi1>, vector<2x8xf32>
    %274 = arith.select %272, %53, %270 : vector<2x8xi1>, vector<2x8xf32>
    %cst_64 = arith.constant 0.833333313 : f32
    %275 = vector.broadcast %cst_64 : f32 to vector<2x8xf32>
    %276 = arith.cmpf oge, %258, %275 : vector<2x8xf32>
    %277 = arith.select %276, %38, %273 : vector<2x8xi1>, vector<2x8xf32>
    %278 = arith.select %276, %56, %274 : vector<2x8xi1>, vector<2x8xf32>
    %279 = arith.mulf %277, %258 : vector<2x8xf32>
    %280 = arith.addf %279, %278 : vector<2x8xf32>
    %cst_65 = arith.constant 0.166666672 : f32
    %281 = vector.broadcast %cst_65 : f32 to vector<2x8xf32>
    %282 = arith.cmpf oge, %280, %281 : vector<2x8xf32>
    %283 = arith.select %282, %26, %23 : vector<2x8xi1>, vector<2x8xf32>
    %284 = arith.select %282, %44, %41 : vector<2x8xi1>, vector<2x8xf32>
    %cst_66 = arith.constant 0.333333343 : f32
    %285 = vector.broadcast %cst_66 : f32 to vector<2x8xf32>
    %286 = arith.cmpf oge, %280, %285 : vector<2x8xf32>
    %287 = arith.select %286, %29, %283 : vector<2x8xi1>, vector<2x8xf32>
    %288 = arith.select %286, %47, %284 : vector<2x8xi1>, vector<2x8xf32>
    %cst_67 = arith.constant 5.000000e-01 : f32
    %289 = vector.broadcast %cst_67 : f32 to vector<2x8xf32>
    %290 = arith.cmpf oge, %280, %289 : vector<2x8xf32>
    %291 = arith.select %290, %32, %287 : vector<2x8xi1>, vector<2x8xf32>
    %292 = arith.select %290, %50, %288 : vector<2x8xi1>, vector<2x8xf32>
    %cst_68 = arith.constant 0.666666686 : f32
    %293 = vector.broadcast %cst_68 : f32 to vector<2x8xf32>
    %294 = arith.cmpf oge, %280, %293 : vector<2x8xf32>
    %295 = arith.select %294, %35, %291 : vector<2x8xi1>, vector<2x8xf32>
    %296 = arith.select %294, %53, %292 : vector<2x8xi1>, vector<2x8xf32>
    %cst_69 = arith.constant 0.833333313 : f32
    %297 = vector.broadcast %cst_69 : f32 to vector<2x8xf32>
    %298 = arith.cmpf oge, %280, %297 : vector<2x8xf32>
    %299 = arith.select %298, %38, %295 : vector<2x8xi1>, vector<2x8xf32>
    %300 = arith.select %298, %56, %296 : vector<2x8xi1>, vector<2x8xf32>
    %301 = arith.mulf %299, %280 : vector<2x8xf32>
    %302 = arith.addf %301, %300 : vector<2x8xf32>
    %cst_70 = arith.constant 0.166666672 : f32
    %303 = vector.broadcast %cst_70 : f32 to vector<2x8xf32>
    %304 = arith.cmpf oge, %302, %303 : vector<2x8xf32>
    %305 = arith.select %304, %26, %23 : vector<2x8xi1>, vector<2x8xf32>
    %306 = arith.select %304, %44, %41 : vector<2x8xi1>, vector<2x8xf32>
    %cst_71 = arith.constant 0.333333343 : f32
    %307 = vector.broadcast %cst_71 : f32 to vector<2x8xf32>
    %308 = arith.cmpf oge, %302, %307 : vector<2x8xf32>
    %309 = arith.select %308, %29, %305 : vector<2x8xi1>, vector<2x8xf32>
    %310 = arith.select %308, %47, %306 : vector<2x8xi1>, vector<2x8xf32>
    %cst_72 = arith.constant 5.000000e-01 : f32
    %311 = vector.broadcast %cst_72 : f32 to vector<2x8xf32>
    %312 = arith.cmpf oge, %302, %311 : vector<2x8xf32>
    %313 = arith.select %312, %32, %309 : vector<2x8xi1>, vector<2x8xf32>
    %314 = arith.select %312, %50, %310 : vector<2x8xi1>, vector<2x8xf32>
    %cst_73 = arith.constant 0.666666686 : f32
    %315 = vector.broadcast %cst_73 : f32 to vector<2x8xf32>
    %316 = arith.cmpf oge, %302, %315 : vector<2x8xf32>
    %317 = arith.select %316, %35, %313 : vector<2x8xi1>, vector<2x8xf32>
    %318 = arith.select %316, %53, %314 : vector<2x8xi1>, vector<2x8xf32>
    %cst_74 = arith.constant 0.833333313 : f32
    %319 = vector.broadcast %cst_74 : f32 to vector<2x8xf32>
    %320 = arith.cmpf oge, %302, %319 : vector<2x8xf32>
    %321 = arith.select %320, %38, %317 : vector<2x8xi1>, vector<2x8xf32>
    %322 = arith.select %320, %56, %318 : vector<2x8xi1>, vector<2x8xf32>
    %323 = arith.mulf %321, %302 : vector<2x8xf32>
    %324 = arith.addf %323, %322 : vector<2x8xf32>
    %cst_75 = arith.constant 0.166666672 : f32
    %325 = vector.broadcast %cst_75 : f32 to vector<2x8xf32>
    %326 = arith.cmpf oge, %324, %325 : vector<2x8xf32>
    %327 = arith.select %326, %26, %23 : vector<2x8xi1>, vector<2x8xf32>
    %328 = arith.select %326, %44, %41 : vector<2x8xi1>, vector<2x8xf32>
    %cst_76 = arith.constant 0.333333343 : f32
    %329 = vector.broadcast %cst_76 : f32 to vector<2x8xf32>
    %330 = arith.cmpf oge, %324, %329 : vector<2x8xf32>
    %331 = arith.select %330, %29, %327 : vector<2x8xi1>, vector<2x8xf32>
    %332 = arith.select %330, %47, %328 : vector<2x8xi1>, vector<2x8xf32>
    %cst_77 = arith.constant 5.000000e-01 : f32
    %333 = vector.broadcast %cst_77 : f32 to vector<2x8xf32>
    %334 = arith.cmpf oge, %324, %333 : vector<2x8xf32>
    %335 = arith.select %334, %32, %331 : vector<2x8xi1>, vector<2x8xf32>
    %336 = arith.select %334, %50, %332 : vector<2x8xi1>, vector<2x8xf32>
    %cst_78 = arith.constant 0.666666686 : f32
    %337 = vector.broadcast %cst_78 : f32 to vector<2x8xf32>
    %338 = arith.cmpf oge, %324, %337 : vector<2x8xf32>
    %339 = arith.select %338, %35, %335 : vector<2x8xi1>, vector<2x8xf32>
    %340 = arith.select %338, %53, %336 : vector<2x8xi1>, vector<2x8xf32>
    %cst_79 = arith.constant 0.833333313 : f32
    %341 = vector.broadcast %cst_79 : f32 to vector<2x8xf32>
    %342 = arith.cmpf oge, %324, %341 : vector<2x8xf32>
    %343 = arith.select %342, %38, %339 : vector<2x8xi1>, vector<2x8xf32>
    %344 = arith.select %342, %56, %340 : vector<2x8xi1>, vector<2x8xf32>
    %345 = arith.mulf %343, %324 : vector<2x8xf32>
    %346 = arith.addf %345, %344 : vector<2x8xf32>
    %cst_80 = arith.constant 0.166666672 : f32
    %347 = vector.broadcast %cst_80 : f32 to vector<2x8xf32>
    %348 = arith.cmpf oge, %346, %347 : vector<2x8xf32>
    %349 = arith.select %348, %26, %23 : vector<2x8xi1>, vector<2x8xf32>
    %350 = arith.select %348, %44, %41 : vector<2x8xi1>, vector<2x8xf32>
    %cst_81 = arith.constant 0.333333343 : f32
    %351 = vector.broadcast %cst_81 : f32 to vector<2x8xf32>
    %352 = arith.cmpf oge, %346, %351 : vector<2x8xf32>
    %353 = arith.select %352, %29, %349 : vector<2x8xi1>, vector<2x8xf32>
    %354 = arith.select %352, %47, %350 : vector<2x8xi1>, vector<2x8xf32>
    %cst_82 = arith.constant 5.000000e-01 : f32
    %355 = vector.broadcast %cst_82 : f32 to vector<2x8xf32>
    %356 = arith.cmpf oge, %346, %355 : vector<2x8xf32>
    %357 = arith.select %356, %32, %353 : vector<2x8xi1>, vector<2x8xf32>
    %358 = arith.select %356, %50, %354 : vector<2x8xi1>, vector<2x8xf32>
    %cst_83 = arith.constant 0.666666686 : f32
    %359 = vector.broadcast %cst_83 : f32 to vector<2x8xf32>
    %360 = arith.cmpf oge, %346, %359 : vector<2x8xf32>
    %361 = arith.select %360, %35, %357 : vector<2x8xi1>, vector<2x8xf32>
    %362 = arith.select %360, %53, %358 : vector<2x8xi1>, vector<2x8xf32>
    %cst_84 = arith.constant 0.833333313 : f32
    %363 = vector.broadcast %cst_84 : f32 to vector<2x8xf32>
    %364 = arith.cmpf oge, %346, %363 : vector<2x8xf32>
    %365 = arith.select %364, %38, %361 : vector<2x8xi1>, vector<2x8xf32>
    %366 = arith.select %364, %56, %362 : vector<2x8xi1>, vector<2x8xf32>
    %367 = arith.mulf %365, %346 : vector<2x8xf32>
    %368 = arith.addf %367, %366 : vector<2x8xf32>
    %cst_85 = arith.constant 0.166666672 : f32
    %369 = vector.broadcast %cst_85 : f32 to vector<2x8xf32>
    %370 = arith.cmpf oge, %368, %369 : vector<2x8xf32>
    %371 = arith.select %370, %26, %23 : vector<2x8xi1>, vector<2x8xf32>
    %372 = arith.select %370, %44, %41 : vector<2x8xi1>, vector<2x8xf32>
    %cst_86 = arith.constant 0.333333343 : f32
    %373 = vector.broadcast %cst_86 : f32 to vector<2x8xf32>
    %374 = arith.cmpf oge, %368, %373 : vector<2x8xf32>
    %375 = arith.select %374, %29, %371 : vector<2x8xi1>, vector<2x8xf32>
    %376 = arith.select %374, %47, %372 : vector<2x8xi1>, vector<2x8xf32>
    %cst_87 = arith.constant 5.000000e-01 : f32
    %377 = vector.broadcast %cst_87 : f32 to vector<2x8xf32>
    %378 = arith.cmpf oge, %368, %377 : vector<2x8xf32>
    %379 = arith.select %378, %32, %375 : vector<2x8xi1>, vector<2x8xf32>
    %380 = arith.select %378, %50, %376 : vector<2x8xi1>, vector<2x8xf32>
    %cst_88 = arith.constant 0.666666686 : f32
    %381 = vector.broadcast %cst_88 : f32 to vector<2x8xf32>
    %382 = arith.cmpf oge, %368, %381 : vector<2x8xf32>
    %383 = arith.select %382, %35, %379 : vector<2x8xi1>, vector<2x8xf32>
    %384 = arith.select %382, %53, %380 : vector<2x8xi1>, vector<2x8xf32>
    %cst_89 = arith.constant 0.833333313 : f32
    %385 = vector.broadcast %cst_89 : f32 to vector<2x8xf32>
    %386 = arith.cmpf oge, %368, %385 : vector<2x8xf32>
    %387 = arith.select %386, %38, %383 : vector<2x8xi1>, vector<2x8xf32>
    %388 = arith.select %386, %56, %384 : vector<2x8xi1>, vector<2x8xf32>
    %389 = arith.mulf %387, %368 : vector<2x8xf32>
    %390 = arith.addf %389, %388 : vector<2x8xf32>
    %cst_90 = arith.constant 0.166666672 : f32
    %391 = vector.broadcast %cst_90 : f32 to vector<2x8xf32>
    %392 = arith.cmpf oge, %390, %391 : vector<2x8xf32>
    %393 = arith.select %392, %26, %23 : vector<2x8xi1>, vector<2x8xf32>
    %394 = arith.select %392, %44, %41 : vector<2x8xi1>, vector<2x8xf32>
    %cst_91 = arith.constant 0.333333343 : f32
    %395 = vector.broadcast %cst_91 : f32 to vector<2x8xf32>
    %396 = arith.cmpf oge, %390, %395 : vector<2x8xf32>
    %397 = arith.select %396, %29, %393 : vector<2x8xi1>, vector<2x8xf32>
    %398 = arith.select %396, %47, %394 : vector<2x8xi1>, vector<2x8xf32>
    %cst_92 = arith.constant 5.000000e-01 : f32
    %399 = vector.broadcast %cst_92 : f32 to vector<2x8xf32>
    %400 = arith.cmpf oge, %390, %399 : vector<2x8xf32>
    %401 = arith.select %400, %32, %397 : vector<2x8xi1>, vector<2x8xf32>
    %402 = arith.select %400, %50, %398 : vector<2x8xi1>, vector<2x8xf32>
    %cst_93 = arith.constant 0.666666686 : f32
    %403 = vector.broadcast %cst_93 : f32 to vector<2x8xf32>
    %404 = arith.cmpf oge, %390, %403 : vector<2x8xf32>
    %405 = arith.select %404, %35, %401 : vector<2x8xi1>, vector<2x8xf32>
    %406 = arith.select %404, %53, %402 : vector<2x8xi1>, vector<2x8xf32>
    %cst_94 = arith.constant 0.833333313 : f32
    %407 = vector.broadcast %cst_94 : f32 to vector<2x8xf32>
    %408 = arith.cmpf oge, %390, %407 : vector<2x8xf32>
    %409 = arith.select %408, %38, %405 : vector<2x8xi1>, vector<2x8xf32>
    %410 = arith.select %408, %56, %406 : vector<2x8xi1>, vector<2x8xf32>
    %411 = arith.mulf %409, %390 : vector<2x8xf32>
    %412 = arith.addf %411, %410 : vector<2x8xf32>
    %cst_95 = arith.constant 0.166666672 : f32
    %413 = vector.broadcast %cst_95 : f32 to vector<2x8xf32>
    %414 = arith.cmpf oge, %412, %413 : vector<2x8xf32>
    %415 = arith.select %414, %26, %23 : vector<2x8xi1>, vector<2x8xf32>
    %416 = arith.select %414, %44, %41 : vector<2x8xi1>, vector<2x8xf32>
    %cst_96 = arith.constant 0.333333343 : f32
    %417 = vector.broadcast %cst_96 : f32 to vector<2x8xf32>
    %418 = arith.cmpf oge, %412, %417 : vector<2x8xf32>
    %419 = arith.select %418, %29, %415 : vector<2x8xi1>, vector<2x8xf32>
    %420 = arith.select %418, %47, %416 : vector<2x8xi1>, vector<2x8xf32>
    %cst_97 = arith.constant 5.000000e-01 : f32
    %421 = vector.broadcast %cst_97 : f32 to vector<2x8xf32>
    %422 = arith.cmpf oge, %412, %421 : vector<2x8xf32>
    %423 = arith.select %422, %32, %419 : vector<2x8xi1>, vector<2x8xf32>
    %424 = arith.select %422, %50, %420 : vector<2x8xi1>, vector<2x8xf32>
    %cst_98 = arith.constant 0.666666686 : f32
    %425 = vector.broadcast %cst_98 : f32 to vector<2x8xf32>
    %426 = arith.cmpf oge, %412, %425 : vector<2x8xf32>
    %427 = arith.select %426, %35, %423 : vector<2x8xi1>, vector<2x8xf32>
    %428 = arith.select %426, %53, %424 : vector<2x8xi1>, vector<2x8xf32>
    %cst_99 = arith.constant 0.833333313 : f32
    %429 = vector.broadcast %cst_99 : f32 to vector<2x8xf32>
    %430 = arith.cmpf oge, %412, %429 : vector<2x8xf32>
    %431 = arith.select %430, %38, %427 : vector<2x8xi1>, vector<2x8xf32>
    %432 = arith.select %430, %56, %428 : vector<2x8xi1>, vector<2x8xf32>
    %433 = arith.mulf %431, %412 : vector<2x8xf32>
    %434 = arith.addf %433, %432 : vector<2x8xf32>
    %cst_100 = arith.constant 0.166666672 : f32
    %435 = vector.broadcast %cst_100 : f32 to vector<2x8xf32>
    %436 = arith.cmpf oge, %434, %435 : vector<2x8xf32>
    %437 = arith.select %436, %26, %23 : vector<2x8xi1>, vector<2x8xf32>
    %438 = arith.select %436, %44, %41 : vector<2x8xi1>, vector<2x8xf32>
    %cst_101 = arith.constant 0.333333343 : f32
    %439 = vector.broadcast %cst_101 : f32 to vector<2x8xf32>
    %440 = arith.cmpf oge, %434, %439 : vector<2x8xf32>
    %441 = arith.select %440, %29, %437 : vector<2x8xi1>, vector<2x8xf32>
    %442 = arith.select %440, %47, %438 : vector<2x8xi1>, vector<2x8xf32>
    %cst_102 = arith.constant 5.000000e-01 : f32
    %443 = vector.broadcast %cst_102 : f32 to vector<2x8xf32>
    %444 = arith.cmpf oge, %434, %443 : vector<2x8xf32>
    %445 = arith.select %444, %32, %441 : vector<2x8xi1>, vector<2x8xf32>
    %446 = arith.select %444, %50, %442 : vector<2x8xi1>, vector<2x8xf32>
    %cst_103 = arith.constant 0.666666686 : f32
    %447 = vector.broadcast %cst_103 : f32 to vector<2x8xf32>
    %448 = arith.cmpf oge, %434, %447 : vector<2x8xf32>
    %449 = arith.select %448, %35, %445 : vector<2x8xi1>, vector<2x8xf32>
    %450 = arith.select %448, %53, %446 : vector<2x8xi1>, vector<2x8xf32>
    %cst_104 = arith.constant 0.833333313 : f32
    %451 = vector.broadcast %cst_104 : f32 to vector<2x8xf32>
    %452 = arith.cmpf oge, %434, %451 : vector<2x8xf32>
    %453 = arith.select %452, %38, %449 : vector<2x8xi1>, vector<2x8xf32>
    %454 = arith.select %452, %56, %450 : vector<2x8xi1>, vector<2x8xf32>
    %455 = arith.mulf %453, %434 : vector<2x8xf32>
    %456 = arith.addf %455, %454 : vector<2x8xf32>
    %cst_105 = arith.constant 0.166666672 : f32
    %457 = vector.broadcast %cst_105 : f32 to vector<2x8xf32>
    %458 = arith.cmpf oge, %456, %457 : vector<2x8xf32>
    %459 = arith.select %458, %26, %23 : vector<2x8xi1>, vector<2x8xf32>
    %460 = arith.select %458, %44, %41 : vector<2x8xi1>, vector<2x8xf32>
    %cst_106 = arith.constant 0.333333343 : f32
    %461 = vector.broadcast %cst_106 : f32 to vector<2x8xf32>
    %462 = arith.cmpf oge, %456, %461 : vector<2x8xf32>
    %463 = arith.select %462, %29, %459 : vector<2x8xi1>, vector<2x8xf32>
    %464 = arith.select %462, %47, %460 : vector<2x8xi1>, vector<2x8xf32>
    %cst_107 = arith.constant 5.000000e-01 : f32
    %465 = vector.broadcast %cst_107 : f32 to vector<2x8xf32>
    %466 = arith.cmpf oge, %456, %465 : vector<2x8xf32>
    %467 = arith.select %466, %32, %463 : vector<2x8xi1>, vector<2x8xf32>
    %468 = arith.select %466, %50, %464 : vector<2x8xi1>, vector<2x8xf32>
    %cst_108 = arith.constant 0.666666686 : f32
    %469 = vector.broadcast %cst_108 : f32 to vector<2x8xf32>
    %470 = arith.cmpf oge, %456, %469 : vector<2x8xf32>
    %471 = arith.select %470, %35, %467 : vector<2x8xi1>, vector<2x8xf32>
    %472 = arith.select %470, %53, %468 : vector<2x8xi1>, vector<2x8xf32>
    %cst_109 = arith.constant 0.833333313 : f32
    %473 = vector.broadcast %cst_109 : f32 to vector<2x8xf32>
    %474 = arith.cmpf oge, %456, %473 : vector<2x8xf32>
    %475 = arith.select %474, %38, %471 : vector<2x8xi1>, vector<2x8xf32>
    %476 = arith.select %474, %56, %472 : vector<2x8xi1>, vector<2x8xf32>
    %477 = arith.mulf %475, %456 : vector<2x8xf32>
    %478 = arith.addf %477, %476 : vector<2x8xf32>
    %cst_110 = arith.constant 0.166666672 : f32
    %479 = vector.broadcast %cst_110 : f32 to vector<2x8xf32>
    %480 = arith.cmpf oge, %478, %479 : vector<2x8xf32>
    %481 = arith.select %480, %26, %23 : vector<2x8xi1>, vector<2x8xf32>
    %482 = arith.select %480, %44, %41 : vector<2x8xi1>, vector<2x8xf32>
    %cst_111 = arith.constant 0.333333343 : f32
    %483 = vector.broadcast %cst_111 : f32 to vector<2x8xf32>
    %484 = arith.cmpf oge, %478, %483 : vector<2x8xf32>
    %485 = arith.select %484, %29, %481 : vector<2x8xi1>, vector<2x8xf32>
    %486 = arith.select %484, %47, %482 : vector<2x8xi1>, vector<2x8xf32>
    %cst_112 = arith.constant 5.000000e-01 : f32
    %487 = vector.broadcast %cst_112 : f32 to vector<2x8xf32>
    %488 = arith.cmpf oge, %478, %487 : vector<2x8xf32>
    %489 = arith.select %488, %32, %485 : vector<2x8xi1>, vector<2x8xf32>
    %490 = arith.select %488, %50, %486 : vector<2x8xi1>, vector<2x8xf32>
    %cst_113 = arith.constant 0.666666686 : f32
    %491 = vector.broadcast %cst_113 : f32 to vector<2x8xf32>
    %492 = arith.cmpf oge, %478, %491 : vector<2x8xf32>
    %493 = arith.select %492, %35, %489 : vector<2x8xi1>, vector<2x8xf32>
    %494 = arith.select %492, %53, %490 : vector<2x8xi1>, vector<2x8xf32>
    %cst_114 = arith.constant 0.833333313 : f32
    %495 = vector.broadcast %cst_114 : f32 to vector<2x8xf32>
    %496 = arith.cmpf oge, %478, %495 : vector<2x8xf32>
    %497 = arith.select %496, %38, %493 : vector<2x8xi1>, vector<2x8xf32>
    %498 = arith.select %496, %56, %494 : vector<2x8xi1>, vector<2x8xf32>
    %499 = arith.mulf %497, %478 : vector<2x8xf32>
    %500 = arith.addf %499, %498 : vector<2x8xf32>
    %cst_115 = arith.constant 0.166666672 : f32
    %501 = vector.broadcast %cst_115 : f32 to vector<2x8xf32>
    %502 = arith.cmpf oge, %500, %501 : vector<2x8xf32>
    %503 = arith.select %502, %26, %23 : vector<2x8xi1>, vector<2x8xf32>
    %504 = arith.select %502, %44, %41 : vector<2x8xi1>, vector<2x8xf32>
    %cst_116 = arith.constant 0.333333343 : f32
    %505 = vector.broadcast %cst_116 : f32 to vector<2x8xf32>
    %506 = arith.cmpf oge, %500, %505 : vector<2x8xf32>
    %507 = arith.select %506, %29, %503 : vector<2x8xi1>, vector<2x8xf32>
    %508 = arith.select %506, %47, %504 : vector<2x8xi1>, vector<2x8xf32>
    %cst_117 = arith.constant 5.000000e-01 : f32
    %509 = vector.broadcast %cst_117 : f32 to vector<2x8xf32>
    %510 = arith.cmpf oge, %500, %509 : vector<2x8xf32>
    %511 = arith.select %510, %32, %507 : vector<2x8xi1>, vector<2x8xf32>
    %512 = arith.select %510, %50, %508 : vector<2x8xi1>, vector<2x8xf32>
    %cst_118 = arith.constant 0.666666686 : f32
    %513 = vector.broadcast %cst_118 : f32 to vector<2x8xf32>
    %514 = arith.cmpf oge, %500, %513 : vector<2x8xf32>
    %515 = arith.select %514, %35, %511 : vector<2x8xi1>, vector<2x8xf32>
    %516 = arith.select %514, %53, %512 : vector<2x8xi1>, vector<2x8xf32>
    %cst_119 = arith.constant 0.833333313 : f32
    %517 = vector.broadcast %cst_119 : f32 to vector<2x8xf32>
    %518 = arith.cmpf oge, %500, %517 : vector<2x8xf32>
    %519 = arith.select %518, %38, %515 : vector<2x8xi1>, vector<2x8xf32>
    %520 = arith.select %518, %56, %516 : vector<2x8xi1>, vector<2x8xf32>
    %521 = arith.mulf %519, %500 : vector<2x8xf32>
    %522 = arith.addf %521, %520 : vector<2x8xf32>
    %cst_120 = arith.constant 0.166666672 : f32
    %523 = vector.broadcast %cst_120 : f32 to vector<2x8xf32>
    %524 = arith.cmpf oge, %522, %523 : vector<2x8xf32>
    %525 = arith.select %524, %26, %23 : vector<2x8xi1>, vector<2x8xf32>
    %526 = arith.select %524, %44, %41 : vector<2x8xi1>, vector<2x8xf32>
    %cst_121 = arith.constant 0.333333343 : f32
    %527 = vector.broadcast %cst_121 : f32 to vector<2x8xf32>
    %528 = arith.cmpf oge, %522, %527 : vector<2x8xf32>
    %529 = arith.select %528, %29, %525 : vector<2x8xi1>, vector<2x8xf32>
    %530 = arith.select %528, %47, %526 : vector<2x8xi1>, vector<2x8xf32>
    %cst_122 = arith.constant 5.000000e-01 : f32
    %531 = vector.broadcast %cst_122 : f32 to vector<2x8xf32>
    %532 = arith.cmpf oge, %522, %531 : vector<2x8xf32>
    %533 = arith.select %532, %32, %529 : vector<2x8xi1>, vector<2x8xf32>
    %534 = arith.select %532, %50, %530 : vector<2x8xi1>, vector<2x8xf32>
    %cst_123 = arith.constant 0.666666686 : f32
    %535 = vector.broadcast %cst_123 : f32 to vector<2x8xf32>
    %536 = arith.cmpf oge, %522, %535 : vector<2x8xf32>
    %537 = arith.select %536, %35, %533 : vector<2x8xi1>, vector<2x8xf32>
    %538 = arith.select %536, %53, %534 : vector<2x8xi1>, vector<2x8xf32>
    %cst_124 = arith.constant 0.833333313 : f32
    %539 = vector.broadcast %cst_124 : f32 to vector<2x8xf32>
    %540 = arith.cmpf oge, %522, %539 : vector<2x8xf32>
    %541 = arith.select %540, %38, %537 : vector<2x8xi1>, vector<2x8xf32>
    %542 = arith.select %540, %56, %538 : vector<2x8xi1>, vector<2x8xf32>
    %543 = arith.mulf %541, %522 : vector<2x8xf32>
    %544 = arith.addf %543, %542 : vector<2x8xf32>
    %cst_125 = arith.constant 0.166666672 : f32
    %545 = vector.broadcast %cst_125 : f32 to vector<2x8xf32>
    %546 = arith.cmpf oge, %544, %545 : vector<2x8xf32>
    %547 = arith.select %546, %26, %23 : vector<2x8xi1>, vector<2x8xf32>
    %548 = arith.select %546, %44, %41 : vector<2x8xi1>, vector<2x8xf32>
    %cst_126 = arith.constant 0.333333343 : f32
    %549 = vector.broadcast %cst_126 : f32 to vector<2x8xf32>
    %550 = arith.cmpf oge, %544, %549 : vector<2x8xf32>
    %551 = arith.select %550, %29, %547 : vector<2x8xi1>, vector<2x8xf32>
    %552 = arith.select %550, %47, %548 : vector<2x8xi1>, vector<2x8xf32>
    %cst_127 = arith.constant 5.000000e-01 : f32
    %553 = vector.broadcast %cst_127 : f32 to vector<2x8xf32>
    %554 = arith.cmpf oge, %544, %553 : vector<2x8xf32>
    %555 = arith.select %554, %32, %551 : vector<2x8xi1>, vector<2x8xf32>
    %556 = arith.select %554, %50, %552 : vector<2x8xi1>, vector<2x8xf32>
    %cst_128 = arith.constant 0.666666686 : f32
    %557 = vector.broadcast %cst_128 : f32 to vector<2x8xf32>
    %558 = arith.cmpf oge, %544, %557 : vector<2x8xf32>
    %559 = arith.select %558, %35, %555 : vector<2x8xi1>, vector<2x8xf32>
    %560 = arith.select %558, %53, %556 : vector<2x8xi1>, vector<2x8xf32>
    %cst_129 = arith.constant 0.833333313 : f32
    %561 = vector.broadcast %cst_129 : f32 to vector<2x8xf32>
    %562 = arith.cmpf oge, %544, %561 : vector<2x8xf32>
    %563 = arith.select %562, %38, %559 : vector<2x8xi1>, vector<2x8xf32>
    %564 = arith.select %562, %56, %560 : vector<2x8xi1>, vector<2x8xf32>
    %565 = arith.mulf %563, %544 : vector<2x8xf32>
    %566 = arith.addf %565, %564 : vector<2x8xf32>
    %cst_130 = arith.constant 0.166666672 : f32
    %567 = vector.broadcast %cst_130 : f32 to vector<2x8xf32>
    %568 = arith.cmpf oge, %566, %567 : vector<2x8xf32>
    %569 = arith.select %568, %26, %23 : vector<2x8xi1>, vector<2x8xf32>
    %570 = arith.select %568, %44, %41 : vector<2x8xi1>, vector<2x8xf32>
    %cst_131 = arith.constant 0.333333343 : f32
    %571 = vector.broadcast %cst_131 : f32 to vector<2x8xf32>
    %572 = arith.cmpf oge, %566, %571 : vector<2x8xf32>
    %573 = arith.select %572, %29, %569 : vector<2x8xi1>, vector<2x8xf32>
    %574 = arith.select %572, %47, %570 : vector<2x8xi1>, vector<2x8xf32>
    %cst_132 = arith.constant 5.000000e-01 : f32
    %575 = vector.broadcast %cst_132 : f32 to vector<2x8xf32>
    %576 = arith.cmpf oge, %566, %575 : vector<2x8xf32>
    %577 = arith.select %576, %32, %573 : vector<2x8xi1>, vector<2x8xf32>
    %578 = arith.select %576, %50, %574 : vector<2x8xi1>, vector<2x8xf32>
    %cst_133 = arith.constant 0.666666686 : f32
    %579 = vector.broadcast %cst_133 : f32 to vector<2x8xf32>
    %580 = arith.cmpf oge, %566, %579 : vector<2x8xf32>
    %581 = arith.select %580, %35, %577 : vector<2x8xi1>, vector<2x8xf32>
    %582 = arith.select %580, %53, %578 : vector<2x8xi1>, vector<2x8xf32>
    %cst_134 = arith.constant 0.833333313 : f32
    %583 = vector.broadcast %cst_134 : f32 to vector<2x8xf32>
    %584 = arith.cmpf oge, %566, %583 : vector<2x8xf32>
    %585 = arith.select %584, %38, %581 : vector<2x8xi1>, vector<2x8xf32>
    %586 = arith.select %584, %56, %582 : vector<2x8xi1>, vector<2x8xf32>
    %587 = arith.mulf %585, %566 : vector<2x8xf32>
    %588 = arith.addf %587, %586 : vector<2x8xf32>
    %cst_135 = arith.constant 0.166666672 : f32
    %589 = vector.broadcast %cst_135 : f32 to vector<2x8xf32>
    %590 = arith.cmpf oge, %588, %589 : vector<2x8xf32>
    %591 = arith.select %590, %26, %23 : vector<2x8xi1>, vector<2x8xf32>
    %592 = arith.select %590, %44, %41 : vector<2x8xi1>, vector<2x8xf32>
    %cst_136 = arith.constant 0.333333343 : f32
    %593 = vector.broadcast %cst_136 : f32 to vector<2x8xf32>
    %594 = arith.cmpf oge, %588, %593 : vector<2x8xf32>
    %595 = arith.select %594, %29, %591 : vector<2x8xi1>, vector<2x8xf32>
    %596 = arith.select %594, %47, %592 : vector<2x8xi1>, vector<2x8xf32>
    %cst_137 = arith.constant 5.000000e-01 : f32
    %597 = vector.broadcast %cst_137 : f32 to vector<2x8xf32>
    %598 = arith.cmpf oge, %588, %597 : vector<2x8xf32>
    %599 = arith.select %598, %32, %595 : vector<2x8xi1>, vector<2x8xf32>
    %600 = arith.select %598, %50, %596 : vector<2x8xi1>, vector<2x8xf32>
    %cst_138 = arith.constant 0.666666686 : f32
    %601 = vector.broadcast %cst_138 : f32 to vector<2x8xf32>
    %602 = arith.cmpf oge, %588, %601 : vector<2x8xf32>
    %603 = arith.select %602, %35, %599 : vector<2x8xi1>, vector<2x8xf32>
    %604 = arith.select %602, %53, %600 : vector<2x8xi1>, vector<2x8xf32>
    %cst_139 = arith.constant 0.833333313 : f32
    %605 = vector.broadcast %cst_139 : f32 to vector<2x8xf32>
    %606 = arith.cmpf oge, %588, %605 : vector<2x8xf32>
    %607 = arith.select %606, %38, %603 : vector<2x8xi1>, vector<2x8xf32>
    %608 = arith.select %606, %56, %604 : vector<2x8xi1>, vector<2x8xf32>
    %609 = arith.mulf %607, %588 : vector<2x8xf32>
    %610 = arith.addf %609, %608 : vector<2x8xf32>
    %cst_140 = arith.constant 0.166666672 : f32
    %611 = vector.broadcast %cst_140 : f32 to vector<2x8xf32>
    %612 = arith.cmpf oge, %610, %611 : vector<2x8xf32>
    %613 = arith.select %612, %26, %23 : vector<2x8xi1>, vector<2x8xf32>
    %614 = arith.select %612, %44, %41 : vector<2x8xi1>, vector<2x8xf32>
    %cst_141 = arith.constant 0.333333343 : f32
    %615 = vector.broadcast %cst_141 : f32 to vector<2x8xf32>
    %616 = arith.cmpf oge, %610, %615 : vector<2x8xf32>
    %617 = arith.select %616, %29, %613 : vector<2x8xi1>, vector<2x8xf32>
    %618 = arith.select %616, %47, %614 : vector<2x8xi1>, vector<2x8xf32>
    %cst_142 = arith.constant 5.000000e-01 : f32
    %619 = vector.broadcast %cst_142 : f32 to vector<2x8xf32>
    %620 = arith.cmpf oge, %610, %619 : vector<2x8xf32>
    %621 = arith.select %620, %32, %617 : vector<2x8xi1>, vector<2x8xf32>
    %622 = arith.select %620, %50, %618 : vector<2x8xi1>, vector<2x8xf32>
    %cst_143 = arith.constant 0.666666686 : f32
    %623 = vector.broadcast %cst_143 : f32 to vector<2x8xf32>
    %624 = arith.cmpf oge, %610, %623 : vector<2x8xf32>
    %625 = arith.select %624, %35, %621 : vector<2x8xi1>, vector<2x8xf32>
    %626 = arith.select %624, %53, %622 : vector<2x8xi1>, vector<2x8xf32>
    %cst_144 = arith.constant 0.833333313 : f32
    %627 = vector.broadcast %cst_144 : f32 to vector<2x8xf32>
    %628 = arith.cmpf oge, %610, %627 : vector<2x8xf32>
    %629 = arith.select %628, %38, %625 : vector<2x8xi1>, vector<2x8xf32>
    %630 = arith.select %628, %56, %626 : vector<2x8xi1>, vector<2x8xf32>
    %631 = arith.mulf %629, %610 : vector<2x8xf32>
    %632 = arith.addf %631, %630 : vector<2x8xf32>
    %cst_145 = arith.constant 0.166666672 : f32
    %633 = vector.broadcast %cst_145 : f32 to vector<2x8xf32>
    %634 = arith.cmpf oge, %632, %633 : vector<2x8xf32>
    %635 = arith.select %634, %26, %23 : vector<2x8xi1>, vector<2x8xf32>
    %636 = arith.select %634, %44, %41 : vector<2x8xi1>, vector<2x8xf32>
    %cst_146 = arith.constant 0.333333343 : f32
    %637 = vector.broadcast %cst_146 : f32 to vector<2x8xf32>
    %638 = arith.cmpf oge, %632, %637 : vector<2x8xf32>
    %639 = arith.select %638, %29, %635 : vector<2x8xi1>, vector<2x8xf32>
    %640 = arith.select %638, %47, %636 : vector<2x8xi1>, vector<2x8xf32>
    %cst_147 = arith.constant 5.000000e-01 : f32
    %641 = vector.broadcast %cst_147 : f32 to vector<2x8xf32>
    %642 = arith.cmpf oge, %632, %641 : vector<2x8xf32>
    %643 = arith.select %642, %32, %639 : vector<2x8xi1>, vector<2x8xf32>
    %644 = arith.select %642, %50, %640 : vector<2x8xi1>, vector<2x8xf32>
    %cst_148 = arith.constant 0.666666686 : f32
    %645 = vector.broadcast %cst_148 : f32 to vector<2x8xf32>
    %646 = arith.cmpf oge, %632, %645 : vector<2x8xf32>
    %647 = arith.select %646, %35, %643 : vector<2x8xi1>, vector<2x8xf32>
    %648 = arith.select %646, %53, %644 : vector<2x8xi1>, vector<2x8xf32>
    %cst_149 = arith.constant 0.833333313 : f32
    %649 = vector.broadcast %cst_149 : f32 to vector<2x8xf32>
    %650 = arith.cmpf oge, %632, %649 : vector<2x8xf32>
    %651 = arith.select %650, %38, %647 : vector<2x8xi1>, vector<2x8xf32>
    %652 = arith.select %650, %56, %648 : vector<2x8xi1>, vector<2x8xf32>
    %653 = arith.mulf %651, %632 : vector<2x8xf32>
    %654 = arith.addf %653, %652 : vector<2x8xf32>
    %cst_150 = arith.constant 0.166666672 : f32
    %655 = vector.broadcast %cst_150 : f32 to vector<2x8xf32>
    %656 = arith.cmpf oge, %654, %655 : vector<2x8xf32>
    %657 = arith.select %656, %26, %23 : vector<2x8xi1>, vector<2x8xf32>
    %658 = arith.select %656, %44, %41 : vector<2x8xi1>, vector<2x8xf32>
    %cst_151 = arith.constant 0.333333343 : f32
    %659 = vector.broadcast %cst_151 : f32 to vector<2x8xf32>
    %660 = arith.cmpf oge, %654, %659 : vector<2x8xf32>
    %661 = arith.select %660, %29, %657 : vector<2x8xi1>, vector<2x8xf32>
    %662 = arith.select %660, %47, %658 : vector<2x8xi1>, vector<2x8xf32>
    %cst_152 = arith.constant 5.000000e-01 : f32
    %663 = vector.broadcast %cst_152 : f32 to vector<2x8xf32>
    %664 = arith.cmpf oge, %654, %663 : vector<2x8xf32>
    %665 = arith.select %664, %32, %661 : vector<2x8xi1>, vector<2x8xf32>
    %666 = arith.select %664, %50, %662 : vector<2x8xi1>, vector<2x8xf32>
    %cst_153 = arith.constant 0.666666686 : f32
    %667 = vector.broadcast %cst_153 : f32 to vector<2x8xf32>
    %668 = arith.cmpf oge, %654, %667 : vector<2x8xf32>
    %669 = arith.select %668, %35, %665 : vector<2x8xi1>, vector<2x8xf32>
    %670 = arith.select %668, %53, %666 : vector<2x8xi1>, vector<2x8xf32>
    %cst_154 = arith.constant 0.833333313 : f32
    %671 = vector.broadcast %cst_154 : f32 to vector<2x8xf32>
    %672 = arith.cmpf oge, %654, %671 : vector<2x8xf32>
    %673 = arith.select %672, %38, %669 : vector<2x8xi1>, vector<2x8xf32>
    %674 = arith.select %672, %56, %670 : vector<2x8xi1>, vector<2x8xf32>
    %675 = arith.mulf %673, %654 : vector<2x8xf32>
    %676 = arith.addf %675, %674 : vector<2x8xf32>
    %cst_155 = arith.constant 0.166666672 : f32
    %677 = vector.broadcast %cst_155 : f32 to vector<2x8xf32>
    %678 = arith.cmpf oge, %676, %677 : vector<2x8xf32>
    %679 = arith.select %678, %26, %23 : vector<2x8xi1>, vector<2x8xf32>
    %680 = arith.select %678, %44, %41 : vector<2x8xi1>, vector<2x8xf32>
    %cst_156 = arith.constant 0.333333343 : f32
    %681 = vector.broadcast %cst_156 : f32 to vector<2x8xf32>
    %682 = arith.cmpf oge, %676, %681 : vector<2x8xf32>
    %683 = arith.select %682, %29, %679 : vector<2x8xi1>, vector<2x8xf32>
    %684 = arith.select %682, %47, %680 : vector<2x8xi1>, vector<2x8xf32>
    %cst_157 = arith.constant 5.000000e-01 : f32
    %685 = vector.broadcast %cst_157 : f32 to vector<2x8xf32>
    %686 = arith.cmpf oge, %676, %685 : vector<2x8xf32>
    %687 = arith.select %686, %32, %683 : vector<2x8xi1>, vector<2x8xf32>
    %688 = arith.select %686, %50, %684 : vector<2x8xi1>, vector<2x8xf32>
    %cst_158 = arith.constant 0.666666686 : f32
    %689 = vector.broadcast %cst_158 : f32 to vector<2x8xf32>
    %690 = arith.cmpf oge, %676, %689 : vector<2x8xf32>
    %691 = arith.select %690, %35, %687 : vector<2x8xi1>, vector<2x8xf32>
    %692 = arith.select %690, %53, %688 : vector<2x8xi1>, vector<2x8xf32>
    %cst_159 = arith.constant 0.833333313 : f32
    %693 = vector.broadcast %cst_159 : f32 to vector<2x8xf32>
    %694 = arith.cmpf oge, %676, %693 : vector<2x8xf32>
    %695 = arith.select %694, %38, %691 : vector<2x8xi1>, vector<2x8xf32>
    %696 = arith.select %694, %56, %692 : vector<2x8xi1>, vector<2x8xf32>
    %697 = arith.mulf %695, %676 : vector<2x8xf32>
    %698 = arith.addf %697, %696 : vector<2x8xf32>
    %cst_160 = arith.constant 0.166666672 : f32
    %699 = vector.broadcast %cst_160 : f32 to vector<2x8xf32>
    %700 = arith.cmpf oge, %698, %699 : vector<2x8xf32>
    %701 = arith.select %700, %26, %23 : vector<2x8xi1>, vector<2x8xf32>
    %702 = arith.select %700, %44, %41 : vector<2x8xi1>, vector<2x8xf32>
    %cst_161 = arith.constant 0.333333343 : f32
    %703 = vector.broadcast %cst_161 : f32 to vector<2x8xf32>
    %704 = arith.cmpf oge, %698, %703 : vector<2x8xf32>
    %705 = arith.select %704, %29, %701 : vector<2x8xi1>, vector<2x8xf32>
    %706 = arith.select %704, %47, %702 : vector<2x8xi1>, vector<2x8xf32>
    %cst_162 = arith.constant 5.000000e-01 : f32
    %707 = vector.broadcast %cst_162 : f32 to vector<2x8xf32>
    %708 = arith.cmpf oge, %698, %707 : vector<2x8xf32>
    %709 = arith.select %708, %32, %705 : vector<2x8xi1>, vector<2x8xf32>
    %710 = arith.select %708, %50, %706 : vector<2x8xi1>, vector<2x8xf32>
    %cst_163 = arith.constant 0.666666686 : f32
    %711 = vector.broadcast %cst_163 : f32 to vector<2x8xf32>
    %712 = arith.cmpf oge, %698, %711 : vector<2x8xf32>
    %713 = arith.select %712, %35, %709 : vector<2x8xi1>, vector<2x8xf32>
    %714 = arith.select %712, %53, %710 : vector<2x8xi1>, vector<2x8xf32>
    %cst_164 = arith.constant 0.833333313 : f32
    %715 = vector.broadcast %cst_164 : f32 to vector<2x8xf32>
    %716 = arith.cmpf oge, %698, %715 : vector<2x8xf32>
    %717 = arith.select %716, %38, %713 : vector<2x8xi1>, vector<2x8xf32>
    %718 = arith.select %716, %56, %714 : vector<2x8xi1>, vector<2x8xf32>
    %719 = arith.mulf %717, %698 : vector<2x8xf32>
    %720 = arith.addf %719, %718 : vector<2x8xf32>
    %cst_165 = arith.constant 0.166666672 : f32
    %721 = vector.broadcast %cst_165 : f32 to vector<2x8xf32>
    %722 = arith.cmpf oge, %720, %721 : vector<2x8xf32>
    %723 = arith.select %722, %26, %23 : vector<2x8xi1>, vector<2x8xf32>
    %724 = arith.select %722, %44, %41 : vector<2x8xi1>, vector<2x8xf32>
    %cst_166 = arith.constant 0.333333343 : f32
    %725 = vector.broadcast %cst_166 : f32 to vector<2x8xf32>
    %726 = arith.cmpf oge, %720, %725 : vector<2x8xf32>
    %727 = arith.select %726, %29, %723 : vector<2x8xi1>, vector<2x8xf32>
    %728 = arith.select %726, %47, %724 : vector<2x8xi1>, vector<2x8xf32>
    %cst_167 = arith.constant 5.000000e-01 : f32
    %729 = vector.broadcast %cst_167 : f32 to vector<2x8xf32>
    %730 = arith.cmpf oge, %720, %729 : vector<2x8xf32>
    %731 = arith.select %730, %32, %727 : vector<2x8xi1>, vector<2x8xf32>
    %732 = arith.select %730, %50, %728 : vector<2x8xi1>, vector<2x8xf32>
    %cst_168 = arith.constant 0.666666686 : f32
    %733 = vector.broadcast %cst_168 : f32 to vector<2x8xf32>
    %734 = arith.cmpf oge, %720, %733 : vector<2x8xf32>
    %735 = arith.select %734, %35, %731 : vector<2x8xi1>, vector<2x8xf32>
    %736 = arith.select %734, %53, %732 : vector<2x8xi1>, vector<2x8xf32>
    %cst_169 = arith.constant 0.833333313 : f32
    %737 = vector.broadcast %cst_169 : f32 to vector<2x8xf32>
    %738 = arith.cmpf oge, %720, %737 : vector<2x8xf32>
    %739 = arith.select %738, %38, %735 : vector<2x8xi1>, vector<2x8xf32>
    %740 = arith.select %738, %56, %736 : vector<2x8xi1>, vector<2x8xf32>
    %741 = arith.mulf %739, %720 : vector<2x8xf32>
    %742 = arith.addf %741, %740 : vector<2x8xf32>
    %cst_170 = arith.constant 0.166666672 : f32
    %743 = vector.broadcast %cst_170 : f32 to vector<2x8xf32>
    %744 = arith.cmpf oge, %742, %743 : vector<2x8xf32>
    %745 = arith.select %744, %26, %23 : vector<2x8xi1>, vector<2x8xf32>
    %746 = arith.select %744, %44, %41 : vector<2x8xi1>, vector<2x8xf32>
    %cst_171 = arith.constant 0.333333343 : f32
    %747 = vector.broadcast %cst_171 : f32 to vector<2x8xf32>
    %748 = arith.cmpf oge, %742, %747 : vector<2x8xf32>
    %749 = arith.select %748, %29, %745 : vector<2x8xi1>, vector<2x8xf32>
    %750 = arith.select %748, %47, %746 : vector<2x8xi1>, vector<2x8xf32>
    %cst_172 = arith.constant 5.000000e-01 : f32
    %751 = vector.broadcast %cst_172 : f32 to vector<2x8xf32>
    %752 = arith.cmpf oge, %742, %751 : vector<2x8xf32>
    %753 = arith.select %752, %32, %749 : vector<2x8xi1>, vector<2x8xf32>
    %754 = arith.select %752, %50, %750 : vector<2x8xi1>, vector<2x8xf32>
    %cst_173 = arith.constant 0.666666686 : f32
    %755 = vector.broadcast %cst_173 : f32 to vector<2x8xf32>
    %756 = arith.cmpf oge, %742, %755 : vector<2x8xf32>
    %757 = arith.select %756, %35, %753 : vector<2x8xi1>, vector<2x8xf32>
    %758 = arith.select %756, %53, %754 : vector<2x8xi1>, vector<2x8xf32>
    %cst_174 = arith.constant 0.833333313 : f32
    %759 = vector.broadcast %cst_174 : f32 to vector<2x8xf32>
    %760 = arith.cmpf oge, %742, %759 : vector<2x8xf32>
    %761 = arith.select %760, %38, %757 : vector<2x8xi1>, vector<2x8xf32>
    %762 = arith.select %760, %56, %758 : vector<2x8xi1>, vector<2x8xf32>
    %763 = arith.mulf %761, %742 : vector<2x8xf32>
    %764 = arith.addf %763, %762 : vector<2x8xf32>
    %cst_175 = arith.constant 0.166666672 : f32
    %765 = vector.broadcast %cst_175 : f32 to vector<2x8xf32>
    %766 = arith.cmpf oge, %764, %765 : vector<2x8xf32>
    %767 = arith.select %766, %26, %23 : vector<2x8xi1>, vector<2x8xf32>
    %768 = arith.select %766, %44, %41 : vector<2x8xi1>, vector<2x8xf32>
    %cst_176 = arith.constant 0.333333343 : f32
    %769 = vector.broadcast %cst_176 : f32 to vector<2x8xf32>
    %770 = arith.cmpf oge, %764, %769 : vector<2x8xf32>
    %771 = arith.select %770, %29, %767 : vector<2x8xi1>, vector<2x8xf32>
    %772 = arith.select %770, %47, %768 : vector<2x8xi1>, vector<2x8xf32>
    %cst_177 = arith.constant 5.000000e-01 : f32
    %773 = vector.broadcast %cst_177 : f32 to vector<2x8xf32>
    %774 = arith.cmpf oge, %764, %773 : vector<2x8xf32>
    %775 = arith.select %774, %32, %771 : vector<2x8xi1>, vector<2x8xf32>
    %776 = arith.select %774, %50, %772 : vector<2x8xi1>, vector<2x8xf32>
    %cst_178 = arith.constant 0.666666686 : f32
    %777 = vector.broadcast %cst_178 : f32 to vector<2x8xf32>
    %778 = arith.cmpf oge, %764, %777 : vector<2x8xf32>
    %779 = arith.select %778, %35, %775 : vector<2x8xi1>, vector<2x8xf32>
    %780 = arith.select %778, %53, %776 : vector<2x8xi1>, vector<2x8xf32>
    %cst_179 = arith.constant 0.833333313 : f32
    %781 = vector.broadcast %cst_179 : f32 to vector<2x8xf32>
    %782 = arith.cmpf oge, %764, %781 : vector<2x8xf32>
    %783 = arith.select %782, %38, %779 : vector<2x8xi1>, vector<2x8xf32>
    %784 = arith.select %782, %56, %780 : vector<2x8xi1>, vector<2x8xf32>
    %785 = arith.mulf %783, %764 : vector<2x8xf32>
    %786 = arith.addf %785, %784 : vector<2x8xf32>
    %cst_180 = arith.constant 0.166666672 : f32
    %787 = vector.broadcast %cst_180 : f32 to vector<2x8xf32>
    %788 = arith.cmpf oge, %786, %787 : vector<2x8xf32>
    %789 = arith.select %788, %26, %23 : vector<2x8xi1>, vector<2x8xf32>
    %790 = arith.select %788, %44, %41 : vector<2x8xi1>, vector<2x8xf32>
    %cst_181 = arith.constant 0.333333343 : f32
    %791 = vector.broadcast %cst_181 : f32 to vector<2x8xf32>
    %792 = arith.cmpf oge, %786, %791 : vector<2x8xf32>
    %793 = arith.select %792, %29, %789 : vector<2x8xi1>, vector<2x8xf32>
    %794 = arith.select %792, %47, %790 : vector<2x8xi1>, vector<2x8xf32>
    %cst_182 = arith.constant 5.000000e-01 : f32
    %795 = vector.broadcast %cst_182 : f32 to vector<2x8xf32>
    %796 = arith.cmpf oge, %786, %795 : vector<2x8xf32>
    %797 = arith.select %796, %32, %793 : vector<2x8xi1>, vector<2x8xf32>
    %798 = arith.select %796, %50, %794 : vector<2x8xi1>, vector<2x8xf32>
    %cst_183 = arith.constant 0.666666686 : f32
    %799 = vector.broadcast %cst_183 : f32 to vector<2x8xf32>
    %800 = arith.cmpf oge, %786, %799 : vector<2x8xf32>
    %801 = arith.select %800, %35, %797 : vector<2x8xi1>, vector<2x8xf32>
    %802 = arith.select %800, %53, %798 : vector<2x8xi1>, vector<2x8xf32>
    %cst_184 = arith.constant 0.833333313 : f32
    %803 = vector.broadcast %cst_184 : f32 to vector<2x8xf32>
    %804 = arith.cmpf oge, %786, %803 : vector<2x8xf32>
    %805 = arith.select %804, %38, %801 : vector<2x8xi1>, vector<2x8xf32>
    %806 = arith.select %804, %56, %802 : vector<2x8xi1>, vector<2x8xf32>
    %807 = arith.mulf %805, %786 : vector<2x8xf32>
    %808 = arith.addf %807, %806 : vector<2x8xf32>
    %cst_185 = arith.constant 0.166666672 : f32
    %809 = vector.broadcast %cst_185 : f32 to vector<2x8xf32>
    %810 = arith.cmpf oge, %808, %809 : vector<2x8xf32>
    %811 = arith.select %810, %26, %23 : vector<2x8xi1>, vector<2x8xf32>
    %812 = arith.select %810, %44, %41 : vector<2x8xi1>, vector<2x8xf32>
    %cst_186 = arith.constant 0.333333343 : f32
    %813 = vector.broadcast %cst_186 : f32 to vector<2x8xf32>
    %814 = arith.cmpf oge, %808, %813 : vector<2x8xf32>
    %815 = arith.select %814, %29, %811 : vector<2x8xi1>, vector<2x8xf32>
    %816 = arith.select %814, %47, %812 : vector<2x8xi1>, vector<2x8xf32>
    %cst_187 = arith.constant 5.000000e-01 : f32
    %817 = vector.broadcast %cst_187 : f32 to vector<2x8xf32>
    %818 = arith.cmpf oge, %808, %817 : vector<2x8xf32>
    %819 = arith.select %818, %32, %815 : vector<2x8xi1>, vector<2x8xf32>
    %820 = arith.select %818, %50, %816 : vector<2x8xi1>, vector<2x8xf32>
    %cst_188 = arith.constant 0.666666686 : f32
    %821 = vector.broadcast %cst_188 : f32 to vector<2x8xf32>
    %822 = arith.cmpf oge, %808, %821 : vector<2x8xf32>
    %823 = arith.select %822, %35, %819 : vector<2x8xi1>, vector<2x8xf32>
    %824 = arith.select %822, %53, %820 : vector<2x8xi1>, vector<2x8xf32>
    %cst_189 = arith.constant 0.833333313 : f32
    %825 = vector.broadcast %cst_189 : f32 to vector<2x8xf32>
    %826 = arith.cmpf oge, %808, %825 : vector<2x8xf32>
    %827 = arith.select %826, %38, %823 : vector<2x8xi1>, vector<2x8xf32>
    %828 = arith.select %826, %56, %824 : vector<2x8xi1>, vector<2x8xf32>
    %829 = arith.mulf %827, %808 : vector<2x8xf32>
    %830 = arith.addf %829, %828 : vector<2x8xf32>
    %cst_190 = arith.constant 0.166666672 : f32
    %831 = vector.broadcast %cst_190 : f32 to vector<2x8xf32>
    %832 = arith.cmpf oge, %830, %831 : vector<2x8xf32>
    %833 = arith.select %832, %26, %23 : vector<2x8xi1>, vector<2x8xf32>
    %834 = arith.select %832, %44, %41 : vector<2x8xi1>, vector<2x8xf32>
    %cst_191 = arith.constant 0.333333343 : f32
    %835 = vector.broadcast %cst_191 : f32 to vector<2x8xf32>
    %836 = arith.cmpf oge, %830, %835 : vector<2x8xf32>
    %837 = arith.select %836, %29, %833 : vector<2x8xi1>, vector<2x8xf32>
    %838 = arith.select %836, %47, %834 : vector<2x8xi1>, vector<2x8xf32>
    %cst_192 = arith.constant 5.000000e-01 : f32
    %839 = vector.broadcast %cst_192 : f32 to vector<2x8xf32>
    %840 = arith.cmpf oge, %830, %839 : vector<2x8xf32>
    %841 = arith.select %840, %32, %837 : vector<2x8xi1>, vector<2x8xf32>
    %842 = arith.select %840, %50, %838 : vector<2x8xi1>, vector<2x8xf32>
    %cst_193 = arith.constant 0.666666686 : f32
    %843 = vector.broadcast %cst_193 : f32 to vector<2x8xf32>
    %844 = arith.cmpf oge, %830, %843 : vector<2x8xf32>
    %845 = arith.select %844, %35, %841 : vector<2x8xi1>, vector<2x8xf32>
    %846 = arith.select %844, %53, %842 : vector<2x8xi1>, vector<2x8xf32>
    %cst_194 = arith.constant 0.833333313 : f32
    %847 = vector.broadcast %cst_194 : f32 to vector<2x8xf32>
    %848 = arith.cmpf oge, %830, %847 : vector<2x8xf32>
    %849 = arith.select %848, %38, %845 : vector<2x8xi1>, vector<2x8xf32>
    %850 = arith.select %848, %56, %846 : vector<2x8xi1>, vector<2x8xf32>
    %851 = arith.mulf %849, %830 : vector<2x8xf32>
    %852 = arith.addf %851, %850 : vector<2x8xf32>
    %cst_195 = arith.constant 0.166666672 : f32
    %853 = vector.broadcast %cst_195 : f32 to vector<2x8xf32>
    %854 = arith.cmpf oge, %852, %853 : vector<2x8xf32>
    %855 = arith.select %854, %26, %23 : vector<2x8xi1>, vector<2x8xf32>
    %856 = arith.select %854, %44, %41 : vector<2x8xi1>, vector<2x8xf32>
    %cst_196 = arith.constant 0.333333343 : f32
    %857 = vector.broadcast %cst_196 : f32 to vector<2x8xf32>
    %858 = arith.cmpf oge, %852, %857 : vector<2x8xf32>
    %859 = arith.select %858, %29, %855 : vector<2x8xi1>, vector<2x8xf32>
    %860 = arith.select %858, %47, %856 : vector<2x8xi1>, vector<2x8xf32>
    %cst_197 = arith.constant 5.000000e-01 : f32
    %861 = vector.broadcast %cst_197 : f32 to vector<2x8xf32>
    %862 = arith.cmpf oge, %852, %861 : vector<2x8xf32>
    %863 = arith.select %862, %32, %859 : vector<2x8xi1>, vector<2x8xf32>
    %864 = arith.select %862, %50, %860 : vector<2x8xi1>, vector<2x8xf32>
    %cst_198 = arith.constant 0.666666686 : f32
    %865 = vector.broadcast %cst_198 : f32 to vector<2x8xf32>
    %866 = arith.cmpf oge, %852, %865 : vector<2x8xf32>
    %867 = arith.select %866, %35, %863 : vector<2x8xi1>, vector<2x8xf32>
    %868 = arith.select %866, %53, %864 : vector<2x8xi1>, vector<2x8xf32>
    %cst_199 = arith.constant 0.833333313 : f32
    %869 = vector.broadcast %cst_199 : f32 to vector<2x8xf32>
    %870 = arith.cmpf oge, %852, %869 : vector<2x8xf32>
    %871 = arith.select %870, %38, %867 : vector<2x8xi1>, vector<2x8xf32>
    %872 = arith.select %870, %56, %868 : vector<2x8xi1>, vector<2x8xf32>
    %873 = arith.mulf %871, %852 : vector<2x8xf32>
    %874 = arith.addf %873, %872 : vector<2x8xf32>
    %cst_200 = arith.constant 0.166666672 : f32
    %875 = vector.broadcast %cst_200 : f32 to vector<2x8xf32>
    %876 = arith.cmpf oge, %874, %875 : vector<2x8xf32>
    %877 = arith.select %876, %26, %23 : vector<2x8xi1>, vector<2x8xf32>
    %878 = arith.select %876, %44, %41 : vector<2x8xi1>, vector<2x8xf32>
    %cst_201 = arith.constant 0.333333343 : f32
    %879 = vector.broadcast %cst_201 : f32 to vector<2x8xf32>
    %880 = arith.cmpf oge, %874, %879 : vector<2x8xf32>
    %881 = arith.select %880, %29, %877 : vector<2x8xi1>, vector<2x8xf32>
    %882 = arith.select %880, %47, %878 : vector<2x8xi1>, vector<2x8xf32>
    %cst_202 = arith.constant 5.000000e-01 : f32
    %883 = vector.broadcast %cst_202 : f32 to vector<2x8xf32>
    %884 = arith.cmpf oge, %874, %883 : vector<2x8xf32>
    %885 = arith.select %884, %32, %881 : vector<2x8xi1>, vector<2x8xf32>
    %886 = arith.select %884, %50, %882 : vector<2x8xi1>, vector<2x8xf32>
    %cst_203 = arith.constant 0.666666686 : f32
    %887 = vector.broadcast %cst_203 : f32 to vector<2x8xf32>
    %888 = arith.cmpf oge, %874, %887 : vector<2x8xf32>
    %889 = arith.select %888, %35, %885 : vector<2x8xi1>, vector<2x8xf32>
    %890 = arith.select %888, %53, %886 : vector<2x8xi1>, vector<2x8xf32>
    %cst_204 = arith.constant 0.833333313 : f32
    %891 = vector.broadcast %cst_204 : f32 to vector<2x8xf32>
    %892 = arith.cmpf oge, %874, %891 : vector<2x8xf32>
    %893 = arith.select %892, %38, %889 : vector<2x8xi1>, vector<2x8xf32>
    %894 = arith.select %892, %56, %890 : vector<2x8xi1>, vector<2x8xf32>
    %895 = arith.mulf %893, %874 : vector<2x8xf32>
    %896 = arith.addf %895, %894 : vector<2x8xf32>
    %cst_205 = arith.constant 0.166666672 : f32
    %897 = vector.broadcast %cst_205 : f32 to vector<2x8xf32>
    %898 = arith.cmpf oge, %896, %897 : vector<2x8xf32>
    %899 = arith.select %898, %26, %23 : vector<2x8xi1>, vector<2x8xf32>
    %900 = arith.select %898, %44, %41 : vector<2x8xi1>, vector<2x8xf32>
    %cst_206 = arith.constant 0.333333343 : f32
    %901 = vector.broadcast %cst_206 : f32 to vector<2x8xf32>
    %902 = arith.cmpf oge, %896, %901 : vector<2x8xf32>
    %903 = arith.select %902, %29, %899 : vector<2x8xi1>, vector<2x8xf32>
    %904 = arith.select %902, %47, %900 : vector<2x8xi1>, vector<2x8xf32>
    %cst_207 = arith.constant 5.000000e-01 : f32
    %905 = vector.broadcast %cst_207 : f32 to vector<2x8xf32>
    %906 = arith.cmpf oge, %896, %905 : vector<2x8xf32>
    %907 = arith.select %906, %32, %903 : vector<2x8xi1>, vector<2x8xf32>
    %908 = arith.select %906, %50, %904 : vector<2x8xi1>, vector<2x8xf32>
    %cst_208 = arith.constant 0.666666686 : f32
    %909 = vector.broadcast %cst_208 : f32 to vector<2x8xf32>
    %910 = arith.cmpf oge, %896, %909 : vector<2x8xf32>
    %911 = arith.select %910, %35, %907 : vector<2x8xi1>, vector<2x8xf32>
    %912 = arith.select %910, %53, %908 : vector<2x8xi1>, vector<2x8xf32>
    %cst_209 = arith.constant 0.833333313 : f32
    %913 = vector.broadcast %cst_209 : f32 to vector<2x8xf32>
    %914 = arith.cmpf oge, %896, %913 : vector<2x8xf32>
    %915 = arith.select %914, %38, %911 : vector<2x8xi1>, vector<2x8xf32>
    %916 = arith.select %914, %56, %912 : vector<2x8xi1>, vector<2x8xf32>
    %917 = arith.mulf %915, %896 : vector<2x8xf32>
    %918 = arith.addf %917, %916 : vector<2x8xf32>
    %cst_210 = arith.constant 0.166666672 : f32
    %919 = vector.broadcast %cst_210 : f32 to vector<2x8xf32>
    %920 = arith.cmpf oge, %918, %919 : vector<2x8xf32>
    %921 = arith.select %920, %26, %23 : vector<2x8xi1>, vector<2x8xf32>
    %922 = arith.select %920, %44, %41 : vector<2x8xi1>, vector<2x8xf32>
    %cst_211 = arith.constant 0.333333343 : f32
    %923 = vector.broadcast %cst_211 : f32 to vector<2x8xf32>
    %924 = arith.cmpf oge, %918, %923 : vector<2x8xf32>
    %925 = arith.select %924, %29, %921 : vector<2x8xi1>, vector<2x8xf32>
    %926 = arith.select %924, %47, %922 : vector<2x8xi1>, vector<2x8xf32>
    %cst_212 = arith.constant 5.000000e-01 : f32
    %927 = vector.broadcast %cst_212 : f32 to vector<2x8xf32>
    %928 = arith.cmpf oge, %918, %927 : vector<2x8xf32>
    %929 = arith.select %928, %32, %925 : vector<2x8xi1>, vector<2x8xf32>
    %930 = arith.select %928, %50, %926 : vector<2x8xi1>, vector<2x8xf32>
    %cst_213 = arith.constant 0.666666686 : f32
    %931 = vector.broadcast %cst_213 : f32 to vector<2x8xf32>
    %932 = arith.cmpf oge, %918, %931 : vector<2x8xf32>
    %933 = arith.select %932, %35, %929 : vector<2x8xi1>, vector<2x8xf32>
    %934 = arith.select %932, %53, %930 : vector<2x8xi1>, vector<2x8xf32>
    %cst_214 = arith.constant 0.833333313 : f32
    %935 = vector.broadcast %cst_214 : f32 to vector<2x8xf32>
    %936 = arith.cmpf oge, %918, %935 : vector<2x8xf32>
    %937 = arith.select %936, %38, %933 : vector<2x8xi1>, vector<2x8xf32>
    %938 = arith.select %936, %56, %934 : vector<2x8xi1>, vector<2x8xf32>
    %939 = arith.mulf %937, %918 : vector<2x8xf32>
    %940 = arith.addf %939, %938 : vector<2x8xf32>
    %cst_215 = arith.constant 0.166666672 : f32
    %941 = vector.broadcast %cst_215 : f32 to vector<2x8xf32>
    %942 = arith.cmpf oge, %940, %941 : vector<2x8xf32>
    %943 = arith.select %942, %26, %23 : vector<2x8xi1>, vector<2x8xf32>
    %944 = arith.select %942, %44, %41 : vector<2x8xi1>, vector<2x8xf32>
    %cst_216 = arith.constant 0.333333343 : f32
    %945 = vector.broadcast %cst_216 : f32 to vector<2x8xf32>
    %946 = arith.cmpf oge, %940, %945 : vector<2x8xf32>
    %947 = arith.select %946, %29, %943 : vector<2x8xi1>, vector<2x8xf32>
    %948 = arith.select %946, %47, %944 : vector<2x8xi1>, vector<2x8xf32>
    %cst_217 = arith.constant 5.000000e-01 : f32
    %949 = vector.broadcast %cst_217 : f32 to vector<2x8xf32>
    %950 = arith.cmpf oge, %940, %949 : vector<2x8xf32>
    %951 = arith.select %950, %32, %947 : vector<2x8xi1>, vector<2x8xf32>
    %952 = arith.select %950, %50, %948 : vector<2x8xi1>, vector<2x8xf32>
    %cst_218 = arith.constant 0.666666686 : f32
    %953 = vector.broadcast %cst_218 : f32 to vector<2x8xf32>
    %954 = arith.cmpf oge, %940, %953 : vector<2x8xf32>
    %955 = arith.select %954, %35, %951 : vector<2x8xi1>, vector<2x8xf32>
    %956 = arith.select %954, %53, %952 : vector<2x8xi1>, vector<2x8xf32>
    %cst_219 = arith.constant 0.833333313 : f32
    %957 = vector.broadcast %cst_219 : f32 to vector<2x8xf32>
    %958 = arith.cmpf oge, %940, %957 : vector<2x8xf32>
    %959 = arith.select %958, %38, %955 : vector<2x8xi1>, vector<2x8xf32>
    %960 = arith.select %958, %56, %956 : vector<2x8xi1>, vector<2x8xf32>
    %961 = arith.mulf %959, %940 : vector<2x8xf32>
    %962 = arith.addf %961, %960 : vector<2x8xf32>
    %cst_220 = arith.constant 0.166666672 : f32
    %963 = vector.broadcast %cst_220 : f32 to vector<2x8xf32>
    %964 = arith.cmpf oge, %962, %963 : vector<2x8xf32>
    %965 = arith.select %964, %26, %23 : vector<2x8xi1>, vector<2x8xf32>
    %966 = arith.select %964, %44, %41 : vector<2x8xi1>, vector<2x8xf32>
    %cst_221 = arith.constant 0.333333343 : f32
    %967 = vector.broadcast %cst_221 : f32 to vector<2x8xf32>
    %968 = arith.cmpf oge, %962, %967 : vector<2x8xf32>
    %969 = arith.select %968, %29, %965 : vector<2x8xi1>, vector<2x8xf32>
    %970 = arith.select %968, %47, %966 : vector<2x8xi1>, vector<2x8xf32>
    %cst_222 = arith.constant 5.000000e-01 : f32
    %971 = vector.broadcast %cst_222 : f32 to vector<2x8xf32>
    %972 = arith.cmpf oge, %962, %971 : vector<2x8xf32>
    %973 = arith.select %972, %32, %969 : vector<2x8xi1>, vector<2x8xf32>
    %974 = arith.select %972, %50, %970 : vector<2x8xi1>, vector<2x8xf32>
    %cst_223 = arith.constant 0.666666686 : f32
    %975 = vector.broadcast %cst_223 : f32 to vector<2x8xf32>
    %976 = arith.cmpf oge, %962, %975 : vector<2x8xf32>
    %977 = arith.select %976, %35, %973 : vector<2x8xi1>, vector<2x8xf32>
    %978 = arith.select %976, %53, %974 : vector<2x8xi1>, vector<2x8xf32>
    %cst_224 = arith.constant 0.833333313 : f32
    %979 = vector.broadcast %cst_224 : f32 to vector<2x8xf32>
    %980 = arith.cmpf oge, %962, %979 : vector<2x8xf32>
    %981 = arith.select %980, %38, %977 : vector<2x8xi1>, vector<2x8xf32>
    %982 = arith.select %980, %56, %978 : vector<2x8xi1>, vector<2x8xf32>
    %983 = arith.mulf %981, %962 : vector<2x8xf32>
    %984 = arith.addf %983, %982 : vector<2x8xf32>
    %cst_225 = arith.constant 0.166666672 : f32
    %985 = vector.broadcast %cst_225 : f32 to vector<2x8xf32>
    %986 = arith.cmpf oge, %984, %985 : vector<2x8xf32>
    %987 = arith.select %986, %26, %23 : vector<2x8xi1>, vector<2x8xf32>
    %988 = arith.select %986, %44, %41 : vector<2x8xi1>, vector<2x8xf32>
    %cst_226 = arith.constant 0.333333343 : f32
    %989 = vector.broadcast %cst_226 : f32 to vector<2x8xf32>
    %990 = arith.cmpf oge, %984, %989 : vector<2x8xf32>
    %991 = arith.select %990, %29, %987 : vector<2x8xi1>, vector<2x8xf32>
    %992 = arith.select %990, %47, %988 : vector<2x8xi1>, vector<2x8xf32>
    %cst_227 = arith.constant 5.000000e-01 : f32
    %993 = vector.broadcast %cst_227 : f32 to vector<2x8xf32>
    %994 = arith.cmpf oge, %984, %993 : vector<2x8xf32>
    %995 = arith.select %994, %32, %991 : vector<2x8xi1>, vector<2x8xf32>
    %996 = arith.select %994, %50, %992 : vector<2x8xi1>, vector<2x8xf32>
    %cst_228 = arith.constant 0.666666686 : f32
    %997 = vector.broadcast %cst_228 : f32 to vector<2x8xf32>
    %998 = arith.cmpf oge, %984, %997 : vector<2x8xf32>
    %999 = arith.select %998, %35, %995 : vector<2x8xi1>, vector<2x8xf32>
    %1000 = arith.select %998, %53, %996 : vector<2x8xi1>, vector<2x8xf32>
    %cst_229 = arith.constant 0.833333313 : f32
    %1001 = vector.broadcast %cst_229 : f32 to vector<2x8xf32>
    %1002 = arith.cmpf oge, %984, %1001 : vector<2x8xf32>
    %1003 = arith.select %1002, %38, %999 : vector<2x8xi1>, vector<2x8xf32>
    %1004 = arith.select %1002, %56, %1000 : vector<2x8xi1>, vector<2x8xf32>
    %1005 = arith.mulf %1003, %984 : vector<2x8xf32>
    %1006 = arith.addf %1005, %1004 : vector<2x8xf32>
    %cst_230 = arith.constant 0.166666672 : f32
    %1007 = vector.broadcast %cst_230 : f32 to vector<2x8xf32>
    %1008 = arith.cmpf oge, %1006, %1007 : vector<2x8xf32>
    %1009 = arith.select %1008, %26, %23 : vector<2x8xi1>, vector<2x8xf32>
    %1010 = arith.select %1008, %44, %41 : vector<2x8xi1>, vector<2x8xf32>
    %cst_231 = arith.constant 0.333333343 : f32
    %1011 = vector.broadcast %cst_231 : f32 to vector<2x8xf32>
    %1012 = arith.cmpf oge, %1006, %1011 : vector<2x8xf32>
    %1013 = arith.select %1012, %29, %1009 : vector<2x8xi1>, vector<2x8xf32>
    %1014 = arith.select %1012, %47, %1010 : vector<2x8xi1>, vector<2x8xf32>
    %cst_232 = arith.constant 5.000000e-01 : f32
    %1015 = vector.broadcast %cst_232 : f32 to vector<2x8xf32>
    %1016 = arith.cmpf oge, %1006, %1015 : vector<2x8xf32>
    %1017 = arith.select %1016, %32, %1013 : vector<2x8xi1>, vector<2x8xf32>
    %1018 = arith.select %1016, %50, %1014 : vector<2x8xi1>, vector<2x8xf32>
    %cst_233 = arith.constant 0.666666686 : f32
    %1019 = vector.broadcast %cst_233 : f32 to vector<2x8xf32>
    %1020 = arith.cmpf oge, %1006, %1019 : vector<2x8xf32>
    %1021 = arith.select %1020, %35, %1017 : vector<2x8xi1>, vector<2x8xf32>
    %1022 = arith.select %1020, %53, %1018 : vector<2x8xi1>, vector<2x8xf32>
    %cst_234 = arith.constant 0.833333313 : f32
    %1023 = vector.broadcast %cst_234 : f32 to vector<2x8xf32>
    %1024 = arith.cmpf oge, %1006, %1023 : vector<2x8xf32>
    %1025 = arith.select %1024, %38, %1021 : vector<2x8xi1>, vector<2x8xf32>
    %1026 = arith.select %1024, %56, %1022 : vector<2x8xi1>, vector<2x8xf32>
    %1027 = arith.mulf %1025, %1006 : vector<2x8xf32>
    %1028 = arith.addf %1027, %1026 : vector<2x8xf32>
    %cst_235 = arith.constant 0.166666672 : f32
    %1029 = vector.broadcast %cst_235 : f32 to vector<2x8xf32>
    %1030 = arith.cmpf oge, %1028, %1029 : vector<2x8xf32>
    %1031 = arith.select %1030, %26, %23 : vector<2x8xi1>, vector<2x8xf32>
    %1032 = arith.select %1030, %44, %41 : vector<2x8xi1>, vector<2x8xf32>
    %cst_236 = arith.constant 0.333333343 : f32
    %1033 = vector.broadcast %cst_236 : f32 to vector<2x8xf32>
    %1034 = arith.cmpf oge, %1028, %1033 : vector<2x8xf32>
    %1035 = arith.select %1034, %29, %1031 : vector<2x8xi1>, vector<2x8xf32>
    %1036 = arith.select %1034, %47, %1032 : vector<2x8xi1>, vector<2x8xf32>
    %cst_237 = arith.constant 5.000000e-01 : f32
    %1037 = vector.broadcast %cst_237 : f32 to vector<2x8xf32>
    %1038 = arith.cmpf oge, %1028, %1037 : vector<2x8xf32>
    %1039 = arith.select %1038, %32, %1035 : vector<2x8xi1>, vector<2x8xf32>
    %1040 = arith.select %1038, %50, %1036 : vector<2x8xi1>, vector<2x8xf32>
    %cst_238 = arith.constant 0.666666686 : f32
    %1041 = vector.broadcast %cst_238 : f32 to vector<2x8xf32>
    %1042 = arith.cmpf oge, %1028, %1041 : vector<2x8xf32>
    %1043 = arith.select %1042, %35, %1039 : vector<2x8xi1>, vector<2x8xf32>
    %1044 = arith.select %1042, %53, %1040 : vector<2x8xi1>, vector<2x8xf32>
    %cst_239 = arith.constant 0.833333313 : f32
    %1045 = vector.broadcast %cst_239 : f32 to vector<2x8xf32>
    %1046 = arith.cmpf oge, %1028, %1045 : vector<2x8xf32>
    %1047 = arith.select %1046, %38, %1043 : vector<2x8xi1>, vector<2x8xf32>
    %1048 = arith.select %1046, %56, %1044 : vector<2x8xi1>, vector<2x8xf32>
    %1049 = arith.mulf %1047, %1028 : vector<2x8xf32>
    %1050 = arith.addf %1049, %1048 : vector<2x8xf32>
    %cst_240 = arith.constant 0.166666672 : f32
    %1051 = vector.broadcast %cst_240 : f32 to vector<2x8xf32>
    %1052 = arith.cmpf oge, %1050, %1051 : vector<2x8xf32>
    %1053 = arith.select %1052, %26, %23 : vector<2x8xi1>, vector<2x8xf32>
    %1054 = arith.select %1052, %44, %41 : vector<2x8xi1>, vector<2x8xf32>
    %cst_241 = arith.constant 0.333333343 : f32
    %1055 = vector.broadcast %cst_241 : f32 to vector<2x8xf32>
    %1056 = arith.cmpf oge, %1050, %1055 : vector<2x8xf32>
    %1057 = arith.select %1056, %29, %1053 : vector<2x8xi1>, vector<2x8xf32>
    %1058 = arith.select %1056, %47, %1054 : vector<2x8xi1>, vector<2x8xf32>
    %cst_242 = arith.constant 5.000000e-01 : f32
    %1059 = vector.broadcast %cst_242 : f32 to vector<2x8xf32>
    %1060 = arith.cmpf oge, %1050, %1059 : vector<2x8xf32>
    %1061 = arith.select %1060, %32, %1057 : vector<2x8xi1>, vector<2x8xf32>
    %1062 = arith.select %1060, %50, %1058 : vector<2x8xi1>, vector<2x8xf32>
    %cst_243 = arith.constant 0.666666686 : f32
    %1063 = vector.broadcast %cst_243 : f32 to vector<2x8xf32>
    %1064 = arith.cmpf oge, %1050, %1063 : vector<2x8xf32>
    %1065 = arith.select %1064, %35, %1061 : vector<2x8xi1>, vector<2x8xf32>
    %1066 = arith.select %1064, %53, %1062 : vector<2x8xi1>, vector<2x8xf32>
    %cst_244 = arith.constant 0.833333313 : f32
    %1067 = vector.broadcast %cst_244 : f32 to vector<2x8xf32>
    %1068 = arith.cmpf oge, %1050, %1067 : vector<2x8xf32>
    %1069 = arith.select %1068, %38, %1065 : vector<2x8xi1>, vector<2x8xf32>
    %1070 = arith.select %1068, %56, %1066 : vector<2x8xi1>, vector<2x8xf32>
    %1071 = arith.mulf %1069, %1050 : vector<2x8xf32>
    %1072 = arith.addf %1071, %1070 : vector<2x8xf32>
    %cst_245 = arith.constant 0.166666672 : f32
    %1073 = vector.broadcast %cst_245 : f32 to vector<2x8xf32>
    %1074 = arith.cmpf oge, %1072, %1073 : vector<2x8xf32>
    %1075 = arith.select %1074, %26, %23 : vector<2x8xi1>, vector<2x8xf32>
    %1076 = arith.select %1074, %44, %41 : vector<2x8xi1>, vector<2x8xf32>
    %cst_246 = arith.constant 0.333333343 : f32
    %1077 = vector.broadcast %cst_246 : f32 to vector<2x8xf32>
    %1078 = arith.cmpf oge, %1072, %1077 : vector<2x8xf32>
    %1079 = arith.select %1078, %29, %1075 : vector<2x8xi1>, vector<2x8xf32>
    %1080 = arith.select %1078, %47, %1076 : vector<2x8xi1>, vector<2x8xf32>
    %cst_247 = arith.constant 5.000000e-01 : f32
    %1081 = vector.broadcast %cst_247 : f32 to vector<2x8xf32>
    %1082 = arith.cmpf oge, %1072, %1081 : vector<2x8xf32>
    %1083 = arith.select %1082, %32, %1079 : vector<2x8xi1>, vector<2x8xf32>
    %1084 = arith.select %1082, %50, %1080 : vector<2x8xi1>, vector<2x8xf32>
    %cst_248 = arith.constant 0.666666686 : f32
    %1085 = vector.broadcast %cst_248 : f32 to vector<2x8xf32>
    %1086 = arith.cmpf oge, %1072, %1085 : vector<2x8xf32>
    %1087 = arith.select %1086, %35, %1083 : vector<2x8xi1>, vector<2x8xf32>
    %1088 = arith.select %1086, %53, %1084 : vector<2x8xi1>, vector<2x8xf32>
    %cst_249 = arith.constant 0.833333313 : f32
    %1089 = vector.broadcast %cst_249 : f32 to vector<2x8xf32>
    %1090 = arith.cmpf oge, %1072, %1089 : vector<2x8xf32>
    %1091 = arith.select %1090, %38, %1087 : vector<2x8xi1>, vector<2x8xf32>
    %1092 = arith.select %1090, %56, %1088 : vector<2x8xi1>, vector<2x8xf32>
    %1093 = arith.mulf %1091, %1072 : vector<2x8xf32>
    %1094 = arith.addf %1093, %1092 : vector<2x8xf32>
    %cst_250 = arith.constant 0.166666672 : f32
    %1095 = vector.broadcast %cst_250 : f32 to vector<2x8xf32>
    %1096 = arith.cmpf oge, %1094, %1095 : vector<2x8xf32>
    %1097 = arith.select %1096, %26, %23 : vector<2x8xi1>, vector<2x8xf32>
    %1098 = arith.select %1096, %44, %41 : vector<2x8xi1>, vector<2x8xf32>
    %cst_251 = arith.constant 0.333333343 : f32
    %1099 = vector.broadcast %cst_251 : f32 to vector<2x8xf32>
    %1100 = arith.cmpf oge, %1094, %1099 : vector<2x8xf32>
    %1101 = arith.select %1100, %29, %1097 : vector<2x8xi1>, vector<2x8xf32>
    %1102 = arith.select %1100, %47, %1098 : vector<2x8xi1>, vector<2x8xf32>
    %cst_252 = arith.constant 5.000000e-01 : f32
    %1103 = vector.broadcast %cst_252 : f32 to vector<2x8xf32>
    %1104 = arith.cmpf oge, %1094, %1103 : vector<2x8xf32>
    %1105 = arith.select %1104, %32, %1101 : vector<2x8xi1>, vector<2x8xf32>
    %1106 = arith.select %1104, %50, %1102 : vector<2x8xi1>, vector<2x8xf32>
    %cst_253 = arith.constant 0.666666686 : f32
    %1107 = vector.broadcast %cst_253 : f32 to vector<2x8xf32>
    %1108 = arith.cmpf oge, %1094, %1107 : vector<2x8xf32>
    %1109 = arith.select %1108, %35, %1105 : vector<2x8xi1>, vector<2x8xf32>
    %1110 = arith.select %1108, %53, %1106 : vector<2x8xi1>, vector<2x8xf32>
    %cst_254 = arith.constant 0.833333313 : f32
    %1111 = vector.broadcast %cst_254 : f32 to vector<2x8xf32>
    %1112 = arith.cmpf oge, %1094, %1111 : vector<2x8xf32>
    %1113 = arith.select %1112, %38, %1109 : vector<2x8xi1>, vector<2x8xf32>
    %1114 = arith.select %1112, %56, %1110 : vector<2x8xi1>, vector<2x8xf32>
    %1115 = arith.mulf %1113, %1094 : vector<2x8xf32>
    %1116 = arith.addf %1115, %1114 : vector<2x8xf32>
    %cst_255 = arith.constant 0.166666672 : f32
    %1117 = vector.broadcast %cst_255 : f32 to vector<2x8xf32>
    %1118 = arith.cmpf oge, %1116, %1117 : vector<2x8xf32>
    %1119 = arith.select %1118, %26, %23 : vector<2x8xi1>, vector<2x8xf32>
    %1120 = arith.select %1118, %44, %41 : vector<2x8xi1>, vector<2x8xf32>
    %cst_256 = arith.constant 0.333333343 : f32
    %1121 = vector.broadcast %cst_256 : f32 to vector<2x8xf32>
    %1122 = arith.cmpf oge, %1116, %1121 : vector<2x8xf32>
    %1123 = arith.select %1122, %29, %1119 : vector<2x8xi1>, vector<2x8xf32>
    %1124 = arith.select %1122, %47, %1120 : vector<2x8xi1>, vector<2x8xf32>
    %cst_257 = arith.constant 5.000000e-01 : f32
    %1125 = vector.broadcast %cst_257 : f32 to vector<2x8xf32>
    %1126 = arith.cmpf oge, %1116, %1125 : vector<2x8xf32>
    %1127 = arith.select %1126, %32, %1123 : vector<2x8xi1>, vector<2x8xf32>
    %1128 = arith.select %1126, %50, %1124 : vector<2x8xi1>, vector<2x8xf32>
    %cst_258 = arith.constant 0.666666686 : f32
    %1129 = vector.broadcast %cst_258 : f32 to vector<2x8xf32>
    %1130 = arith.cmpf oge, %1116, %1129 : vector<2x8xf32>
    %1131 = arith.select %1130, %35, %1127 : vector<2x8xi1>, vector<2x8xf32>
    %1132 = arith.select %1130, %53, %1128 : vector<2x8xi1>, vector<2x8xf32>
    %cst_259 = arith.constant 0.833333313 : f32
    %1133 = vector.broadcast %cst_259 : f32 to vector<2x8xf32>
    %1134 = arith.cmpf oge, %1116, %1133 : vector<2x8xf32>
    %1135 = arith.select %1134, %38, %1131 : vector<2x8xi1>, vector<2x8xf32>
    %1136 = arith.select %1134, %56, %1132 : vector<2x8xi1>, vector<2x8xf32>
    %1137 = arith.mulf %1135, %1116 : vector<2x8xf32>
    %1138 = arith.addf %1137, %1136 : vector<2x8xf32>
    %cst_260 = arith.constant 0.166666672 : f32
    %1139 = vector.broadcast %cst_260 : f32 to vector<2x8xf32>
    %1140 = arith.cmpf oge, %1138, %1139 : vector<2x8xf32>
    %1141 = arith.select %1140, %26, %23 : vector<2x8xi1>, vector<2x8xf32>
    %1142 = arith.select %1140, %44, %41 : vector<2x8xi1>, vector<2x8xf32>
    %cst_261 = arith.constant 0.333333343 : f32
    %1143 = vector.broadcast %cst_261 : f32 to vector<2x8xf32>
    %1144 = arith.cmpf oge, %1138, %1143 : vector<2x8xf32>
    %1145 = arith.select %1144, %29, %1141 : vector<2x8xi1>, vector<2x8xf32>
    %1146 = arith.select %1144, %47, %1142 : vector<2x8xi1>, vector<2x8xf32>
    %cst_262 = arith.constant 5.000000e-01 : f32
    %1147 = vector.broadcast %cst_262 : f32 to vector<2x8xf32>
    %1148 = arith.cmpf oge, %1138, %1147 : vector<2x8xf32>
    %1149 = arith.select %1148, %32, %1145 : vector<2x8xi1>, vector<2x8xf32>
    %1150 = arith.select %1148, %50, %1146 : vector<2x8xi1>, vector<2x8xf32>
    %cst_263 = arith.constant 0.666666686 : f32
    %1151 = vector.broadcast %cst_263 : f32 to vector<2x8xf32>
    %1152 = arith.cmpf oge, %1138, %1151 : vector<2x8xf32>
    %1153 = arith.select %1152, %35, %1149 : vector<2x8xi1>, vector<2x8xf32>
    %1154 = arith.select %1152, %53, %1150 : vector<2x8xi1>, vector<2x8xf32>
    %cst_264 = arith.constant 0.833333313 : f32
    %1155 = vector.broadcast %cst_264 : f32 to vector<2x8xf32>
    %1156 = arith.cmpf oge, %1138, %1155 : vector<2x8xf32>
    %1157 = arith.select %1156, %38, %1153 : vector<2x8xi1>, vector<2x8xf32>
    %1158 = arith.select %1156, %56, %1154 : vector<2x8xi1>, vector<2x8xf32>
    %1159 = arith.mulf %1157, %1138 : vector<2x8xf32>
    %1160 = arith.addf %1159, %1158 : vector<2x8xf32>
    %cst_265 = arith.constant 7.000000e+00 : f32
    %1161 = vector.broadcast %cst_265 : f32 to vector<2x8xf32>
    %1162 = arith.mulf %1160, %1161 : vector<2x8xf32>
    %1163 = math.floor %1162 : vector<2x8xf32>
    %cst_266 = arith.constant 0.000000e+00 : f32
    %cst_267 = arith.constant 7.000000e+00 : f32
    %1164 = vector.broadcast %cst_266 : f32 to vector<2x8xf32>
    %1165 = arith.maximumf %1164, %1163 : vector<2x8xf32>
    %1166 = vector.broadcast %cst_267 : f32 to vector<2x8xf32>
    %1167 = arith.minimumf %1166, %1165 : vector<2x8xf32>
    %cst_268 = arith.constant 1.000000e+00 : f32
    %1168 = vector.broadcast %cst_268 : f32 to vector<2x8xf32>
    %1169 = arith.addf %1163, %1168 : vector<2x8xf32>
    %cst_269 = arith.constant 0.000000e+00 : f32
    %cst_270 = arith.constant 7.000000e+00 : f32
    %1170 = vector.broadcast %cst_269 : f32 to vector<2x8xf32>
    %1171 = arith.maximumf %1170, %1169 : vector<2x8xf32>
    %1172 = vector.broadcast %cst_270 : f32 to vector<2x8xf32>
    %1173 = arith.minimumf %1172, %1171 : vector<2x8xf32>
    %1174 = arith.subf %1162, %1167 : vector<2x8xf32>
    %1175 = tpu.iota {dimensions = array<i32: 2>} : vector<2x8x8xi32>
    %1176 = arith.sitofp %1175 : vector<2x8x8xi32> to vector<2x8x8xf32>
    %1177 = vector.shape_cast %1174 : vector<2x8xf32> to vector<2x8x1xf32>
    %1178 = vector.shape_cast %1167 : vector<2x8xf32> to vector<2x8x1xf32>
    %1179 = vector.broadcast %1178 : vector<2x8x1xf32> to vector<2x8x8xf32>
    %1180 = arith.cmpf oeq, %1179, %1176 : vector<2x8x8xf32>
    %cst_271 = arith.constant 1.000000e+00 : f32
    %1181 = vector.broadcast %cst_271 : f32 to vector<2x8x1xf32>
    %1182 = arith.subf %1181, %1177 : vector<2x8x1xf32>
    %cst_272 = arith.constant 0.000000e+00 : f32
    %1183 = vector.shape_cast %1182 : vector<2x8x1xf32> to vector<2x8x1xf32>
    %1184 = vector.broadcast %1183 : vector<2x8x1xf32> to vector<2x8x8xf32>
    %1185 = vector.broadcast %cst_272 : f32 to vector<2x8x8xf32>
    %1186 = arith.select %1180, %1184, %1185 : vector<2x8x8xi1>, vector<2x8x8xf32>
    %1187 = vector.shape_cast %1173 : vector<2x8xf32> to vector<2x8x1xf32>
    %1188 = vector.broadcast %1187 : vector<2x8x1xf32> to vector<2x8x8xf32>
    %1189 = arith.cmpf oeq, %1188, %1176 : vector<2x8x8xf32>
    %cst_273 = arith.constant 0.000000e+00 : f32
    %1190 = vector.shape_cast %1177 : vector<2x8x1xf32> to vector<2x8x1xf32>
    %1191 = vector.broadcast %1190 : vector<2x8x1xf32> to vector<2x8x8xf32>
    %1192 = vector.broadcast %cst_273 : f32 to vector<2x8x8xf32>
    %1193 = arith.select %1189, %1191, %1192 : vector<2x8x8xi1>, vector<2x8x8xf32>
    %1194 = arith.addf %1186, %1193 : vector<2x8x8xf32>
    "tpu.trace_start"() <{level = 10 : i32, message = "ncj,ntj->nct"}> : () -> ()
    %cst_274 = arith.constant dense<0.000000e+00> : vector<2x4x8xf32>
    %1195 = tpu.matmul %0, %1194, %cst_274 {dimension_numbers = #tpu.dot_dimension_numbers<[2], [2], [1], [1], [0, 0, 0, 1, 1, 1], [0], [0]>} : vector<2x4x8xf32>, vector<2x8x8xf32>, vector<2x4x8xf32> -> vector<2x4x8xf32>
    "tpu.trace_stop"() : () -> ()
    "tpu.trace_start"() <{level = 10 : i32, message = "ntj,ncj->ntc"}> : () -> ()
    %cst_275 = arith.constant dense<0.000000e+00> : vector<2x8x4xf32>
    %1196 = tpu.matmul %1194, %0, %cst_275 {dimension_numbers = #tpu.dot_dimension_numbers<[2], [2], [1], [1], [0, 0, 0, 1, 1, 1], [0], [0]>} : vector<2x8x8xf32>, vector<2x4x8xf32>, vector<2x8x4xf32> -> vector<2x8x4xf32>
    "tpu.trace_stop"() : () -> ()
    %c0_276 = arith.constant 0 : index
    %c0_277 = arith.constant 0 : index
    %c0_278 = arith.constant 0 : index
    %1197 = vector.load %arg19[%c0_276, %c0_277, %c0_278] : memref<2x4x8xf32, #tpu.memory_space<vmem>>, vector<2x4x8xf32>
    tpu.vector_store %arg19[%c0_276, %c0_277, %c0_278], %1195 {strides = array<i32>} : memref<2x4x8xf32, #tpu.memory_space<vmem>>, vector<2x4x8xf32>,
    %c0_279 = arith.constant 0 : index
    %c0_280 = arith.constant 0 : index
    %c0_281 = arith.constant 0 : index
    %1198 = vector.load %arg1[%c0_279, %c0_280, %c0_281] : memref<2x8x4xf32, #tpu.memory_space<vmem>>, vector<2x8x4xf32>
    %1199 = tpu.concatenate %1198, %1196 in 0 : vector<2x8x4xf32>, vector<2x8x4xf32> -> vector<4x8x4xf32>
    %1200 = vector.shape_cast %1199 : vector<4x8x4xf32> to vector<32x4xf32>
    %cst_282 = arith.constant dense<0.000000e+00> : vector<32xf32>
    %1201 = vector.multi_reduction <add>, %1200, %cst_282 [1] : vector<32x4xf32> to vector<32xf32>
    %1202 = vector.shape_cast %1201 : vector<32xf32> to vector<32x1xf32>
    %cst_283 = arith.constant 4.000000e+00 : f32
    %1203 = vector.broadcast %cst_283 : f32 to vector<32x1xf32>
    %1204 = arith.divf %1202, %1203 : vector<32x1xf32>
    %1205 = vector.broadcast %1204 : vector<32x1xf32> to vector<32x4xf32>
    %1206 = arith.subf %1200, %1205 : vector<32x4xf32>
    %1207 = arith.mulf %1206, %1206 : vector<32x4xf32>
    %cst_284 = arith.constant dense<0.000000e+00> : vector<32xf32>
    %1208 = vector.multi_reduction <add>, %1207, %cst_284 [1] : vector<32x4xf32> to vector<32xf32>
    %1209 = vector.shape_cast %1208 : vector<32xf32> to vector<32x1xf32>
    %cst_285 = arith.constant 4.000000e+00 : f32
    %1210 = vector.broadcast %cst_285 : f32 to vector<32x1xf32>
    %1211 = arith.divf %1209, %1210 : vector<32x1xf32>
    %1212 = vector.broadcast %1204 : vector<32x1xf32> to vector<32x4xf32>
    %1213 = arith.subf %1200, %1212 : vector<32x4xf32>
    %cst_286 = arith.constant 9.99999974E-6 : f32
    %1214 = vector.broadcast %cst_286 : f32 to vector<32x1xf32>
    %1215 = arith.addf %1211, %1214 : vector<32x1xf32>
    %1216 = math.rsqrt %1215 : vector<32x1xf32>
    %1217 = vector.broadcast %1216 : vector<32x1xf32> to vector<32x4xf32>
    %1218 = arith.mulf %1213, %1217 : vector<32x4xf32>
    %c0_287 = arith.constant 0 : index
    %c0_288 = arith.constant 0 : index
    %1219 = vector.load %arg5[%c0_287, %c0_288] : memref<1x4xf32, #tpu.memory_space<vmem>>, vector<1x4xf32>
    %1220 = vector.broadcast %1219 : vector<1x4xf32> to vector<32x4xf32>
    %1221 = arith.mulf %1218, %1220 : vector<32x4xf32>
    %c0_289 = arith.constant 0 : index
    %c0_290 = arith.constant 0 : index
    %1222 = vector.load %arg6[%c0_289, %c0_290] : memref<1x4xf32, #tpu.memory_space<vmem>>, vector<1x4xf32>
    %1223 = vector.broadcast %1222 : vector<1x4xf32> to vector<32x4xf32>
    %1224 = arith.addf %1221, %1223 : vector<32x4xf32>
    %c0_291 = arith.constant 0 : index
    %c0_292 = arith.constant 0 : index
    %1225 = vector.load %arg7[%c0_291, %c0_292] : memref<4x32xf32, #tpu.memory_space<vmem>>, vector<4x32xf32>
    %cst_293 = arith.constant dense<0.000000e+00> : vector<32x32xf32>
    %1226 = tpu.matmul %1224, %1225, %cst_293 {dimension_numbers = #tpu.dot_dimension_numbers<[1], [0], [0], [1], [0, 0, 1, 1], [], []>} : vector<32x4xf32>, vector<4x32xf32>, vector<32x32xf32> -> vector<32x32xf32>
    %c0_294 = arith.constant 0 : index
    %c0_295 = arith.constant 0 : index
    %1227 = vector.load %arg8[%c0_294, %c0_295] : memref<1x32xf32, #tpu.memory_space<vmem>>, vector<1x32xf32>
    %1228 = vector.broadcast %1227 : vector<1x32xf32> to vector<32x32xf32>
    %1229 = arith.addf %1226, %1228 : vector<32x32xf32>
    %cst_296 = arith.constant 0.000000e+00 : f32
    %1230 = vector.broadcast %cst_296 : f32 to vector<32x32xf32>
    %1231 = arith.maximumf %1229, %1230 : vector<32x32xf32>
    %c0_297 = arith.constant 0 : index
    %c0_298 = arith.constant 0 : index
    %1232 = vector.load %arg9[%c0_297, %c0_298] : memref<32x32xf32, #tpu.memory_space<vmem>>, vector<32x32xf32>
    %cst_299 = arith.constant dense<0.000000e+00> : vector<32x32xf32>
    %1233 = tpu.matmul %1231, %1232, %cst_299 {dimension_numbers = #tpu.dot_dimension_numbers<[1], [0], [0], [1], [0, 0, 1, 1], [], []>} : vector<32x32xf32>, vector<32x32xf32>, vector<32x32xf32> -> vector<32x32xf32>
    %c0_300 = arith.constant 0 : index
    %c0_301 = arith.constant 0 : index
    %1234 = vector.load %arg10[%c0_300, %c0_301] : memref<1x32xf32, #tpu.memory_space<vmem>>, vector<1x32xf32>
    %1235 = vector.broadcast %1234 : vector<1x32xf32> to vector<32x32xf32>
    %1236 = arith.addf %1233, %1235 : vector<32x32xf32>
    %cst_302 = arith.constant 0.000000e+00 : f32
    %1237 = vector.broadcast %cst_302 : f32 to vector<32x32xf32>
    %1238 = arith.maximumf %1236, %1237 : vector<32x32xf32>
    %cst_303 = arith.constant dense<0.000000e+00> : vector<32xf32>
    %1239 = vector.multi_reduction <add>, %1238, %cst_303 [1] : vector<32x32xf32> to vector<32xf32>
    %1240 = vector.shape_cast %1239 : vector<32xf32> to vector<32x1xf32>
    %cst_304 = arith.constant 3.200000e+01 : f32
    %1241 = vector.broadcast %cst_304 : f32 to vector<32x1xf32>
    %1242 = arith.divf %1240, %1241 : vector<32x1xf32>
    %1243 = vector.broadcast %1242 : vector<32x1xf32> to vector<32x32xf32>
    %1244 = arith.subf %1238, %1243 : vector<32x32xf32>
    %1245 = arith.mulf %1244, %1244 : vector<32x32xf32>
    %cst_305 = arith.constant dense<0.000000e+00> : vector<32xf32>
    %1246 = vector.multi_reduction <add>, %1245, %cst_305 [1] : vector<32x32xf32> to vector<32xf32>
    %1247 = vector.shape_cast %1246 : vector<32xf32> to vector<32x1xf32>
    %cst_306 = arith.constant 3.200000e+01 : f32
    %1248 = vector.broadcast %cst_306 : f32 to vector<32x1xf32>
    %1249 = arith.divf %1247, %1248 : vector<32x1xf32>
    %1250 = vector.broadcast %1242 : vector<32x1xf32> to vector<32x32xf32>
    %1251 = arith.subf %1238, %1250 : vector<32x32xf32>
    %cst_307 = arith.constant 9.99999974E-6 : f32
    %1252 = vector.broadcast %cst_307 : f32 to vector<32x1xf32>
    %1253 = arith.addf %1249, %1252 : vector<32x1xf32>
    %1254 = math.rsqrt %1253 : vector<32x1xf32>
    %1255 = vector.broadcast %1254 : vector<32x1xf32> to vector<32x32xf32>
    %1256 = arith.mulf %1251, %1255 : vector<32x32xf32>
    %c0_308 = arith.constant 0 : index
    %c0_309 = arith.constant 0 : index
    %1257 = vector.load %arg11[%c0_308, %c0_309] : memref<1x32xf32, #tpu.memory_space<vmem>>, vector<1x32xf32>
    %1258 = vector.broadcast %1257 : vector<1x32xf32> to vector<32x32xf32>
    %1259 = arith.mulf %1256, %1258 : vector<32x32xf32>
    %c0_310 = arith.constant 0 : index
    %c0_311 = arith.constant 0 : index
    %1260 = vector.load %arg12[%c0_310, %c0_311] : memref<1x32xf32, #tpu.memory_space<vmem>>, vector<1x32xf32>
    %1261 = vector.broadcast %1260 : vector<1x32xf32> to vector<32x32xf32>
    %1262 = arith.addf %1259, %1261 : vector<32x32xf32>
    %1263 = vector.shape_cast %1262 : vector<32x32xf32> to vector<4x8x32xf32>
    %1264 = vector.extract_strided_slice %1263 {offsets = [0, 0, 0], sizes = [2, 8, 32], strides = [1, 1, 1]} : vector<4x8x32xf32> to vector<2x8x32xf32>
    %1265 = vector.extract_strided_slice %1263 {offsets = [2, 0, 0], sizes = [2, 8, 32], strides = [1, 1, 1]} : vector<4x8x32xf32> to vector<2x8x32xf32>
    %c0_312 = arith.constant 0 : index
    %c0_313 = arith.constant 0 : index
    %c0_314 = arith.constant 0 : index
    %1266 = vector.load %arg13[%c0_312, %c0_313, %c0_314] : memref<8x32x16xf32, #tpu.memory_space<vmem>>, vector<8x32x16xf32>
    %c0_315 = arith.constant 0 : index
    %c0_316 = arith.constant 0 : index
    %c0_317 = arith.constant 0 : index
    %1267 = vector.load %arg14[%c0_315, %c0_316, %c0_317] : memref<8x32x16xf32, #tpu.memory_space<vmem>>, vector<8x32x16xf32>
    %c0_318 = arith.constant 0 : index
    %c0_319 = arith.constant 0 : index
    %1268 = vector.load %arg15[%c0_318, %c0_319] : memref<1x16xf32, #tpu.memory_space<vmem>>, vector<1x16xf32>
    %1269 = vector.shape_cast %1268 : vector<1x16xf32> to vector<1x16xf32>
    %1270 = vector.broadcast %1269 : vector<1x16xf32> to vector<2x16xf32>
    %1271 = vector.extract_strided_slice %1264 {offsets = [0, 0, 0], sizes = [2, 1, 32], strides = [1, 1, 1]} : vector<2x8x32xf32> to vector<2x1x32xf32>
    %1272 = vector.shape_cast %1271 : vector<2x1x32xf32> to vector<2x32xf32>
    %1273 = vector.extract_strided_slice %1266 {offsets = [0, 0, 0], sizes = [1, 32, 16], strides = [1, 1, 1]} : vector<8x32x16xf32> to vector<1x32x16xf32>
    %1274 = vector.shape_cast %1273 : vector<1x32x16xf32> to vector<32x16xf32>
    %cst_320 = arith.constant dense<0.000000e+00> : vector<2x16xf32>
    %1275 = tpu.matmul %1272, %1274, %cst_320 {dimension_numbers = #tpu.dot_dimension_numbers<[1], [0], [0], [1], [0, 0, 1, 1], [], []>} : vector<2x32xf32>, vector<32x16xf32>, vector<2x16xf32> -> vector<2x16xf32>
    %1276 = arith.addf %1270, %1275 : vector<2x16xf32>
    %1277 = vector.extract_strided_slice %1265 {offsets = [0, 0, 0], sizes = [2, 1, 32], strides = [1, 1, 1]} : vector<2x8x32xf32> to vector<2x1x32xf32>
    %1278 = vector.shape_cast %1277 : vector<2x1x32xf32> to vector<2x32xf32>
    %1279 = vector.extract_strided_slice %1267 {offsets = [0, 0, 0], sizes = [1, 32, 16], strides = [1, 1, 1]} : vector<8x32x16xf32> to vector<1x32x16xf32>
    %1280 = vector.shape_cast %1279 : vector<1x32x16xf32> to vector<32x16xf32>
    %cst_321 = arith.constant dense<0.000000e+00> : vector<2x16xf32>
    %1281 = tpu.matmul %1278, %1280, %cst_321 {dimension_numbers = #tpu.dot_dimension_numbers<[1], [0], [0], [1], [0, 0, 1, 1], [], []>} : vector<2x32xf32>, vector<32x16xf32>, vector<2x16xf32> -> vector<2x16xf32>
    %1282 = arith.addf %1276, %1281 : vector<2x16xf32>
    %1283 = vector.extract_strided_slice %1264 {offsets = [0, 1, 0], sizes = [2, 1, 32], strides = [1, 1, 1]} : vector<2x8x32xf32> to vector<2x1x32xf32>
    %1284 = vector.shape_cast %1283 : vector<2x1x32xf32> to vector<2x32xf32>
    %1285 = vector.extract_strided_slice %1266 {offsets = [1, 0, 0], sizes = [1, 32, 16], strides = [1, 1, 1]} : vector<8x32x16xf32> to vector<1x32x16xf32>
    %1286 = vector.shape_cast %1285 : vector<1x32x16xf32> to vector<32x16xf32>
    %cst_322 = arith.constant dense<0.000000e+00> : vector<2x16xf32>
    %1287 = tpu.matmul %1284, %1286, %cst_322 {dimension_numbers = #tpu.dot_dimension_numbers<[1], [0], [0], [1], [0, 0, 1, 1], [], []>} : vector<2x32xf32>, vector<32x16xf32>, vector<2x16xf32> -> vector<2x16xf32>
    %1288 = arith.addf %1282, %1287 : vector<2x16xf32>
    %1289 = vector.extract_strided_slice %1265 {offsets = [0, 1, 0], sizes = [2, 1, 32], strides = [1, 1, 1]} : vector<2x8x32xf32> to vector<2x1x32xf32>
    %1290 = vector.shape_cast %1289 : vector<2x1x32xf32> to vector<2x32xf32>
    %1291 = vector.extract_strided_slice %1267 {offsets = [1, 0, 0], sizes = [1, 32, 16], strides = [1, 1, 1]} : vector<8x32x16xf32> to vector<1x32x16xf32>
    %1292 = vector.shape_cast %1291 : vector<1x32x16xf32> to vector<32x16xf32>
    %cst_323 = arith.constant dense<0.000000e+00> : vector<2x16xf32>
    %1293 = tpu.matmul %1290, %1292, %cst_323 {dimension_numbers = #tpu.dot_dimension_numbers<[1], [0], [0], [1], [0, 0, 1, 1], [], []>} : vector<2x32xf32>, vector<32x16xf32>, vector<2x16xf32> -> vector<2x16xf32>
    %1294 = arith.addf %1288, %1293 : vector<2x16xf32>
    %1295 = vector.extract_strided_slice %1264 {offsets = [0, 2, 0], sizes = [2, 1, 32], strides = [1, 1, 1]} : vector<2x8x32xf32> to vector<2x1x32xf32>
    %1296 = vector.shape_cast %1295 : vector<2x1x32xf32> to vector<2x32xf32>
    %1297 = vector.extract_strided_slice %1266 {offsets = [2, 0, 0], sizes = [1, 32, 16], strides = [1, 1, 1]} : vector<8x32x16xf32> to vector<1x32x16xf32>
    %1298 = vector.shape_cast %1297 : vector<1x32x16xf32> to vector<32x16xf32>
    %cst_324 = arith.constant dense<0.000000e+00> : vector<2x16xf32>
    %1299 = tpu.matmul %1296, %1298, %cst_324 {dimension_numbers = #tpu.dot_dimension_numbers<[1], [0], [0], [1], [0, 0, 1, 1], [], []>} : vector<2x32xf32>, vector<32x16xf32>, vector<2x16xf32> -> vector<2x16xf32>
    %1300 = arith.addf %1294, %1299 : vector<2x16xf32>
    %1301 = vector.extract_strided_slice %1265 {offsets = [0, 2, 0], sizes = [2, 1, 32], strides = [1, 1, 1]} : vector<2x8x32xf32> to vector<2x1x32xf32>
    %1302 = vector.shape_cast %1301 : vector<2x1x32xf32> to vector<2x32xf32>
    %1303 = vector.extract_strided_slice %1267 {offsets = [2, 0, 0], sizes = [1, 32, 16], strides = [1, 1, 1]} : vector<8x32x16xf32> to vector<1x32x16xf32>
    %1304 = vector.shape_cast %1303 : vector<1x32x16xf32> to vector<32x16xf32>
    %cst_325 = arith.constant dense<0.000000e+00> : vector<2x16xf32>
    %1305 = tpu.matmul %1302, %1304, %cst_325 {dimension_numbers = #tpu.dot_dimension_numbers<[1], [0], [0], [1], [0, 0, 1, 1], [], []>} : vector<2x32xf32>, vector<32x16xf32>, vector<2x16xf32> -> vector<2x16xf32>
    %1306 = arith.addf %1300, %1305 : vector<2x16xf32>
    %1307 = vector.extract_strided_slice %1264 {offsets = [0, 3, 0], sizes = [2, 1, 32], strides = [1, 1, 1]} : vector<2x8x32xf32> to vector<2x1x32xf32>
    %1308 = vector.shape_cast %1307 : vector<2x1x32xf32> to vector<2x32xf32>
    %1309 = vector.extract_strided_slice %1266 {offsets = [3, 0, 0], sizes = [1, 32, 16], strides = [1, 1, 1]} : vector<8x32x16xf32> to vector<1x32x16xf32>
    %1310 = vector.shape_cast %1309 : vector<1x32x16xf32> to vector<32x16xf32>
    %cst_326 = arith.constant dense<0.000000e+00> : vector<2x16xf32>
    %1311 = tpu.matmul %1308, %1310, %cst_326 {dimension_numbers = #tpu.dot_dimension_numbers<[1], [0], [0], [1], [0, 0, 1, 1], [], []>} : vector<2x32xf32>, vector<32x16xf32>, vector<2x16xf32> -> vector<2x16xf32>
    %1312 = arith.addf %1306, %1311 : vector<2x16xf32>
    %1313 = vector.extract_strided_slice %1265 {offsets = [0, 3, 0], sizes = [2, 1, 32], strides = [1, 1, 1]} : vector<2x8x32xf32> to vector<2x1x32xf32>
    %1314 = vector.shape_cast %1313 : vector<2x1x32xf32> to vector<2x32xf32>
    %1315 = vector.extract_strided_slice %1267 {offsets = [3, 0, 0], sizes = [1, 32, 16], strides = [1, 1, 1]} : vector<8x32x16xf32> to vector<1x32x16xf32>
    %1316 = vector.shape_cast %1315 : vector<1x32x16xf32> to vector<32x16xf32>
    %cst_327 = arith.constant dense<0.000000e+00> : vector<2x16xf32>
    %1317 = tpu.matmul %1314, %1316, %cst_327 {dimension_numbers = #tpu.dot_dimension_numbers<[1], [0], [0], [1], [0, 0, 1, 1], [], []>} : vector<2x32xf32>, vector<32x16xf32>, vector<2x16xf32> -> vector<2x16xf32>
    %1318 = arith.addf %1312, %1317 : vector<2x16xf32>
    %1319 = vector.extract_strided_slice %1264 {offsets = [0, 4, 0], sizes = [2, 1, 32], strides = [1, 1, 1]} : vector<2x8x32xf32> to vector<2x1x32xf32>
    %1320 = vector.shape_cast %1319 : vector<2x1x32xf32> to vector<2x32xf32>
    %1321 = vector.extract_strided_slice %1266 {offsets = [4, 0, 0], sizes = [1, 32, 16], strides = [1, 1, 1]} : vector<8x32x16xf32> to vector<1x32x16xf32>
    %1322 = vector.shape_cast %1321 : vector<1x32x16xf32> to vector<32x16xf32>
    %cst_328 = arith.constant dense<0.000000e+00> : vector<2x16xf32>
    %1323 = tpu.matmul %1320, %1322, %cst_328 {dimension_numbers = #tpu.dot_dimension_numbers<[1], [0], [0], [1], [0, 0, 1, 1], [], []>} : vector<2x32xf32>, vector<32x16xf32>, vector<2x16xf32> -> vector<2x16xf32>
    %1324 = arith.addf %1318, %1323 : vector<2x16xf32>
    %1325 = vector.extract_strided_slice %1265 {offsets = [0, 4, 0], sizes = [2, 1, 32], strides = [1, 1, 1]} : vector<2x8x32xf32> to vector<2x1x32xf32>
    %1326 = vector.shape_cast %1325 : vector<2x1x32xf32> to vector<2x32xf32>
    %1327 = vector.extract_strided_slice %1267 {offsets = [4, 0, 0], sizes = [1, 32, 16], strides = [1, 1, 1]} : vector<8x32x16xf32> to vector<1x32x16xf32>
    %1328 = vector.shape_cast %1327 : vector<1x32x16xf32> to vector<32x16xf32>
    %cst_329 = arith.constant dense<0.000000e+00> : vector<2x16xf32>
    %1329 = tpu.matmul %1326, %1328, %cst_329 {dimension_numbers = #tpu.dot_dimension_numbers<[1], [0], [0], [1], [0, 0, 1, 1], [], []>} : vector<2x32xf32>, vector<32x16xf32>, vector<2x16xf32> -> vector<2x16xf32>
    %1330 = arith.addf %1324, %1329 : vector<2x16xf32>
    %1331 = vector.extract_strided_slice %1264 {offsets = [0, 5, 0], sizes = [2, 1, 32], strides = [1, 1, 1]} : vector<2x8x32xf32> to vector<2x1x32xf32>
    %1332 = vector.shape_cast %1331 : vector<2x1x32xf32> to vector<2x32xf32>
    %1333 = vector.extract_strided_slice %1266 {offsets = [5, 0, 0], sizes = [1, 32, 16], strides = [1, 1, 1]} : vector<8x32x16xf32> to vector<1x32x16xf32>
    %1334 = vector.shape_cast %1333 : vector<1x32x16xf32> to vector<32x16xf32>
    %cst_330 = arith.constant dense<0.000000e+00> : vector<2x16xf32>
    %1335 = tpu.matmul %1332, %1334, %cst_330 {dimension_numbers = #tpu.dot_dimension_numbers<[1], [0], [0], [1], [0, 0, 1, 1], [], []>} : vector<2x32xf32>, vector<32x16xf32>, vector<2x16xf32> -> vector<2x16xf32>
    %1336 = arith.addf %1330, %1335 : vector<2x16xf32>
    %1337 = vector.extract_strided_slice %1265 {offsets = [0, 5, 0], sizes = [2, 1, 32], strides = [1, 1, 1]} : vector<2x8x32xf32> to vector<2x1x32xf32>
    %1338 = vector.shape_cast %1337 : vector<2x1x32xf32> to vector<2x32xf32>
    %1339 = vector.extract_strided_slice %1267 {offsets = [5, 0, 0], sizes = [1, 32, 16], strides = [1, 1, 1]} : vector<8x32x16xf32> to vector<1x32x16xf32>
    %1340 = vector.shape_cast %1339 : vector<1x32x16xf32> to vector<32x16xf32>
    %cst_331 = arith.constant dense<0.000000e+00> : vector<2x16xf32>
    %1341 = tpu.matmul %1338, %1340, %cst_331 {dimension_numbers = #tpu.dot_dimension_numbers<[1], [0], [0], [1], [0, 0, 1, 1], [], []>} : vector<2x32xf32>, vector<32x16xf32>, vector<2x16xf32> -> vector<2x16xf32>
    %1342 = arith.addf %1336, %1341 : vector<2x16xf32>
    %1343 = vector.extract_strided_slice %1264 {offsets = [0, 6, 0], sizes = [2, 1, 32], strides = [1, 1, 1]} : vector<2x8x32xf32> to vector<2x1x32xf32>
    %1344 = vector.shape_cast %1343 : vector<2x1x32xf32> to vector<2x32xf32>
    %1345 = vector.extract_strided_slice %1266 {offsets = [6, 0, 0], sizes = [1, 32, 16], strides = [1, 1, 1]} : vector<8x32x16xf32> to vector<1x32x16xf32>
    %1346 = vector.shape_cast %1345 : vector<1x32x16xf32> to vector<32x16xf32>
    %cst_332 = arith.constant dense<0.000000e+00> : vector<2x16xf32>
    %1347 = tpu.matmul %1344, %1346, %cst_332 {dimension_numbers = #tpu.dot_dimension_numbers<[1], [0], [0], [1], [0, 0, 1, 1], [], []>} : vector<2x32xf32>, vector<32x16xf32>, vector<2x16xf32> -> vector<2x16xf32>
    %1348 = arith.addf %1342, %1347 : vector<2x16xf32>
    %1349 = vector.extract_strided_slice %1265 {offsets = [0, 6, 0], sizes = [2, 1, 32], strides = [1, 1, 1]} : vector<2x8x32xf32> to vector<2x1x32xf32>
    %1350 = vector.shape_cast %1349 : vector<2x1x32xf32> to vector<2x32xf32>
    %1351 = vector.extract_strided_slice %1267 {offsets = [6, 0, 0], sizes = [1, 32, 16], strides = [1, 1, 1]} : vector<8x32x16xf32> to vector<1x32x16xf32>
    %1352 = vector.shape_cast %1351 : vector<1x32x16xf32> to vector<32x16xf32>
    %cst_333 = arith.constant dense<0.000000e+00> : vector<2x16xf32>
    %1353 = tpu.matmul %1350, %1352, %cst_333 {dimension_numbers = #tpu.dot_dimension_numbers<[1], [0], [0], [1], [0, 0, 1, 1], [], []>} : vector<2x32xf32>, vector<32x16xf32>, vector<2x16xf32> -> vector<2x16xf32>
    %1354 = arith.addf %1348, %1353 : vector<2x16xf32>
    %1355 = vector.extract_strided_slice %1264 {offsets = [0, 7, 0], sizes = [2, 1, 32], strides = [1, 1, 1]} : vector<2x8x32xf32> to vector<2x1x32xf32>
    %1356 = vector.shape_cast %1355 : vector<2x1x32xf32> to vector<2x32xf32>
    %1357 = vector.extract_strided_slice %1266 {offsets = [7, 0, 0], sizes = [1, 32, 16], strides = [1, 1, 1]} : vector<8x32x16xf32> to vector<1x32x16xf32>
    %1358 = vector.shape_cast %1357 : vector<1x32x16xf32> to vector<32x16xf32>
    %cst_334 = arith.constant dense<0.000000e+00> : vector<2x16xf32>
    %1359 = tpu.matmul %1356, %1358, %cst_334 {dimension_numbers = #tpu.dot_dimension_numbers<[1], [0], [0], [1], [0, 0, 1, 1], [], []>} : vector<2x32xf32>, vector<32x16xf32>, vector<2x16xf32> -> vector<2x16xf32>
    %1360 = arith.addf %1354, %1359 : vector<2x16xf32>
    %1361 = vector.extract_strided_slice %1265 {offsets = [0, 7, 0], sizes = [2, 1, 32], strides = [1, 1, 1]} : vector<2x8x32xf32> to vector<2x1x32xf32>
    %1362 = vector.shape_cast %1361 : vector<2x1x32xf32> to vector<2x32xf32>
    %1363 = vector.extract_strided_slice %1267 {offsets = [7, 0, 0], sizes = [1, 32, 16], strides = [1, 1, 1]} : vector<8x32x16xf32> to vector<1x32x16xf32>
    %1364 = vector.shape_cast %1363 : vector<1x32x16xf32> to vector<32x16xf32>
    %cst_335 = arith.constant dense<0.000000e+00> : vector<2x16xf32>
    %1365 = tpu.matmul %1362, %1364, %cst_335 {dimension_numbers = #tpu.dot_dimension_numbers<[1], [0], [0], [1], [0, 0, 1, 1], [], []>} : vector<2x32xf32>, vector<32x16xf32>, vector<2x16xf32> -> vector<2x16xf32>
    %1366 = arith.addf %1360, %1365 : vector<2x16xf32>
    %cst_336 = arith.constant 0.000000e+00 : f32
    %1367 = vector.broadcast %cst_336 : f32 to vector<2x16xf32>
    %1368 = arith.maximumf %1366, %1367 : vector<2x16xf32>
    %c0_337 = arith.constant 0 : index
    %c0_338 = arith.constant 0 : index
    %1369 = vector.load %arg16[%c0_337, %c0_338] : memref<16x5xf32, #tpu.memory_space<vmem>>, vector<16x5xf32>
    %cst_339 = arith.constant dense<0.000000e+00> : vector<2x5xf32>
    %1370 = tpu.matmul %1368, %1369, %cst_339 {dimension_numbers = #tpu.dot_dimension_numbers<[1], [0], [0], [1], [0, 0, 1, 1], [], []>} : vector<2x16xf32>, vector<16x5xf32>, vector<2x5xf32> -> vector<2x5xf32>
    %c0_340 = arith.constant 0 : index
    %c0_341 = arith.constant 0 : index
    %1371 = vector.load %arg17[%c0_340, %c0_341] : memref<1x5xf32, #tpu.memory_space<vmem>>, vector<1x5xf32>
    %1372 = vector.broadcast %1371 : vector<1x5xf32> to vector<2x5xf32>
    %1373 = arith.addf %1370, %1372 : vector<2x5xf32>
    %1374 = math.tanh %1373 : vector<2x5xf32>
    %c0_342 = arith.constant 0 : index
    %c0_343 = arith.constant 0 : index
    %1375 = vector.load %arg20[%c0_342, %c0_343] : memref<2x5xf32, #tpu.memory_space<vmem>>, vector<2x5xf32>
    tpu.vector_store %arg20[%c0_342, %c0_343], %1374 {strides = array<i32>} : memref<2x5xf32, #tpu.memory_space<vmem>>, vector<2x5xf32>,
    %c0_344 = arith.constant 0 : index
    %c0_345 = arith.constant 0 : index
    %1376 = vector.load %arg3[%c0_344, %c0_345] : memref<5x6xf32, #tpu.memory_space<vmem>>, vector<5x6xf32>
    %cst_346 = arith.constant dense<0.000000e+00> : vector<2x6xf32>
    %1377 = tpu.matmul %1374, %1376, %cst_346 {dimension_numbers = #tpu.dot_dimension_numbers<[1], [0], [0], [1], [0, 0, 1, 1], [], []>} : vector<2x5xf32>, vector<5x6xf32>, vector<2x6xf32> -> vector<2x6xf32>
    %c0_347 = arith.constant 0 : index
    %c0_348 = arith.constant 0 : index
    %1378 = vector.load %arg4[%c0_347, %c0_348] : memref<5x6xf32, #tpu.memory_space<vmem>>, vector<5x6xf32>
    %cst_349 = arith.constant dense<0.000000e+00> : vector<2x6xf32>
    %1379 = tpu.matmul %1374, %1378, %cst_349 {dimension_numbers = #tpu.dot_dimension_numbers<[1], [0], [0], [1], [0, 0, 1, 1], [], []>} : vector<2x5xf32>, vector<5x6xf32>, vector<2x6xf32> -> vector<2x6xf32>
    %cst_350 = arith.constant 2.000000e-02 : f32
    %1380 = vector.broadcast %cst_350 : f32 to vector<2x6xf32>
    %1381 = arith.mulf %1377, %1380 : vector<2x6xf32>
    %1382 = math.exp %1381 : vector<2x6xf32>
    %1383 = math.absf %1377 : vector<2x6xf32>
    %cst_351 = arith.constant 9.99999993E-9 : f32
    %1384 = vector.broadcast %cst_351 : f32 to vector<2x6xf32>
    %1385 = arith.cmpf olt, %1383, %1384 : vector<2x6xf32>
    %cst_352 = arith.constant 1.000000e+00 : f32
    %1386 = vector.broadcast %cst_352 : f32 to vector<2x6xf32>
    %1387 = arith.select %1385, %1386, %1377 : vector<2x6xi1>, vector<2x6xf32>
    %cst_353 = arith.constant 2.000000e-02 : f32
    %1388 = vector.broadcast %cst_353 : f32 to vector<2x6xf32>
    %1389 = arith.mulf %1379, %1388 : vector<2x6xf32>
    %1390 = arith.divf %1379, %1387 : vector<2x6xf32>
    %cst_354 = arith.constant 1.000000e+00 : f32
    %1391 = vector.broadcast %cst_354 : f32 to vector<2x6xf32>
    %1392 = arith.subf %1382, %1391 : vector<2x6xf32>
    %1393 = arith.mulf %1390, %1392 : vector<2x6xf32>
    %1394 = arith.select %1385, %1389, %1393 : vector<2x6xi1>, vector<2x6xf32>
    %1395 = vector.extract_strided_slice %1382 {offsets = [0, 0], sizes = [2, 1], strides = [1, 1]} : vector<2x6xf32> to vector<2x1xf32>
    %1396 = vector.shape_cast %1395 : vector<2x1xf32> to vector<2x1xf32>
    %1397 = vector.broadcast %1396 : vector<2x1xf32> to vector<2x8xf32>
    %1398 = vector.extract_strided_slice %1382 {offsets = [0, 1], sizes = [2, 1], strides = [1, 1]} : vector<2x6xf32> to vector<2x1xf32>
    %1399 = vector.shape_cast %1398 : vector<2x1xf32> to vector<2x1xf32>
    %1400 = vector.broadcast %1399 : vector<2x1xf32> to vector<2x8xf32>
    %1401 = vector.extract_strided_slice %1382 {offsets = [0, 2], sizes = [2, 1], strides = [1, 1]} : vector<2x6xf32> to vector<2x1xf32>
    %1402 = vector.shape_cast %1401 : vector<2x1xf32> to vector<2x1xf32>
    %1403 = vector.broadcast %1402 : vector<2x1xf32> to vector<2x8xf32>
    %1404 = vector.extract_strided_slice %1382 {offsets = [0, 3], sizes = [2, 1], strides = [1, 1]} : vector<2x6xf32> to vector<2x1xf32>
    %1405 = vector.shape_cast %1404 : vector<2x1xf32> to vector<2x1xf32>
    %1406 = vector.broadcast %1405 : vector<2x1xf32> to vector<2x8xf32>
    %1407 = vector.extract_strided_slice %1382 {offsets = [0, 4], sizes = [2, 1], strides = [1, 1]} : vector<2x6xf32> to vector<2x1xf32>
    %1408 = vector.shape_cast %1407 : vector<2x1xf32> to vector<2x1xf32>
    %1409 = vector.broadcast %1408 : vector<2x1xf32> to vector<2x8xf32>
    %1410 = vector.extract_strided_slice %1382 {offsets = [0, 5], sizes = [2, 1], strides = [1, 1]} : vector<2x6xf32> to vector<2x1xf32>
    %1411 = vector.shape_cast %1410 : vector<2x1xf32> to vector<2x1xf32>
    %1412 = vector.broadcast %1411 : vector<2x1xf32> to vector<2x8xf32>
    %1413 = vector.extract_strided_slice %1394 {offsets = [0, 0], sizes = [2, 1], strides = [1, 1]} : vector<2x6xf32> to vector<2x1xf32>
    %1414 = vector.shape_cast %1413 : vector<2x1xf32> to vector<2x1xf32>
    %1415 = vector.broadcast %1414 : vector<2x1xf32> to vector<2x8xf32>
    %1416 = vector.extract_strided_slice %1394 {offsets = [0, 1], sizes = [2, 1], strides = [1, 1]} : vector<2x6xf32> to vector<2x1xf32>
    %1417 = vector.shape_cast %1416 : vector<2x1xf32> to vector<2x1xf32>
    %1418 = vector.broadcast %1417 : vector<2x1xf32> to vector<2x8xf32>
    %1419 = vector.extract_strided_slice %1394 {offsets = [0, 2], sizes = [2, 1], strides = [1, 1]} : vector<2x6xf32> to vector<2x1xf32>
    %1420 = vector.shape_cast %1419 : vector<2x1xf32> to vector<2x1xf32>
    %1421 = vector.broadcast %1420 : vector<2x1xf32> to vector<2x8xf32>
    %1422 = vector.extract_strided_slice %1394 {offsets = [0, 3], sizes = [2, 1], strides = [1, 1]} : vector<2x6xf32> to vector<2x1xf32>
    %1423 = vector.shape_cast %1422 : vector<2x1xf32> to vector<2x1xf32>
    %1424 = vector.broadcast %1423 : vector<2x1xf32> to vector<2x8xf32>
    %1425 = vector.extract_strided_slice %1394 {offsets = [0, 4], sizes = [2, 1], strides = [1, 1]} : vector<2x6xf32> to vector<2x1xf32>
    %1426 = vector.shape_cast %1425 : vector<2x1xf32> to vector<2x1xf32>
    %1427 = vector.broadcast %1426 : vector<2x1xf32> to vector<2x8xf32>
    %1428 = vector.extract_strided_slice %1394 {offsets = [0, 5], sizes = [2, 1], strides = [1, 1]} : vector<2x6xf32> to vector<2x1xf32>
    %1429 = vector.shape_cast %1428 : vector<2x1xf32> to vector<2x1xf32>
    %1430 = vector.broadcast %1429 : vector<2x1xf32> to vector<2x8xf32>
    %1431 = tpu.iota {dimensions = array<i32: 1>} : vector<2x8xi32>
    %1432 = arith.sitofp %1431 : vector<2x8xi32> to vector<2x8xf32>
    %cst_355 = arith.constant 7.000000e+00 : f32
    %1433 = vector.broadcast %cst_355 : f32 to vector<2x8xf32>
    %1434 = arith.divf %1432, %1433 : vector<2x8xf32>
    %cst_356 = arith.constant 0.166666672 : f32
    %1435 = vector.broadcast %cst_356 : f32 to vector<2x8xf32>
    %1436 = arith.cmpf oge, %1434, %1435 : vector<2x8xf32>
    %1437 = arith.select %1436, %1400, %1397 : vector<2x8xi1>, vector<2x8xf32>
    %1438 = arith.select %1436, %1418, %1415 : vector<2x8xi1>, vector<2x8xf32>
    %cst_357 = arith.constant 0.333333343 : f32
    %1439 = vector.broadcast %cst_357 : f32 to vector<2x8xf32>
    %1440 = arith.cmpf oge, %1434, %1439 : vector<2x8xf32>
    %1441 = arith.select %1440, %1403, %1437 : vector<2x8xi1>, vector<2x8xf32>
    %1442 = arith.select %1440, %1421, %1438 : vector<2x8xi1>, vector<2x8xf32>
    %cst_358 = arith.constant 5.000000e-01 : f32
    %1443 = vector.broadcast %cst_358 : f32 to vector<2x8xf32>
    %1444 = arith.cmpf oge, %1434, %1443 : vector<2x8xf32>
    %1445 = arith.select %1444, %1406, %1441 : vector<2x8xi1>, vector<2x8xf32>
    %1446 = arith.select %1444, %1424, %1442 : vector<2x8xi1>, vector<2x8xf32>
    %cst_359 = arith.constant 0.666666686 : f32
    %1447 = vector.broadcast %cst_359 : f32 to vector<2x8xf32>
    %1448 = arith.cmpf oge, %1434, %1447 : vector<2x8xf32>
    %1449 = arith.select %1448, %1409, %1445 : vector<2x8xi1>, vector<2x8xf32>
    %1450 = arith.select %1448, %1427, %1446 : vector<2x8xi1>, vector<2x8xf32>
    %cst_360 = arith.constant 0.833333313 : f32
    %1451 = vector.broadcast %cst_360 : f32 to vector<2x8xf32>
    %1452 = arith.cmpf oge, %1434, %1451 : vector<2x8xf32>
    %1453 = arith.select %1452, %1412, %1449 : vector<2x8xi1>, vector<2x8xf32>
    %1454 = arith.select %1452, %1430, %1450 : vector<2x8xi1>, vector<2x8xf32>
    %1455 = arith.mulf %1453, %1434 : vector<2x8xf32>
    %1456 = arith.addf %1455, %1454 : vector<2x8xf32>
    %cst_361 = arith.constant 0.166666672 : f32
    %1457 = vector.broadcast %cst_361 : f32 to vector<2x8xf32>
    %1458 = arith.cmpf oge, %1456, %1457 : vector<2x8xf32>
    %1459 = arith.select %1458, %1400, %1397 : vector<2x8xi1>, vector<2x8xf32>
    %1460 = arith.select %1458, %1418, %1415 : vector<2x8xi1>, vector<2x8xf32>
    %cst_362 = arith.constant 0.333333343 : f32
    %1461 = vector.broadcast %cst_362 : f32 to vector<2x8xf32>
    %1462 = arith.cmpf oge, %1456, %1461 : vector<2x8xf32>
    %1463 = arith.select %1462, %1403, %1459 : vector<2x8xi1>, vector<2x8xf32>
    %1464 = arith.select %1462, %1421, %1460 : vector<2x8xi1>, vector<2x8xf32>
    %cst_363 = arith.constant 5.000000e-01 : f32
    %1465 = vector.broadcast %cst_363 : f32 to vector<2x8xf32>
    %1466 = arith.cmpf oge, %1456, %1465 : vector<2x8xf32>
    %1467 = arith.select %1466, %1406, %1463 : vector<2x8xi1>, vector<2x8xf32>
    %1468 = arith.select %1466, %1424, %1464 : vector<2x8xi1>, vector<2x8xf32>
    %cst_364 = arith.constant 0.666666686 : f32
    %1469 = vector.broadcast %cst_364 : f32 to vector<2x8xf32>
    %1470 = arith.cmpf oge, %1456, %1469 : vector<2x8xf32>
    %1471 = arith.select %1470, %1409, %1467 : vector<2x8xi1>, vector<2x8xf32>
    %1472 = arith.select %1470, %1427, %1468 : vector<2x8xi1>, vector<2x8xf32>
    %cst_365 = arith.constant 0.833333313 : f32
    %1473 = vector.broadcast %cst_365 : f32 to vector<2x8xf32>
    %1474 = arith.cmpf oge, %1456, %1473 : vector<2x8xf32>
    %1475 = arith.select %1474, %1412, %1471 : vector<2x8xi1>, vector<2x8xf32>
    %1476 = arith.select %1474, %1430, %1472 : vector<2x8xi1>, vector<2x8xf32>
    %1477 = arith.mulf %1475, %1456 : vector<2x8xf32>
    %1478 = arith.addf %1477, %1476 : vector<2x8xf32>
    %cst_366 = arith.constant 0.166666672 : f32
    %1479 = vector.broadcast %cst_366 : f32 to vector<2x8xf32>
    %1480 = arith.cmpf oge, %1478, %1479 : vector<2x8xf32>
    %1481 = arith.select %1480, %1400, %1397 : vector<2x8xi1>, vector<2x8xf32>
    %1482 = arith.select %1480, %1418, %1415 : vector<2x8xi1>, vector<2x8xf32>
    %cst_367 = arith.constant 0.333333343 : f32
    %1483 = vector.broadcast %cst_367 : f32 to vector<2x8xf32>
    %1484 = arith.cmpf oge, %1478, %1483 : vector<2x8xf32>
    %1485 = arith.select %1484, %1403, %1481 : vector<2x8xi1>, vector<2x8xf32>
    %1486 = arith.select %1484, %1421, %1482 : vector<2x8xi1>, vector<2x8xf32>
    %cst_368 = arith.constant 5.000000e-01 : f32
    %1487 = vector.broadcast %cst_368 : f32 to vector<2x8xf32>
    %1488 = arith.cmpf oge, %1478, %1487 : vector<2x8xf32>
    %1489 = arith.select %1488, %1406, %1485 : vector<2x8xi1>, vector<2x8xf32>
    %1490 = arith.select %1488, %1424, %1486 : vector<2x8xi1>, vector<2x8xf32>
    %cst_369 = arith.constant 0.666666686 : f32
    %1491 = vector.broadcast %cst_369 : f32 to vector<2x8xf32>
    %1492 = arith.cmpf oge, %1478, %1491 : vector<2x8xf32>
    %1493 = arith.select %1492, %1409, %1489 : vector<2x8xi1>, vector<2x8xf32>
    %1494 = arith.select %1492, %1427, %1490 : vector<2x8xi1>, vector<2x8xf32>
    %cst_370 = arith.constant 0.833333313 : f32
    %1495 = vector.broadcast %cst_370 : f32 to vector<2x8xf32>
    %1496 = arith.cmpf oge, %1478, %1495 : vector<2x8xf32>
    %1497 = arith.select %1496, %1412, %1493 : vector<2x8xi1>, vector<2x8xf32>
    %1498 = arith.select %1496, %1430, %1494 : vector<2x8xi1>, vector<2x8xf32>
    %1499 = arith.mulf %1497, %1478 : vector<2x8xf32>
    %1500 = arith.addf %1499, %1498 : vector<2x8xf32>
    %cst_371 = arith.constant 0.166666672 : f32
    %1501 = vector.broadcast %cst_371 : f32 to vector<2x8xf32>
    %1502 = arith.cmpf oge, %1500, %1501 : vector<2x8xf32>
    %1503 = arith.select %1502, %1400, %1397 : vector<2x8xi1>, vector<2x8xf32>
    %1504 = arith.select %1502, %1418, %1415 : vector<2x8xi1>, vector<2x8xf32>
    %cst_372 = arith.constant 0.333333343 : f32
    %1505 = vector.broadcast %cst_372 : f32 to vector<2x8xf32>
    %1506 = arith.cmpf oge, %1500, %1505 : vector<2x8xf32>
    %1507 = arith.select %1506, %1403, %1503 : vector<2x8xi1>, vector<2x8xf32>
    %1508 = arith.select %1506, %1421, %1504 : vector<2x8xi1>, vector<2x8xf32>
    %cst_373 = arith.constant 5.000000e-01 : f32
    %1509 = vector.broadcast %cst_373 : f32 to vector<2x8xf32>
    %1510 = arith.cmpf oge, %1500, %1509 : vector<2x8xf32>
    %1511 = arith.select %1510, %1406, %1507 : vector<2x8xi1>, vector<2x8xf32>
    %1512 = arith.select %1510, %1424, %1508 : vector<2x8xi1>, vector<2x8xf32>
    %cst_374 = arith.constant 0.666666686 : f32
    %1513 = vector.broadcast %cst_374 : f32 to vector<2x8xf32>
    %1514 = arith.cmpf oge, %1500, %1513 : vector<2x8xf32>
    %1515 = arith.select %1514, %1409, %1511 : vector<2x8xi1>, vector<2x8xf32>
    %1516 = arith.select %1514, %1427, %1512 : vector<2x8xi1>, vector<2x8xf32>
    %cst_375 = arith.constant 0.833333313 : f32
    %1517 = vector.broadcast %cst_375 : f32 to vector<2x8xf32>
    %1518 = arith.cmpf oge, %1500, %1517 : vector<2x8xf32>
    %1519 = arith.select %1518, %1412, %1515 : vector<2x8xi1>, vector<2x8xf32>
    %1520 = arith.select %1518, %1430, %1516 : vector<2x8xi1>, vector<2x8xf32>
    %1521 = arith.mulf %1519, %1500 : vector<2x8xf32>
    %1522 = arith.addf %1521, %1520 : vector<2x8xf32>
    %cst_376 = arith.constant 0.166666672 : f32
    %1523 = vector.broadcast %cst_376 : f32 to vector<2x8xf32>
    %1524 = arith.cmpf oge, %1522, %1523 : vector<2x8xf32>
    %1525 = arith.select %1524, %1400, %1397 : vector<2x8xi1>, vector<2x8xf32>
    %1526 = arith.select %1524, %1418, %1415 : vector<2x8xi1>, vector<2x8xf32>
    %cst_377 = arith.constant 0.333333343 : f32
    %1527 = vector.broadcast %cst_377 : f32 to vector<2x8xf32>
    %1528 = arith.cmpf oge, %1522, %1527 : vector<2x8xf32>
    %1529 = arith.select %1528, %1403, %1525 : vector<2x8xi1>, vector<2x8xf32>
    %1530 = arith.select %1528, %1421, %1526 : vector<2x8xi1>, vector<2x8xf32>
    %cst_378 = arith.constant 5.000000e-01 : f32
    %1531 = vector.broadcast %cst_378 : f32 to vector<2x8xf32>
    %1532 = arith.cmpf oge, %1522, %1531 : vector<2x8xf32>
    %1533 = arith.select %1532, %1406, %1529 : vector<2x8xi1>, vector<2x8xf32>
    %1534 = arith.select %1532, %1424, %1530 : vector<2x8xi1>, vector<2x8xf32>
    %cst_379 = arith.constant 0.666666686 : f32
    %1535 = vector.broadcast %cst_379 : f32 to vector<2x8xf32>
    %1536 = arith.cmpf oge, %1522, %1535 : vector<2x8xf32>
    %1537 = arith.select %1536, %1409, %1533 : vector<2x8xi1>, vector<2x8xf32>
    %1538 = arith.select %1536, %1427, %1534 : vector<2x8xi1>, vector<2x8xf32>
    %cst_380 = arith.constant 0.833333313 : f32
    %1539 = vector.broadcast %cst_380 : f32 to vector<2x8xf32>
    %1540 = arith.cmpf oge, %1522, %1539 : vector<2x8xf32>
    %1541 = arith.select %1540, %1412, %1537 : vector<2x8xi1>, vector<2x8xf32>
    %1542 = arith.select %1540, %1430, %1538 : vector<2x8xi1>, vector<2x8xf32>
    %1543 = arith.mulf %1541, %1522 : vector<2x8xf32>
    %1544 = arith.addf %1543, %1542 : vector<2x8xf32>
    %cst_381 = arith.constant 0.166666672 : f32
    %1545 = vector.broadcast %cst_381 : f32 to vector<2x8xf32>
    %1546 = arith.cmpf oge, %1544, %1545 : vector<2x8xf32>
    %1547 = arith.select %1546, %1400, %1397 : vector<2x8xi1>, vector<2x8xf32>
    %1548 = arith.select %1546, %1418, %1415 : vector<2x8xi1>, vector<2x8xf32>
    %cst_382 = arith.constant 0.333333343 : f32
    %1549 = vector.broadcast %cst_382 : f32 to vector<2x8xf32>
    %1550 = arith.cmpf oge, %1544, %1549 : vector<2x8xf32>
    %1551 = arith.select %1550, %1403, %1547 : vector<2x8xi1>, vector<2x8xf32>
    %1552 = arith.select %1550, %1421, %1548 : vector<2x8xi1>, vector<2x8xf32>
    %cst_383 = arith.constant 5.000000e-01 : f32
    %1553 = vector.broadcast %cst_383 : f32 to vector<2x8xf32>
    %1554 = arith.cmpf oge, %1544, %1553 : vector<2x8xf32>
    %1555 = arith.select %1554, %1406, %1551 : vector<2x8xi1>, vector<2x8xf32>
    %1556 = arith.select %1554, %1424, %1552 : vector<2x8xi1>, vector<2x8xf32>
    %cst_384 = arith.constant 0.666666686 : f32
    %1557 = vector.broadcast %cst_384 : f32 to vector<2x8xf32>
    %1558 = arith.cmpf oge, %1544, %1557 : vector<2x8xf32>
    %1559 = arith.select %1558, %1409, %1555 : vector<2x8xi1>, vector<2x8xf32>
    %1560 = arith.select %1558, %1427, %1556 : vector<2x8xi1>, vector<2x8xf32>
    %cst_385 = arith.constant 0.833333313 : f32
    %1561 = vector.broadcast %cst_385 : f32 to vector<2x8xf32>
    %1562 = arith.cmpf oge, %1544, %1561 : vector<2x8xf32>
    %1563 = arith.select %1562, %1412, %1559 : vector<2x8xi1>, vector<2x8xf32>
    %1564 = arith.select %1562, %1430, %1560 : vector<2x8xi1>, vector<2x8xf32>
    %1565 = arith.mulf %1563, %1544 : vector<2x8xf32>
    %1566 = arith.addf %1565, %1564 : vector<2x8xf32>
    %cst_386 = arith.constant 0.166666672 : f32
    %1567 = vector.broadcast %cst_386 : f32 to vector<2x8xf32>
    %1568 = arith.cmpf oge, %1566, %1567 : vector<2x8xf32>
    %1569 = arith.select %1568, %1400, %1397 : vector<2x8xi1>, vector<2x8xf32>
    %1570 = arith.select %1568, %1418, %1415 : vector<2x8xi1>, vector<2x8xf32>
    %cst_387 = arith.constant 0.333333343 : f32
    %1571 = vector.broadcast %cst_387 : f32 to vector<2x8xf32>
    %1572 = arith.cmpf oge, %1566, %1571 : vector<2x8xf32>
    %1573 = arith.select %1572, %1403, %1569 : vector<2x8xi1>, vector<2x8xf32>
    %1574 = arith.select %1572, %1421, %1570 : vector<2x8xi1>, vector<2x8xf32>
    %cst_388 = arith.constant 5.000000e-01 : f32
    %1575 = vector.broadcast %cst_388 : f32 to vector<2x8xf32>
    %1576 = arith.cmpf oge, %1566, %1575 : vector<2x8xf32>
    %1577 = arith.select %1576, %1406, %1573 : vector<2x8xi1>, vector<2x8xf32>
    %1578 = arith.select %1576, %1424, %1574 : vector<2x8xi1>, vector<2x8xf32>
    %cst_389 = arith.constant 0.666666686 : f32
    %1579 = vector.broadcast %cst_389 : f32 to vector<2x8xf32>
    %1580 = arith.cmpf oge, %1566, %1579 : vector<2x8xf32>
    %1581 = arith.select %1580, %1409, %1577 : vector<2x8xi1>, vector<2x8xf32>
    %1582 = arith.select %1580, %1427, %1578 : vector<2x8xi1>, vector<2x8xf32>
    %cst_390 = arith.constant 0.833333313 : f32
    %1583 = vector.broadcast %cst_390 : f32 to vector<2x8xf32>
    %1584 = arith.cmpf oge, %1566, %1583 : vector<2x8xf32>
    %1585 = arith.select %1584, %1412, %1581 : vector<2x8xi1>, vector<2x8xf32>
    %1586 = arith.select %1584, %1430, %1582 : vector<2x8xi1>, vector<2x8xf32>
    %1587 = arith.mulf %1585, %1566 : vector<2x8xf32>
    %1588 = arith.addf %1587, %1586 : vector<2x8xf32>
    %cst_391 = arith.constant 0.166666672 : f32
    %1589 = vector.broadcast %cst_391 : f32 to vector<2x8xf32>
    %1590 = arith.cmpf oge, %1588, %1589 : vector<2x8xf32>
    %1591 = arith.select %1590, %1400, %1397 : vector<2x8xi1>, vector<2x8xf32>
    %1592 = arith.select %1590, %1418, %1415 : vector<2x8xi1>, vector<2x8xf32>
    %cst_392 = arith.constant 0.333333343 : f32
    %1593 = vector.broadcast %cst_392 : f32 to vector<2x8xf32>
    %1594 = arith.cmpf oge, %1588, %1593 : vector<2x8xf32>
    %1595 = arith.select %1594, %1403, %1591 : vector<2x8xi1>, vector<2x8xf32>
    %1596 = arith.select %1594, %1421, %1592 : vector<2x8xi1>, vector<2x8xf32>
    %cst_393 = arith.constant 5.000000e-01 : f32
    %1597 = vector.broadcast %cst_393 : f32 to vector<2x8xf32>
    %1598 = arith.cmpf oge, %1588, %1597 : vector<2x8xf32>
    %1599 = arith.select %1598, %1406, %1595 : vector<2x8xi1>, vector<2x8xf32>
    %1600 = arith.select %1598, %1424, %1596 : vector<2x8xi1>, vector<2x8xf32>
    %cst_394 = arith.constant 0.666666686 : f32
    %1601 = vector.broadcast %cst_394 : f32 to vector<2x8xf32>
    %1602 = arith.cmpf oge, %1588, %1601 : vector<2x8xf32>
    %1603 = arith.select %1602, %1409, %1599 : vector<2x8xi1>, vector<2x8xf32>
    %1604 = arith.select %1602, %1427, %1600 : vector<2x8xi1>, vector<2x8xf32>
    %cst_395 = arith.constant 0.833333313 : f32
    %1605 = vector.broadcast %cst_395 : f32 to vector<2x8xf32>
    %1606 = arith.cmpf oge, %1588, %1605 : vector<2x8xf32>
    %1607 = arith.select %1606, %1412, %1603 : vector<2x8xi1>, vector<2x8xf32>
    %1608 = arith.select %1606, %1430, %1604 : vector<2x8xi1>, vector<2x8xf32>
    %1609 = arith.mulf %1607, %1588 : vector<2x8xf32>
    %1610 = arith.addf %1609, %1608 : vector<2x8xf32>
    %cst_396 = arith.constant 0.166666672 : f32
    %1611 = vector.broadcast %cst_396 : f32 to vector<2x8xf32>
    %1612 = arith.cmpf oge, %1610, %1611 : vector<2x8xf32>
    %1613 = arith.select %1612, %1400, %1397 : vector<2x8xi1>, vector<2x8xf32>
    %1614 = arith.select %1612, %1418, %1415 : vector<2x8xi1>, vector<2x8xf32>
    %cst_397 = arith.constant 0.333333343 : f32
    %1615 = vector.broadcast %cst_397 : f32 to vector<2x8xf32>
    %1616 = arith.cmpf oge, %1610, %1615 : vector<2x8xf32>
    %1617 = arith.select %1616, %1403, %1613 : vector<2x8xi1>, vector<2x8xf32>
    %1618 = arith.select %1616, %1421, %1614 : vector<2x8xi1>, vector<2x8xf32>
    %cst_398 = arith.constant 5.000000e-01 : f32
    %1619 = vector.broadcast %cst_398 : f32 to vector<2x8xf32>
    %1620 = arith.cmpf oge, %1610, %1619 : vector<2x8xf32>
    %1621 = arith.select %1620, %1406, %1617 : vector<2x8xi1>, vector<2x8xf32>
    %1622 = arith.select %1620, %1424, %1618 : vector<2x8xi1>, vector<2x8xf32>
    %cst_399 = arith.constant 0.666666686 : f32
    %1623 = vector.broadcast %cst_399 : f32 to vector<2x8xf32>
    %1624 = arith.cmpf oge, %1610, %1623 : vector<2x8xf32>
    %1625 = arith.select %1624, %1409, %1621 : vector<2x8xi1>, vector<2x8xf32>
    %1626 = arith.select %1624, %1427, %1622 : vector<2x8xi1>, vector<2x8xf32>
    %cst_400 = arith.constant 0.833333313 : f32
    %1627 = vector.broadcast %cst_400 : f32 to vector<2x8xf32>
    %1628 = arith.cmpf oge, %1610, %1627 : vector<2x8xf32>
    %1629 = arith.select %1628, %1412, %1625 : vector<2x8xi1>, vector<2x8xf32>
    %1630 = arith.select %1628, %1430, %1626 : vector<2x8xi1>, vector<2x8xf32>
    %1631 = arith.mulf %1629, %1610 : vector<2x8xf32>
    %1632 = arith.addf %1631, %1630 : vector<2x8xf32>
    %cst_401 = arith.constant 0.166666672 : f32
    %1633 = vector.broadcast %cst_401 : f32 to vector<2x8xf32>
    %1634 = arith.cmpf oge, %1632, %1633 : vector<2x8xf32>
    %1635 = arith.select %1634, %1400, %1397 : vector<2x8xi1>, vector<2x8xf32>
    %1636 = arith.select %1634, %1418, %1415 : vector<2x8xi1>, vector<2x8xf32>
    %cst_402 = arith.constant 0.333333343 : f32
    %1637 = vector.broadcast %cst_402 : f32 to vector<2x8xf32>
    %1638 = arith.cmpf oge, %1632, %1637 : vector<2x8xf32>
    %1639 = arith.select %1638, %1403, %1635 : vector<2x8xi1>, vector<2x8xf32>
    %1640 = arith.select %1638, %1421, %1636 : vector<2x8xi1>, vector<2x8xf32>
    %cst_403 = arith.constant 5.000000e-01 : f32
    %1641 = vector.broadcast %cst_403 : f32 to vector<2x8xf32>
    %1642 = arith.cmpf oge, %1632, %1641 : vector<2x8xf32>
    %1643 = arith.select %1642, %1406, %1639 : vector<2x8xi1>, vector<2x8xf32>
    %1644 = arith.select %1642, %1424, %1640 : vector<2x8xi1>, vector<2x8xf32>
    %cst_404 = arith.constant 0.666666686 : f32
    %1645 = vector.broadcast %cst_404 : f32 to vector<2x8xf32>
    %1646 = arith.cmpf oge, %1632, %1645 : vector<2x8xf32>
    %1647 = arith.select %1646, %1409, %1643 : vector<2x8xi1>, vector<2x8xf32>
    %1648 = arith.select %1646, %1427, %1644 : vector<2x8xi1>, vector<2x8xf32>
    %cst_405 = arith.constant 0.833333313 : f32
    %1649 = vector.broadcast %cst_405 : f32 to vector<2x8xf32>
    %1650 = arith.cmpf oge, %1632, %1649 : vector<2x8xf32>
    %1651 = arith.select %1650, %1412, %1647 : vector<2x8xi1>, vector<2x8xf32>
    %1652 = arith.select %1650, %1430, %1648 : vector<2x8xi1>, vector<2x8xf32>
    %1653 = arith.mulf %1651, %1632 : vector<2x8xf32>
    %1654 = arith.addf %1653, %1652 : vector<2x8xf32>
    %cst_406 = arith.constant 0.166666672 : f32
    %1655 = vector.broadcast %cst_406 : f32 to vector<2x8xf32>
    %1656 = arith.cmpf oge, %1654, %1655 : vector<2x8xf32>
    %1657 = arith.select %1656, %1400, %1397 : vector<2x8xi1>, vector<2x8xf32>
    %1658 = arith.select %1656, %1418, %1415 : vector<2x8xi1>, vector<2x8xf32>
    %cst_407 = arith.constant 0.333333343 : f32
    %1659 = vector.broadcast %cst_407 : f32 to vector<2x8xf32>
    %1660 = arith.cmpf oge, %1654, %1659 : vector<2x8xf32>
    %1661 = arith.select %1660, %1403, %1657 : vector<2x8xi1>, vector<2x8xf32>
    %1662 = arith.select %1660, %1421, %1658 : vector<2x8xi1>, vector<2x8xf32>
    %cst_408 = arith.constant 5.000000e-01 : f32
    %1663 = vector.broadcast %cst_408 : f32 to vector<2x8xf32>
    %1664 = arith.cmpf oge, %1654, %1663 : vector<2x8xf32>
    %1665 = arith.select %1664, %1406, %1661 : vector<2x8xi1>, vector<2x8xf32>
    %1666 = arith.select %1664, %1424, %1662 : vector<2x8xi1>, vector<2x8xf32>
    %cst_409 = arith.constant 0.666666686 : f32
    %1667 = vector.broadcast %cst_409 : f32 to vector<2x8xf32>
    %1668 = arith.cmpf oge, %1654, %1667 : vector<2x8xf32>
    %1669 = arith.select %1668, %1409, %1665 : vector<2x8xi1>, vector<2x8xf32>
    %1670 = arith.select %1668, %1427, %1666 : vector<2x8xi1>, vector<2x8xf32>
    %cst_410 = arith.constant 0.833333313 : f32
    %1671 = vector.broadcast %cst_410 : f32 to vector<2x8xf32>
    %1672 = arith.cmpf oge, %1654, %1671 : vector<2x8xf32>
    %1673 = arith.select %1672, %1412, %1669 : vector<2x8xi1>, vector<2x8xf32>
    %1674 = arith.select %1672, %1430, %1670 : vector<2x8xi1>, vector<2x8xf32>
    %1675 = arith.mulf %1673, %1654 : vector<2x8xf32>
    %1676 = arith.addf %1675, %1674 : vector<2x8xf32>
    %cst_411 = arith.constant 0.166666672 : f32
    %1677 = vector.broadcast %cst_411 : f32 to vector<2x8xf32>
    %1678 = arith.cmpf oge, %1676, %1677 : vector<2x8xf32>
    %1679 = arith.select %1678, %1400, %1397 : vector<2x8xi1>, vector<2x8xf32>
    %1680 = arith.select %1678, %1418, %1415 : vector<2x8xi1>, vector<2x8xf32>
    %cst_412 = arith.constant 0.333333343 : f32
    %1681 = vector.broadcast %cst_412 : f32 to vector<2x8xf32>
    %1682 = arith.cmpf oge, %1676, %1681 : vector<2x8xf32>
    %1683 = arith.select %1682, %1403, %1679 : vector<2x8xi1>, vector<2x8xf32>
    %1684 = arith.select %1682, %1421, %1680 : vector<2x8xi1>, vector<2x8xf32>
    %cst_413 = arith.constant 5.000000e-01 : f32
    %1685 = vector.broadcast %cst_413 : f32 to vector<2x8xf32>
    %1686 = arith.cmpf oge, %1676, %1685 : vector<2x8xf32>
    %1687 = arith.select %1686, %1406, %1683 : vector<2x8xi1>, vector<2x8xf32>
    %1688 = arith.select %1686, %1424, %1684 : vector<2x8xi1>, vector<2x8xf32>
    %cst_414 = arith.constant 0.666666686 : f32
    %1689 = vector.broadcast %cst_414 : f32 to vector<2x8xf32>
    %1690 = arith.cmpf oge, %1676, %1689 : vector<2x8xf32>
    %1691 = arith.select %1690, %1409, %1687 : vector<2x8xi1>, vector<2x8xf32>
    %1692 = arith.select %1690, %1427, %1688 : vector<2x8xi1>, vector<2x8xf32>
    %cst_415 = arith.constant 0.833333313 : f32
    %1693 = vector.broadcast %cst_415 : f32 to vector<2x8xf32>
    %1694 = arith.cmpf oge, %1676, %1693 : vector<2x8xf32>
    %1695 = arith.select %1694, %1412, %1691 : vector<2x8xi1>, vector<2x8xf32>
    %1696 = arith.select %1694, %1430, %1692 : vector<2x8xi1>, vector<2x8xf32>
    %1697 = arith.mulf %1695, %1676 : vector<2x8xf32>
    %1698 = arith.addf %1697, %1696 : vector<2x8xf32>
    %cst_416 = arith.constant 0.166666672 : f32
    %1699 = vector.broadcast %cst_416 : f32 to vector<2x8xf32>
    %1700 = arith.cmpf oge, %1698, %1699 : vector<2x8xf32>
    %1701 = arith.select %1700, %1400, %1397 : vector<2x8xi1>, vector<2x8xf32>
    %1702 = arith.select %1700, %1418, %1415 : vector<2x8xi1>, vector<2x8xf32>
    %cst_417 = arith.constant 0.333333343 : f32
    %1703 = vector.broadcast %cst_417 : f32 to vector<2x8xf32>
    %1704 = arith.cmpf oge, %1698, %1703 : vector<2x8xf32>
    %1705 = arith.select %1704, %1403, %1701 : vector<2x8xi1>, vector<2x8xf32>
    %1706 = arith.select %1704, %1421, %1702 : vector<2x8xi1>, vector<2x8xf32>
    %cst_418 = arith.constant 5.000000e-01 : f32
    %1707 = vector.broadcast %cst_418 : f32 to vector<2x8xf32>
    %1708 = arith.cmpf oge, %1698, %1707 : vector<2x8xf32>
    %1709 = arith.select %1708, %1406, %1705 : vector<2x8xi1>, vector<2x8xf32>
    %1710 = arith.select %1708, %1424, %1706 : vector<2x8xi1>, vector<2x8xf32>
    %cst_419 = arith.constant 0.666666686 : f32
    %1711 = vector.broadcast %cst_419 : f32 to vector<2x8xf32>
    %1712 = arith.cmpf oge, %1698, %1711 : vector<2x8xf32>
    %1713 = arith.select %1712, %1409, %1709 : vector<2x8xi1>, vector<2x8xf32>
    %1714 = arith.select %1712, %1427, %1710 : vector<2x8xi1>, vector<2x8xf32>
    %cst_420 = arith.constant 0.833333313 : f32
    %1715 = vector.broadcast %cst_420 : f32 to vector<2x8xf32>
    %1716 = arith.cmpf oge, %1698, %1715 : vector<2x8xf32>
    %1717 = arith.select %1716, %1412, %1713 : vector<2x8xi1>, vector<2x8xf32>
    %1718 = arith.select %1716, %1430, %1714 : vector<2x8xi1>, vector<2x8xf32>
    %1719 = arith.mulf %1717, %1698 : vector<2x8xf32>
    %1720 = arith.addf %1719, %1718 : vector<2x8xf32>
    %cst_421 = arith.constant 0.166666672 : f32
    %1721 = vector.broadcast %cst_421 : f32 to vector<2x8xf32>
    %1722 = arith.cmpf oge, %1720, %1721 : vector<2x8xf32>
    %1723 = arith.select %1722, %1400, %1397 : vector<2x8xi1>, vector<2x8xf32>
    %1724 = arith.select %1722, %1418, %1415 : vector<2x8xi1>, vector<2x8xf32>
    %cst_422 = arith.constant 0.333333343 : f32
    %1725 = vector.broadcast %cst_422 : f32 to vector<2x8xf32>
    %1726 = arith.cmpf oge, %1720, %1725 : vector<2x8xf32>
    %1727 = arith.select %1726, %1403, %1723 : vector<2x8xi1>, vector<2x8xf32>
    %1728 = arith.select %1726, %1421, %1724 : vector<2x8xi1>, vector<2x8xf32>
    %cst_423 = arith.constant 5.000000e-01 : f32
    %1729 = vector.broadcast %cst_423 : f32 to vector<2x8xf32>
    %1730 = arith.cmpf oge, %1720, %1729 : vector<2x8xf32>
    %1731 = arith.select %1730, %1406, %1727 : vector<2x8xi1>, vector<2x8xf32>
    %1732 = arith.select %1730, %1424, %1728 : vector<2x8xi1>, vector<2x8xf32>
    %cst_424 = arith.constant 0.666666686 : f32
    %1733 = vector.broadcast %cst_424 : f32 to vector<2x8xf32>
    %1734 = arith.cmpf oge, %1720, %1733 : vector<2x8xf32>
    %1735 = arith.select %1734, %1409, %1731 : vector<2x8xi1>, vector<2x8xf32>
    %1736 = arith.select %1734, %1427, %1732 : vector<2x8xi1>, vector<2x8xf32>
    %cst_425 = arith.constant 0.833333313 : f32
    %1737 = vector.broadcast %cst_425 : f32 to vector<2x8xf32>
    %1738 = arith.cmpf oge, %1720, %1737 : vector<2x8xf32>
    %1739 = arith.select %1738, %1412, %1735 : vector<2x8xi1>, vector<2x8xf32>
    %1740 = arith.select %1738, %1430, %1736 : vector<2x8xi1>, vector<2x8xf32>
    %1741 = arith.mulf %1739, %1720 : vector<2x8xf32>
    %1742 = arith.addf %1741, %1740 : vector<2x8xf32>
    %cst_426 = arith.constant 0.166666672 : f32
    %1743 = vector.broadcast %cst_426 : f32 to vector<2x8xf32>
    %1744 = arith.cmpf oge, %1742, %1743 : vector<2x8xf32>
    %1745 = arith.select %1744, %1400, %1397 : vector<2x8xi1>, vector<2x8xf32>
    %1746 = arith.select %1744, %1418, %1415 : vector<2x8xi1>, vector<2x8xf32>
    %cst_427 = arith.constant 0.333333343 : f32
    %1747 = vector.broadcast %cst_427 : f32 to vector<2x8xf32>
    %1748 = arith.cmpf oge, %1742, %1747 : vector<2x8xf32>
    %1749 = arith.select %1748, %1403, %1745 : vector<2x8xi1>, vector<2x8xf32>
    %1750 = arith.select %1748, %1421, %1746 : vector<2x8xi1>, vector<2x8xf32>
    %cst_428 = arith.constant 5.000000e-01 : f32
    %1751 = vector.broadcast %cst_428 : f32 to vector<2x8xf32>
    %1752 = arith.cmpf oge, %1742, %1751 : vector<2x8xf32>
    %1753 = arith.select %1752, %1406, %1749 : vector<2x8xi1>, vector<2x8xf32>
    %1754 = arith.select %1752, %1424, %1750 : vector<2x8xi1>, vector<2x8xf32>
    %cst_429 = arith.constant 0.666666686 : f32
    %1755 = vector.broadcast %cst_429 : f32 to vector<2x8xf32>
    %1756 = arith.cmpf oge, %1742, %1755 : vector<2x8xf32>
    %1757 = arith.select %1756, %1409, %1753 : vector<2x8xi1>, vector<2x8xf32>
    %1758 = arith.select %1756, %1427, %1754 : vector<2x8xi1>, vector<2x8xf32>
    %cst_430 = arith.constant 0.833333313 : f32
    %1759 = vector.broadcast %cst_430 : f32 to vector<2x8xf32>
    %1760 = arith.cmpf oge, %1742, %1759 : vector<2x8xf32>
    %1761 = arith.select %1760, %1412, %1757 : vector<2x8xi1>, vector<2x8xf32>
    %1762 = arith.select %1760, %1430, %1758 : vector<2x8xi1>, vector<2x8xf32>
    %1763 = arith.mulf %1761, %1742 : vector<2x8xf32>
    %1764 = arith.addf %1763, %1762 : vector<2x8xf32>
    %cst_431 = arith.constant 0.166666672 : f32
    %1765 = vector.broadcast %cst_431 : f32 to vector<2x8xf32>
    %1766 = arith.cmpf oge, %1764, %1765 : vector<2x8xf32>
    %1767 = arith.select %1766, %1400, %1397 : vector<2x8xi1>, vector<2x8xf32>
    %1768 = arith.select %1766, %1418, %1415 : vector<2x8xi1>, vector<2x8xf32>
    %cst_432 = arith.constant 0.333333343 : f32
    %1769 = vector.broadcast %cst_432 : f32 to vector<2x8xf32>
    %1770 = arith.cmpf oge, %1764, %1769 : vector<2x8xf32>
    %1771 = arith.select %1770, %1403, %1767 : vector<2x8xi1>, vector<2x8xf32>
    %1772 = arith.select %1770, %1421, %1768 : vector<2x8xi1>, vector<2x8xf32>
    %cst_433 = arith.constant 5.000000e-01 : f32
    %1773 = vector.broadcast %cst_433 : f32 to vector<2x8xf32>
    %1774 = arith.cmpf oge, %1764, %1773 : vector<2x8xf32>
    %1775 = arith.select %1774, %1406, %1771 : vector<2x8xi1>, vector<2x8xf32>
    %1776 = arith.select %1774, %1424, %1772 : vector<2x8xi1>, vector<2x8xf32>
    %cst_434 = arith.constant 0.666666686 : f32
    %1777 = vector.broadcast %cst_434 : f32 to vector<2x8xf32>
    %1778 = arith.cmpf oge, %1764, %1777 : vector<2x8xf32>
    %1779 = arith.select %1778, %1409, %1775 : vector<2x8xi1>, vector<2x8xf32>
    %1780 = arith.select %1778, %1427, %1776 : vector<2x8xi1>, vector<2x8xf32>
    %cst_435 = arith.constant 0.833333313 : f32
    %1781 = vector.broadcast %cst_435 : f32 to vector<2x8xf32>
    %1782 = arith.cmpf oge, %1764, %1781 : vector<2x8xf32>
    %1783 = arith.select %1782, %1412, %1779 : vector<2x8xi1>, vector<2x8xf32>
    %1784 = arith.select %1782, %1430, %1780 : vector<2x8xi1>, vector<2x8xf32>
    %1785 = arith.mulf %1783, %1764 : vector<2x8xf32>
    %1786 = arith.addf %1785, %1784 : vector<2x8xf32>
    %cst_436 = arith.constant 0.166666672 : f32
    %1787 = vector.broadcast %cst_436 : f32 to vector<2x8xf32>
    %1788 = arith.cmpf oge, %1786, %1787 : vector<2x8xf32>
    %1789 = arith.select %1788, %1400, %1397 : vector<2x8xi1>, vector<2x8xf32>
    %1790 = arith.select %1788, %1418, %1415 : vector<2x8xi1>, vector<2x8xf32>
    %cst_437 = arith.constant 0.333333343 : f32
    %1791 = vector.broadcast %cst_437 : f32 to vector<2x8xf32>
    %1792 = arith.cmpf oge, %1786, %1791 : vector<2x8xf32>
    %1793 = arith.select %1792, %1403, %1789 : vector<2x8xi1>, vector<2x8xf32>
    %1794 = arith.select %1792, %1421, %1790 : vector<2x8xi1>, vector<2x8xf32>
    %cst_438 = arith.constant 5.000000e-01 : f32
    %1795 = vector.broadcast %cst_438 : f32 to vector<2x8xf32>
    %1796 = arith.cmpf oge, %1786, %1795 : vector<2x8xf32>
    %1797 = arith.select %1796, %1406, %1793 : vector<2x8xi1>, vector<2x8xf32>
    %1798 = arith.select %1796, %1424, %1794 : vector<2x8xi1>, vector<2x8xf32>
    %cst_439 = arith.constant 0.666666686 : f32
    %1799 = vector.broadcast %cst_439 : f32 to vector<2x8xf32>
    %1800 = arith.cmpf oge, %1786, %1799 : vector<2x8xf32>
    %1801 = arith.select %1800, %1409, %1797 : vector<2x8xi1>, vector<2x8xf32>
    %1802 = arith.select %1800, %1427, %1798 : vector<2x8xi1>, vector<2x8xf32>
    %cst_440 = arith.constant 0.833333313 : f32
    %1803 = vector.broadcast %cst_440 : f32 to vector<2x8xf32>
    %1804 = arith.cmpf oge, %1786, %1803 : vector<2x8xf32>
    %1805 = arith.select %1804, %1412, %1801 : vector<2x8xi1>, vector<2x8xf32>
    %1806 = arith.select %1804, %1430, %1802 : vector<2x8xi1>, vector<2x8xf32>
    %1807 = arith.mulf %1805, %1786 : vector<2x8xf32>
    %1808 = arith.addf %1807, %1806 : vector<2x8xf32>
    %cst_441 = arith.constant 0.166666672 : f32
    %1809 = vector.broadcast %cst_441 : f32 to vector<2x8xf32>
    %1810 = arith.cmpf oge, %1808, %1809 : vector<2x8xf32>
    %1811 = arith.select %1810, %1400, %1397 : vector<2x8xi1>, vector<2x8xf32>
    %1812 = arith.select %1810, %1418, %1415 : vector<2x8xi1>, vector<2x8xf32>
    %cst_442 = arith.constant 0.333333343 : f32
    %1813 = vector.broadcast %cst_442 : f32 to vector<2x8xf32>
    %1814 = arith.cmpf oge, %1808, %1813 : vector<2x8xf32>
    %1815 = arith.select %1814, %1403, %1811 : vector<2x8xi1>, vector<2x8xf32>
    %1816 = arith.select %1814, %1421, %1812 : vector<2x8xi1>, vector<2x8xf32>
    %cst_443 = arith.constant 5.000000e-01 : f32
    %1817 = vector.broadcast %cst_443 : f32 to vector<2x8xf32>
    %1818 = arith.cmpf oge, %1808, %1817 : vector<2x8xf32>
    %1819 = arith.select %1818, %1406, %1815 : vector<2x8xi1>, vector<2x8xf32>
    %1820 = arith.select %1818, %1424, %1816 : vector<2x8xi1>, vector<2x8xf32>
    %cst_444 = arith.constant 0.666666686 : f32
    %1821 = vector.broadcast %cst_444 : f32 to vector<2x8xf32>
    %1822 = arith.cmpf oge, %1808, %1821 : vector<2x8xf32>
    %1823 = arith.select %1822, %1409, %1819 : vector<2x8xi1>, vector<2x8xf32>
    %1824 = arith.select %1822, %1427, %1820 : vector<2x8xi1>, vector<2x8xf32>
    %cst_445 = arith.constant 0.833333313 : f32
    %1825 = vector.broadcast %cst_445 : f32 to vector<2x8xf32>
    %1826 = arith.cmpf oge, %1808, %1825 : vector<2x8xf32>
    %1827 = arith.select %1826, %1412, %1823 : vector<2x8xi1>, vector<2x8xf32>
    %1828 = arith.select %1826, %1430, %1824 : vector<2x8xi1>, vector<2x8xf32>
    %1829 = arith.mulf %1827, %1808 : vector<2x8xf32>
    %1830 = arith.addf %1829, %1828 : vector<2x8xf32>
    %cst_446 = arith.constant 0.166666672 : f32
    %1831 = vector.broadcast %cst_446 : f32 to vector<2x8xf32>
    %1832 = arith.cmpf oge, %1830, %1831 : vector<2x8xf32>
    %1833 = arith.select %1832, %1400, %1397 : vector<2x8xi1>, vector<2x8xf32>
    %1834 = arith.select %1832, %1418, %1415 : vector<2x8xi1>, vector<2x8xf32>
    %cst_447 = arith.constant 0.333333343 : f32
    %1835 = vector.broadcast %cst_447 : f32 to vector<2x8xf32>
    %1836 = arith.cmpf oge, %1830, %1835 : vector<2x8xf32>
    %1837 = arith.select %1836, %1403, %1833 : vector<2x8xi1>, vector<2x8xf32>
    %1838 = arith.select %1836, %1421, %1834 : vector<2x8xi1>, vector<2x8xf32>
    %cst_448 = arith.constant 5.000000e-01 : f32
    %1839 = vector.broadcast %cst_448 : f32 to vector<2x8xf32>
    %1840 = arith.cmpf oge, %1830, %1839 : vector<2x8xf32>
    %1841 = arith.select %1840, %1406, %1837 : vector<2x8xi1>, vector<2x8xf32>
    %1842 = arith.select %1840, %1424, %1838 : vector<2x8xi1>, vector<2x8xf32>
    %cst_449 = arith.constant 0.666666686 : f32
    %1843 = vector.broadcast %cst_449 : f32 to vector<2x8xf32>
    %1844 = arith.cmpf oge, %1830, %1843 : vector<2x8xf32>
    %1845 = arith.select %1844, %1409, %1841 : vector<2x8xi1>, vector<2x8xf32>
    %1846 = arith.select %1844, %1427, %1842 : vector<2x8xi1>, vector<2x8xf32>
    %cst_450 = arith.constant 0.833333313 : f32
    %1847 = vector.broadcast %cst_450 : f32 to vector<2x8xf32>
    %1848 = arith.cmpf oge, %1830, %1847 : vector<2x8xf32>
    %1849 = arith.select %1848, %1412, %1845 : vector<2x8xi1>, vector<2x8xf32>
    %1850 = arith.select %1848, %1430, %1846 : vector<2x8xi1>, vector<2x8xf32>
    %1851 = arith.mulf %1849, %1830 : vector<2x8xf32>
    %1852 = arith.addf %1851, %1850 : vector<2x8xf32>
    %cst_451 = arith.constant 0.166666672 : f32
    %1853 = vector.broadcast %cst_451 : f32 to vector<2x8xf32>
    %1854 = arith.cmpf oge, %1852, %1853 : vector<2x8xf32>
    %1855 = arith.select %1854, %1400, %1397 : vector<2x8xi1>, vector<2x8xf32>
    %1856 = arith.select %1854, %1418, %1415 : vector<2x8xi1>, vector<2x8xf32>
    %cst_452 = arith.constant 0.333333343 : f32
    %1857 = vector.broadcast %cst_452 : f32 to vector<2x8xf32>
    %1858 = arith.cmpf oge, %1852, %1857 : vector<2x8xf32>
    %1859 = arith.select %1858, %1403, %1855 : vector<2x8xi1>, vector<2x8xf32>
    %1860 = arith.select %1858, %1421, %1856 : vector<2x8xi1>, vector<2x8xf32>
    %cst_453 = arith.constant 5.000000e-01 : f32
    %1861 = vector.broadcast %cst_453 : f32 to vector<2x8xf32>
    %1862 = arith.cmpf oge, %1852, %1861 : vector<2x8xf32>
    %1863 = arith.select %1862, %1406, %1859 : vector<2x8xi1>, vector<2x8xf32>
    %1864 = arith.select %1862, %1424, %1860 : vector<2x8xi1>, vector<2x8xf32>
    %cst_454 = arith.constant 0.666666686 : f32
    %1865 = vector.broadcast %cst_454 : f32 to vector<2x8xf32>
    %1866 = arith.cmpf oge, %1852, %1865 : vector<2x8xf32>
    %1867 = arith.select %1866, %1409, %1863 : vector<2x8xi1>, vector<2x8xf32>
    %1868 = arith.select %1866, %1427, %1864 : vector<2x8xi1>, vector<2x8xf32>
    %cst_455 = arith.constant 0.833333313 : f32
    %1869 = vector.broadcast %cst_455 : f32 to vector<2x8xf32>
    %1870 = arith.cmpf oge, %1852, %1869 : vector<2x8xf32>
    %1871 = arith.select %1870, %1412, %1867 : vector<2x8xi1>, vector<2x8xf32>
    %1872 = arith.select %1870, %1430, %1868 : vector<2x8xi1>, vector<2x8xf32>
    %1873 = arith.mulf %1871, %1852 : vector<2x8xf32>
    %1874 = arith.addf %1873, %1872 : vector<2x8xf32>
    %cst_456 = arith.constant 0.166666672 : f32
    %1875 = vector.broadcast %cst_456 : f32 to vector<2x8xf32>
    %1876 = arith.cmpf oge, %1874, %1875 : vector<2x8xf32>
    %1877 = arith.select %1876, %1400, %1397 : vector<2x8xi1>, vector<2x8xf32>
    %1878 = arith.select %1876, %1418, %1415 : vector<2x8xi1>, vector<2x8xf32>
    %cst_457 = arith.constant 0.333333343 : f32
    %1879 = vector.broadcast %cst_457 : f32 to vector<2x8xf32>
    %1880 = arith.cmpf oge, %1874, %1879 : vector<2x8xf32>
    %1881 = arith.select %1880, %1403, %1877 : vector<2x8xi1>, vector<2x8xf32>
    %1882 = arith.select %1880, %1421, %1878 : vector<2x8xi1>, vector<2x8xf32>
    %cst_458 = arith.constant 5.000000e-01 : f32
    %1883 = vector.broadcast %cst_458 : f32 to vector<2x8xf32>
    %1884 = arith.cmpf oge, %1874, %1883 : vector<2x8xf32>
    %1885 = arith.select %1884, %1406, %1881 : vector<2x8xi1>, vector<2x8xf32>
    %1886 = arith.select %1884, %1424, %1882 : vector<2x8xi1>, vector<2x8xf32>
    %cst_459 = arith.constant 0.666666686 : f32
    %1887 = vector.broadcast %cst_459 : f32 to vector<2x8xf32>
    %1888 = arith.cmpf oge, %1874, %1887 : vector<2x8xf32>
    %1889 = arith.select %1888, %1409, %1885 : vector<2x8xi1>, vector<2x8xf32>
    %1890 = arith.select %1888, %1427, %1886 : vector<2x8xi1>, vector<2x8xf32>
    %cst_460 = arith.constant 0.833333313 : f32
    %1891 = vector.broadcast %cst_460 : f32 to vector<2x8xf32>
    %1892 = arith.cmpf oge, %1874, %1891 : vector<2x8xf32>
    %1893 = arith.select %1892, %1412, %1889 : vector<2x8xi1>, vector<2x8xf32>
    %1894 = arith.select %1892, %1430, %1890 : vector<2x8xi1>, vector<2x8xf32>
    %1895 = arith.mulf %1893, %1874 : vector<2x8xf32>
    %1896 = arith.addf %1895, %1894 : vector<2x8xf32>
    %cst_461 = arith.constant 0.166666672 : f32
    %1897 = vector.broadcast %cst_461 : f32 to vector<2x8xf32>
    %1898 = arith.cmpf oge, %1896, %1897 : vector<2x8xf32>
    %1899 = arith.select %1898, %1400, %1397 : vector<2x8xi1>, vector<2x8xf32>
    %1900 = arith.select %1898, %1418, %1415 : vector<2x8xi1>, vector<2x8xf32>
    %cst_462 = arith.constant 0.333333343 : f32
    %1901 = vector.broadcast %cst_462 : f32 to vector<2x8xf32>
    %1902 = arith.cmpf oge, %1896, %1901 : vector<2x8xf32>
    %1903 = arith.select %1902, %1403, %1899 : vector<2x8xi1>, vector<2x8xf32>
    %1904 = arith.select %1902, %1421, %1900 : vector<2x8xi1>, vector<2x8xf32>
    %cst_463 = arith.constant 5.000000e-01 : f32
    %1905 = vector.broadcast %cst_463 : f32 to vector<2x8xf32>
    %1906 = arith.cmpf oge, %1896, %1905 : vector<2x8xf32>
    %1907 = arith.select %1906, %1406, %1903 : vector<2x8xi1>, vector<2x8xf32>
    %1908 = arith.select %1906, %1424, %1904 : vector<2x8xi1>, vector<2x8xf32>
    %cst_464 = arith.constant 0.666666686 : f32
    %1909 = vector.broadcast %cst_464 : f32 to vector<2x8xf32>
    %1910 = arith.cmpf oge, %1896, %1909 : vector<2x8xf32>
    %1911 = arith.select %1910, %1409, %1907 : vector<2x8xi1>, vector<2x8xf32>
    %1912 = arith.select %1910, %1427, %1908 : vector<2x8xi1>, vector<2x8xf32>
    %cst_465 = arith.constant 0.833333313 : f32
    %1913 = vector.broadcast %cst_465 : f32 to vector<2x8xf32>
    %1914 = arith.cmpf oge, %1896, %1913 : vector<2x8xf32>
    %1915 = arith.select %1914, %1412, %1911 : vector<2x8xi1>, vector<2x8xf32>
    %1916 = arith.select %1914, %1430, %1912 : vector<2x8xi1>, vector<2x8xf32>
    %1917 = arith.mulf %1915, %1896 : vector<2x8xf32>
    %1918 = arith.addf %1917, %1916 : vector<2x8xf32>
    %cst_466 = arith.constant 0.166666672 : f32
    %1919 = vector.broadcast %cst_466 : f32 to vector<2x8xf32>
    %1920 = arith.cmpf oge, %1918, %1919 : vector<2x8xf32>
    %1921 = arith.select %1920, %1400, %1397 : vector<2x8xi1>, vector<2x8xf32>
    %1922 = arith.select %1920, %1418, %1415 : vector<2x8xi1>, vector<2x8xf32>
    %cst_467 = arith.constant 0.333333343 : f32
    %1923 = vector.broadcast %cst_467 : f32 to vector<2x8xf32>
    %1924 = arith.cmpf oge, %1918, %1923 : vector<2x8xf32>
    %1925 = arith.select %1924, %1403, %1921 : vector<2x8xi1>, vector<2x8xf32>
    %1926 = arith.select %1924, %1421, %1922 : vector<2x8xi1>, vector<2x8xf32>
    %cst_468 = arith.constant 5.000000e-01 : f32
    %1927 = vector.broadcast %cst_468 : f32 to vector<2x8xf32>
    %1928 = arith.cmpf oge, %1918, %1927 : vector<2x8xf32>
    %1929 = arith.select %1928, %1406, %1925 : vector<2x8xi1>, vector<2x8xf32>
    %1930 = arith.select %1928, %1424, %1926 : vector<2x8xi1>, vector<2x8xf32>
    %cst_469 = arith.constant 0.666666686 : f32
    %1931 = vector.broadcast %cst_469 : f32 to vector<2x8xf32>
    %1932 = arith.cmpf oge, %1918, %1931 : vector<2x8xf32>
    %1933 = arith.select %1932, %1409, %1929 : vector<2x8xi1>, vector<2x8xf32>
    %1934 = arith.select %1932, %1427, %1930 : vector<2x8xi1>, vector<2x8xf32>
    %cst_470 = arith.constant 0.833333313 : f32
    %1935 = vector.broadcast %cst_470 : f32 to vector<2x8xf32>
    %1936 = arith.cmpf oge, %1918, %1935 : vector<2x8xf32>
    %1937 = arith.select %1936, %1412, %1933 : vector<2x8xi1>, vector<2x8xf32>
    %1938 = arith.select %1936, %1430, %1934 : vector<2x8xi1>, vector<2x8xf32>
    %1939 = arith.mulf %1937, %1918 : vector<2x8xf32>
    %1940 = arith.addf %1939, %1938 : vector<2x8xf32>
    %cst_471 = arith.constant 0.166666672 : f32
    %1941 = vector.broadcast %cst_471 : f32 to vector<2x8xf32>
    %1942 = arith.cmpf oge, %1940, %1941 : vector<2x8xf32>
    %1943 = arith.select %1942, %1400, %1397 : vector<2x8xi1>, vector<2x8xf32>
    %1944 = arith.select %1942, %1418, %1415 : vector<2x8xi1>, vector<2x8xf32>
    %cst_472 = arith.constant 0.333333343 : f32
    %1945 = vector.broadcast %cst_472 : f32 to vector<2x8xf32>
    %1946 = arith.cmpf oge, %1940, %1945 : vector<2x8xf32>
    %1947 = arith.select %1946, %1403, %1943 : vector<2x8xi1>, vector<2x8xf32>
    %1948 = arith.select %1946, %1421, %1944 : vector<2x8xi1>, vector<2x8xf32>
    %cst_473 = arith.constant 5.000000e-01 : f32
    %1949 = vector.broadcast %cst_473 : f32 to vector<2x8xf32>
    %1950 = arith.cmpf oge, %1940, %1949 : vector<2x8xf32>
    %1951 = arith.select %1950, %1406, %1947 : vector<2x8xi1>, vector<2x8xf32>
    %1952 = arith.select %1950, %1424, %1948 : vector<2x8xi1>, vector<2x8xf32>
    %cst_474 = arith.constant 0.666666686 : f32
    %1953 = vector.broadcast %cst_474 : f32 to vector<2x8xf32>
    %1954 = arith.cmpf oge, %1940, %1953 : vector<2x8xf32>
    %1955 = arith.select %1954, %1409, %1951 : vector<2x8xi1>, vector<2x8xf32>
    %1956 = arith.select %1954, %1427, %1952 : vector<2x8xi1>, vector<2x8xf32>
    %cst_475 = arith.constant 0.833333313 : f32
    %1957 = vector.broadcast %cst_475 : f32 to vector<2x8xf32>
    %1958 = arith.cmpf oge, %1940, %1957 : vector<2x8xf32>
    %1959 = arith.select %1958, %1412, %1955 : vector<2x8xi1>, vector<2x8xf32>
    %1960 = arith.select %1958, %1430, %1956 : vector<2x8xi1>, vector<2x8xf32>
    %1961 = arith.mulf %1959, %1940 : vector<2x8xf32>
    %1962 = arith.addf %1961, %1960 : vector<2x8xf32>
    %cst_476 = arith.constant 0.166666672 : f32
    %1963 = vector.broadcast %cst_476 : f32 to vector<2x8xf32>
    %1964 = arith.cmpf oge, %1962, %1963 : vector<2x8xf32>
    %1965 = arith.select %1964, %1400, %1397 : vector<2x8xi1>, vector<2x8xf32>
    %1966 = arith.select %1964, %1418, %1415 : vector<2x8xi1>, vector<2x8xf32>
    %cst_477 = arith.constant 0.333333343 : f32
    %1967 = vector.broadcast %cst_477 : f32 to vector<2x8xf32>
    %1968 = arith.cmpf oge, %1962, %1967 : vector<2x8xf32>
    %1969 = arith.select %1968, %1403, %1965 : vector<2x8xi1>, vector<2x8xf32>
    %1970 = arith.select %1968, %1421, %1966 : vector<2x8xi1>, vector<2x8xf32>
    %cst_478 = arith.constant 5.000000e-01 : f32
    %1971 = vector.broadcast %cst_478 : f32 to vector<2x8xf32>
    %1972 = arith.cmpf oge, %1962, %1971 : vector<2x8xf32>
    %1973 = arith.select %1972, %1406, %1969 : vector<2x8xi1>, vector<2x8xf32>
    %1974 = arith.select %1972, %1424, %1970 : vector<2x8xi1>, vector<2x8xf32>
    %cst_479 = arith.constant 0.666666686 : f32
    %1975 = vector.broadcast %cst_479 : f32 to vector<2x8xf32>
    %1976 = arith.cmpf oge, %1962, %1975 : vector<2x8xf32>
    %1977 = arith.select %1976, %1409, %1973 : vector<2x8xi1>, vector<2x8xf32>
    %1978 = arith.select %1976, %1427, %1974 : vector<2x8xi1>, vector<2x8xf32>
    %cst_480 = arith.constant 0.833333313 : f32
    %1979 = vector.broadcast %cst_480 : f32 to vector<2x8xf32>
    %1980 = arith.cmpf oge, %1962, %1979 : vector<2x8xf32>
    %1981 = arith.select %1980, %1412, %1977 : vector<2x8xi1>, vector<2x8xf32>
    %1982 = arith.select %1980, %1430, %1978 : vector<2x8xi1>, vector<2x8xf32>
    %1983 = arith.mulf %1981, %1962 : vector<2x8xf32>
    %1984 = arith.addf %1983, %1982 : vector<2x8xf32>
    %cst_481 = arith.constant 0.166666672 : f32
    %1985 = vector.broadcast %cst_481 : f32 to vector<2x8xf32>
    %1986 = arith.cmpf oge, %1984, %1985 : vector<2x8xf32>
    %1987 = arith.select %1986, %1400, %1397 : vector<2x8xi1>, vector<2x8xf32>
    %1988 = arith.select %1986, %1418, %1415 : vector<2x8xi1>, vector<2x8xf32>
    %cst_482 = arith.constant 0.333333343 : f32
    %1989 = vector.broadcast %cst_482 : f32 to vector<2x8xf32>
    %1990 = arith.cmpf oge, %1984, %1989 : vector<2x8xf32>
    %1991 = arith.select %1990, %1403, %1987 : vector<2x8xi1>, vector<2x8xf32>
    %1992 = arith.select %1990, %1421, %1988 : vector<2x8xi1>, vector<2x8xf32>
    %cst_483 = arith.constant 5.000000e-01 : f32
    %1993 = vector.broadcast %cst_483 : f32 to vector<2x8xf32>
    %1994 = arith.cmpf oge, %1984, %1993 : vector<2x8xf32>
    %1995 = arith.select %1994, %1406, %1991 : vector<2x8xi1>, vector<2x8xf32>
    %1996 = arith.select %1994, %1424, %1992 : vector<2x8xi1>, vector<2x8xf32>
    %cst_484 = arith.constant 0.666666686 : f32
    %1997 = vector.broadcast %cst_484 : f32 to vector<2x8xf32>
    %1998 = arith.cmpf oge, %1984, %1997 : vector<2x8xf32>
    %1999 = arith.select %1998, %1409, %1995 : vector<2x8xi1>, vector<2x8xf32>
    %2000 = arith.select %1998, %1427, %1996 : vector<2x8xi1>, vector<2x8xf32>
    %cst_485 = arith.constant 0.833333313 : f32
    %2001 = vector.broadcast %cst_485 : f32 to vector<2x8xf32>
    %2002 = arith.cmpf oge, %1984, %2001 : vector<2x8xf32>
    %2003 = arith.select %2002, %1412, %1999 : vector<2x8xi1>, vector<2x8xf32>
    %2004 = arith.select %2002, %1430, %2000 : vector<2x8xi1>, vector<2x8xf32>
    %2005 = arith.mulf %2003, %1984 : vector<2x8xf32>
    %2006 = arith.addf %2005, %2004 : vector<2x8xf32>
    %cst_486 = arith.constant 0.166666672 : f32
    %2007 = vector.broadcast %cst_486 : f32 to vector<2x8xf32>
    %2008 = arith.cmpf oge, %2006, %2007 : vector<2x8xf32>
    %2009 = arith.select %2008, %1400, %1397 : vector<2x8xi1>, vector<2x8xf32>
    %2010 = arith.select %2008, %1418, %1415 : vector<2x8xi1>, vector<2x8xf32>
    %cst_487 = arith.constant 0.333333343 : f32
    %2011 = vector.broadcast %cst_487 : f32 to vector<2x8xf32>
    %2012 = arith.cmpf oge, %2006, %2011 : vector<2x8xf32>
    %2013 = arith.select %2012, %1403, %2009 : vector<2x8xi1>, vector<2x8xf32>
    %2014 = arith.select %2012, %1421, %2010 : vector<2x8xi1>, vector<2x8xf32>
    %cst_488 = arith.constant 5.000000e-01 : f32
    %2015 = vector.broadcast %cst_488 : f32 to vector<2x8xf32>
    %2016 = arith.cmpf oge, %2006, %2015 : vector<2x8xf32>
    %2017 = arith.select %2016, %1406, %2013 : vector<2x8xi1>, vector<2x8xf32>
    %2018 = arith.select %2016, %1424, %2014 : vector<2x8xi1>, vector<2x8xf32>
    %cst_489 = arith.constant 0.666666686 : f32
    %2019 = vector.broadcast %cst_489 : f32 to vector<2x8xf32>
    %2020 = arith.cmpf oge, %2006, %2019 : vector<2x8xf32>
    %2021 = arith.select %2020, %1409, %2017 : vector<2x8xi1>, vector<2x8xf32>
    %2022 = arith.select %2020, %1427, %2018 : vector<2x8xi1>, vector<2x8xf32>
    %cst_490 = arith.constant 0.833333313 : f32
    %2023 = vector.broadcast %cst_490 : f32 to vector<2x8xf32>
    %2024 = arith.cmpf oge, %2006, %2023 : vector<2x8xf32>
    %2025 = arith.select %2024, %1412, %2021 : vector<2x8xi1>, vector<2x8xf32>
    %2026 = arith.select %2024, %1430, %2022 : vector<2x8xi1>, vector<2x8xf32>
    %2027 = arith.mulf %2025, %2006 : vector<2x8xf32>
    %2028 = arith.addf %2027, %2026 : vector<2x8xf32>
    %cst_491 = arith.constant 0.166666672 : f32
    %2029 = vector.broadcast %cst_491 : f32 to vector<2x8xf32>
    %2030 = arith.cmpf oge, %2028, %2029 : vector<2x8xf32>
    %2031 = arith.select %2030, %1400, %1397 : vector<2x8xi1>, vector<2x8xf32>
    %2032 = arith.select %2030, %1418, %1415 : vector<2x8xi1>, vector<2x8xf32>
    %cst_492 = arith.constant 0.333333343 : f32
    %2033 = vector.broadcast %cst_492 : f32 to vector<2x8xf32>
    %2034 = arith.cmpf oge, %2028, %2033 : vector<2x8xf32>
    %2035 = arith.select %2034, %1403, %2031 : vector<2x8xi1>, vector<2x8xf32>
    %2036 = arith.select %2034, %1421, %2032 : vector<2x8xi1>, vector<2x8xf32>
    %cst_493 = arith.constant 5.000000e-01 : f32
    %2037 = vector.broadcast %cst_493 : f32 to vector<2x8xf32>
    %2038 = arith.cmpf oge, %2028, %2037 : vector<2x8xf32>
    %2039 = arith.select %2038, %1406, %2035 : vector<2x8xi1>, vector<2x8xf32>
    %2040 = arith.select %2038, %1424, %2036 : vector<2x8xi1>, vector<2x8xf32>
    %cst_494 = arith.constant 0.666666686 : f32
    %2041 = vector.broadcast %cst_494 : f32 to vector<2x8xf32>
    %2042 = arith.cmpf oge, %2028, %2041 : vector<2x8xf32>
    %2043 = arith.select %2042, %1409, %2039 : vector<2x8xi1>, vector<2x8xf32>
    %2044 = arith.select %2042, %1427, %2040 : vector<2x8xi1>, vector<2x8xf32>
    %cst_495 = arith.constant 0.833333313 : f32
    %2045 = vector.broadcast %cst_495 : f32 to vector<2x8xf32>
    %2046 = arith.cmpf oge, %2028, %2045 : vector<2x8xf32>
    %2047 = arith.select %2046, %1412, %2043 : vector<2x8xi1>, vector<2x8xf32>
    %2048 = arith.select %2046, %1430, %2044 : vector<2x8xi1>, vector<2x8xf32>
    %2049 = arith.mulf %2047, %2028 : vector<2x8xf32>
    %2050 = arith.addf %2049, %2048 : vector<2x8xf32>
    %cst_496 = arith.constant 0.166666672 : f32
    %2051 = vector.broadcast %cst_496 : f32 to vector<2x8xf32>
    %2052 = arith.cmpf oge, %2050, %2051 : vector<2x8xf32>
    %2053 = arith.select %2052, %1400, %1397 : vector<2x8xi1>, vector<2x8xf32>
    %2054 = arith.select %2052, %1418, %1415 : vector<2x8xi1>, vector<2x8xf32>
    %cst_497 = arith.constant 0.333333343 : f32
    %2055 = vector.broadcast %cst_497 : f32 to vector<2x8xf32>
    %2056 = arith.cmpf oge, %2050, %2055 : vector<2x8xf32>
    %2057 = arith.select %2056, %1403, %2053 : vector<2x8xi1>, vector<2x8xf32>
    %2058 = arith.select %2056, %1421, %2054 : vector<2x8xi1>, vector<2x8xf32>
    %cst_498 = arith.constant 5.000000e-01 : f32
    %2059 = vector.broadcast %cst_498 : f32 to vector<2x8xf32>
    %2060 = arith.cmpf oge, %2050, %2059 : vector<2x8xf32>
    %2061 = arith.select %2060, %1406, %2057 : vector<2x8xi1>, vector<2x8xf32>
    %2062 = arith.select %2060, %1424, %2058 : vector<2x8xi1>, vector<2x8xf32>
    %cst_499 = arith.constant 0.666666686 : f32
    %2063 = vector.broadcast %cst_499 : f32 to vector<2x8xf32>
    %2064 = arith.cmpf oge, %2050, %2063 : vector<2x8xf32>
    %2065 = arith.select %2064, %1409, %2061 : vector<2x8xi1>, vector<2x8xf32>
    %2066 = arith.select %2064, %1427, %2062 : vector<2x8xi1>, vector<2x8xf32>
    %cst_500 = arith.constant 0.833333313 : f32
    %2067 = vector.broadcast %cst_500 : f32 to vector<2x8xf32>
    %2068 = arith.cmpf oge, %2050, %2067 : vector<2x8xf32>
    %2069 = arith.select %2068, %1412, %2065 : vector<2x8xi1>, vector<2x8xf32>
    %2070 = arith.select %2068, %1430, %2066 : vector<2x8xi1>, vector<2x8xf32>
    %2071 = arith.mulf %2069, %2050 : vector<2x8xf32>
    %2072 = arith.addf %2071, %2070 : vector<2x8xf32>
    %cst_501 = arith.constant 0.166666672 : f32
    %2073 = vector.broadcast %cst_501 : f32 to vector<2x8xf32>
    %2074 = arith.cmpf oge, %2072, %2073 : vector<2x8xf32>
    %2075 = arith.select %2074, %1400, %1397 : vector<2x8xi1>, vector<2x8xf32>
    %2076 = arith.select %2074, %1418, %1415 : vector<2x8xi1>, vector<2x8xf32>
    %cst_502 = arith.constant 0.333333343 : f32
    %2077 = vector.broadcast %cst_502 : f32 to vector<2x8xf32>
    %2078 = arith.cmpf oge, %2072, %2077 : vector<2x8xf32>
    %2079 = arith.select %2078, %1403, %2075 : vector<2x8xi1>, vector<2x8xf32>
    %2080 = arith.select %2078, %1421, %2076 : vector<2x8xi1>, vector<2x8xf32>
    %cst_503 = arith.constant 5.000000e-01 : f32
    %2081 = vector.broadcast %cst_503 : f32 to vector<2x8xf32>
    %2082 = arith.cmpf oge, %2072, %2081 : vector<2x8xf32>
    %2083 = arith.select %2082, %1406, %2079 : vector<2x8xi1>, vector<2x8xf32>
    %2084 = arith.select %2082, %1424, %2080 : vector<2x8xi1>, vector<2x8xf32>
    %cst_504 = arith.constant 0.666666686 : f32
    %2085 = vector.broadcast %cst_504 : f32 to vector<2x8xf32>
    %2086 = arith.cmpf oge, %2072, %2085 : vector<2x8xf32>
    %2087 = arith.select %2086, %1409, %2083 : vector<2x8xi1>, vector<2x8xf32>
    %2088 = arith.select %2086, %1427, %2084 : vector<2x8xi1>, vector<2x8xf32>
    %cst_505 = arith.constant 0.833333313 : f32
    %2089 = vector.broadcast %cst_505 : f32 to vector<2x8xf32>
    %2090 = arith.cmpf oge, %2072, %2089 : vector<2x8xf32>
    %2091 = arith.select %2090, %1412, %2087 : vector<2x8xi1>, vector<2x8xf32>
    %2092 = arith.select %2090, %1430, %2088 : vector<2x8xi1>, vector<2x8xf32>
    %2093 = arith.mulf %2091, %2072 : vector<2x8xf32>
    %2094 = arith.addf %2093, %2092 : vector<2x8xf32>
    %cst_506 = arith.constant 0.166666672 : f32
    %2095 = vector.broadcast %cst_506 : f32 to vector<2x8xf32>
    %2096 = arith.cmpf oge, %2094, %2095 : vector<2x8xf32>
    %2097 = arith.select %2096, %1400, %1397 : vector<2x8xi1>, vector<2x8xf32>
    %2098 = arith.select %2096, %1418, %1415 : vector<2x8xi1>, vector<2x8xf32>
    %cst_507 = arith.constant 0.333333343 : f32
    %2099 = vector.broadcast %cst_507 : f32 to vector<2x8xf32>
    %2100 = arith.cmpf oge, %2094, %2099 : vector<2x8xf32>
    %2101 = arith.select %2100, %1403, %2097 : vector<2x8xi1>, vector<2x8xf32>
    %2102 = arith.select %2100, %1421, %2098 : vector<2x8xi1>, vector<2x8xf32>
    %cst_508 = arith.constant 5.000000e-01 : f32
    %2103 = vector.broadcast %cst_508 : f32 to vector<2x8xf32>
    %2104 = arith.cmpf oge, %2094, %2103 : vector<2x8xf32>
    %2105 = arith.select %2104, %1406, %2101 : vector<2x8xi1>, vector<2x8xf32>
    %2106 = arith.select %2104, %1424, %2102 : vector<2x8xi1>, vector<2x8xf32>
    %cst_509 = arith.constant 0.666666686 : f32
    %2107 = vector.broadcast %cst_509 : f32 to vector<2x8xf32>
    %2108 = arith.cmpf oge, %2094, %2107 : vector<2x8xf32>
    %2109 = arith.select %2108, %1409, %2105 : vector<2x8xi1>, vector<2x8xf32>
    %2110 = arith.select %2108, %1427, %2106 : vector<2x8xi1>, vector<2x8xf32>
    %cst_510 = arith.constant 0.833333313 : f32
    %2111 = vector.broadcast %cst_510 : f32 to vector<2x8xf32>
    %2112 = arith.cmpf oge, %2094, %2111 : vector<2x8xf32>
    %2113 = arith.select %2112, %1412, %2109 : vector<2x8xi1>, vector<2x8xf32>
    %2114 = arith.select %2112, %1430, %2110 : vector<2x8xi1>, vector<2x8xf32>
    %2115 = arith.mulf %2113, %2094 : vector<2x8xf32>
    %2116 = arith.addf %2115, %2114 : vector<2x8xf32>
    %cst_511 = arith.constant 0.166666672 : f32
    %2117 = vector.broadcast %cst_511 : f32 to vector<2x8xf32>
    %2118 = arith.cmpf oge, %2116, %2117 : vector<2x8xf32>
    %2119 = arith.select %2118, %1400, %1397 : vector<2x8xi1>, vector<2x8xf32>
    %2120 = arith.select %2118, %1418, %1415 : vector<2x8xi1>, vector<2x8xf32>
    %cst_512 = arith.constant 0.333333343 : f32
    %2121 = vector.broadcast %cst_512 : f32 to vector<2x8xf32>
    %2122 = arith.cmpf oge, %2116, %2121 : vector<2x8xf32>
    %2123 = arith.select %2122, %1403, %2119 : vector<2x8xi1>, vector<2x8xf32>
    %2124 = arith.select %2122, %1421, %2120 : vector<2x8xi1>, vector<2x8xf32>
    %cst_513 = arith.constant 5.000000e-01 : f32
    %2125 = vector.broadcast %cst_513 : f32 to vector<2x8xf32>
    %2126 = arith.cmpf oge, %2116, %2125 : vector<2x8xf32>
    %2127 = arith.select %2126, %1406, %2123 : vector<2x8xi1>, vector<2x8xf32>
    %2128 = arith.select %2126, %1424, %2124 : vector<2x8xi1>, vector<2x8xf32>
    %cst_514 = arith.constant 0.666666686 : f32
    %2129 = vector.broadcast %cst_514 : f32 to vector<2x8xf32>
    %2130 = arith.cmpf oge, %2116, %2129 : vector<2x8xf32>
    %2131 = arith.select %2130, %1409, %2127 : vector<2x8xi1>, vector<2x8xf32>
    %2132 = arith.select %2130, %1427, %2128 : vector<2x8xi1>, vector<2x8xf32>
    %cst_515 = arith.constant 0.833333313 : f32
    %2133 = vector.broadcast %cst_515 : f32 to vector<2x8xf32>
    %2134 = arith.cmpf oge, %2116, %2133 : vector<2x8xf32>
    %2135 = arith.select %2134, %1412, %2131 : vector<2x8xi1>, vector<2x8xf32>
    %2136 = arith.select %2134, %1430, %2132 : vector<2x8xi1>, vector<2x8xf32>
    %2137 = arith.mulf %2135, %2116 : vector<2x8xf32>
    %2138 = arith.addf %2137, %2136 : vector<2x8xf32>
    %cst_516 = arith.constant 0.166666672 : f32
    %2139 = vector.broadcast %cst_516 : f32 to vector<2x8xf32>
    %2140 = arith.cmpf oge, %2138, %2139 : vector<2x8xf32>
    %2141 = arith.select %2140, %1400, %1397 : vector<2x8xi1>, vector<2x8xf32>
    %2142 = arith.select %2140, %1418, %1415 : vector<2x8xi1>, vector<2x8xf32>
    %cst_517 = arith.constant 0.333333343 : f32
    %2143 = vector.broadcast %cst_517 : f32 to vector<2x8xf32>
    %2144 = arith.cmpf oge, %2138, %2143 : vector<2x8xf32>
    %2145 = arith.select %2144, %1403, %2141 : vector<2x8xi1>, vector<2x8xf32>
    %2146 = arith.select %2144, %1421, %2142 : vector<2x8xi1>, vector<2x8xf32>
    %cst_518 = arith.constant 5.000000e-01 : f32
    %2147 = vector.broadcast %cst_518 : f32 to vector<2x8xf32>
    %2148 = arith.cmpf oge, %2138, %2147 : vector<2x8xf32>
    %2149 = arith.select %2148, %1406, %2145 : vector<2x8xi1>, vector<2x8xf32>
    %2150 = arith.select %2148, %1424, %2146 : vector<2x8xi1>, vector<2x8xf32>
    %cst_519 = arith.constant 0.666666686 : f32
    %2151 = vector.broadcast %cst_519 : f32 to vector<2x8xf32>
    %2152 = arith.cmpf oge, %2138, %2151 : vector<2x8xf32>
    %2153 = arith.select %2152, %1409, %2149 : vector<2x8xi1>, vector<2x8xf32>
    %2154 = arith.select %2152, %1427, %2150 : vector<2x8xi1>, vector<2x8xf32>
    %cst_520 = arith.constant 0.833333313 : f32
    %2155 = vector.broadcast %cst_520 : f32 to vector<2x8xf32>
    %2156 = arith.cmpf oge, %2138, %2155 : vector<2x8xf32>
    %2157 = arith.select %2156, %1412, %2153 : vector<2x8xi1>, vector<2x8xf32>
    %2158 = arith.select %2156, %1430, %2154 : vector<2x8xi1>, vector<2x8xf32>
    %2159 = arith.mulf %2157, %2138 : vector<2x8xf32>
    %2160 = arith.addf %2159, %2158 : vector<2x8xf32>
    %cst_521 = arith.constant 0.166666672 : f32
    %2161 = vector.broadcast %cst_521 : f32 to vector<2x8xf32>
    %2162 = arith.cmpf oge, %2160, %2161 : vector<2x8xf32>
    %2163 = arith.select %2162, %1400, %1397 : vector<2x8xi1>, vector<2x8xf32>
    %2164 = arith.select %2162, %1418, %1415 : vector<2x8xi1>, vector<2x8xf32>
    %cst_522 = arith.constant 0.333333343 : f32
    %2165 = vector.broadcast %cst_522 : f32 to vector<2x8xf32>
    %2166 = arith.cmpf oge, %2160, %2165 : vector<2x8xf32>
    %2167 = arith.select %2166, %1403, %2163 : vector<2x8xi1>, vector<2x8xf32>
    %2168 = arith.select %2166, %1421, %2164 : vector<2x8xi1>, vector<2x8xf32>
    %cst_523 = arith.constant 5.000000e-01 : f32
    %2169 = vector.broadcast %cst_523 : f32 to vector<2x8xf32>
    %2170 = arith.cmpf oge, %2160, %2169 : vector<2x8xf32>
    %2171 = arith.select %2170, %1406, %2167 : vector<2x8xi1>, vector<2x8xf32>
    %2172 = arith.select %2170, %1424, %2168 : vector<2x8xi1>, vector<2x8xf32>
    %cst_524 = arith.constant 0.666666686 : f32
    %2173 = vector.broadcast %cst_524 : f32 to vector<2x8xf32>
    %2174 = arith.cmpf oge, %2160, %2173 : vector<2x8xf32>
    %2175 = arith.select %2174, %1409, %2171 : vector<2x8xi1>, vector<2x8xf32>
    %2176 = arith.select %2174, %1427, %2172 : vector<2x8xi1>, vector<2x8xf32>
    %cst_525 = arith.constant 0.833333313 : f32
    %2177 = vector.broadcast %cst_525 : f32 to vector<2x8xf32>
    %2178 = arith.cmpf oge, %2160, %2177 : vector<2x8xf32>
    %2179 = arith.select %2178, %1412, %2175 : vector<2x8xi1>, vector<2x8xf32>
    %2180 = arith.select %2178, %1430, %2176 : vector<2x8xi1>, vector<2x8xf32>
    %2181 = arith.mulf %2179, %2160 : vector<2x8xf32>
    %2182 = arith.addf %2181, %2180 : vector<2x8xf32>
    %cst_526 = arith.constant 0.166666672 : f32
    %2183 = vector.broadcast %cst_526 : f32 to vector<2x8xf32>
    %2184 = arith.cmpf oge, %2182, %2183 : vector<2x8xf32>
    %2185 = arith.select %2184, %1400, %1397 : vector<2x8xi1>, vector<2x8xf32>
    %2186 = arith.select %2184, %1418, %1415 : vector<2x8xi1>, vector<2x8xf32>
    %cst_527 = arith.constant 0.333333343 : f32
    %2187 = vector.broadcast %cst_527 : f32 to vector<2x8xf32>
    %2188 = arith.cmpf oge, %2182, %2187 : vector<2x8xf32>
    %2189 = arith.select %2188, %1403, %2185 : vector<2x8xi1>, vector<2x8xf32>
    %2190 = arith.select %2188, %1421, %2186 : vector<2x8xi1>, vector<2x8xf32>
    %cst_528 = arith.constant 5.000000e-01 : f32
    %2191 = vector.broadcast %cst_528 : f32 to vector<2x8xf32>
    %2192 = arith.cmpf oge, %2182, %2191 : vector<2x8xf32>
    %2193 = arith.select %2192, %1406, %2189 : vector<2x8xi1>, vector<2x8xf32>
    %2194 = arith.select %2192, %1424, %2190 : vector<2x8xi1>, vector<2x8xf32>
    %cst_529 = arith.constant 0.666666686 : f32
    %2195 = vector.broadcast %cst_529 : f32 to vector<2x8xf32>
    %2196 = arith.cmpf oge, %2182, %2195 : vector<2x8xf32>
    %2197 = arith.select %2196, %1409, %2193 : vector<2x8xi1>, vector<2x8xf32>
    %2198 = arith.select %2196, %1427, %2194 : vector<2x8xi1>, vector<2x8xf32>
    %cst_530 = arith.constant 0.833333313 : f32
    %2199 = vector.broadcast %cst_530 : f32 to vector<2x8xf32>
    %2200 = arith.cmpf oge, %2182, %2199 : vector<2x8xf32>
    %2201 = arith.select %2200, %1412, %2197 : vector<2x8xi1>, vector<2x8xf32>
    %2202 = arith.select %2200, %1430, %2198 : vector<2x8xi1>, vector<2x8xf32>
    %2203 = arith.mulf %2201, %2182 : vector<2x8xf32>
    %2204 = arith.addf %2203, %2202 : vector<2x8xf32>
    %cst_531 = arith.constant 0.166666672 : f32
    %2205 = vector.broadcast %cst_531 : f32 to vector<2x8xf32>
    %2206 = arith.cmpf oge, %2204, %2205 : vector<2x8xf32>
    %2207 = arith.select %2206, %1400, %1397 : vector<2x8xi1>, vector<2x8xf32>
    %2208 = arith.select %2206, %1418, %1415 : vector<2x8xi1>, vector<2x8xf32>
    %cst_532 = arith.constant 0.333333343 : f32
    %2209 = vector.broadcast %cst_532 : f32 to vector<2x8xf32>
    %2210 = arith.cmpf oge, %2204, %2209 : vector<2x8xf32>
    %2211 = arith.select %2210, %1403, %2207 : vector<2x8xi1>, vector<2x8xf32>
    %2212 = arith.select %2210, %1421, %2208 : vector<2x8xi1>, vector<2x8xf32>
    %cst_533 = arith.constant 5.000000e-01 : f32
    %2213 = vector.broadcast %cst_533 : f32 to vector<2x8xf32>
    %2214 = arith.cmpf oge, %2204, %2213 : vector<2x8xf32>
    %2215 = arith.select %2214, %1406, %2211 : vector<2x8xi1>, vector<2x8xf32>
    %2216 = arith.select %2214, %1424, %2212 : vector<2x8xi1>, vector<2x8xf32>
    %cst_534 = arith.constant 0.666666686 : f32
    %2217 = vector.broadcast %cst_534 : f32 to vector<2x8xf32>
    %2218 = arith.cmpf oge, %2204, %2217 : vector<2x8xf32>
    %2219 = arith.select %2218, %1409, %2215 : vector<2x8xi1>, vector<2x8xf32>
    %2220 = arith.select %2218, %1427, %2216 : vector<2x8xi1>, vector<2x8xf32>
    %cst_535 = arith.constant 0.833333313 : f32
    %2221 = vector.broadcast %cst_535 : f32 to vector<2x8xf32>
    %2222 = arith.cmpf oge, %2204, %2221 : vector<2x8xf32>
    %2223 = arith.select %2222, %1412, %2219 : vector<2x8xi1>, vector<2x8xf32>
    %2224 = arith.select %2222, %1430, %2220 : vector<2x8xi1>, vector<2x8xf32>
    %2225 = arith.mulf %2223, %2204 : vector<2x8xf32>
    %2226 = arith.addf %2225, %2224 : vector<2x8xf32>
    %cst_536 = arith.constant 0.166666672 : f32
    %2227 = vector.broadcast %cst_536 : f32 to vector<2x8xf32>
    %2228 = arith.cmpf oge, %2226, %2227 : vector<2x8xf32>
    %2229 = arith.select %2228, %1400, %1397 : vector<2x8xi1>, vector<2x8xf32>
    %2230 = arith.select %2228, %1418, %1415 : vector<2x8xi1>, vector<2x8xf32>
    %cst_537 = arith.constant 0.333333343 : f32
    %2231 = vector.broadcast %cst_537 : f32 to vector<2x8xf32>
    %2232 = arith.cmpf oge, %2226, %2231 : vector<2x8xf32>
    %2233 = arith.select %2232, %1403, %2229 : vector<2x8xi1>, vector<2x8xf32>
    %2234 = arith.select %2232, %1421, %2230 : vector<2x8xi1>, vector<2x8xf32>
    %cst_538 = arith.constant 5.000000e-01 : f32
    %2235 = vector.broadcast %cst_538 : f32 to vector<2x8xf32>
    %2236 = arith.cmpf oge, %2226, %2235 : vector<2x8xf32>
    %2237 = arith.select %2236, %1406, %2233 : vector<2x8xi1>, vector<2x8xf32>
    %2238 = arith.select %2236, %1424, %2234 : vector<2x8xi1>, vector<2x8xf32>
    %cst_539 = arith.constant 0.666666686 : f32
    %2239 = vector.broadcast %cst_539 : f32 to vector<2x8xf32>
    %2240 = arith.cmpf oge, %2226, %2239 : vector<2x8xf32>
    %2241 = arith.select %2240, %1409, %2237 : vector<2x8xi1>, vector<2x8xf32>
    %2242 = arith.select %2240, %1427, %2238 : vector<2x8xi1>, vector<2x8xf32>
    %cst_540 = arith.constant 0.833333313 : f32
    %2243 = vector.broadcast %cst_540 : f32 to vector<2x8xf32>
    %2244 = arith.cmpf oge, %2226, %2243 : vector<2x8xf32>
    %2245 = arith.select %2244, %1412, %2241 : vector<2x8xi1>, vector<2x8xf32>
    %2246 = arith.select %2244, %1430, %2242 : vector<2x8xi1>, vector<2x8xf32>
    %2247 = arith.mulf %2245, %2226 : vector<2x8xf32>
    %2248 = arith.addf %2247, %2246 : vector<2x8xf32>
    %cst_541 = arith.constant 0.166666672 : f32
    %2249 = vector.broadcast %cst_541 : f32 to vector<2x8xf32>
    %2250 = arith.cmpf oge, %2248, %2249 : vector<2x8xf32>
    %2251 = arith.select %2250, %1400, %1397 : vector<2x8xi1>, vector<2x8xf32>
    %2252 = arith.select %2250, %1418, %1415 : vector<2x8xi1>, vector<2x8xf32>
    %cst_542 = arith.constant 0.333333343 : f32
    %2253 = vector.broadcast %cst_542 : f32 to vector<2x8xf32>
    %2254 = arith.cmpf oge, %2248, %2253 : vector<2x8xf32>
    %2255 = arith.select %2254, %1403, %2251 : vector<2x8xi1>, vector<2x8xf32>
    %2256 = arith.select %2254, %1421, %2252 : vector<2x8xi1>, vector<2x8xf32>
    %cst_543 = arith.constant 5.000000e-01 : f32
    %2257 = vector.broadcast %cst_543 : f32 to vector<2x8xf32>
    %2258 = arith.cmpf oge, %2248, %2257 : vector<2x8xf32>
    %2259 = arith.select %2258, %1406, %2255 : vector<2x8xi1>, vector<2x8xf32>
    %2260 = arith.select %2258, %1424, %2256 : vector<2x8xi1>, vector<2x8xf32>
    %cst_544 = arith.constant 0.666666686 : f32
    %2261 = vector.broadcast %cst_544 : f32 to vector<2x8xf32>
    %2262 = arith.cmpf oge, %2248, %2261 : vector<2x8xf32>
    %2263 = arith.select %2262, %1409, %2259 : vector<2x8xi1>, vector<2x8xf32>
    %2264 = arith.select %2262, %1427, %2260 : vector<2x8xi1>, vector<2x8xf32>
    %cst_545 = arith.constant 0.833333313 : f32
    %2265 = vector.broadcast %cst_545 : f32 to vector<2x8xf32>
    %2266 = arith.cmpf oge, %2248, %2265 : vector<2x8xf32>
    %2267 = arith.select %2266, %1412, %2263 : vector<2x8xi1>, vector<2x8xf32>
    %2268 = arith.select %2266, %1430, %2264 : vector<2x8xi1>, vector<2x8xf32>
    %2269 = arith.mulf %2267, %2248 : vector<2x8xf32>
    %2270 = arith.addf %2269, %2268 : vector<2x8xf32>
    %cst_546 = arith.constant 0.166666672 : f32
    %2271 = vector.broadcast %cst_546 : f32 to vector<2x8xf32>
    %2272 = arith.cmpf oge, %2270, %2271 : vector<2x8xf32>
    %2273 = arith.select %2272, %1400, %1397 : vector<2x8xi1>, vector<2x8xf32>
    %2274 = arith.select %2272, %1418, %1415 : vector<2x8xi1>, vector<2x8xf32>
    %cst_547 = arith.constant 0.333333343 : f32
    %2275 = vector.broadcast %cst_547 : f32 to vector<2x8xf32>
    %2276 = arith.cmpf oge, %2270, %2275 : vector<2x8xf32>
    %2277 = arith.select %2276, %1403, %2273 : vector<2x8xi1>, vector<2x8xf32>
    %2278 = arith.select %2276, %1421, %2274 : vector<2x8xi1>, vector<2x8xf32>
    %cst_548 = arith.constant 5.000000e-01 : f32
    %2279 = vector.broadcast %cst_548 : f32 to vector<2x8xf32>
    %2280 = arith.cmpf oge, %2270, %2279 : vector<2x8xf32>
    %2281 = arith.select %2280, %1406, %2277 : vector<2x8xi1>, vector<2x8xf32>
    %2282 = arith.select %2280, %1424, %2278 : vector<2x8xi1>, vector<2x8xf32>
    %cst_549 = arith.constant 0.666666686 : f32
    %2283 = vector.broadcast %cst_549 : f32 to vector<2x8xf32>
    %2284 = arith.cmpf oge, %2270, %2283 : vector<2x8xf32>
    %2285 = arith.select %2284, %1409, %2281 : vector<2x8xi1>, vector<2x8xf32>
    %2286 = arith.select %2284, %1427, %2282 : vector<2x8xi1>, vector<2x8xf32>
    %cst_550 = arith.constant 0.833333313 : f32
    %2287 = vector.broadcast %cst_550 : f32 to vector<2x8xf32>
    %2288 = arith.cmpf oge, %2270, %2287 : vector<2x8xf32>
    %2289 = arith.select %2288, %1412, %2285 : vector<2x8xi1>, vector<2x8xf32>
    %2290 = arith.select %2288, %1430, %2286 : vector<2x8xi1>, vector<2x8xf32>
    %2291 = arith.mulf %2289, %2270 : vector<2x8xf32>
    %2292 = arith.addf %2291, %2290 : vector<2x8xf32>
    %cst_551 = arith.constant 0.166666672 : f32
    %2293 = vector.broadcast %cst_551 : f32 to vector<2x8xf32>
    %2294 = arith.cmpf oge, %2292, %2293 : vector<2x8xf32>
    %2295 = arith.select %2294, %1400, %1397 : vector<2x8xi1>, vector<2x8xf32>
    %2296 = arith.select %2294, %1418, %1415 : vector<2x8xi1>, vector<2x8xf32>
    %cst_552 = arith.constant 0.333333343 : f32
    %2297 = vector.broadcast %cst_552 : f32 to vector<2x8xf32>
    %2298 = arith.cmpf oge, %2292, %2297 : vector<2x8xf32>
    %2299 = arith.select %2298, %1403, %2295 : vector<2x8xi1>, vector<2x8xf32>
    %2300 = arith.select %2298, %1421, %2296 : vector<2x8xi1>, vector<2x8xf32>
    %cst_553 = arith.constant 5.000000e-01 : f32
    %2301 = vector.broadcast %cst_553 : f32 to vector<2x8xf32>
    %2302 = arith.cmpf oge, %2292, %2301 : vector<2x8xf32>
    %2303 = arith.select %2302, %1406, %2299 : vector<2x8xi1>, vector<2x8xf32>
    %2304 = arith.select %2302, %1424, %2300 : vector<2x8xi1>, vector<2x8xf32>
    %cst_554 = arith.constant 0.666666686 : f32
    %2305 = vector.broadcast %cst_554 : f32 to vector<2x8xf32>
    %2306 = arith.cmpf oge, %2292, %2305 : vector<2x8xf32>
    %2307 = arith.select %2306, %1409, %2303 : vector<2x8xi1>, vector<2x8xf32>
    %2308 = arith.select %2306, %1427, %2304 : vector<2x8xi1>, vector<2x8xf32>
    %cst_555 = arith.constant 0.833333313 : f32
    %2309 = vector.broadcast %cst_555 : f32 to vector<2x8xf32>
    %2310 = arith.cmpf oge, %2292, %2309 : vector<2x8xf32>
    %2311 = arith.select %2310, %1412, %2307 : vector<2x8xi1>, vector<2x8xf32>
    %2312 = arith.select %2310, %1430, %2308 : vector<2x8xi1>, vector<2x8xf32>
    %2313 = arith.mulf %2311, %2292 : vector<2x8xf32>
    %2314 = arith.addf %2313, %2312 : vector<2x8xf32>
    %cst_556 = arith.constant 0.166666672 : f32
    %2315 = vector.broadcast %cst_556 : f32 to vector<2x8xf32>
    %2316 = arith.cmpf oge, %2314, %2315 : vector<2x8xf32>
    %2317 = arith.select %2316, %1400, %1397 : vector<2x8xi1>, vector<2x8xf32>
    %2318 = arith.select %2316, %1418, %1415 : vector<2x8xi1>, vector<2x8xf32>
    %cst_557 = arith.constant 0.333333343 : f32
    %2319 = vector.broadcast %cst_557 : f32 to vector<2x8xf32>
    %2320 = arith.cmpf oge, %2314, %2319 : vector<2x8xf32>
    %2321 = arith.select %2320, %1403, %2317 : vector<2x8xi1>, vector<2x8xf32>
    %2322 = arith.select %2320, %1421, %2318 : vector<2x8xi1>, vector<2x8xf32>
    %cst_558 = arith.constant 5.000000e-01 : f32
    %2323 = vector.broadcast %cst_558 : f32 to vector<2x8xf32>
    %2324 = arith.cmpf oge, %2314, %2323 : vector<2x8xf32>
    %2325 = arith.select %2324, %1406, %2321 : vector<2x8xi1>, vector<2x8xf32>
    %2326 = arith.select %2324, %1424, %2322 : vector<2x8xi1>, vector<2x8xf32>
    %cst_559 = arith.constant 0.666666686 : f32
    %2327 = vector.broadcast %cst_559 : f32 to vector<2x8xf32>
    %2328 = arith.cmpf oge, %2314, %2327 : vector<2x8xf32>
    %2329 = arith.select %2328, %1409, %2325 : vector<2x8xi1>, vector<2x8xf32>
    %2330 = arith.select %2328, %1427, %2326 : vector<2x8xi1>, vector<2x8xf32>
    %cst_560 = arith.constant 0.833333313 : f32
    %2331 = vector.broadcast %cst_560 : f32 to vector<2x8xf32>
    %2332 = arith.cmpf oge, %2314, %2331 : vector<2x8xf32>
    %2333 = arith.select %2332, %1412, %2329 : vector<2x8xi1>, vector<2x8xf32>
    %2334 = arith.select %2332, %1430, %2330 : vector<2x8xi1>, vector<2x8xf32>
    %2335 = arith.mulf %2333, %2314 : vector<2x8xf32>
    %2336 = arith.addf %2335, %2334 : vector<2x8xf32>
    %cst_561 = arith.constant 0.166666672 : f32
    %2337 = vector.broadcast %cst_561 : f32 to vector<2x8xf32>
    %2338 = arith.cmpf oge, %2336, %2337 : vector<2x8xf32>
    %2339 = arith.select %2338, %1400, %1397 : vector<2x8xi1>, vector<2x8xf32>
    %2340 = arith.select %2338, %1418, %1415 : vector<2x8xi1>, vector<2x8xf32>
    %cst_562 = arith.constant 0.333333343 : f32
    %2341 = vector.broadcast %cst_562 : f32 to vector<2x8xf32>
    %2342 = arith.cmpf oge, %2336, %2341 : vector<2x8xf32>
    %2343 = arith.select %2342, %1403, %2339 : vector<2x8xi1>, vector<2x8xf32>
    %2344 = arith.select %2342, %1421, %2340 : vector<2x8xi1>, vector<2x8xf32>
    %cst_563 = arith.constant 5.000000e-01 : f32
    %2345 = vector.broadcast %cst_563 : f32 to vector<2x8xf32>
    %2346 = arith.cmpf oge, %2336, %2345 : vector<2x8xf32>
    %2347 = arith.select %2346, %1406, %2343 : vector<2x8xi1>, vector<2x8xf32>
    %2348 = arith.select %2346, %1424, %2344 : vector<2x8xi1>, vector<2x8xf32>
    %cst_564 = arith.constant 0.666666686 : f32
    %2349 = vector.broadcast %cst_564 : f32 to vector<2x8xf32>
    %2350 = arith.cmpf oge, %2336, %2349 : vector<2x8xf32>
    %2351 = arith.select %2350, %1409, %2347 : vector<2x8xi1>, vector<2x8xf32>
    %2352 = arith.select %2350, %1427, %2348 : vector<2x8xi1>, vector<2x8xf32>
    %cst_565 = arith.constant 0.833333313 : f32
    %2353 = vector.broadcast %cst_565 : f32 to vector<2x8xf32>
    %2354 = arith.cmpf oge, %2336, %2353 : vector<2x8xf32>
    %2355 = arith.select %2354, %1412, %2351 : vector<2x8xi1>, vector<2x8xf32>
    %2356 = arith.select %2354, %1430, %2352 : vector<2x8xi1>, vector<2x8xf32>
    %2357 = arith.mulf %2355, %2336 : vector<2x8xf32>
    %2358 = arith.addf %2357, %2356 : vector<2x8xf32>
    %cst_566 = arith.constant 0.166666672 : f32
    %2359 = vector.broadcast %cst_566 : f32 to vector<2x8xf32>
    %2360 = arith.cmpf oge, %2358, %2359 : vector<2x8xf32>
    %2361 = arith.select %2360, %1400, %1397 : vector<2x8xi1>, vector<2x8xf32>
    %2362 = arith.select %2360, %1418, %1415 : vector<2x8xi1>, vector<2x8xf32>
    %cst_567 = arith.constant 0.333333343 : f32
    %2363 = vector.broadcast %cst_567 : f32 to vector<2x8xf32>
    %2364 = arith.cmpf oge, %2358, %2363 : vector<2x8xf32>
    %2365 = arith.select %2364, %1403, %2361 : vector<2x8xi1>, vector<2x8xf32>
    %2366 = arith.select %2364, %1421, %2362 : vector<2x8xi1>, vector<2x8xf32>
    %cst_568 = arith.constant 5.000000e-01 : f32
    %2367 = vector.broadcast %cst_568 : f32 to vector<2x8xf32>
    %2368 = arith.cmpf oge, %2358, %2367 : vector<2x8xf32>
    %2369 = arith.select %2368, %1406, %2365 : vector<2x8xi1>, vector<2x8xf32>
    %2370 = arith.select %2368, %1424, %2366 : vector<2x8xi1>, vector<2x8xf32>
    %cst_569 = arith.constant 0.666666686 : f32
    %2371 = vector.broadcast %cst_569 : f32 to vector<2x8xf32>
    %2372 = arith.cmpf oge, %2358, %2371 : vector<2x8xf32>
    %2373 = arith.select %2372, %1409, %2369 : vector<2x8xi1>, vector<2x8xf32>
    %2374 = arith.select %2372, %1427, %2370 : vector<2x8xi1>, vector<2x8xf32>
    %cst_570 = arith.constant 0.833333313 : f32
    %2375 = vector.broadcast %cst_570 : f32 to vector<2x8xf32>
    %2376 = arith.cmpf oge, %2358, %2375 : vector<2x8xf32>
    %2377 = arith.select %2376, %1412, %2373 : vector<2x8xi1>, vector<2x8xf32>
    %2378 = arith.select %2376, %1430, %2374 : vector<2x8xi1>, vector<2x8xf32>
    %2379 = arith.mulf %2377, %2358 : vector<2x8xf32>
    %2380 = arith.addf %2379, %2378 : vector<2x8xf32>
    %cst_571 = arith.constant 0.166666672 : f32
    %2381 = vector.broadcast %cst_571 : f32 to vector<2x8xf32>
    %2382 = arith.cmpf oge, %2380, %2381 : vector<2x8xf32>
    %2383 = arith.select %2382, %1400, %1397 : vector<2x8xi1>, vector<2x8xf32>
    %2384 = arith.select %2382, %1418, %1415 : vector<2x8xi1>, vector<2x8xf32>
    %cst_572 = arith.constant 0.333333343 : f32
    %2385 = vector.broadcast %cst_572 : f32 to vector<2x8xf32>
    %2386 = arith.cmpf oge, %2380, %2385 : vector<2x8xf32>
    %2387 = arith.select %2386, %1403, %2383 : vector<2x8xi1>, vector<2x8xf32>
    %2388 = arith.select %2386, %1421, %2384 : vector<2x8xi1>, vector<2x8xf32>
    %cst_573 = arith.constant 5.000000e-01 : f32
    %2389 = vector.broadcast %cst_573 : f32 to vector<2x8xf32>
    %2390 = arith.cmpf oge, %2380, %2389 : vector<2x8xf32>
    %2391 = arith.select %2390, %1406, %2387 : vector<2x8xi1>, vector<2x8xf32>
    %2392 = arith.select %2390, %1424, %2388 : vector<2x8xi1>, vector<2x8xf32>
    %cst_574 = arith.constant 0.666666686 : f32
    %2393 = vector.broadcast %cst_574 : f32 to vector<2x8xf32>
    %2394 = arith.cmpf oge, %2380, %2393 : vector<2x8xf32>
    %2395 = arith.select %2394, %1409, %2391 : vector<2x8xi1>, vector<2x8xf32>
    %2396 = arith.select %2394, %1427, %2392 : vector<2x8xi1>, vector<2x8xf32>
    %cst_575 = arith.constant 0.833333313 : f32
    %2397 = vector.broadcast %cst_575 : f32 to vector<2x8xf32>
    %2398 = arith.cmpf oge, %2380, %2397 : vector<2x8xf32>
    %2399 = arith.select %2398, %1412, %2395 : vector<2x8xi1>, vector<2x8xf32>
    %2400 = arith.select %2398, %1430, %2396 : vector<2x8xi1>, vector<2x8xf32>
    %2401 = arith.mulf %2399, %2380 : vector<2x8xf32>
    %2402 = arith.addf %2401, %2400 : vector<2x8xf32>
    %cst_576 = arith.constant 0.166666672 : f32
    %2403 = vector.broadcast %cst_576 : f32 to vector<2x8xf32>
    %2404 = arith.cmpf oge, %2402, %2403 : vector<2x8xf32>
    %2405 = arith.select %2404, %1400, %1397 : vector<2x8xi1>, vector<2x8xf32>
    %2406 = arith.select %2404, %1418, %1415 : vector<2x8xi1>, vector<2x8xf32>
    %cst_577 = arith.constant 0.333333343 : f32
    %2407 = vector.broadcast %cst_577 : f32 to vector<2x8xf32>
    %2408 = arith.cmpf oge, %2402, %2407 : vector<2x8xf32>
    %2409 = arith.select %2408, %1403, %2405 : vector<2x8xi1>, vector<2x8xf32>
    %2410 = arith.select %2408, %1421, %2406 : vector<2x8xi1>, vector<2x8xf32>
    %cst_578 = arith.constant 5.000000e-01 : f32
    %2411 = vector.broadcast %cst_578 : f32 to vector<2x8xf32>
    %2412 = arith.cmpf oge, %2402, %2411 : vector<2x8xf32>
    %2413 = arith.select %2412, %1406, %2409 : vector<2x8xi1>, vector<2x8xf32>
    %2414 = arith.select %2412, %1424, %2410 : vector<2x8xi1>, vector<2x8xf32>
    %cst_579 = arith.constant 0.666666686 : f32
    %2415 = vector.broadcast %cst_579 : f32 to vector<2x8xf32>
    %2416 = arith.cmpf oge, %2402, %2415 : vector<2x8xf32>
    %2417 = arith.select %2416, %1409, %2413 : vector<2x8xi1>, vector<2x8xf32>
    %2418 = arith.select %2416, %1427, %2414 : vector<2x8xi1>, vector<2x8xf32>
    %cst_580 = arith.constant 0.833333313 : f32
    %2419 = vector.broadcast %cst_580 : f32 to vector<2x8xf32>
    %2420 = arith.cmpf oge, %2402, %2419 : vector<2x8xf32>
    %2421 = arith.select %2420, %1412, %2417 : vector<2x8xi1>, vector<2x8xf32>
    %2422 = arith.select %2420, %1430, %2418 : vector<2x8xi1>, vector<2x8xf32>
    %2423 = arith.mulf %2421, %2402 : vector<2x8xf32>
    %2424 = arith.addf %2423, %2422 : vector<2x8xf32>
    %cst_581 = arith.constant 0.166666672 : f32
    %2425 = vector.broadcast %cst_581 : f32 to vector<2x8xf32>
    %2426 = arith.cmpf oge, %2424, %2425 : vector<2x8xf32>
    %2427 = arith.select %2426, %1400, %1397 : vector<2x8xi1>, vector<2x8xf32>
    %2428 = arith.select %2426, %1418, %1415 : vector<2x8xi1>, vector<2x8xf32>
    %cst_582 = arith.constant 0.333333343 : f32
    %2429 = vector.broadcast %cst_582 : f32 to vector<2x8xf32>
    %2430 = arith.cmpf oge, %2424, %2429 : vector<2x8xf32>
    %2431 = arith.select %2430, %1403, %2427 : vector<2x8xi1>, vector<2x8xf32>
    %2432 = arith.select %2430, %1421, %2428 : vector<2x8xi1>, vector<2x8xf32>
    %cst_583 = arith.constant 5.000000e-01 : f32
    %2433 = vector.broadcast %cst_583 : f32 to vector<2x8xf32>
    %2434 = arith.cmpf oge, %2424, %2433 : vector<2x8xf32>
    %2435 = arith.select %2434, %1406, %2431 : vector<2x8xi1>, vector<2x8xf32>
    %2436 = arith.select %2434, %1424, %2432 : vector<2x8xi1>, vector<2x8xf32>
    %cst_584 = arith.constant 0.666666686 : f32
    %2437 = vector.broadcast %cst_584 : f32 to vector<2x8xf32>
    %2438 = arith.cmpf oge, %2424, %2437 : vector<2x8xf32>
    %2439 = arith.select %2438, %1409, %2435 : vector<2x8xi1>, vector<2x8xf32>
    %2440 = arith.select %2438, %1427, %2436 : vector<2x8xi1>, vector<2x8xf32>
    %cst_585 = arith.constant 0.833333313 : f32
    %2441 = vector.broadcast %cst_585 : f32 to vector<2x8xf32>
    %2442 = arith.cmpf oge, %2424, %2441 : vector<2x8xf32>
    %2443 = arith.select %2442, %1412, %2439 : vector<2x8xi1>, vector<2x8xf32>
    %2444 = arith.select %2442, %1430, %2440 : vector<2x8xi1>, vector<2x8xf32>
    %2445 = arith.mulf %2443, %2424 : vector<2x8xf32>
    %2446 = arith.addf %2445, %2444 : vector<2x8xf32>
    %cst_586 = arith.constant 0.166666672 : f32
    %2447 = vector.broadcast %cst_586 : f32 to vector<2x8xf32>
    %2448 = arith.cmpf oge, %2446, %2447 : vector<2x8xf32>
    %2449 = arith.select %2448, %1400, %1397 : vector<2x8xi1>, vector<2x8xf32>
    %2450 = arith.select %2448, %1418, %1415 : vector<2x8xi1>, vector<2x8xf32>
    %cst_587 = arith.constant 0.333333343 : f32
    %2451 = vector.broadcast %cst_587 : f32 to vector<2x8xf32>
    %2452 = arith.cmpf oge, %2446, %2451 : vector<2x8xf32>
    %2453 = arith.select %2452, %1403, %2449 : vector<2x8xi1>, vector<2x8xf32>
    %2454 = arith.select %2452, %1421, %2450 : vector<2x8xi1>, vector<2x8xf32>
    %cst_588 = arith.constant 5.000000e-01 : f32
    %2455 = vector.broadcast %cst_588 : f32 to vector<2x8xf32>
    %2456 = arith.cmpf oge, %2446, %2455 : vector<2x8xf32>
    %2457 = arith.select %2456, %1406, %2453 : vector<2x8xi1>, vector<2x8xf32>
    %2458 = arith.select %2456, %1424, %2454 : vector<2x8xi1>, vector<2x8xf32>
    %cst_589 = arith.constant 0.666666686 : f32
    %2459 = vector.broadcast %cst_589 : f32 to vector<2x8xf32>
    %2460 = arith.cmpf oge, %2446, %2459 : vector<2x8xf32>
    %2461 = arith.select %2460, %1409, %2457 : vector<2x8xi1>, vector<2x8xf32>
    %2462 = arith.select %2460, %1427, %2458 : vector<2x8xi1>, vector<2x8xf32>
    %cst_590 = arith.constant 0.833333313 : f32
    %2463 = vector.broadcast %cst_590 : f32 to vector<2x8xf32>
    %2464 = arith.cmpf oge, %2446, %2463 : vector<2x8xf32>
    %2465 = arith.select %2464, %1412, %2461 : vector<2x8xi1>, vector<2x8xf32>
    %2466 = arith.select %2464, %1430, %2462 : vector<2x8xi1>, vector<2x8xf32>
    %2467 = arith.mulf %2465, %2446 : vector<2x8xf32>
    %2468 = arith.addf %2467, %2466 : vector<2x8xf32>
    %cst_591 = arith.constant 0.166666672 : f32
    %2469 = vector.broadcast %cst_591 : f32 to vector<2x8xf32>
    %2470 = arith.cmpf oge, %2468, %2469 : vector<2x8xf32>
    %2471 = arith.select %2470, %1400, %1397 : vector<2x8xi1>, vector<2x8xf32>
    %2472 = arith.select %2470, %1418, %1415 : vector<2x8xi1>, vector<2x8xf32>
    %cst_592 = arith.constant 0.333333343 : f32
    %2473 = vector.broadcast %cst_592 : f32 to vector<2x8xf32>
    %2474 = arith.cmpf oge, %2468, %2473 : vector<2x8xf32>
    %2475 = arith.select %2474, %1403, %2471 : vector<2x8xi1>, vector<2x8xf32>
    %2476 = arith.select %2474, %1421, %2472 : vector<2x8xi1>, vector<2x8xf32>
    %cst_593 = arith.constant 5.000000e-01 : f32
    %2477 = vector.broadcast %cst_593 : f32 to vector<2x8xf32>
    %2478 = arith.cmpf oge, %2468, %2477 : vector<2x8xf32>
    %2479 = arith.select %2478, %1406, %2475 : vector<2x8xi1>, vector<2x8xf32>
    %2480 = arith.select %2478, %1424, %2476 : vector<2x8xi1>, vector<2x8xf32>
    %cst_594 = arith.constant 0.666666686 : f32
    %2481 = vector.broadcast %cst_594 : f32 to vector<2x8xf32>
    %2482 = arith.cmpf oge, %2468, %2481 : vector<2x8xf32>
    %2483 = arith.select %2482, %1409, %2479 : vector<2x8xi1>, vector<2x8xf32>
    %2484 = arith.select %2482, %1427, %2480 : vector<2x8xi1>, vector<2x8xf32>
    %cst_595 = arith.constant 0.833333313 : f32
    %2485 = vector.broadcast %cst_595 : f32 to vector<2x8xf32>
    %2486 = arith.cmpf oge, %2468, %2485 : vector<2x8xf32>
    %2487 = arith.select %2486, %1412, %2483 : vector<2x8xi1>, vector<2x8xf32>
    %2488 = arith.select %2486, %1430, %2484 : vector<2x8xi1>, vector<2x8xf32>
    %2489 = arith.mulf %2487, %2468 : vector<2x8xf32>
    %2490 = arith.addf %2489, %2488 : vector<2x8xf32>
    %cst_596 = arith.constant 0.166666672 : f32
    %2491 = vector.broadcast %cst_596 : f32 to vector<2x8xf32>
    %2492 = arith.cmpf oge, %2490, %2491 : vector<2x8xf32>
    %2493 = arith.select %2492, %1400, %1397 : vector<2x8xi1>, vector<2x8xf32>
    %2494 = arith.select %2492, %1418, %1415 : vector<2x8xi1>, vector<2x8xf32>
    %cst_597 = arith.constant 0.333333343 : f32
    %2495 = vector.broadcast %cst_597 : f32 to vector<2x8xf32>
    %2496 = arith.cmpf oge, %2490, %2495 : vector<2x8xf32>
    %2497 = arith.select %2496, %1403, %2493 : vector<2x8xi1>, vector<2x8xf32>
    %2498 = arith.select %2496, %1421, %2494 : vector<2x8xi1>, vector<2x8xf32>
    %cst_598 = arith.constant 5.000000e-01 : f32
    %2499 = vector.broadcast %cst_598 : f32 to vector<2x8xf32>
    %2500 = arith.cmpf oge, %2490, %2499 : vector<2x8xf32>
    %2501 = arith.select %2500, %1406, %2497 : vector<2x8xi1>, vector<2x8xf32>
    %2502 = arith.select %2500, %1424, %2498 : vector<2x8xi1>, vector<2x8xf32>
    %cst_599 = arith.constant 0.666666686 : f32
    %2503 = vector.broadcast %cst_599 : f32 to vector<2x8xf32>
    %2504 = arith.cmpf oge, %2490, %2503 : vector<2x8xf32>
    %2505 = arith.select %2504, %1409, %2501 : vector<2x8xi1>, vector<2x8xf32>
    %2506 = arith.select %2504, %1427, %2502 : vector<2x8xi1>, vector<2x8xf32>
    %cst_600 = arith.constant 0.833333313 : f32
    %2507 = vector.broadcast %cst_600 : f32 to vector<2x8xf32>
    %2508 = arith.cmpf oge, %2490, %2507 : vector<2x8xf32>
    %2509 = arith.select %2508, %1412, %2505 : vector<2x8xi1>, vector<2x8xf32>
    %2510 = arith.select %2508, %1430, %2506 : vector<2x8xi1>, vector<2x8xf32>
    %2511 = arith.mulf %2509, %2490 : vector<2x8xf32>
    %2512 = arith.addf %2511, %2510 : vector<2x8xf32>
    %cst_601 = arith.constant 0.166666672 : f32
    %2513 = vector.broadcast %cst_601 : f32 to vector<2x8xf32>
    %2514 = arith.cmpf oge, %2512, %2513 : vector<2x8xf32>
    %2515 = arith.select %2514, %1400, %1397 : vector<2x8xi1>, vector<2x8xf32>
    %2516 = arith.select %2514, %1418, %1415 : vector<2x8xi1>, vector<2x8xf32>
    %cst_602 = arith.constant 0.333333343 : f32
    %2517 = vector.broadcast %cst_602 : f32 to vector<2x8xf32>
    %2518 = arith.cmpf oge, %2512, %2517 : vector<2x8xf32>
    %2519 = arith.select %2518, %1403, %2515 : vector<2x8xi1>, vector<2x8xf32>
    %2520 = arith.select %2518, %1421, %2516 : vector<2x8xi1>, vector<2x8xf32>
    %cst_603 = arith.constant 5.000000e-01 : f32
    %2521 = vector.broadcast %cst_603 : f32 to vector<2x8xf32>
    %2522 = arith.cmpf oge, %2512, %2521 : vector<2x8xf32>
    %2523 = arith.select %2522, %1406, %2519 : vector<2x8xi1>, vector<2x8xf32>
    %2524 = arith.select %2522, %1424, %2520 : vector<2x8xi1>, vector<2x8xf32>
    %cst_604 = arith.constant 0.666666686 : f32
    %2525 = vector.broadcast %cst_604 : f32 to vector<2x8xf32>
    %2526 = arith.cmpf oge, %2512, %2525 : vector<2x8xf32>
    %2527 = arith.select %2526, %1409, %2523 : vector<2x8xi1>, vector<2x8xf32>
    %2528 = arith.select %2526, %1427, %2524 : vector<2x8xi1>, vector<2x8xf32>
    %cst_605 = arith.constant 0.833333313 : f32
    %2529 = vector.broadcast %cst_605 : f32 to vector<2x8xf32>
    %2530 = arith.cmpf oge, %2512, %2529 : vector<2x8xf32>
    %2531 = arith.select %2530, %1412, %2527 : vector<2x8xi1>, vector<2x8xf32>
    %2532 = arith.select %2530, %1430, %2528 : vector<2x8xi1>, vector<2x8xf32>
    %2533 = arith.mulf %2531, %2512 : vector<2x8xf32>
    %2534 = arith.addf %2533, %2532 : vector<2x8xf32>
    %cst_606 = arith.constant 7.000000e+00 : f32
    %2535 = vector.broadcast %cst_606 : f32 to vector<2x8xf32>
    %2536 = arith.mulf %2534, %2535 : vector<2x8xf32>
    %2537 = math.floor %2536 : vector<2x8xf32>
    %cst_607 = arith.constant 0.000000e+00 : f32
    %cst_608 = arith.constant 7.000000e+00 : f32
    %2538 = vector.broadcast %cst_607 : f32 to vector<2x8xf32>
    %2539 = arith.maximumf %2538, %2537 : vector<2x8xf32>
    %2540 = vector.broadcast %cst_608 : f32 to vector<2x8xf32>
    %2541 = arith.minimumf %2540, %2539 : vector<2x8xf32>
    %cst_609 = arith.constant 1.000000e+00 : f32
    %2542 = vector.broadcast %cst_609 : f32 to vector<2x8xf32>
    %2543 = arith.addf %2537, %2542 : vector<2x8xf32>
    %cst_610 = arith.constant 0.000000e+00 : f32
    %cst_611 = arith.constant 7.000000e+00 : f32
    %2544 = vector.broadcast %cst_610 : f32 to vector<2x8xf32>
    %2545 = arith.maximumf %2544, %2543 : vector<2x8xf32>
    %2546 = vector.broadcast %cst_611 : f32 to vector<2x8xf32>
    %2547 = arith.minimumf %2546, %2545 : vector<2x8xf32>
    %2548 = arith.subf %2536, %2541 : vector<2x8xf32>
    %2549 = tpu.iota {dimensions = array<i32: 2>} : vector<2x8x8xi32>
    %2550 = arith.sitofp %2549 : vector<2x8x8xi32> to vector<2x8x8xf32>
    %2551 = vector.shape_cast %2548 : vector<2x8xf32> to vector<2x8x1xf32>
    %2552 = vector.shape_cast %2541 : vector<2x8xf32> to vector<2x8x1xf32>
    %2553 = vector.broadcast %2552 : vector<2x8x1xf32> to vector<2x8x8xf32>
    %2554 = arith.cmpf oeq, %2553, %2550 : vector<2x8x8xf32>
    %cst_612 = arith.constant 1.000000e+00 : f32
    %2555 = vector.broadcast %cst_612 : f32 to vector<2x8x1xf32>
    %2556 = arith.subf %2555, %2551 : vector<2x8x1xf32>
    %cst_613 = arith.constant 0.000000e+00 : f32
    %2557 = vector.shape_cast %2556 : vector<2x8x1xf32> to vector<2x8x1xf32>
    %2558 = vector.broadcast %2557 : vector<2x8x1xf32> to vector<2x8x8xf32>
    %2559 = vector.broadcast %cst_613 : f32 to vector<2x8x8xf32>
    %2560 = arith.select %2554, %2558, %2559 : vector<2x8x8xi1>, vector<2x8x8xf32>
    %2561 = vector.shape_cast %2547 : vector<2x8xf32> to vector<2x8x1xf32>
    %2562 = vector.broadcast %2561 : vector<2x8x1xf32> to vector<2x8x8xf32>
    %2563 = arith.cmpf oeq, %2562, %2550 : vector<2x8x8xf32>
    %cst_614 = arith.constant 0.000000e+00 : f32
    %2564 = vector.shape_cast %2551 : vector<2x8x1xf32> to vector<2x8x1xf32>
    %2565 = vector.broadcast %2564 : vector<2x8x1xf32> to vector<2x8x8xf32>
    %2566 = vector.broadcast %cst_614 : f32 to vector<2x8x8xf32>
    %2567 = arith.select %2563, %2565, %2566 : vector<2x8x8xi1>, vector<2x8x8xf32>
    %2568 = arith.addf %2560, %2567 : vector<2x8x8xf32>
    "tpu.trace_start"() <{level = 10 : i32, message = "ncj,ntj->nct"}> : () -> ()
    %cst_615 = arith.constant dense<0.000000e+00> : vector<2x4x8xf32>
    %2569 = tpu.matmul %0, %2568, %cst_615 {dimension_numbers = #tpu.dot_dimension_numbers<[2], [2], [1], [1], [0, 0, 0, 1, 1, 1], [0], [0]>} : vector<2x4x8xf32>, vector<2x8x8xf32>, vector<2x4x8xf32> -> vector<2x4x8xf32>
    "tpu.trace_stop"() : () -> ()
    %c0_616 = arith.constant 0 : index
    %c0_617 = arith.constant 0 : index
    %c0_618 = arith.constant 0 : index
    %2570 = vector.load %arg18[%c0_616, %c0_617, %c0_618] : memref<2x4x8xf32, #tpu.memory_space<vmem>>, vector<2x4x8xf32>
    tpu.vector_store %arg18[%c0_616, %c0_617, %c0_618], %2569 {strides = array<i32>} : memref<2x4x8xf32, #tpu.memory_space<vmem>>, vector<2x4x8xf32>,
    return
  }
}

</mosaic_0001>

<llo_original>
// kernel: ssavf_forward.1
$region0: #{ssavf_forward.1}
  #allocation0 [shape = 'u32[]', space=smem, size = 0x4, offset = 0x4, fixed_abs, tag = 'smem constant byte address 0x4 - core index']
  #allocation1 [shape = 'u32[144,128]{1,0:T(1,128)}', space=vmem, size = 0x12000, scoped, tag = 'internal scratch']
  %s0 = inlined_call_operand.vmem [shape: f32[2,4,8], index: 0, kind: input, shape index: {}]
  %s1 = inlined_call_operand.vmem [shape: f32[2,8,4], index: 1, kind: input, shape index: {}]
  %s2 = inlined_call_operand.vmem [shape: f32[2,5], index: 2, kind: input, shape index: {}]
  %s3 = inlined_call_operand.vmem [shape: f32[5,6], index: 3, kind: input, shape index: {}]
  %s4 = inlined_call_operand.vmem [shape: f32[5,6], index: 4, kind: input, shape index: {}]
  %s5 = inlined_call_operand.vmem [shape: f32[1,4], index: 5, kind: input, shape index: {}]
  %s6 = inlined_call_operand.vmem [shape: f32[1,4], index: 6, kind: input, shape index: {}]
  %s7 = inlined_call_operand.vmem [shape: f32[4,32], index: 7, kind: input, shape index: {}]
  %s8 = inlined_call_operand.vmem [shape: f32[1,32], index: 8, kind: input, shape index: {}]
  %s9 = inlined_call_operand.vmem [shape: f32[32,32], index: 9, kind: input, shape index: {}]
  %s10 = inlined_call_operand.vmem [shape: f32[1,32], index: 10, kind: input, shape index: {}]
  %s11 = inlined_call_operand.vmem [shape: f32[1,32], index: 11, kind: input, shape index: {}]
  %s12 = inlined_call_operand.vmem [shape: f32[1,32], index: 12, kind: input, shape index: {}]
  %s13 = inlined_call_operand.hbm [shape: f32[8,32,16], index: 13, kind: input, shape index: {}]
  %s14 = inlined_call_operand.hbm [shape: f32[8,32,16], index: 14, kind: input, shape index: {}]
  %s15 = inlined_call_operand.vmem [shape: f32[1,16], index: 15, kind: input, shape index: {}]
  %s16 = inlined_call_operand.vmem [shape: f32[16,5], index: 16, kind: input, shape index: {}]
  %s17 = inlined_call_operand.vmem [shape: f32[1,5], index: 17, kind: input, shape index: {}]
  %s18 = inlined_call_operand.hbm [shape: f32[2,4,8], index: 18, kind: output, shape index: {0}]
  %s19 = inlined_call_operand.hbm [shape: f32[2,4,8], index: 19, kind: output, shape index: {1}]
  %s20 = inlined_call_operand.hbm [shape: f32[2,5], index: 20, kind: output, shape index: {2}]
  %21 = xla_tuple %s18, %s19, %s20
  %s22 = sld [smem:[#allocation0]]
  $region106: #{ssavf_forward.1} parent=0
    _
  %s24 = ssub.s32 1, %s22
  %s25 = scalar_select 0, %s24, %s22
  $region1: #{ssavf_forward.1} parent=0
    #allocation2 [shape = 'u8[131072]{0}', space=vmem, size = 0x20000, scoped, tag = 'input window, operand 13, single buffered']
    #allocation3 [shape = 's32[1]{0}', space=sflag, size = 0x4, scoped, tag = 'scoped memory for ssavf_forward.1']
    #allocation4 [shape = 's32[1]{0}', space=sflag, size = 0x4, scoped, tag = 'scoped memory for ssavf_forward.1']
    #allocation5 [shape = 'u8[131072]{0}', space=vmem, size = 0x20000, scoped, tag = 'input window, operand 14, single buffered']
    #allocation6 [shape = 's32[1]{0}', space=sflag, size = 0x4, scoped, tag = 'scoped memory for ssavf_forward.1']
    #allocation7 [shape = 'u8[4096]{0}', space=vmem, size = 0x1000, scoped, tag = 'output window, operand 0, single buffered']
    #allocation8 [shape = 'u8[4096]{0}', space=vmem, size = 0x1000, scoped, tag = 'output window, operand 1, single buffered']
    #allocation9 [shape = 's32[1]{0}', space=sflag, size = 0x4, scoped, tag = 'scoped memory for ssavf_forward.1']
    #allocation10 [shape = 'u8[1024]{0}', space=vmem, size = 0x400, scoped, tag = 'output window, operand 2, single buffered']
    %26 = vsyncpa [#allocation3], 0
    %27 = vsyncpa [#allocation6], 0
    %28 = vsyncpa [#allocation4], 0
    %29 = vsyncpa [#allocation9], 0
    // Predicated region
    $region2: #{ssavf_forward.1} parent=1 // pred_check
      _
    $region3: #{ssavf_forward.1} parent=1 // pred_check_branch
      %31 = sbr.rel (0) target = $region5
    $region4: #{ssavf_forward.1} parent=1 // pred_region
      _
    $region5: #{ssavf_forward.1} parent=1 // pred_fallthru
      _
    // Predicated region
    $region6: #{ssavf_forward.1} parent=1 // pred_check
      _
    $region7: #{ssavf_forward.1} parent=1 // pred_check_branch
      %33 = sbr.rel (0) target = $region9
    $region8: #{ssavf_forward.1} parent=1 // pred_region
      _
    $region9: #{ssavf_forward.1} parent=1 // pred_fallthru
      _
    // Predicated region
    $region10: #{ssavf_forward.1} parent=1 // pred_check
      _
    $region11: #{ssavf_forward.1} parent=1 // pred_check_branch
      %35 = sbr.rel (0) target = $region13
    $region12: #{ssavf_forward.1} parent=1 // pred_region
      _
    $region13: #{ssavf_forward.1} parent=1 // pred_fallthru
      _
    // Predicated region
    $region14: #{ssavf_forward.1} parent=1 // pred_check
      _
    $region15: #{ssavf_forward.1} parent=1 // pred_check_branch
      %37 = sbr.rel (0) target = $region17
    $region16: #{ssavf_forward.1} parent=1 // pred_region
      _
    $region17: #{ssavf_forward.1} parent=1 // pred_fallthru
      _
    // Predicated region
    $region18: #{ssavf_forward.1} parent=1 // pred_check
      _
    $region19: #{ssavf_forward.1} parent=1 // pred_check_branch
      %39 = sbr.rel (0) target = $region21
    $region20: #{ssavf_forward.1} parent=1 // pred_region
      _
    $region21: #{ssavf_forward.1} parent=1 // pred_fallthru
      _
    // Predicated region
    $region22: #{ssavf_forward.1} parent=1 // pred_check
      _
    $region23: #{ssavf_forward.1} parent=1 // pred_check_branch
      %41 = sbr.rel (0) target = $region25
    $region24: #{ssavf_forward.1} parent=1 // pred_region
      _
    $region25: #{ssavf_forward.1} parent=1 // pred_fallthru
      _
    // Predicated region
    $region26: #{ssavf_forward.1} parent=1 // pred_check
      _
    $region27: #{ssavf_forward.1} parent=1 // pred_check_branch
      %43 = sbr.rel (0) target = $region29
    $region28: #{ssavf_forward.1} parent=1 // pred_region
      _
    $region29: #{ssavf_forward.1} parent=1 // pred_fallthru
      _
    // Predicated region
    $region30: #{ssavf_forward.1} parent=1 // pred_check
      _
    $region31: #{ssavf_forward.1} parent=1 // pred_check_branch
      %45 = sbr.rel (0) target = $region33
    $region32: #{ssavf_forward.1} parent=1 // pred_region
      _
    $region33: #{ssavf_forward.1} parent=1 // pred_fallthru
      _
    // Predicated region
    $region34: #{ssavf_forward.1} parent=1 // pred_check
      _
    $region35: #{ssavf_forward.1} parent=1 // pred_check_branch
      %47 = sbr.rel (0) target = $region37
    $region36: #{ssavf_forward.1} parent=1 // pred_region
      _
    $region37: #{ssavf_forward.1} parent=1 // pred_fallthru
      _
    // Predicated region
    $region38: #{ssavf_forward.1} parent=1 // pred_check
      _
    $region39: #{ssavf_forward.1} parent=1 // pred_check_branch
      %49 = sbr.rel (0) target = $region41
    $region40: #{ssavf_forward.1} parent=1 // pred_region
      _
    $region41: #{ssavf_forward.1} parent=1 // pred_fallthru
      _
    // Predicated region
    $region42: #{ssavf_forward.1} parent=1 // pred_check
      _
    $region43: #{ssavf_forward.1} parent=1 // pred_check_branch
      %51 = sbr.rel (0) target = $region45
    $region44: #{ssavf_forward.1} parent=1 // pred_region
      _
    $region45: #{ssavf_forward.1} parent=1 // pred_fallthru
      _
    // Predicated region
    $region46: #{ssavf_forward.1} parent=1 // pred_check
      _
    $region47: #{ssavf_forward.1} parent=1 // pred_check_branch
      %53 = sbr.rel (0) target = $region49
    $region48: #{ssavf_forward.1} parent=1 // pred_region
      _
    $region49: #{ssavf_forward.1} parent=1 // pred_fallthru
      _
    // Predicated region
    $region50: #{ssavf_forward.1} parent=1 // pred_check
      _
    $region51: #{ssavf_forward.1} parent=1 // pred_check_branch
      %55 = sbr.rel (0) target = $region53
    $region52: #{ssavf_forward.1} parent=1 // pred_region
      _
    $region53: #{ssavf_forward.1} parent=1 // pred_fallthru
      _
    // Predicated region
    $region54: #{ssavf_forward.1} parent=1 // pred_check
      _
    $region55: #{ssavf_forward.1} parent=1 // pred_check_branch
      %57 = sbr.rel (0) target = $region57
    $region56: #{ssavf_forward.1} parent=1 // pred_region
      %s59 = ssub.s32 4096, 4096
      %60 = vsyncadd [#allocation3], %s59
      %s61 = sshll.u32 [#allocation2], 4
      %s62 = int_to_ptr.vmem [resolvable:$true] %s61
      %67 = dma.hbm_to_vmem [thread:$0]  %s13, 4096, %s62, [#allocation3], 128, 128, 8
    $region57: #{ssavf_forward.1} parent=1 // pred_fallthru
      _
    // Predicated region
    $region58: #{ssavf_forward.1} parent=1 // pred_check
      _
    $region59: #{ssavf_forward.1} parent=1 // pred_check_branch
      %69 = sbr.rel (0) target = $region61
    $region60: #{ssavf_forward.1} parent=1 // pred_region
      %s71 = ssub.s32 4096, 4096
      %72 = vsyncadd [#allocation6], %s71
      %s73 = sshll.u32 [#allocation5], 4
      %s74 = int_to_ptr.vmem [resolvable:$true] %s73
      %79 = dma.hbm_to_vmem [thread:$0]  %s14, 4096, %s74, [#allocation6], 128, 128, 8
    $region61: #{ssavf_forward.1} parent=1 // pred_fallthru
      _
    // Predicated region
    $region62: #{ssavf_forward.1} parent=1 // pred_check
      _
    $region63: #{ssavf_forward.1} parent=1 // pred_check_branch
      %81 = sbr.rel (0) target = $region65
    $region64: #{ssavf_forward.1} parent=1 // pred_region
      _
    $region65: #{ssavf_forward.1} parent=1 // pred_fallthru
      _
    // Predicated region
    $region66: #{ssavf_forward.1} parent=1 // pred_check
      _
    $region67: #{ssavf_forward.1} parent=1 // pred_check_branch
      %83 = sbr.rel (0) target = $region69
    $region68: #{ssavf_forward.1} parent=1 // pred_region
      _
    $region69: #{ssavf_forward.1} parent=1 // pred_fallthru
      _
    // Predicated region
    $region70: #{ssavf_forward.1} parent=1 // pred_check
      _
    $region71: #{ssavf_forward.1} parent=1 // pred_check_branch
      %85 = sbr.rel (0) target = $region73
    $region72: #{ssavf_forward.1} parent=1 // pred_region
      _
    $region73: #{ssavf_forward.1} parent=1 // pred_fallthru
      _
    // Predicated region
    $region74: #{ssavf_forward.1} parent=1 // pred_check
      _
    $region75: #{ssavf_forward.1} parent=1 // pred_check_branch
      %87 = sbr.rel (0) target = $region77
    $region76: #{ssavf_forward.1} parent=1 // pred_region
      %88 = dma.done [#allocation3], 4096
    $region77: #{ssavf_forward.1} parent=1 // pred_fallthru
      _
    // Predicated region
    $region78: #{ssavf_forward.1} parent=1 // pred_check
      _
    $region79: #{ssavf_forward.1} parent=1 // pred_check_branch
      %90 = sbr.rel (0) target = $region81
    $region80: #{ssavf_forward.1} parent=1 // pred_region
      %91 = dma.done [#allocation6], 4096
    $region81: #{ssavf_forward.1} parent=1 // pred_fallthru
      _
    %v92 = vld [vmem:[%s0] sm:$0xf]
    %v93 = vld [vmem:[%s0 + $0x4] sm:$0xf]
    %v94 = vld [vmem:[%s2] sm:$0x3]
    %v95 = vld [vmem:[%s3] sm:$0x1f]
    %vm96 = vcmask 39936
    %v98 = vsel %vm96, %v94, 0
    %vm100 = vcmask 1044480
    %v102 = vsel %vm100, %v95, 0
    %104 = vmatprep.subr.mxu0 0.0
    %105 = vmatpush1.msra.mxu0 %v102
    %106 = vmatprep.subr.mxu0 0.0
    %107 = vmatpush1.msra.mxu0 0.0
    %108 = vmatprep.subr.mxu0 0.0
    %109 = vmatpush1.msra.mxu0 0.0
    %110 = vmatprep.subr.mxu0 0.0
    %111 = vmatpush1.msra.mxu0 0.0
    %112 = vmatprep.subr.mxu0 0.0
    %113 = vmatpush1.msra.mxu0 0.0
    %114 = vmatprep.subr.mxu0 0.0
    %115 = vmatpush1.msra.mxu0 0.0
    %116 = vmatprep.subr.mxu0 0.0
    %117 = vmatpush1.msra.mxu0 0.0
    %118 = vmatprep.subr.mxu0 0.0
    %119 = vmatpush1.msra.mxu0 0.0
    %120 = vmatprep.subr.mxu0 0.0
    %121 = vmatpush1.msra.mxu0 0.0
    %122 = vmatprep.subr.mxu0 0.0
    %123 = vmatpush1.msra.mxu0 0.0
    %124 = vmatprep.subr.mxu0 0.0
    %125 = vmatpush1.msra.mxu0 0.0
    %126 = vmatprep.subr.mxu0 0.0
    %127 = vmatpush1.msra.mxu0 0.0
    %128 = vmatprep.subr.mxu0 0.0
    %129 = vmatpush1.msra.mxu0 0.0
    %130 = vmatprep.subr.mxu0 0.0
    %131 = vmatpush1.msra.mxu0 0.0
    %132 = vmatprep.subr.mxu0 0.0
    %133 = vmatpush1.msra.mxu0 0.0
    %134 = vmatprep.subr.mxu0 0.0
    %135 = vmatpush1.msra.mxu0 0.0
    %136 = vmatprep.subr.mxu0 0.0
    %137 = vmatpush1.msra.mxu0 0.0
    %138 = vmatprep.subr.mxu0 0.0
    %139 = vmatpush1.msra.mxu0 0.0
    %140 = vmatprep.subr.mxu0 0.0
    %141 = vmatpush1.msra.mxu0 0.0
    %142 = vmatprep.subr.mxu0 0.0
    %143 = vmatpush1.msra.mxu0 0.0
    %144 = vmatprep.subr.mxu0 0.0
    %145 = vmatpush1.msra.mxu0 0.0
    %146 = vmatprep.subr.mxu0 0.0
    %147 = vmatpush1.msra.mxu0 0.0
    %148 = vmatprep.subr.mxu0 0.0
    %149 = vmatpush1.msra.mxu0 0.0
    %150 = vmatprep.subr.mxu0 0.0
    %151 = vmatpush1.msra.mxu0 0.0
    %152 = vmatprep.subr.mxu0 0.0
    %153 = vmatpush1.msra.mxu0 0.0
    %154 = vmatprep.subr.mxu0 0.0
    %155 = vmatpush1.msra.mxu0 0.0
    %156 = vmatprep.subr.mxu0 0.0
    %157 = vmatpush1.msra.mxu0 0.0
    %158 = vmatprep.subr.mxu0 0.0
    %159 = vmatpush1.msra.mxu0 0.0
    %160 = vmatprep.subr.mxu0 0.0
    %161 = vmatpush1.msra.mxu0 0.0
    %162 = vmatprep.subr.mxu0 0.0
    %163 = vmatpush1.msra.mxu0 0.0
    %164 = vmatprep.subr.mxu0 0.0
    %165 = vmatpush1.msra.mxu0 0.0
    %166 = vmatprep.subr.mxu0 0.0
    %167 = vmatpush1.msra.mxu0 0.0
    %168 = vmatprep.mubr.f32.mxu0 0.0
    %169 = vmatmul.mubr.f32.gmra.mrb[0].mxu0 %v98
    %v170 = vpop.f32.mrb[0].mxu0
    %v171 = vadd.f32 0.0, %v170
    %v172 = vpop.f32.mrb[0].mxu0
    %173 = vdwg.mxu0
    %v174 = vld [vmem:[%s4] sm:$0x1f]
    %v176 = vsel %vm100, %v174, 0
    %178 = vmatprep.subr.mxu0 0.0
    %179 = vmatpush1.msra.mxu0 %v176
    %180 = vmatprep.subr.mxu0 0.0
    %181 = vmatpush1.msra.mxu0 0.0
    %182 = vmatprep.subr.mxu0 0.0
    %183 = vmatpush1.msra.mxu0 0.0
    %184 = vmatprep.subr.mxu0 0.0
    %185 = vmatpush1.msra.mxu0 0.0
    %186 = vmatprep.subr.mxu0 0.0
    %187 = vmatpush1.msra.mxu0 0.0
    %188 = vmatprep.subr.mxu0 0.0
    %189 = vmatpush1.msra.mxu0 0.0
    %190 = vmatprep.subr.mxu0 0.0
    %191 = vmatpush1.msra.mxu0 0.0
    %192 = vmatprep.subr.mxu0 0.0
    %193 = vmatpush1.msra.mxu0 0.0
    %194 = vmatprep.subr.mxu0 0.0
    %195 = vmatpush1.msra.mxu0 0.0
    %196 = vmatprep.subr.mxu0 0.0
    %197 = vmatpush1.msra.mxu0 0.0
    %198 = vmatprep.subr.mxu0 0.0
    %199 = vmatpush1.msra.mxu0 0.0
    %200 = vmatprep.subr.mxu0 0.0
    %201 = vmatpush1.msra.mxu0 0.0
    %202 = vmatprep.subr.mxu0 0.0
    %203 = vmatpush1.msra.mxu0 0.0
    %204 = vmatprep.subr.mxu0 0.0
    %205 = vmatpush1.msra.mxu0 0.0
    %206 = vmatprep.subr.mxu0 0.0
    %207 = vmatpush1.msra.mxu0 0.0
    %208 = vmatprep.subr.mxu0 0.0
    %209 = vmatpush1.msra.mxu0 0.0
    %210 = vmatprep.subr.mxu0 0.0
    %211 = vmatpush1.msra.mxu0 0.0
    %212 = vmatprep.subr.mxu0 0.0
    %213 = vmatpush1.msra.mxu0 0.0
    %214 = vmatprep.subr.mxu0 0.0
    %215 = vmatpush1.msra.mxu0 0.0
    %216 = vmatprep.subr.mxu0 0.0
    %217 = vmatpush1.msra.mxu0 0.0
    %218 = vmatprep.subr.mxu0 0.0
    %219 = vmatpush1.msra.mxu0 0.0
    %220 = vmatprep.subr.mxu0 0.0
    %221 = vmatpush1.msra.mxu0 0.0
    %222 = vmatprep.subr.mxu0 0.0
    %223 = vmatpush1.msra.mxu0 0.0
    %224 = vmatprep.subr.mxu0 0.0
    %225 = vmatpush1.msra.mxu0 0.0
    %226 = vmatprep.subr.mxu0 0.0
    %227 = vmatpush1.msra.mxu0 0.0
    %228 = vmatprep.subr.mxu0 0.0
    %229 = vmatpush1.msra.mxu0 0.0
    %230 = vmatprep.subr.mxu0 0.0
    %231 = vmatpush1.msra.mxu0 0.0
    %232 = vmatprep.subr.mxu0 0.0
    %233 = vmatpush1.msra.mxu0 0.0
    %234 = vmatprep.subr.mxu0 0.0
    %235 = vmatpush1.msra.mxu0 0.0
    %236 = vmatprep.subr.mxu0 0.0
    %237 = vmatpush1.msra.mxu0 0.0
    %238 = vmatprep.subr.mxu0 0.0
    %239 = vmatpush1.msra.mxu0 0.0
    %240 = vmatprep.subr.mxu0 0.0
    %241 = vmatpush1.msra.mxu0 0.0
    %242 = vmatprep.mubr.f32.mxu0 0.0
    %243 = vmatmul.mubr.f32.gmra.mrb[0].mxu0 %v98
    %v244 = vpop.f32.mrb[0].mxu0
    %v245 = vadd.f32 0.0, %v244
    %v246 = vpop.f32.mrb[0].mxu0
    %247 = vdwg.mxu0
    %v248 = vmul.f32 %v171, 0.02
    %v249 = vmul.f32 %v248, 1.442695
    %v250 = vpow.pop %v249
    %v251 = vand.u32 2147483647, %v171
    %vm252 = vcmp.lt.f32.partialorder %v251, 1e-08
    %v253 = vsel %vm252, 1.0, %v171
    %v254 = vmul.f32 %v245, 0.02
    %v255 = vrcp.pop %v253
    %v256 = vmul.f32 %v245, %v255
    %v257 = vsub.f32 %v250, 1.0
    %v258 = vmul.f32 %v256, %v257
    %v259 = vsel %vm252, %v254, %v258
    %261 = vset.pattern.permute.xlu0 0
    %262 = vperm.xlu0 %261, %v250
    %v263 = vpop.permute.xlu0 %262
    %265 = vset.pattern.permute.xlu0 1
    %266 = vperm.xlu0 %265, %v250
    %v267 = vpop.permute.xlu0 %266
    %269 = vset.pattern.permute.xlu0 2
    %270 = vperm.xlu0 %269, %v250
    %v271 = vpop.permute.xlu0 %270
    %273 = vset.pattern.permute.xlu0 3
    %274 = vperm.xlu0 %273, %v250
    %v275 = vpop.permute.xlu0 %274
    %277 = vset.pattern.permute.xlu0 4
    %278 = vperm.xlu0 %277, %v250
    %v279 = vpop.permute.xlu0 %278
    %281 = vset.pattern.permute.xlu0 5
    %282 = vperm.xlu0 %281, %v250
    %v283 = vpop.permute.xlu0 %282
    %286 = vset.pattern.permute.xlu0 0
    %287 = vperm.xlu0 %286, %v259
    %v288 = vpop.permute.xlu0 %287
    %290 = vset.pattern.permute.xlu0 1
    %291 = vperm.xlu0 %290, %v259
    %v292 = vpop.permute.xlu0 %291
    %294 = vset.pattern.permute.xlu0 2
    %295 = vperm.xlu0 %294, %v259
    %v296 = vpop.permute.xlu0 %295
    %298 = vset.pattern.permute.xlu0 3
    %299 = vperm.xlu0 %298, %v259
    %v300 = vpop.permute.xlu0 %299
    %302 = vset.pattern.permute.xlu0 4
    %303 = vperm.xlu0 %302, %v259
    %v304 = vpop.permute.xlu0 %303
    %306 = vset.pattern.permute.xlu0 5
    %307 = vperm.xlu0 %306, %v259
    %v308 = vpop.permute.xlu0 %307
    %v310 = vlaneseq
    %v311 = vand.u32 %v310, 127
    %v312 = vcvt.s32.f32 %v311
    %v313 = vrcp.pop 7.0
    %v314 = vmul.f32 %v312, %v313
    %vm315 = vcmp.ge.f32.partialorder %v314, 0.16666667
    %v316 = vsel %vm315, %v267, %v263
    %v317 = vsel %vm315, %v292, %v288
    %vm318 = vcmp.ge.f32.partialorder %v314, 0.33333334
    %v319 = vsel %vm318, %v271, %v316
    %v320 = vsel %vm318, %v296, %v317
    %vm321 = vcmp.ge.f32.partialorder %v314, 0.5
    %v322 = vsel %vm321, %v275, %v319
    %v323 = vsel %vm321, %v300, %v320
    %vm324 = vcmp.ge.f32.partialorder %v314, 0.6666667
    %v325 = vsel %vm324, %v279, %v322
    %v326 = vsel %vm324, %v304, %v323
    %vm327 = vcmp.ge.f32.partialorder %v314, 0.8333333
    %v328 = vsel %vm327, %v283, %v325
    %v329 = vsel %vm327, %v308, %v326
    %v330 = vmul.f32 %v328, %v314
    %v331 = vadd.f32 %v330, %v329
    %vm332 = vcmp.ge.f32.partialorder %v331, 0.16666667
    %v333 = vsel %vm332, %v267, %v263
    %v334 = vsel %vm332, %v292, %v288
    %vm335 = vcmp.ge.f32.partialorder %v331, 0.33333334
    %v336 = vsel %vm335, %v271, %v333
    %v337 = vsel %vm335, %v296, %v334
    %vm338 = vcmp.ge.f32.partialorder %v331, 0.5
    %v339 = vsel %vm338, %v275, %v336
    %v340 = vsel %vm338, %v300, %v337
    %vm341 = vcmp.ge.f32.partialorder %v331, 0.6666667
    %v342 = vsel %vm341, %v279, %v339
    %v343 = vsel %vm341, %v304, %v340
    %vm344 = vcmp.ge.f32.partialorder %v331, 0.8333333
    %v345 = vsel %vm344, %v283, %v342
    %v346 = vsel %vm344, %v308, %v343
    %v347 = vmul.f32 %v345, %v331
    %v348 = vadd.f32 %v347, %v346
    %vm349 = vcmp.ge.f32.partialorder %v348, 0.16666667
    %v350 = vsel %vm349, %v267, %v263
    %v351 = vsel %vm349, %v292, %v288
    %vm352 = vcmp.ge.f32.partialorder %v348, 0.33333334
    %v353 = vsel %vm352, %v271, %v350
    %v354 = vsel %vm352, %v296, %v351
    %vm355 = vcmp.ge.f32.partialorder %v348, 0.5
    %v356 = vsel %vm355, %v275, %v353
    %v357 = vsel %vm355, %v300, %v354
    %vm358 = vcmp.ge.f32.partialorder %v348, 0.6666667
    %v359 = vsel %vm358, %v279, %v356
    %v360 = vsel %vm358, %v304, %v357
    %vm361 = vcmp.ge.f32.partialorder %v348, 0.8333333
    %v362 = vsel %vm361, %v283, %v359
    %v363 = vsel %vm361, %v308, %v360
    %v364 = vmul.f32 %v362, %v348
    %v365 = vadd.f32 %v364, %v363
    %vm366 = vcmp.ge.f32.partialorder %v365, 0.16666667
    %v367 = vsel %vm366, %v267, %v263
    %v368 = vsel %vm366, %v292, %v288
    %vm369 = vcmp.ge.f32.partialorder %v365, 0.33333334
    %v370 = vsel %vm369, %v271, %v367
    %v371 = vsel %vm369, %v296, %v368
    %vm372 = vcmp.ge.f32.partialorder %v365, 0.5
    %v373 = vsel %vm372, %v275, %v370
    %v374 = vsel %vm372, %v300, %v371
    %vm375 = vcmp.ge.f32.partialorder %v365, 0.6666667
    %v376 = vsel %vm375, %v279, %v373
    %v377 = vsel %vm375, %v304, %v374
    %vm378 = vcmp.ge.f32.partialorder %v365, 0.8333333
    %v379 = vsel %vm378, %v283, %v376
    %v380 = vsel %vm378, %v308, %v377
    %v381 = vmul.f32 %v379, %v365
    %v382 = vadd.f32 %v381, %v380
    %vm383 = vcmp.ge.f32.partialorder %v382, 0.16666667
    %v384 = vsel %vm383, %v267, %v263
    %v385 = vsel %vm383, %v292, %v288
    %vm386 = vcmp.ge.f32.partialorder %v382, 0.33333334
    %v387 = vsel %vm386, %v271, %v384
    %v388 = vsel %vm386, %v296, %v385
    %vm389 = vcmp.ge.f32.partialorder %v382, 0.5
    %v390 = vsel %vm389, %v275, %v387
    %v391 = vsel %vm389, %v300, %v388
    %vm392 = vcmp.ge.f32.partialorder %v382, 0.6666667
    %v393 = vsel %vm392, %v279, %v390
    %v394 = vsel %vm392, %v304, %v391
    %vm395 = vcmp.ge.f32.partialorder %v382, 0.8333333
    %v396 = vsel %vm395, %v283, %v393
    %v397 = vsel %vm395, %v308, %v394
    %v398 = vmul.f32 %v396, %v382
    %v399 = vadd.f32 %v398, %v397
    %vm400 = vcmp.ge.f32.partialorder %v399, 0.16666667
    %v401 = vsel %vm400, %v267, %v263
    %v402 = vsel %vm400, %v292, %v288
    %vm403 = vcmp.ge.f32.partialorder %v399, 0.33333334
    %v404 = vsel %vm403, %v271, %v401
    %v405 = vsel %vm403, %v296, %v402
    %vm406 = vcmp.ge.f32.partialorder %v399, 0.5
    %v407 = vsel %vm406, %v275, %v404
    %v408 = vsel %vm406, %v300, %v405
    %vm409 = vcmp.ge.f32.partialorder %v399, 0.6666667
    %v410 = vsel %vm409, %v279, %v407
    %v411 = vsel %vm409, %v304, %v408
    %vm412 = vcmp.ge.f32.partialorder %v399, 0.8333333
    %v413 = vsel %vm412, %v283, %v410
    %v414 = vsel %vm412, %v308, %v411
    %v415 = vmul.f32 %v413, %v399
    %v416 = vadd.f32 %v415, %v414
    %vm417 = vcmp.ge.f32.partialorder %v416, 0.16666667
    %v418 = vsel %vm417, %v267, %v263
    %v419 = vsel %vm417, %v292, %v288
    %vm420 = vcmp.ge.f32.partialorder %v416, 0.33333334
    %v421 = vsel %vm420, %v271, %v418
    %v422 = vsel %vm420, %v296, %v419
    %vm423 = vcmp.ge.f32.partialorder %v416, 0.5
    %v424 = vsel %vm423, %v275, %v421
    %v425 = vsel %vm423, %v300, %v422
    %vm426 = vcmp.ge.f32.partialorder %v416, 0.6666667
    %v427 = vsel %vm426, %v279, %v424
    %v428 = vsel %vm426, %v304, %v425
    %vm429 = vcmp.ge.f32.partialorder %v416, 0.8333333
    %v430 = vsel %vm429, %v283, %v427
    %v431 = vsel %vm429, %v308, %v428
    %v432 = vmul.f32 %v430, %v416
    %v433 = vadd.f32 %v432, %v431
    %vm434 = vcmp.ge.f32.partialorder %v433, 0.16666667
    %v435 = vsel %vm434, %v267, %v263
    %v436 = vsel %vm434, %v292, %v288
    %vm437 = vcmp.ge.f32.partialorder %v433, 0.33333334
    %v438 = vsel %vm437, %v271, %v435
    %v439 = vsel %vm437, %v296, %v436
    %vm440 = vcmp.ge.f32.partialorder %v433, 0.5
    %v441 = vsel %vm440, %v275, %v438
    %v442 = vsel %vm440, %v300, %v439
    %vm443 = vcmp.ge.f32.partialorder %v433, 0.6666667
    %v444 = vsel %vm443, %v279, %v441
    %v445 = vsel %vm443, %v304, %v442
    %vm446 = vcmp.ge.f32.partialorder %v433, 0.8333333
    %v447 = vsel %vm446, %v283, %v444
    %v448 = vsel %vm446, %v308, %v445
    %v449 = vmul.f32 %v447, %v433
    %v450 = vadd.f32 %v449, %v448
    %vm451 = vcmp.ge.f32.partialorder %v450, 0.16666667
    %v452 = vsel %vm451, %v267, %v263
    %v453 = vsel %vm451, %v292, %v288
    %vm454 = vcmp.ge.f32.partialorder %v450, 0.33333334
    %v455 = vsel %vm454, %v271, %v452
    %v456 = vsel %vm454, %v296, %v453
    %vm457 = vcmp.ge.f32.partialorder %v450, 0.5
    %v458 = vsel %vm457, %v275, %v455
    %v459 = vsel %vm457, %v300, %v456
    %vm460 = vcmp.ge.f32.partialorder %v450, 0.6666667
    %v461 = vsel %vm460, %v279, %v458
    %v462 = vsel %vm460, %v304, %v459
    %vm463 = vcmp.ge.f32.partialorder %v450, 0.8333333
    %v464 = vsel %vm463, %v283, %v461
    %v465 = vsel %vm463, %v308, %v462
    %v466 = vmul.f32 %v464, %v450
    %v467 = vadd.f32 %v466, %v465
    %vm468 = vcmp.ge.f32.partialorder %v467, 0.16666667
    %v469 = vsel %vm468, %v267, %v263
    %v470 = vsel %vm468, %v292, %v288
    %vm471 = vcmp.ge.f32.partialorder %v467, 0.33333334
    %v472 = vsel %vm471, %v271, %v469
    %v473 = vsel %vm471, %v296, %v470
    %vm474 = vcmp.ge.f32.partialorder %v467, 0.5
    %v475 = vsel %vm474, %v275, %v472
    %v476 = vsel %vm474, %v300, %v473
    %vm477 = vcmp.ge.f32.partialorder %v467, 0.6666667
    %v478 = vsel %vm477, %v279, %v475
    %v479 = vsel %vm477, %v304, %v476
    %vm480 = vcmp.ge.f32.partialorder %v467, 0.8333333
    %v481 = vsel %vm480, %v283, %v478
    %v482 = vsel %vm480, %v308, %v479
    %v483 = vmul.f32 %v481, %v467
    %v484 = vadd.f32 %v483, %v482
    %vm485 = vcmp.ge.f32.partialorder %v484, 0.16666667
    %v486 = vsel %vm485, %v267, %v263
    %v487 = vsel %vm485, %v292, %v288
    %vm488 = vcmp.ge.f32.partialorder %v484, 0.33333334
    %v489 = vsel %vm488, %v271, %v486
    %v490 = vsel %vm488, %v296, %v487
    %vm491 = vcmp.ge.f32.partialorder %v484, 0.5
    %v492 = vsel %vm491, %v275, %v489
    %v493 = vsel %vm491, %v300, %v490
    %vm494 = vcmp.ge.f32.partialorder %v484, 0.6666667
    %v495 = vsel %vm494, %v279, %v492
    %v496 = vsel %vm494, %v304, %v493
    %vm497 = vcmp.ge.f32.partialorder %v484, 0.8333333
    %v498 = vsel %vm497, %v283, %v495
    %v499 = vsel %vm497, %v308, %v496
    %v500 = vmul.f32 %v498, %v484
    %v501 = vadd.f32 %v500, %v499
    %vm502 = vcmp.ge.f32.partialorder %v501, 0.16666667
    %v503 = vsel %vm502, %v267, %v263
    %v504 = vsel %vm502, %v292, %v288
    %vm505 = vcmp.ge.f32.partialorder %v501, 0.33333334
    %v506 = vsel %vm505, %v271, %v503
    %v507 = vsel %vm505, %v296, %v504
    %vm508 = vcmp.ge.f32.partialorder %v501, 0.5
    %v509 = vsel %vm508, %v275, %v506
    %v510 = vsel %vm508, %v300, %v507
    %vm511 = vcmp.ge.f32.partialorder %v501, 0.6666667
    %v512 = vsel %vm511, %v279, %v509
    %v513 = vsel %vm511, %v304, %v510
    %vm514 = vcmp.ge.f32.partialorder %v501, 0.8333333
    %v515 = vsel %vm514, %v283, %v512
    %v516 = vsel %vm514, %v308, %v513
    %v517 = vmul.f32 %v515, %v501
    %v518 = vadd.f32 %v517, %v516
    %vm519 = vcmp.ge.f32.partialorder %v518, 0.16666667
    %v520 = vsel %vm519, %v267, %v263
    %v521 = vsel %vm519, %v292, %v288
    %vm522 = vcmp.ge.f32.partialorder %v518, 0.33333334
    %v523 = vsel %vm522, %v271, %v520
    %v524 = vsel %vm522, %v296, %v521
    %vm525 = vcmp.ge.f32.partialorder %v518, 0.5
    %v526 = vsel %vm525, %v275, %v523
    %v527 = vsel %vm525, %v300, %v524
    %vm528 = vcmp.ge.f32.partialorder %v518, 0.6666667
    %v529 = vsel %vm528, %v279, %v526
    %v530 = vsel %vm528, %v304, %v527
    %vm531 = vcmp.ge.f32.partialorder %v518, 0.8333333
    %v532 = vsel %vm531, %v283, %v529
    %v533 = vsel %vm531, %v308, %v530
    %v534 = vmul.f32 %v532, %v518
    %v535 = vadd.f32 %v534, %v533
    %vm536 = vcmp.ge.f32.partialorder %v535, 0.16666667
    %v537 = vsel %vm536, %v267, %v263
    %v538 = vsel %vm536, %v292, %v288
    %vm539 = vcmp.ge.f32.partialorder %v535, 0.33333334
    %v540 = vsel %vm539, %v271, %v537
    %v541 = vsel %vm539, %v296, %v538
    %vm542 = vcmp.ge.f32.partialorder %v535, 0.5
    %v543 = vsel %vm542, %v275, %v540
    %v544 = vsel %vm542, %v300, %v541
    %vm545 = vcmp.ge.f32.partialorder %v535, 0.6666667
    %v546 = vsel %vm545, %v279, %v543
    %v547 = vsel %vm545, %v304, %v544
    %vm548 = vcmp.ge.f32.partialorder %v535, 0.8333333
    %v549 = vsel %vm548, %v283, %v546
    %v550 = vsel %vm548, %v308, %v547
    %v551 = vmul.f32 %v549, %v535
    %v552 = vadd.f32 %v551, %v550
    %vm553 = vcmp.ge.f32.partialorder %v552, 0.16666667
    %v554 = vsel %vm553, %v267, %v263
    %v555 = vsel %vm553, %v292, %v288
    %vm556 = vcmp.ge.f32.partialorder %v552, 0.33333334
    %v557 = vsel %vm556, %v271, %v554
    %v558 = vsel %vm556, %v296, %v555
    %vm559 = vcmp.ge.f32.partialorder %v552, 0.5
    %v560 = vsel %vm559, %v275, %v557
    %v561 = vsel %vm559, %v300, %v558
    %vm562 = vcmp.ge.f32.partialorder %v552, 0.6666667
    %v563 = vsel %vm562, %v279, %v560
    %v564 = vsel %vm562, %v304, %v561
    %vm565 = vcmp.ge.f32.partialorder %v552, 0.8333333
    %v566 = vsel %vm565, %v283, %v563
    %v567 = vsel %vm565, %v308, %v564
    %v568 = vmul.f32 %v566, %v552
    %v569 = vadd.f32 %v568, %v567
    %vm570 = vcmp.ge.f32.partialorder %v569, 0.16666667
    %v571 = vsel %vm570, %v267, %v263
    %v572 = vsel %vm570, %v292, %v288
    %vm573 = vcmp.ge.f32.partialorder %v569, 0.33333334
    %v574 = vsel %vm573, %v271, %v571
    %v575 = vsel %vm573, %v296, %v572
    %vm576 = vcmp.ge.f32.partialorder %v569, 0.5
    %v577 = vsel %vm576, %v275, %v574
    %v578 = vsel %vm576, %v300, %v575
    %vm579 = vcmp.ge.f32.partialorder %v569, 0.6666667
    %v580 = vsel %vm579, %v279, %v577
    %v581 = vsel %vm579, %v304, %v578
    %vm582 = vcmp.ge.f32.partialorder %v569, 0.8333333
    %v583 = vsel %vm582, %v283, %v580
    %v584 = vsel %vm582, %v308, %v581
    %v585 = vmul.f32 %v583, %v569
    %v586 = vadd.f32 %v585, %v584
    %vm587 = vcmp.ge.f32.partialorder %v586, 0.16666667
    %v588 = vsel %vm587, %v267, %v263
    %v589 = vsel %vm587, %v292, %v288
    %vm590 = vcmp.ge.f32.partialorder %v586, 0.33333334
    %v591 = vsel %vm590, %v271, %v588
    %v592 = vsel %vm590, %v296, %v589
    %vm593 = vcmp.ge.f32.partialorder %v586, 0.5
    %v594 = vsel %vm593, %v275, %v591
    %v595 = vsel %vm593, %v300, %v592
    %vm596 = vcmp.ge.f32.partialorder %v586, 0.6666667
    %v597 = vsel %vm596, %v279, %v594
    %v598 = vsel %vm596, %v304, %v595
    %vm599 = vcmp.ge.f32.partialorder %v586, 0.8333333
    %v600 = vsel %vm599, %v283, %v597
    %v601 = vsel %vm599, %v308, %v598
    %v602 = vmul.f32 %v600, %v586
    %v603 = vadd.f32 %v602, %v601
    %vm604 = vcmp.ge.f32.partialorder %v603, 0.16666667
    %v605 = vsel %vm604, %v267, %v263
    %v606 = vsel %vm604, %v292, %v288
    %vm607 = vcmp.ge.f32.partialorder %v603, 0.33333334
    %v608 = vsel %vm607, %v271, %v605
    %v609 = vsel %vm607, %v296, %v606
    %vm610 = vcmp.ge.f32.partialorder %v603, 0.5
    %v611 = vsel %vm610, %v275, %v608
    %v612 = vsel %vm610, %v300, %v609
    %vm613 = vcmp.ge.f32.partialorder %v603, 0.6666667
    %v614 = vsel %vm613, %v279, %v611
    %v615 = vsel %vm613, %v304, %v612
    %vm616 = vcmp.ge.f32.partialorder %v603, 0.8333333
    %v617 = vsel %vm616, %v283, %v614
    %v618 = vsel %vm616, %v308, %v615
    %v619 = vmul.f32 %v617, %v603
    %v620 = vadd.f32 %v619, %v618
    %vm621 = vcmp.ge.f32.partialorder %v620, 0.16666667
    %v622 = vsel %vm621, %v267, %v263
    %v623 = vsel %vm621, %v292, %v288
    %vm624 = vcmp.ge.f32.partialorder %v620, 0.33333334
    %v625 = vsel %vm624, %v271, %v622
    %v626 = vsel %vm624, %v296, %v623
    %vm627 = vcmp.ge.f32.partialorder %v620, 0.5
    %v628 = vsel %vm627, %v275, %v625
    %v629 = vsel %vm627, %v300, %v626
    %vm630 = vcmp.ge.f32.partialorder %v620, 0.6666667
    %v631 = vsel %vm630, %v279, %v628
    %v632 = vsel %vm630, %v304, %v629
    %vm633 = vcmp.ge.f32.partialorder %v620, 0.8333333
    %v634 = vsel %vm633, %v283, %v631
    %v635 = vsel %vm633, %v308, %v632
    %v636 = vmul.f32 %v634, %v620
    %v637 = vadd.f32 %v636, %v635
    %vm638 = vcmp.ge.f32.partialorder %v637, 0.16666667
    %v639 = vsel %vm638, %v267, %v263
    %v640 = vsel %vm638, %v292, %v288
    %vm641 = vcmp.ge.f32.partialorder %v637, 0.33333334
    %v642 = vsel %vm641, %v271, %v639
    %v643 = vsel %vm641, %v296, %v640
    %vm644 = vcmp.ge.f32.partialorder %v637, 0.5
    %v645 = vsel %vm644, %v275, %v642
    %v646 = vsel %vm644, %v300, %v643
    %vm647 = vcmp.ge.f32.partialorder %v637, 0.6666667
    %v648 = vsel %vm647, %v279, %v645
    %v649 = vsel %vm647, %v304, %v646
    %vm650 = vcmp.ge.f32.partialorder %v637, 0.8333333
    %v651 = vsel %vm650, %v283, %v648
    %v652 = vsel %vm650, %v308, %v649
    %v653 = vmul.f32 %v651, %v637
    %v654 = vadd.f32 %v653, %v652
    %vm655 = vcmp.ge.f32.partialorder %v654, 0.16666667
    %v656 = vsel %vm655, %v267, %v263
    %v657 = vsel %vm655, %v292, %v288
    %vm658 = vcmp.ge.f32.partialorder %v654, 0.33333334
    %v659 = vsel %vm658, %v271, %v656
    %v660 = vsel %vm658, %v296, %v657
    %vm661 = vcmp.ge.f32.partialorder %v654, 0.5
    %v662 = vsel %vm661, %v275, %v659
    %v663 = vsel %vm661, %v300, %v660
    %vm664 = vcmp.ge.f32.partialorder %v654, 0.6666667
    %v665 = vsel %vm664, %v279, %v662
    %v666 = vsel %vm664, %v304, %v663
    %vm667 = vcmp.ge.f32.partialorder %v654, 0.8333333
    %v668 = vsel %vm667, %v283, %v665
    %v669 = vsel %vm667, %v308, %v666
    %v670 = vmul.f32 %v668, %v654
    %v671 = vadd.f32 %v670, %v669
    %vm672 = vcmp.ge.f32.partialorder %v671, 0.16666667
    %v673 = vsel %vm672, %v267, %v263
    %v674 = vsel %vm672, %v292, %v288
    %vm675 = vcmp.ge.f32.partialorder %v671, 0.33333334
    %v676 = vsel %vm675, %v271, %v673
    %v677 = vsel %vm675, %v296, %v674
    %vm678 = vcmp.ge.f32.partialorder %v671, 0.5
    %v679 = vsel %vm678, %v275, %v676
    %v680 = vsel %vm678, %v300, %v677
    %vm681 = vcmp.ge.f32.partialorder %v671, 0.6666667
    %v682 = vsel %vm681, %v279, %v679
    %v683 = vsel %vm681, %v304, %v680
    %vm684 = vcmp.ge.f32.partialorder %v671, 0.8333333
    %v685 = vsel %vm684, %v283, %v682
    %v686 = vsel %vm684, %v308, %v683
    %v687 = vmul.f32 %v685, %v671
    %v688 = vadd.f32 %v687, %v686
    %vm689 = vcmp.ge.f32.partialorder %v688, 0.16666667
    %v690 = vsel %vm689, %v267, %v263
    %v691 = vsel %vm689, %v292, %v288
    %vm692 = vcmp.ge.f32.partialorder %v688, 0.33333334
    %v693 = vsel %vm692, %v271, %v690
    %v694 = vsel %vm692, %v296, %v691
    %vm695 = vcmp.ge.f32.partialorder %v688, 0.5
    %v696 = vsel %vm695, %v275, %v693
    %v697 = vsel %vm695, %v300, %v694
    %vm698 = vcmp.ge.f32.partialorder %v688, 0.6666667
    %v699 = vsel %vm698, %v279, %v696
    %v700 = vsel %vm698, %v304, %v697
    %vm701 = vcmp.ge.f32.partialorder %v688, 0.8333333
    %v702 = vsel %vm701, %v283, %v699
    %v703 = vsel %vm701, %v308, %v700
    %v704 = vmul.f32 %v702, %v688
    %v705 = vadd.f32 %v704, %v703
    %vm706 = vcmp.ge.f32.partialorder %v705, 0.16666667
    %v707 = vsel %vm706, %v267, %v263
    %v708 = vsel %vm706, %v292, %v288
    %vm709 = vcmp.ge.f32.partialorder %v705, 0.33333334
    %v710 = vsel %vm709, %v271, %v707
    %v711 = vsel %vm709, %v296, %v708
    %vm712 = vcmp.ge.f32.partialorder %v705, 0.5
    %v713 = vsel %vm712, %v275, %v710
    %v714 = vsel %vm712, %v300, %v711
    %vm715 = vcmp.ge.f32.partialorder %v705, 0.6666667
    %v716 = vsel %vm715, %v279, %v713
    %v717 = vsel %vm715, %v304, %v714
    %vm718 = vcmp.ge.f32.partialorder %v705, 0.8333333
    %v719 = vsel %vm718, %v283, %v716
    %v720 = vsel %vm718, %v308, %v717
    %v721 = vmul.f32 %v719, %v705
    %v722 = vadd.f32 %v721, %v720
    %vm723 = vcmp.ge.f32.partialorder %v722, 0.16666667
    %v724 = vsel %vm723, %v267, %v263
    %v725 = vsel %vm723, %v292, %v288
    %vm726 = vcmp.ge.f32.partialorder %v722, 0.33333334
    %v727 = vsel %vm726, %v271, %v724
    %v728 = vsel %vm726, %v296, %v725
    %vm729 = vcmp.ge.f32.partialorder %v722, 0.5
    %v730 = vsel %vm729, %v275, %v727
    %v731 = vsel %vm729, %v300, %v728
    %vm732 = vcmp.ge.f32.partialorder %v722, 0.6666667
    %v733 = vsel %vm732, %v279, %v730
    %v734 = vsel %vm732, %v304, %v731
    %vm735 = vcmp.ge.f32.partialorder %v722, 0.8333333
    %v736 = vsel %vm735, %v283, %v733
    %v737 = vsel %vm735, %v308, %v734
    %v738 = vmul.f32 %v736, %v722
    %v739 = vadd.f32 %v738, %v737
    %vm740 = vcmp.ge.f32.partialorder %v739, 0.16666667
    %v741 = vsel %vm740, %v267, %v263
    %v742 = vsel %vm740, %v292, %v288
    %vm743 = vcmp.ge.f32.partialorder %v739, 0.33333334
    %v744 = vsel %vm743, %v271, %v741
    %v745 = vsel %vm743, %v296, %v742
    %vm746 = vcmp.ge.f32.partialorder %v739, 0.5
    %v747 = vsel %vm746, %v275, %v744
    %v748 = vsel %vm746, %v300, %v745
    %vm749 = vcmp.ge.f32.partialorder %v739, 0.6666667
    %v750 = vsel %vm749, %v279, %v747
    %v751 = vsel %vm749, %v304, %v748
    %vm752 = vcmp.ge.f32.partialorder %v739, 0.8333333
    %v753 = vsel %vm752, %v283, %v750
    %v754 = vsel %vm752, %v308, %v751
    %v755 = vmul.f32 %v753, %v739
    %v756 = vadd.f32 %v755, %v754
    %vm757 = vcmp.ge.f32.partialorder %v756, 0.16666667
    %v758 = vsel %vm757, %v267, %v263
    %v759 = vsel %vm757, %v292, %v288
    %vm760 = vcmp.ge.f32.partialorder %v756, 0.33333334
    %v761 = vsel %vm760, %v271, %v758
    %v762 = vsel %vm760, %v296, %v759
    %vm763 = vcmp.ge.f32.partialorder %v756, 0.5
    %v764 = vsel %vm763, %v275, %v761
    %v765 = vsel %vm763, %v300, %v762
    %vm766 = vcmp.ge.f32.partialorder %v756, 0.6666667
    %v767 = vsel %vm766, %v279, %v764
    %v768 = vsel %vm766, %v304, %v765
    %vm769 = vcmp.ge.f32.partialorder %v756, 0.8333333
    %v770 = vsel %vm769, %v283, %v767
    %v771 = vsel %vm769, %v308, %v768
    %v772 = vmul.f32 %v770, %v756
    %v773 = vadd.f32 %v772, %v771
    %vm774 = vcmp.ge.f32.partialorder %v773, 0.16666667
    %v775 = vsel %vm774, %v267, %v263
    %v776 = vsel %vm774, %v292, %v288
    %vm777 = vcmp.ge.f32.partialorder %v773, 0.33333334
    %v778 = vsel %vm777, %v271, %v775
    %v779 = vsel %vm777, %v296, %v776
    %vm780 = vcmp.ge.f32.partialorder %v773, 0.5
    %v781 = vsel %vm780, %v275, %v778
    %v782 = vsel %vm780, %v300, %v779
    %vm783 = vcmp.ge.f32.partialorder %v773, 0.6666667
    %v784 = vsel %vm783, %v279, %v781
    %v785 = vsel %vm783, %v304, %v782
    %vm786 = vcmp.ge.f32.partialorder %v773, 0.8333333
    %v787 = vsel %vm786, %v283, %v784
    %v788 = vsel %vm786, %v308, %v785
    %v789 = vmul.f32 %v787, %v773
    %v790 = vadd.f32 %v789, %v788
    %vm791 = vcmp.ge.f32.partialorder %v790, 0.16666667
    %v792 = vsel %vm791, %v267, %v263
    %v793 = vsel %vm791, %v292, %v288
    %vm794 = vcmp.ge.f32.partialorder %v790, 0.33333334
    %v795 = vsel %vm794, %v271, %v792
    %v796 = vsel %vm794, %v296, %v793
    %vm797 = vcmp.ge.f32.partialorder %v790, 0.5
    %v798 = vsel %vm797, %v275, %v795
    %v799 = vsel %vm797, %v300, %v796
    %vm800 = vcmp.ge.f32.partialorder %v790, 0.6666667
    %v801 = vsel %vm800, %v279, %v798
    %v802 = vsel %vm800, %v304, %v799
    %vm803 = vcmp.ge.f32.partialorder %v790, 0.8333333
    %v804 = vsel %vm803, %v283, %v801
    %v805 = vsel %vm803, %v308, %v802
    %v806 = vmul.f32 %v804, %v790
    %v807 = vadd.f32 %v806, %v805
    %vm808 = vcmp.ge.f32.partialorder %v807, 0.16666667
    %v809 = vsel %vm808, %v267, %v263
    %v810 = vsel %vm808, %v292, %v288
    %vm811 = vcmp.ge.f32.partialorder %v807, 0.33333334
    %v812 = vsel %vm811, %v271, %v809
    %v813 = vsel %vm811, %v296, %v810
    %vm814 = vcmp.ge.f32.partialorder %v807, 0.5
    %v815 = vsel %vm814, %v275, %v812
    %v816 = vsel %vm814, %v300, %v813
    %vm817 = vcmp.ge.f32.partialorder %v807, 0.6666667
    %v818 = vsel %vm817, %v279, %v815
    %v819 = vsel %vm817, %v304, %v816
    %vm820 = vcmp.ge.f32.partialorder %v807, 0.8333333
    %v821 = vsel %vm820, %v283, %v818
    %v822 = vsel %vm820, %v308, %v819
    %v823 = vmul.f32 %v821, %v807
    %v824 = vadd.f32 %v823, %v822
    %vm825 = vcmp.ge.f32.partialorder %v824, 0.16666667
    %v826 = vsel %vm825, %v267, %v263
    %v827 = vsel %vm825, %v292, %v288
    %vm828 = vcmp.ge.f32.partialorder %v824, 0.33333334
    %v829 = vsel %vm828, %v271, %v826
    %v830 = vsel %vm828, %v296, %v827
    %vm831 = vcmp.ge.f32.partialorder %v824, 0.5
    %v832 = vsel %vm831, %v275, %v829
    %v833 = vsel %vm831, %v300, %v830
    %vm834 = vcmp.ge.f32.partialorder %v824, 0.6666667
    %v835 = vsel %vm834, %v279, %v832
    %v836 = vsel %vm834, %v304, %v833
    %vm837 = vcmp.ge.f32.partialorder %v824, 0.8333333
    %v838 = vsel %vm837, %v283, %v835
    %v839 = vsel %vm837, %v308, %v836
    %v840 = vmul.f32 %v838, %v824
    %v841 = vadd.f32 %v840, %v839
    %vm842 = vcmp.ge.f32.partialorder %v841, 0.16666667
    %v843 = vsel %vm842, %v267, %v263
    %v844 = vsel %vm842, %v292, %v288
    %vm845 = vcmp.ge.f32.partialorder %v841, 0.33333334
    %v846 = vsel %vm845, %v271, %v843
    %v847 = vsel %vm845, %v296, %v844
    %vm848 = vcmp.ge.f32.partialorder %v841, 0.5
    %v849 = vsel %vm848, %v275, %v846
    %v850 = vsel %vm848, %v300, %v847
    %vm851 = vcmp.ge.f32.partialorder %v841, 0.6666667
    %v852 = vsel %vm851, %v279, %v849
    %v853 = vsel %vm851, %v304, %v850
    %vm854 = vcmp.ge.f32.partialorder %v841, 0.8333333
    %v855 = vsel %vm854, %v283, %v852
    %v856 = vsel %vm854, %v308, %v853
    %v857 = vmul.f32 %v855, %v841
    %v858 = vadd.f32 %v857, %v856
    %vm859 = vcmp.ge.f32.partialorder %v858, 0.16666667
    %v860 = vsel %vm859, %v267, %v263
    %v861 = vsel %vm859, %v292, %v288
    %vm862 = vcmp.ge.f32.partialorder %v858, 0.33333334
    %v863 = vsel %vm862, %v271, %v860
    %v864 = vsel %vm862, %v296, %v861
    %vm865 = vcmp.ge.f32.partialorder %v858, 0.5
    %v866 = vsel %vm865, %v275, %v863
    %v867 = vsel %vm865, %v300, %v864
    %vm868 = vcmp.ge.f32.partialorder %v858, 0.6666667
    %v869 = vsel %vm868, %v279, %v866
    %v870 = vsel %vm868, %v304, %v867
    %vm871 = vcmp.ge.f32.partialorder %v858, 0.8333333
    %v872 = vsel %vm871, %v283, %v869
    %v873 = vsel %vm871, %v308, %v870
    %v874 = vmul.f32 %v872, %v858
    %v875 = vadd.f32 %v874, %v873
    %vm876 = vcmp.ge.f32.partialorder %v875, 0.16666667
    %v877 = vsel %vm876, %v267, %v263
    %v878 = vsel %vm876, %v292, %v288
    %vm879 = vcmp.ge.f32.partialorder %v875, 0.33333334
    %v880 = vsel %vm879, %v271, %v877
    %v881 = vsel %vm879, %v296, %v878
    %vm882 = vcmp.ge.f32.partialorder %v875, 0.5
    %v883 = vsel %vm882, %v275, %v880
    %v884 = vsel %vm882, %v300, %v881
    %vm885 = vcmp.ge.f32.partialorder %v875, 0.6666667
    %v886 = vsel %vm885, %v279, %v883
    %v887 = vsel %vm885, %v304, %v884
    %vm888 = vcmp.ge.f32.partialorder %v875, 0.8333333
    %v889 = vsel %vm888, %v283, %v886
    %v890 = vsel %vm888, %v308, %v887
    %v891 = vmul.f32 %v889, %v875
    %v892 = vadd.f32 %v891, %v890
    %vm893 = vcmp.ge.f32.partialorder %v892, 0.16666667
    %v894 = vsel %vm893, %v267, %v263
    %v895 = vsel %vm893, %v292, %v288
    %vm896 = vcmp.ge.f32.partialorder %v892, 0.33333334
    %v897 = vsel %vm896, %v271, %v894
    %v898 = vsel %vm896, %v296, %v895
    %vm899 = vcmp.ge.f32.partialorder %v892, 0.5
    %v900 = vsel %vm899, %v275, %v897
    %v901 = vsel %vm899, %v300, %v898
    %vm902 = vcmp.ge.f32.partialorder %v892, 0.6666667
    %v903 = vsel %vm902, %v279, %v900
    %v904 = vsel %vm902, %v304, %v901
    %vm905 = vcmp.ge.f32.partialorder %v892, 0.8333333
    %v906 = vsel %vm905, %v283, %v903
    %v907 = vsel %vm905, %v308, %v904
    %v908 = vmul.f32 %v906, %v892
    %v909 = vadd.f32 %v908, %v907
    %vm910 = vcmp.ge.f32.partialorder %v909, 0.16666667
    %v911 = vsel %vm910, %v267, %v263
    %v912 = vsel %vm910, %v292, %v288
    %vm913 = vcmp.ge.f32.partialorder %v909, 0.33333334
    %v914 = vsel %vm913, %v271, %v911
    %v915 = vsel %vm913, %v296, %v912
    %vm916 = vcmp.ge.f32.partialorder %v909, 0.5
    %v917 = vsel %vm916, %v275, %v914
    %v918 = vsel %vm916, %v300, %v915
    %vm919 = vcmp.ge.f32.partialorder %v909, 0.6666667
    %v920 = vsel %vm919, %v279, %v917
    %v921 = vsel %vm919, %v304, %v918
    %vm922 = vcmp.ge.f32.partialorder %v909, 0.8333333
    %v923 = vsel %vm922, %v283, %v920
    %v924 = vsel %vm922, %v308, %v921
    %v925 = vmul.f32 %v923, %v909
    %v926 = vadd.f32 %v925, %v924
    %vm927 = vcmp.ge.f32.partialorder %v926, 0.16666667
    %v928 = vsel %vm927, %v267, %v263
    %v929 = vsel %vm927, %v292, %v288
    %vm930 = vcmp.ge.f32.partialorder %v926, 0.33333334
    %v931 = vsel %vm930, %v271, %v928
    %v932 = vsel %vm930, %v296, %v929
    %vm933 = vcmp.ge.f32.partialorder %v926, 0.5
    %v934 = vsel %vm933, %v275, %v931
    %v935 = vsel %vm933, %v300, %v932
    %vm936 = vcmp.ge.f32.partialorder %v926, 0.6666667
    %v937 = vsel %vm936, %v279, %v934
    %v938 = vsel %vm936, %v304, %v935
    %vm939 = vcmp.ge.f32.partialorder %v926, 0.8333333
    %v940 = vsel %vm939, %v283, %v937
    %v941 = vsel %vm939, %v308, %v938
    %v942 = vmul.f32 %v940, %v926
    %v943 = vadd.f32 %v942, %v941
    %vm944 = vcmp.ge.f32.partialorder %v943, 0.16666667
    %v945 = vsel %vm944, %v267, %v263
    %v946 = vsel %vm944, %v292, %v288
    %vm947 = vcmp.ge.f32.partialorder %v943, 0.33333334
    %v948 = vsel %vm947, %v271, %v945
    %v949 = vsel %vm947, %v296, %v946
    %vm950 = vcmp.ge.f32.partialorder %v943, 0.5
    %v951 = vsel %vm950, %v275, %v948
    %v952 = vsel %vm950, %v300, %v949
    %vm953 = vcmp.ge.f32.partialorder %v943, 0.6666667
    %v954 = vsel %vm953, %v279, %v951
    %v955 = vsel %vm953, %v304, %v952
    %vm956 = vcmp.ge.f32.partialorder %v943, 0.8333333
    %v957 = vsel %vm956, %v283, %v954
    %v958 = vsel %vm956, %v308, %v955
    %v959 = vmul.f32 %v957, %v943
    %v960 = vadd.f32 %v959, %v958
    %vm961 = vcmp.ge.f32.partialorder %v960, 0.16666667
    %v962 = vsel %vm961, %v267, %v263
    %v963 = vsel %vm961, %v292, %v288
    %vm964 = vcmp.ge.f32.partialorder %v960, 0.33333334
    %v965 = vsel %vm964, %v271, %v962
    %v966 = vsel %vm964, %v296, %v963
    %vm967 = vcmp.ge.f32.partialorder %v960, 0.5
    %v968 = vsel %vm967, %v275, %v965
    %v969 = vsel %vm967, %v300, %v966
    %vm970 = vcmp.ge.f32.partialorder %v960, 0.6666667
    %v971 = vsel %vm970, %v279, %v968
    %v972 = vsel %vm970, %v304, %v969
    %vm973 = vcmp.ge.f32.partialorder %v960, 0.8333333
    %v974 = vsel %vm973, %v283, %v971
    %v975 = vsel %vm973, %v308, %v972
    %v976 = vmul.f32 %v974, %v960
    %v977 = vadd.f32 %v976, %v975
    %vm978 = vcmp.ge.f32.partialorder %v977, 0.16666667
    %v979 = vsel %vm978, %v267, %v263
    %v980 = vsel %vm978, %v292, %v288
    %vm981 = vcmp.ge.f32.partialorder %v977, 0.33333334
    %v982 = vsel %vm981, %v271, %v979
    %v983 = vsel %vm981, %v296, %v980
    %vm984 = vcmp.ge.f32.partialorder %v977, 0.5
    %v985 = vsel %vm984, %v275, %v982
    %v986 = vsel %vm984, %v300, %v983
    %vm987 = vcmp.ge.f32.partialorder %v977, 0.6666667
    %v988 = vsel %vm987, %v279, %v985
    %v989 = vsel %vm987, %v304, %v986
    %vm990 = vcmp.ge.f32.partialorder %v977, 0.8333333
    %v991 = vsel %vm990, %v283, %v988
    %v992 = vsel %vm990, %v308, %v989
    %v993 = vmul.f32 %v991, %v977
    %v994 = vadd.f32 %v993, %v992
    %vm995 = vcmp.ge.f32.partialorder %v994, 0.16666667
    %v996 = vsel %vm995, %v267, %v263
    %v997 = vsel %vm995, %v292, %v288
    %vm998 = vcmp.ge.f32.partialorder %v994, 0.33333334
    %v999 = vsel %vm998, %v271, %v996
    %v1000 = vsel %vm998, %v296, %v997
    %vm1001 = vcmp.ge.f32.partialorder %v994, 0.5
    %v1002 = vsel %vm1001, %v275, %v999
    %v1003 = vsel %vm1001, %v300, %v1000
    %vm1004 = vcmp.ge.f32.partialorder %v994, 0.6666667
    %v1005 = vsel %vm1004, %v279, %v1002
    %v1006 = vsel %vm1004, %v304, %v1003
    %vm1007 = vcmp.ge.f32.partialorder %v994, 0.8333333
    %v1008 = vsel %vm1007, %v283, %v1005
    %v1009 = vsel %vm1007, %v308, %v1006
    %v1010 = vmul.f32 %v1008, %v994
    %v1011 = vadd.f32 %v1010, %v1009
    %vm1012 = vcmp.ge.f32.partialorder %v1011, 0.16666667
    %v1013 = vsel %vm1012, %v267, %v263
    %v1014 = vsel %vm1012, %v292, %v288
    %vm1015 = vcmp.ge.f32.partialorder %v1011, 0.33333334
    %v1016 = vsel %vm1015, %v271, %v1013
    %v1017 = vsel %vm1015, %v296, %v1014
    %vm1018 = vcmp.ge.f32.partialorder %v1011, 0.5
    %v1019 = vsel %vm1018, %v275, %v1016
    %v1020 = vsel %vm1018, %v300, %v1017
    %vm1021 = vcmp.ge.f32.partialorder %v1011, 0.6666667
    %v1022 = vsel %vm1021, %v279, %v1019
    %v1023 = vsel %vm1021, %v304, %v1020
    %vm1024 = vcmp.ge.f32.partialorder %v1011, 0.8333333
    %v1025 = vsel %vm1024, %v283, %v1022
    %v1026 = vsel %vm1024, %v308, %v1023
    %v1027 = vmul.f32 %v1025, %v1011
    %v1028 = vadd.f32 %v1027, %v1026
    %vm1029 = vcmp.ge.f32.partialorder %v1028, 0.16666667
    %v1030 = vsel %vm1029, %v267, %v263
    %v1031 = vsel %vm1029, %v292, %v288
    %vm1032 = vcmp.ge.f32.partialorder %v1028, 0.33333334
    %v1033 = vsel %vm1032, %v271, %v1030
    %v1034 = vsel %vm1032, %v296, %v1031
    %vm1035 = vcmp.ge.f32.partialorder %v1028, 0.5
    %v1036 = vsel %vm1035, %v275, %v1033
    %v1037 = vsel %vm1035, %v300, %v1034
    %vm1038 = vcmp.ge.f32.partialorder %v1028, 0.6666667
    %v1039 = vsel %vm1038, %v279, %v1036
    %v1040 = vsel %vm1038, %v304, %v1037
    %vm1041 = vcmp.ge.f32.partialorder %v1028, 0.8333333
    %v1042 = vsel %vm1041, %v283, %v1039
    %v1043 = vsel %vm1041, %v308, %v1040
    %v1044 = vmul.f32 %v1042, %v1028
    %v1045 = vadd.f32 %v1044, %v1043
    %vm1046 = vcmp.ge.f32.partialorder %v1045, 0.16666667
    %v1047 = vsel %vm1046, %v267, %v263
    %v1048 = vsel %vm1046, %v292, %v288
    %vm1049 = vcmp.ge.f32.partialorder %v1045, 0.33333334
    %v1050 = vsel %vm1049, %v271, %v1047
    %v1051 = vsel %vm1049, %v296, %v1048
    %vm1052 = vcmp.ge.f32.partialorder %v1045, 0.5
    %v1053 = vsel %vm1052, %v275, %v1050
    %v1054 = vsel %vm1052, %v300, %v1051
    %vm1055 = vcmp.ge.f32.partialorder %v1045, 0.6666667
    %v1056 = vsel %vm1055, %v279, %v1053
    %v1057 = vsel %vm1055, %v304, %v1054
    %vm1058 = vcmp.ge.f32.partialorder %v1045, 0.8333333
    %v1059 = vsel %vm1058, %v283, %v1056
    %v1060 = vsel %vm1058, %v308, %v1057
    %v1061 = vmul.f32 %v1059, %v1045
    %v1062 = vadd.f32 %v1061, %v1060
    %vm1063 = vcmp.ge.f32.partialorder %v1062, 0.16666667
    %v1064 = vsel %vm1063, %v267, %v263
    %v1065 = vsel %vm1063, %v292, %v288
    %vm1066 = vcmp.ge.f32.partialorder %v1062, 0.33333334
    %v1067 = vsel %vm1066, %v271, %v1064
    %v1068 = vsel %vm1066, %v296, %v1065
    %vm1069 = vcmp.ge.f32.partialorder %v1062, 0.5
    %v1070 = vsel %vm1069, %v275, %v1067
    %v1071 = vsel %vm1069, %v300, %v1068
    %vm1072 = vcmp.ge.f32.partialorder %v1062, 0.6666667
    %v1073 = vsel %vm1072, %v279, %v1070
    %v1074 = vsel %vm1072, %v304, %v1071
    %vm1075 = vcmp.ge.f32.partialorder %v1062, 0.8333333
    %v1076 = vsel %vm1075, %v283, %v1073
    %v1077 = vsel %vm1075, %v308, %v1074
    %v1078 = vmul.f32 %v1076, %v1062
    %v1079 = vadd.f32 %v1078, %v1077
    %vm1080 = vcmp.ge.f32.partialorder %v1079, 0.16666667
    %v1081 = vsel %vm1080, %v267, %v263
    %v1082 = vsel %vm1080, %v292, %v288
    %vm1083 = vcmp.ge.f32.partialorder %v1079, 0.33333334
    %v1084 = vsel %vm1083, %v271, %v1081
    %v1085 = vsel %vm1083, %v296, %v1082
    %vm1086 = vcmp.ge.f32.partialorder %v1079, 0.5
    %v1087 = vsel %vm1086, %v275, %v1084
    %v1088 = vsel %vm1086, %v300, %v1085
    %vm1089 = vcmp.ge.f32.partialorder %v1079, 0.6666667
    %v1090 = vsel %vm1089, %v279, %v1087
    %v1091 = vsel %vm1089, %v304, %v1088
    %vm1092 = vcmp.ge.f32.partialorder %v1079, 0.8333333
    %v1093 = vsel %vm1092, %v283, %v1090
    %v1094 = vsel %vm1092, %v308, %v1091
    %v1095 = vmul.f32 %v1093, %v1079
    %v1096 = vadd.f32 %v1095, %v1094
    %vm1097 = vcmp.ge.f32.partialorder %v1096, 0.16666667
    %v1098 = vsel %vm1097, %v267, %v263
    %v1099 = vsel %vm1097, %v292, %v288
    %vm1100 = vcmp.ge.f32.partialorder %v1096, 0.33333334
    %v1101 = vsel %vm1100, %v271, %v1098
    %v1102 = vsel %vm1100, %v296, %v1099
    %vm1103 = vcmp.ge.f32.partialorder %v1096, 0.5
    %v1104 = vsel %vm1103, %v275, %v1101
    %v1105 = vsel %vm1103, %v300, %v1102
    %vm1106 = vcmp.ge.f32.partialorder %v1096, 0.6666667
    %v1107 = vsel %vm1106, %v279, %v1104
    %v1108 = vsel %vm1106, %v304, %v1105
    %vm1109 = vcmp.ge.f32.partialorder %v1096, 0.8333333
    %v1110 = vsel %vm1109, %v283, %v1107
    %v1111 = vsel %vm1109, %v308, %v1108
    %v1112 = vmul.f32 %v1110, %v1096
    %v1113 = vadd.f32 %v1112, %v1111
    %vm1114 = vcmp.ge.f32.partialorder %v1113, 0.16666667
    %v1115 = vsel %vm1114, %v267, %v263
    %v1116 = vsel %vm1114, %v292, %v288
    %vm1117 = vcmp.ge.f32.partialorder %v1113, 0.33333334
    %v1118 = vsel %vm1117, %v271, %v1115
    %v1119 = vsel %vm1117, %v296, %v1116
    %vm1120 = vcmp.ge.f32.partialorder %v1113, 0.5
    %v1121 = vsel %vm1120, %v275, %v1118
    %v1122 = vsel %vm1120, %v300, %v1119
    %vm1123 = vcmp.ge.f32.partialorder %v1113, 0.6666667
    %v1124 = vsel %vm1123, %v279, %v1121
    %v1125 = vsel %vm1123, %v304, %v1122
    %vm1126 = vcmp.ge.f32.partialorder %v1113, 0.8333333
    %v1127 = vsel %vm1126, %v283, %v1124
    %v1128 = vsel %vm1126, %v308, %v1125
    %v1129 = vmul.f32 %v1127, %v1113
    %v1130 = vadd.f32 %v1129, %v1128
    %vm1131 = vcmp.ge.f32.partialorder %v1130, 0.16666667
    %v1132 = vsel %vm1131, %v267, %v263
    %v1133 = vsel %vm1131, %v292, %v288
    %vm1134 = vcmp.ge.f32.partialorder %v1130, 0.33333334
    %v1135 = vsel %vm1134, %v271, %v1132
    %v1136 = vsel %vm1134, %v296, %v1133
    %vm1137 = vcmp.ge.f32.partialorder %v1130, 0.5
    %v1138 = vsel %vm1137, %v275, %v1135
    %v1139 = vsel %vm1137, %v300, %v1136
    %vm1140 = vcmp.ge.f32.partialorder %v1130, 0.6666667
    %v1141 = vsel %vm1140, %v279, %v1138
    %v1142 = vsel %vm1140, %v304, %v1139
    %vm1143 = vcmp.ge.f32.partialorder %v1130, 0.8333333
    %v1144 = vsel %vm1143, %v283, %v1141
    %v1145 = vsel %vm1143, %v308, %v1142
    %v1146 = vmul.f32 %v1144, %v1130
    %v1147 = vadd.f32 %v1146, %v1145
    %vm1148 = vcmp.ge.f32.partialorder %v1147, 0.16666667
    %v1149 = vsel %vm1148, %v267, %v263
    %v1150 = vsel %vm1148, %v292, %v288
    %vm1151 = vcmp.ge.f32.partialorder %v1147, 0.33333334
    %v1152 = vsel %vm1151, %v271, %v1149
    %v1153 = vsel %vm1151, %v296, %v1150
    %vm1154 = vcmp.ge.f32.partialorder %v1147, 0.5
    %v1155 = vsel %vm1154, %v275, %v1152
    %v1156 = vsel %vm1154, %v300, %v1153
    %vm1157 = vcmp.ge.f32.partialorder %v1147, 0.6666667
    %v1158 = vsel %vm1157, %v279, %v1155
    %v1159 = vsel %vm1157, %v304, %v1156
    %vm1160 = vcmp.ge.f32.partialorder %v1147, 0.8333333
    %v1161 = vsel %vm1160, %v283, %v1158
    %v1162 = vsel %vm1160, %v308, %v1159
    %v1163 = vmul.f32 %v1161, %v1147
    %v1164 = vadd.f32 %v1163, %v1162
    %v1165 = vmul.f32 %v1164, 7.0
    %v1166 = vfloor.f32 %v1165
    %v1167 = vmax.f32 %v1166, 0.0
    %v1168 = vmin.f32 %v1167, 7.0
    %v1169 = vadd.f32 %v1166, 1.0
    %v1170 = vmax.f32 %v1169, 0.0
    %v1171 = vmin.f32 %v1170, 7.0
    %v1172 = vsub.f32 %v1165, %v1168
    %v1173 = vlaneseq
    %v1174 = vshrl.u32 %v1173, 7
    %v1175 = vsub.s32 0, %v1174
    %v1176 = vrot.slane %v1172, %v1175
    %1178 = vbcast.lane.b32.xlu0 %v1176, 256
    %v1179 = vpop.permute.xlu0 %1178
    %v1180 = vlaneseq
    %v1181 = vshrl.u32 %v1180, 7
    %v1182 = vsub.s32 1, %v1181
    %v1183 = vrot.slane %v1172, %v1182
    %1185 = vbcast.lane.b32.xlu0 %v1183, 256
    %v1186 = vpop.permute.xlu0 %1185
    %v1187 = vlaneseq
    %v1188 = vshrl.u32 %v1187, 7
    %v1189 = vsub.s32 0, %v1188
    %v1190 = vrot.slane %v1168, %v1189
    %1192 = vbcast.lane.b32.xlu0 %v1190, 256
    %v1193 = vpop.permute.xlu0 %1192
    %v1194 = vlaneseq
    %v1195 = vshrl.u32 %v1194, 7
    %v1196 = vsub.s32 1, %v1195
    %v1197 = vrot.slane %v1168, %v1196
    %1199 = vbcast.lane.b32.xlu0 %v1197, 256
    %v1200 = vpop.permute.xlu0 %1199
    %vm1201 = vcmp.eq.f32.partialorder %v1193, %v312
    %vm1202 = vcmp.eq.f32.partialorder %v1200, %v312
    %v1203 = vsub.f32 1.0, %v1179
    %v1204 = vsub.f32 1.0, %v1186
    %v1205 = vsel %vm1201, %v1203, 0.0
    %v1206 = vsel %vm1202, %v1204, 0.0
    %v1207 = vlaneseq
    %v1208 = vshrl.u32 %v1207, 7
    %v1209 = vsub.s32 0, %v1208
    %v1210 = vrot.slane %v1171, %v1209
    %1212 = vbcast.lane.b32.xlu0 %v1210, 256
    %v1213 = vpop.permute.xlu0 %1212
    %v1214 = vlaneseq
    %v1215 = vshrl.u32 %v1214, 7
    %v1216 = vsub.s32 1, %v1215
    %v1217 = vrot.slane %v1171, %v1216
    %1219 = vbcast.lane.b32.xlu0 %v1217, 256
    %v1220 = vpop.permute.xlu0 %1219
    %vm1221 = vcmp.eq.f32.partialorder %v1213, %v312
    %vm1222 = vcmp.eq.f32.partialorder %v1220, %v312
    %v1223 = vsel %vm1221, %v1179, 0.0
    %v1224 = vsel %vm1222, %v1186, 0.0
    %v1225 = vadd.f32 %v1205, %v1223
    %v1226 = vadd.f32 %v1206, %v1224
    %vm1227 = vcmask 64512
    %v1229 = vsel %vm1227, %v92, 0
    %v1232 = vsel %vm1227, %v1225, 0
    %1234 = vmatprep.subr.mxu0 0.0
    %1235 = vmatpush1.xpose.msra.mxu0 %v1232
    %1236 = vmatprep.subr.mxu0 0.0
    %1237 = vmatpush1.xpose.msra.mxu0 0.0
    %1238 = vmatprep.subr.mxu0 0.0
    %1239 = vmatpush1.xpose.msra.mxu0 0.0
    %1240 = vmatprep.subr.mxu0 0.0
    %1241 = vmatpush1.xpose.msra.mxu0 0.0
    %1242 = vmatprep.subr.mxu0 0.0
    %1243 = vmatpush1.xpose.msra.mxu0 0.0
    %1244 = vmatprep.subr.mxu0 0.0
    %1245 = vmatpush1.xpose.msra.mxu0 0.0
    %1246 = vmatprep.subr.mxu0 0.0
    %1247 = vmatpush1.xpose.msra.mxu0 0.0
    %1248 = vmatprep.subr.mxu0 0.0
    %1249 = vmatpush1.xpose.msra.mxu0 0.0
    %1250 = vmatprep.subr.mxu0 0.0
    %1251 = vmatpush1.xpose.msra.mxu0 0.0
    %1252 = vmatprep.subr.mxu0 0.0
    %1253 = vmatpush1.xpose.msra.mxu0 0.0
    %1254 = vmatprep.subr.mxu0 0.0
    %1255 = vmatpush1.xpose.msra.mxu0 0.0
    %1256 = vmatprep.subr.mxu0 0.0
    %1257 = vmatpush1.xpose.msra.mxu0 0.0
    %1258 = vmatprep.subr.mxu0 0.0
    %1259 = vmatpush1.xpose.msra.mxu0 0.0
    %1260 = vmatprep.subr.mxu0 0.0
    %1261 = vmatpush1.xpose.msra.mxu0 0.0
    %1262 = vmatprep.subr.mxu0 0.0
    %1263 = vmatpush1.xpose.msra.mxu0 0.0
    %1264 = vmatprep.subr.mxu0 0.0
    %1265 = vmatpush1.xpose.msra.mxu0 0.0
    %1266 = vmatprep.subr.mxu0 0.0
    %1267 = vmatpush1.xpose.msra.mxu0 0.0
    %1268 = vmatprep.subr.mxu0 0.0
    %1269 = vmatpush1.xpose.msra.mxu0 0.0
    %1270 = vmatprep.subr.mxu0 0.0
    %1271 = vmatpush1.xpose.msra.mxu0 0.0
    %1272 = vmatprep.subr.mxu0 0.0
    %1273 = vmatpush1.xpose.msra.mxu0 0.0
    %1274 = vmatprep.subr.mxu0 0.0
    %1275 = vmatpush1.xpose.msra.mxu0 0.0
    %1276 = vmatprep.subr.mxu0 0.0
    %1277 = vmatpush1.xpose.msra.mxu0 0.0
    %1278 = vmatprep.subr.mxu0 0.0
    %1279 = vmatpush1.xpose.msra.mxu0 0.0
    %1280 = vmatprep.subr.mxu0 0.0
    %1281 = vmatpush1.xpose.msra.mxu0 0.0
    %1282 = vmatprep.subr.mxu0 0.0
    %1283 = vmatpush1.xpose.msra.mxu0 0.0
    %1284 = vmatprep.subr.mxu0 0.0
    %1285 = vmatpush1.xpose.msra.mxu0 0.0
    %1286 = vmatprep.subr.mxu0 0.0
    %1287 = vmatpush1.xpose.msra.mxu0 0.0
    %1288 = vmatprep.subr.mxu0 0.0
    %1289 = vmatpush1.xpose.msra.mxu0 0.0
    %1290 = vmatprep.subr.mxu0 0.0
    %1291 = vmatpush1.xpose.msra.mxu0 0.0
    %1292 = vmatprep.subr.mxu0 0.0
    %1293 = vmatpush1.xpose.msra.mxu0 0.0
    %1294 = vmatprep.subr.mxu0 0.0
    %1295 = vmatpush1.xpose.msra.mxu0 0.0
    %1296 = vmatprep.subr.mxu0 0.0
    %1297 = vmatpush1.xpose.msra.mxu0 0.0
    %1298 = vmatprep.mubr.f32.mxu0 0.0
    %1299 = vmatmul.mubr.f32.gmra.mrb[0].mxu0 %v1229
    %v1300 = vpop.f32.mrb[0].mxu0
    %v1301 = vadd.f32 0.0, %v1300
    %v1302 = vpop.f32.mrb[0].mxu0
    %1303 = vdwg.mxu0
    %v1305 = vsel %vm1227, %v93, 0
    %v1308 = vsel %vm1227, %v1226, 0
    %1310 = vmatprep.subr.mxu0 0.0
    %1311 = vmatpush1.xpose.msra.mxu0 %v1308
    %1312 = vmatprep.subr.mxu0 0.0
    %1313 = vmatpush1.xpose.msra.mxu0 0.0
    %1314 = vmatprep.subr.mxu0 0.0
    %1315 = vmatpush1.xpose.msra.mxu0 0.0
    %1316 = vmatprep.subr.mxu0 0.0
    %1317 = vmatpush1.xpose.msra.mxu0 0.0
    %1318 = vmatprep.subr.mxu0 0.0
    %1319 = vmatpush1.xpose.msra.mxu0 0.0
    %1320 = vmatprep.subr.mxu0 0.0
    %1321 = vmatpush1.xpose.msra.mxu0 0.0
    %1322 = vmatprep.subr.mxu0 0.0
    %1323 = vmatpush1.xpose.msra.mxu0 0.0
    %1324 = vmatprep.subr.mxu0 0.0
    %1325 = vmatpush1.xpose.msra.mxu0 0.0
    %1326 = vmatprep.subr.mxu0 0.0
    %1327 = vmatpush1.xpose.msra.mxu0 0.0
    %1328 = vmatprep.subr.mxu0 0.0
    %1329 = vmatpush1.xpose.msra.mxu0 0.0
    %1330 = vmatprep.subr.mxu0 0.0
    %1331 = vmatpush1.xpose.msra.mxu0 0.0
    %1332 = vmatprep.subr.mxu0 0.0
    %1333 = vmatpush1.xpose.msra.mxu0 0.0
    %1334 = vmatprep.subr.mxu0 0.0
    %1335 = vmatpush1.xpose.msra.mxu0 0.0
    %1336 = vmatprep.subr.mxu0 0.0
    %1337 = vmatpush1.xpose.msra.mxu0 0.0
    %1338 = vmatprep.subr.mxu0 0.0
    %1339 = vmatpush1.xpose.msra.mxu0 0.0
    %1340 = vmatprep.subr.mxu0 0.0
    %1341 = vmatpush1.xpose.msra.mxu0 0.0
    %1342 = vmatprep.subr.mxu0 0.0
    %1343 = vmatpush1.xpose.msra.mxu0 0.0
    %1344 = vmatprep.subr.mxu0 0.0
    %1345 = vmatpush1.xpose.msra.mxu0 0.0
    %1346 = vmatprep.subr.mxu0 0.0
    %1347 = vmatpush1.xpose.msra.mxu0 0.0
    %1348 = vmatprep.subr.mxu0 0.0
    %1349 = vmatpush1.xpose.msra.mxu0 0.0
    %1350 = vmatprep.subr.mxu0 0.0
    %1351 = vmatpush1.xpose.msra.mxu0 0.0
    %1352 = vmatprep.subr.mxu0 0.0
    %1353 = vmatpush1.xpose.msra.mxu0 0.0
    %1354 = vmatprep.subr.mxu0 0.0
    %1355 = vmatpush1.xpose.msra.mxu0 0.0
    %1356 = vmatprep.subr.mxu0 0.0
    %1357 = vmatpush1.xpose.msra.mxu0 0.0
    %1358 = vmatprep.subr.mxu0 0.0
    %1359 = vmatpush1.xpose.msra.mxu0 0.0
    %1360 = vmatprep.subr.mxu0 0.0
    %1361 = vmatpush1.xpose.msra.mxu0 0.0
    %1362 = vmatprep.subr.mxu0 0.0
    %1363 = vmatpush1.xpose.msra.mxu0 0.0
    %1364 = vmatprep.subr.mxu0 0.0
    %1365 = vmatpush1.xpose.msra.mxu0 0.0
    %1366 = vmatprep.subr.mxu0 0.0
    %1367 = vmatpush1.xpose.msra.mxu0 0.0
    %1368 = vmatprep.subr.mxu0 0.0
    %1369 = vmatpush1.xpose.msra.mxu0 0.0
    %1370 = vmatprep.subr.mxu0 0.0
    %1371 = vmatpush1.xpose.msra.mxu0 0.0
    %1372 = vmatprep.subr.mxu0 0.0
    %1373 = vmatpush1.xpose.msra.mxu0 0.0
    %1374 = vmatprep.mubr.f32.mxu0 0.0
    %1375 = vmatmul.mubr.f32.gmra.mrb[0].mxu0 %v1305
    %v1376 = vpop.f32.mrb[0].mxu0
    %v1377 = vadd.f32 0.0, %v1376
    %v1378 = vpop.f32.mrb[0].mxu0
    %1379 = vdwg.mxu0
    %1380 = vmatprep.subr.mxu0 0.0
    %1381 = vmatpush1.xpose.msra.mxu0 %v1229
    %1382 = vmatprep.subr.mxu0 0.0
    %1383 = vmatpush1.xpose.msra.mxu0 0.0
    %1384 = vmatprep.subr.mxu0 0.0
    %1385 = vmatpush1.xpose.msra.mxu0 0.0
    %1386 = vmatprep.subr.mxu0 0.0
    %1387 = vmatpush1.xpose.msra.mxu0 0.0
    %1388 = vmatprep.subr.mxu0 0.0
    %1389 = vmatpush1.xpose.msra.mxu0 0.0
    %1390 = vmatprep.subr.mxu0 0.0
    %1391 = vmatpush1.xpose.msra.mxu0 0.0
    %1392 = vmatprep.subr.mxu0 0.0
    %1393 = vmatpush1.xpose.msra.mxu0 0.0
    %1394 = vmatprep.subr.mxu0 0.0
    %1395 = vmatpush1.xpose.msra.mxu0 0.0
    %1396 = vmatprep.subr.mxu0 0.0
    %1397 = vmatpush1.xpose.msra.mxu0 0.0
    %1398 = vmatprep.subr.mxu0 0.0
    %1399 = vmatpush1.xpose.msra.mxu0 0.0
    %1400 = vmatprep.subr.mxu0 0.0
    %1401 = vmatpush1.xpose.msra.mxu0 0.0
    %1402 = vmatprep.subr.mxu0 0.0
    %1403 = vmatpush1.xpose.msra.mxu0 0.0
    %1404 = vmatprep.subr.mxu0 0.0
    %1405 = vmatpush1.xpose.msra.mxu0 0.0
    %1406 = vmatprep.subr.mxu0 0.0
    %1407 = vmatpush1.xpose.msra.mxu0 0.0
    %1408 = vmatprep.subr.mxu0 0.0
    %1409 = vmatpush1.xpose.msra.mxu0 0.0
    %1410 = vmatprep.subr.mxu0 0.0
    %1411 = vmatpush1.xpose.msra.mxu0 0.0
    %1412 = vmatprep.subr.mxu0 0.0
    %1413 = vmatpush1.xpose.msra.mxu0 0.0
    %1414 = vmatprep.subr.mxu0 0.0
    %1415 = vmatpush1.xpose.msra.mxu0 0.0
    %1416 = vmatprep.subr.mxu0 0.0
    %1417 = vmatpush1.xpose.msra.mxu0 0.0
    %1418 = vmatprep.subr.mxu0 0.0
    %1419 = vmatpush1.xpose.msra.mxu0 0.0
    %1420 = vmatprep.subr.mxu0 0.0
    %1421 = vmatpush1.xpose.msra.mxu0 0.0
    %1422 = vmatprep.subr.mxu0 0.0
    %1423 = vmatpush1.xpose.msra.mxu0 0.0
    %1424 = vmatprep.subr.mxu0 0.0
    %1425 = vmatpush1.xpose.msra.mxu0 0.0
    %1426 = vmatprep.subr.mxu0 0.0
    %1427 = vmatpush1.xpose.msra.mxu0 0.0
    %1428 = vmatprep.subr.mxu0 0.0
    %1429 = vmatpush1.xpose.msra.mxu0 0.0
    %1430 = vmatprep.subr.mxu0 0.0
    %1431 = vmatpush1.xpose.msra.mxu0 0.0
    %1432 = vmatprep.subr.mxu0 0.0
    %1433 = vmatpush1.xpose.msra.mxu0 0.0
    %1434 = vmatprep.subr.mxu0 0.0
    %1435 = vmatpush1.xpose.msra.mxu0 0.0
    %1436 = vmatprep.subr.mxu0 0.0
    %1437 = vmatpush1.xpose.msra.mxu0 0.0
    %1438 = vmatprep.subr.mxu0 0.0
    %1439 = vmatpush1.xpose.msra.mxu0 0.0
    %1440 = vmatprep.subr.mxu0 0.0
    %1441 = vmatpush1.xpose.msra.mxu0 0.0
    %1442 = vmatprep.subr.mxu0 0.0
    %1443 = vmatpush1.xpose.msra.mxu0 0.0
    %1444 = vmatprep.mubr.f32.mxu0 0.0
    %1445 = vmatmul.mubr.f32.gmra.mrb[0].mxu0 %v1232
    %v1446 = vpop.f32.mrb[0].mxu0
    %v1447 = vadd.f32 0.0, %v1446
    %v1448 = vpop.f32.mrb[0].mxu0
    %1449 = vdwg.mxu0
    %1450 = vmatprep.subr.mxu0 0.0
    %1451 = vmatpush1.xpose.msra.mxu0 %v1305
    %1452 = vmatprep.subr.mxu0 0.0
    %1453 = vmatpush1.xpose.msra.mxu0 0.0
    %1454 = vmatprep.subr.mxu0 0.0
    %1455 = vmatpush1.xpose.msra.mxu0 0.0
    %1456 = vmatprep.subr.mxu0 0.0
    %1457 = vmatpush1.xpose.msra.mxu0 0.0
    %1458 = vmatprep.subr.mxu0 0.0
    %1459 = vmatpush1.xpose.msra.mxu0 0.0
    %1460 = vmatprep.subr.mxu0 0.0
    %1461 = vmatpush1.xpose.msra.mxu0 0.0
    %1462 = vmatprep.subr.mxu0 0.0
    %1463 = vmatpush1.xpose.msra.mxu0 0.0
    %1464 = vmatprep.subr.mxu0 0.0
    %1465 = vmatpush1.xpose.msra.mxu0 0.0
    %1466 = vmatprep.subr.mxu0 0.0
    %1467 = vmatpush1.xpose.msra.mxu0 0.0
    %1468 = vmatprep.subr.mxu0 0.0
    %1469 = vmatpush1.xpose.msra.mxu0 0.0
    %1470 = vmatprep.subr.mxu0 0.0
    %1471 = vmatpush1.xpose.msra.mxu0 0.0
    %1472 = vmatprep.subr.mxu0 0.0
    %1473 = vmatpush1.xpose.msra.mxu0 0.0
    %1474 = vmatprep.subr.mxu0 0.0
    %1475 = vmatpush1.xpose.msra.mxu0 0.0
    %1476 = vmatprep.subr.mxu0 0.0
    %1477 = vmatpush1.xpose.msra.mxu0 0.0
    %1478 = vmatprep.subr.mxu0 0.0
    %1479 = vmatpush1.xpose.msra.mxu0 0.0
    %1480 = vmatprep.subr.mxu0 0.0
    %1481 = vmatpush1.xpose.msra.mxu0 0.0
    %1482 = vmatprep.subr.mxu0 0.0
    %1483 = vmatpush1.xpose.msra.mxu0 0.0
    %1484 = vmatprep.subr.mxu0 0.0
    %1485 = vmatpush1.xpose.msra.mxu0 0.0
    %1486 = vmatprep.subr.mxu0 0.0
    %1487 = vmatpush1.xpose.msra.mxu0 0.0
    %1488 = vmatprep.subr.mxu0 0.0
    %1489 = vmatpush1.xpose.msra.mxu0 0.0
    %1490 = vmatprep.subr.mxu0 0.0
    %1491 = vmatpush1.xpose.msra.mxu0 0.0
    %1492 = vmatprep.subr.mxu0 0.0
    %1493 = vmatpush1.xpose.msra.mxu0 0.0
    %1494 = vmatprep.subr.mxu0 0.0
    %1495 = vmatpush1.xpose.msra.mxu0 0.0
    %1496 = vmatprep.subr.mxu0 0.0
    %1497 = vmatpush1.xpose.msra.mxu0 0.0
    %1498 = vmatprep.subr.mxu0 0.0
    %1499 = vmatpush1.xpose.msra.mxu0 0.0
    %1500 = vmatprep.subr.mxu0 0.0
    %1501 = vmatpush1.xpose.msra.mxu0 0.0
    %1502 = vmatprep.subr.mxu0 0.0
    %1503 = vmatpush1.xpose.msra.mxu0 0.0
    %1504 = vmatprep.subr.mxu0 0.0
    %1505 = vmatpush1.xpose.msra.mxu0 0.0
    %1506 = vmatprep.subr.mxu0 0.0
    %1507 = vmatpush1.xpose.msra.mxu0 0.0
    %1508 = vmatprep.subr.mxu0 0.0
    %1509 = vmatpush1.xpose.msra.mxu0 0.0
    %1510 = vmatprep.subr.mxu0 0.0
    %1511 = vmatpush1.xpose.msra.mxu0 0.0
    %1512 = vmatprep.subr.mxu0 0.0
    %1513 = vmatpush1.xpose.msra.mxu0 0.0
    %1514 = vmatprep.mubr.f32.mxu0 0.0
    %1515 = vmatmul.mubr.f32.gmra.mrb[0].mxu0 %v1308
    %v1516 = vpop.f32.mrb[0].mxu0
    %v1517 = vadd.f32 0.0, %v1516
    %v1518 = vpop.f32.mrb[0].mxu0
    %1519 = vdwg.mxu0
    %vm1520 = vcmask 60416
    %1521 = vst.msk [vmem:[#allocation8] sm:$0xf] %vm1520, %v1301
    %1522 = vst.msk [vmem:[#allocation8 + $0x4] sm:$0xf] %vm1520, %v1377
    %v1523 = vld [vmem:[%s1] sm:$0xff]
    %v1524 = vld [vmem:[%s1 + $0x8] sm:$0xff]
    %vm1525 = vcmask 31744
    %v1526 = vsel %vm1525, %v1523, 0.0
    %1527 = vadd.xlane.f32.xlu0 %v1526
    %v1528 = vpop.xlane.xlu0 %1527
    %v1529 = vsel %vm1525, %v1524, 0.0
    %1530 = vadd.xlane.f32.xlu0 %v1529
    %v1531 = vpop.xlane.xlu0 %1530
    %v1532 = vsel %vm1525, %v1447, 0.0
    %1533 = vadd.xlane.f32.xlu0 %v1532
    %v1534 = vpop.xlane.xlu0 %1533
    %v1535 = vsel %vm1525, %v1517, 0.0
    %1536 = vadd.xlane.f32.xlu0 %v1535
    %v1537 = vpop.xlane.xlu0 %1536
    %v1538 = vrcp.pop 4.0
    %v1539 = vmul.f32 %v1528, %v1538
    %v1540 = vmul.f32 %v1531, %v1538
    %v1541 = vmul.f32 %v1534, %v1538
    %v1542 = vmul.f32 %v1537, %v1538
    %v1543 = vsub.f32 %v1523, %v1539
    %v1544 = vsub.f32 %v1524, %v1540
    %v1545 = vsub.f32 %v1447, %v1541
    %v1546 = vsub.f32 %v1517, %v1542
    %v1547 = vmul.f32 %v1543, %v1543
    %v1548 = vmul.f32 %v1544, %v1544
    %v1549 = vmul.f32 %v1545, %v1545
    %v1550 = vmul.f32 %v1546, %v1546
    %v1551 = vsel %vm1525, %v1547, 0.0
    %1552 = vadd.xlane.f32.xlu0 %v1551
    %v1553 = vpop.xlane.xlu0 %1552
    %v1554 = vsel %vm1525, %v1548, 0.0
    %1555 = vadd.xlane.f32.xlu0 %v1554
    %v1556 = vpop.xlane.xlu0 %1555
    %v1557 = vsel %vm1525, %v1549, 0.0
    %1558 = vadd.xlane.f32.xlu0 %v1557
    %v1559 = vpop.xlane.xlu0 %1558
    %v1560 = vsel %vm1525, %v1550, 0.0
    %1561 = vadd.xlane.f32.xlu0 %v1560
    %v1562 = vpop.xlane.xlu0 %1561
    %v1563 = vmul.f32 %v1553, %v1538
    %v1564 = vmul.f32 %v1556, %v1538
    %v1565 = vmul.f32 %v1559, %v1538
    %v1566 = vmul.f32 %v1562, %v1538
    %v1567 = vadd.f32 %v1563, 1e-05
    %v1568 = vadd.f32 %v1564, 1e-05
    %v1569 = vadd.f32 %v1565, 1e-05
    %v1570 = vadd.f32 %v1566, 1e-05
    %v1571 = vrsqrt.pop %v1567
    %v1572 = vrsqrt.pop %v1568
    %v1573 = vrsqrt.pop %v1569
    %v1574 = vrsqrt.pop %v1570
    %v1575 = vmul.f32 %v1543, %v1571
    %v1576 = vmul.f32 %v1544, %v1572
    %v1577 = vmul.f32 %v1545, %v1573
    %v1578 = vmul.f32 %v1546, %v1574
    %v1579 = vld [vmem:[%s5] sm:$0x1]
    %v1581 = vlaneseq
    %v1582 = vshrl.u32 %v1581, 7
    %v1583 = vsub.s32 0, %v1582
    %v1584 = vrot.slane %v1579, %v1583
    %v1586 = vmul.f32 %v1575, %v1584
    %v1587 = vmul.f32 %v1576, %v1584
    %v1588 = vmul.f32 %v1577, %v1584
    %v1589 = vmul.f32 %v1578, %v1584
    %v1590 = vld [vmem:[%s6] sm:$0x1]
    %v1592 = vlaneseq
    %v1593 = vshrl.u32 %v1592, 7
    %v1594 = vsub.s32 0, %v1593
    %v1595 = vrot.slane %v1590, %v1594
    %v1597 = vadd.f32 %v1586, %v1595
    %v1598 = vadd.f32 %v1587, %v1595
    %v1599 = vadd.f32 %v1588, %v1595
    %v1600 = vadd.f32 %v1589, %v1595
    %v1601 = vld [vmem:[%s7] sm:$0xf]
    %v1602 = vld [vmem:[%s8] sm:$0x1]
    %v1604 = vlaneseq
    %v1605 = vshrl.u32 %v1604, 7
    %v1606 = vsub.s32 0, %v1605
    %v1607 = vrot.slane %v1602, %v1606
    %v1610 = vsel %vm1525, %v1597, 0
    %v1613 = vsel %vm1525, %v1598, 0
    %v1616 = vsel %vm1525, %v1599, 0
    %v1619 = vsel %vm1525, %v1600, 0
    %vm1621 = vcmask 1043456
    %v1623 = vsel %vm1621, %v1601, 0
    %1625 = vmatprep.subr.mxu0 0.0
    %1626 = vmatpush1.msra.mxu0 %v1623
    %1627 = vmatprep.subr.mxu0 0.0
    %1628 = vmatpush1.msra.mxu0 0.0
    %1629 = vmatprep.subr.mxu0 0.0
    %1630 = vmatpush1.msra.mxu0 0.0
    %1631 = vmatprep.subr.mxu0 0.0
    %1632 = vmatpush1.msra.mxu0 0.0
    %1633 = vmatprep.subr.mxu0 0.0
    %1634 = vmatpush1.msra.mxu0 0.0
    %1635 = vmatprep.subr.mxu0 0.0
    %1636 = vmatpush1.msra.mxu0 0.0
    %1637 = vmatprep.subr.mxu0 0.0
    %1638 = vmatpush1.msra.mxu0 0.0
    %1639 = vmatprep.subr.mxu0 0.0
    %1640 = vmatpush1.msra.mxu0 0.0
    %1641 = vmatprep.subr.mxu0 0.0
    %1642 = vmatpush1.msra.mxu0 0.0
    %1643 = vmatprep.subr.mxu0 0.0
    %1644 = vmatpush1.msra.mxu0 0.0
    %1645 = vmatprep.subr.mxu0 0.0
    %1646 = vmatpush1.msra.mxu0 0.0
    %1647 = vmatprep.subr.mxu0 0.0
    %1648 = vmatpush1.msra.mxu0 0.0
    %1649 = vmatprep.subr.mxu0 0.0
    %1650 = vmatpush1.msra.mxu0 0.0
    %1651 = vmatprep.subr.mxu0 0.0
    %1652 = vmatpush1.msra.mxu0 0.0
    %1653 = vmatprep.subr.mxu0 0.0
    %1654 = vmatpush1.msra.mxu0 0.0
    %1655 = vmatprep.subr.mxu0 0.0
    %1656 = vmatpush1.msra.mxu0 0.0
    %1657 = vmatprep.subr.mxu0 0.0
    %1658 = vmatpush1.msra.mxu0 0.0
    %1659 = vmatprep.subr.mxu0 0.0
    %1660 = vmatpush1.msra.mxu0 0.0
    %1661 = vmatprep.subr.mxu0 0.0
    %1662 = vmatpush1.msra.mxu0 0.0
    %1663 = vmatprep.subr.mxu0 0.0
    %1664 = vmatpush1.msra.mxu0 0.0
    %1665 = vmatprep.subr.mxu0 0.0
    %1666 = vmatpush1.msra.mxu0 0.0
    %1667 = vmatprep.subr.mxu0 0.0
    %1668 = vmatpush1.msra.mxu0 0.0
    %1669 = vmatprep.subr.mxu0 0.0
    %1670 = vmatpush1.msra.mxu0 0.0
    %1671 = vmatprep.subr.mxu0 0.0
    %1672 = vmatpush1.msra.mxu0 0.0
    %1673 = vmatprep.subr.mxu0 0.0
    %1674 = vmatpush1.msra.mxu0 0.0
    %1675 = vmatprep.subr.mxu0 0.0
    %1676 = vmatpush1.msra.mxu0 0.0
    %1677 = vmatprep.subr.mxu0 0.0
    %1678 = vmatpush1.msra.mxu0 0.0
    %1679 = vmatprep.subr.mxu0 0.0
    %1680 = vmatpush1.msra.mxu0 0.0
    %1681 = vmatprep.subr.mxu0 0.0
    %1682 = vmatpush1.msra.mxu0 0.0
    %1683 = vmatprep.subr.mxu0 0.0
    %1684 = vmatpush1.msra.mxu0 0.0
    %1685 = vmatprep.subr.mxu0 0.0
    %1686 = vmatpush1.msra.mxu0 0.0
    %1687 = vmatprep.subr.mxu0 0.0
    %1688 = vmatpush1.msra.mxu0 0.0
    %1689 = vmatprep.mubr.f32.mxu0 0.0
    %1690 = vmatmul.mubr.f32.gmra.mrb[0].mxu0 %v1610
    %v1691 = vpop.f32.mrb[0].mxu0
    %v1692 = vadd.f32 %v1607, %v1691
    %v1693 = vpop.f32.mrb[0].mxu0
    %1694 = vmatprep.mubr.f32.mxu0 0.0
    %1695 = vmatmul.mubr.f32.gmra.mrb[0].mxu0 %v1613
    %v1696 = vpop.f32.mrb[0].mxu0
    %v1697 = vadd.f32 %v1607, %v1696
    %v1698 = vpop.f32.mrb[0].mxu0
    %1699 = vmatprep.mubr.f32.mxu0 0.0
    %1700 = vmatmul.mubr.f32.gmra.mrb[0].mxu0 %v1616
    %v1701 = vpop.f32.mrb[0].mxu0
    %v1702 = vadd.f32 %v1607, %v1701
    %v1703 = vpop.f32.mrb[0].mxu0
    %1704 = vmatprep.mubr.f32.mxu0 0.0
    %1705 = vmatmul.mubr.f32.gmra.mrb[0].mxu0 %v1619
    %v1706 = vpop.f32.mrb[0].mxu0
    %v1707 = vadd.f32 %v1607, %v1706
    %v1708 = vpop.f32.mrb[0].mxu0
    %1709 = vdwg.mxu0
    %v1710 = vmax.f32 %v1692, 0.0
    %v1711 = vmax.f32 %v1697, 0.0
    %v1712 = vmax.f32 %v1702, 0.0
    %v1713 = vmax.f32 %v1707, 0.0
    %v1714 = vld [vmem:[%s9] sm:$0xff]
    %v1715 = vld [vmem:[%s9 + $0x8] sm:$0xff]
    %v1716 = vld [vmem:[%s9 + $0x10] sm:$0xff]
    %v1717 = vld [vmem:[%s9 + $0x18] sm:$0xff]
    %v1718 = vld [vmem:[%s10] sm:$0x1]
    %v1720 = vlaneseq
    %v1721 = vshrl.u32 %v1720, 7
    %v1722 = vsub.s32 0, %v1721
    %v1723 = vrot.slane %v1718, %v1722
    %vm1725 = vcmask 261120
    %v1727 = vsel %vm1725, %v1710, 0
    %v1730 = vsel %vm1725, %v1711, 0
    %v1733 = vsel %vm1725, %v1712, 0
    %v1736 = vsel %vm1725, %v1713, 0
    %1738 = vmatprep.subr.mxu0 0.0
    %1739 = vmatpush1.msra.mxu0 %v1714
    %1740 = vmatprep.subr.mxu0 0.0
    %1741 = vmatpush1.msra.mxu0 %v1715
    %1742 = vmatprep.subr.mxu0 0.0
    %1743 = vmatpush1.msra.mxu0 %v1716
    %1744 = vmatprep.subr.mxu0 0.0
    %1745 = vmatpush1.msra.mxu0 %v1717
    %1746 = vmatprep.subr.mxu0 0.0
    %1747 = vmatpush1.msra.mxu0 0.0
    %1748 = vmatprep.subr.mxu0 0.0
    %1749 = vmatpush1.msra.mxu0 0.0
    %1750 = vmatprep.subr.mxu0 0.0
    %1751 = vmatpush1.msra.mxu0 0.0
    %1752 = vmatprep.subr.mxu0 0.0
    %1753 = vmatpush1.msra.mxu0 0.0
    %1754 = vmatprep.subr.mxu0 0.0
    %1755 = vmatpush1.msra.mxu0 0.0
    %1756 = vmatprep.subr.mxu0 0.0
    %1757 = vmatpush1.msra.mxu0 0.0
    %1758 = vmatprep.subr.mxu0 0.0
    %1759 = vmatpush1.msra.mxu0 0.0
    %1760 = vmatprep.subr.mxu0 0.0
    %1761 = vmatpush1.msra.mxu0 0.0
    %1762 = vmatprep.subr.mxu0 0.0
    %1763 = vmatpush1.msra.mxu0 0.0
    %1764 = vmatprep.subr.mxu0 0.0
    %1765 = vmatpush1.msra.mxu0 0.0
    %1766 = vmatprep.subr.mxu0 0.0
    %1767 = vmatpush1.msra.mxu0 0.0
    %1768 = vmatprep.subr.mxu0 0.0
    %1769 = vmatpush1.msra.mxu0 0.0
    %1770 = vmatprep.subr.mxu0 0.0
    %1771 = vmatpush1.msra.mxu0 0.0
    %1772 = vmatprep.subr.mxu0 0.0
    %1773 = vmatpush1.msra.mxu0 0.0
    %1774 = vmatprep.subr.mxu0 0.0
    %1775 = vmatpush1.msra.mxu0 0.0
    %1776 = vmatprep.subr.mxu0 0.0
    %1777 = vmatpush1.msra.mxu0 0.0
    %1778 = vmatprep.subr.mxu0 0.0
    %1779 = vmatpush1.msra.mxu0 0.0
    %1780 = vmatprep.subr.mxu0 0.0
    %1781 = vmatpush1.msra.mxu0 0.0
    %1782 = vmatprep.subr.mxu0 0.0
    %1783 = vmatpush1.msra.mxu0 0.0
    %1784 = vmatprep.subr.mxu0 0.0
    %1785 = vmatpush1.msra.mxu0 0.0
    %1786 = vmatprep.subr.mxu0 0.0
    %1787 = vmatpush1.msra.mxu0 0.0
    %1788 = vmatprep.subr.mxu0 0.0
    %1789 = vmatpush1.msra.mxu0 0.0
    %1790 = vmatprep.subr.mxu0 0.0
    %1791 = vmatpush1.msra.mxu0 0.0
    %1792 = vmatprep.subr.mxu0 0.0
    %1793 = vmatpush1.msra.mxu0 0.0
    %1794 = vmatprep.subr.mxu0 0.0
    %1795 = vmatpush1.msra.mxu0 0.0
    %1796 = vmatprep.subr.mxu0 0.0
    %1797 = vmatpush1.msra.mxu0 0.0
    %1798 = vmatprep.subr.mxu0 0.0
    %1799 = vmatpush1.msra.mxu0 0.0
    %1800 = vmatprep.subr.mxu0 0.0
    %1801 = vmatpush1.msra.mxu0 0.0
    %1802 = vmatprep.mubr.f32.mxu0 0.0
    %1803 = vmatmul.mubr.f32.gmra.mrb[0].mxu0 %v1727
    %v1804 = vpop.f32.mrb[0].mxu0
    %v1805 = vadd.f32 %v1723, %v1804
    %v1806 = vpop.f32.mrb[0].mxu0
    %1807 = vmatprep.mubr.f32.mxu0 0.0
    %1808 = vmatmul.mubr.f32.gmra.mrb[0].mxu0 %v1730
    %v1809 = vpop.f32.mrb[0].mxu0
    %v1810 = vadd.f32 %v1723, %v1809
    %v1811 = vpop.f32.mrb[0].mxu0
    %1812 = vmatprep.mubr.f32.mxu0 0.0
    %1813 = vmatmul.mubr.f32.gmra.mrb[0].mxu0 %v1733
    %v1814 = vpop.f32.mrb[0].mxu0
    %v1815 = vadd.f32 %v1723, %v1814
    %v1816 = vpop.f32.mrb[0].mxu0
    %1817 = vmatprep.mubr.f32.mxu0 0.0
    %1818 = vmatmul.mubr.f32.gmra.mrb[0].mxu0 %v1736
    %v1819 = vpop.f32.mrb[0].mxu0
    %v1820 = vadd.f32 %v1723, %v1819
    %v1821 = vpop.f32.mrb[0].mxu0
    %1822 = vdwg.mxu0
    %v1823 = vmax.f32 %v1805, 0.0
    %v1824 = vmax.f32 %v1810, 0.0
    %v1825 = vmax.f32 %v1815, 0.0
    %v1826 = vmax.f32 %v1820, 0.0
    %v1827 = vsel %vm1725, %v1823, 0.0
    %1828 = vadd.xlane.f32.xlu0 %v1827
    %v1829 = vpop.xlane.xlu0 %1828
    %v1830 = vsel %vm1725, %v1824, 0.0
    %1831 = vadd.xlane.f32.xlu0 %v1830
    %v1832 = vpop.xlane.xlu0 %1831
    %v1833 = vsel %vm1725, %v1825, 0.0
    %1834 = vadd.xlane.f32.xlu0 %v1833
    %v1835 = vpop.xlane.xlu0 %1834
    %v1836 = vsel %vm1725, %v1826, 0.0
    %1837 = vadd.xlane.f32.xlu0 %v1836
    %v1838 = vpop.xlane.xlu0 %1837
    %v1839 = vrcp.pop 32.0
    %v1840 = vmul.f32 %v1829, %v1839
    %v1841 = vmul.f32 %v1832, %v1839
    %v1842 = vmul.f32 %v1835, %v1839
    %v1843 = vmul.f32 %v1838, %v1839
    %v1844 = vsub.f32 %v1823, %v1840
    %v1845 = vsub.f32 %v1824, %v1841
    %v1846 = vsub.f32 %v1825, %v1842
    %v1847 = vsub.f32 %v1826, %v1843
    %v1848 = vmul.f32 %v1844, %v1844
    %v1849 = vmul.f32 %v1845, %v1845
    %v1850 = vmul.f32 %v1846, %v1846
    %v1851 = vmul.f32 %v1847, %v1847
    %v1852 = vsel %vm1725, %v1848, 0.0
    %1853 = vadd.xlane.f32.xlu0 %v1852
    %v1854 = vpop.xlane.xlu0 %1853
    %v1855 = vsel %vm1725, %v1849, 0.0
    %1856 = vadd.xlane.f32.xlu0 %v1855
    %v1857 = vpop.xlane.xlu0 %1856
    %v1858 = vsel %vm1725, %v1850, 0.0
    %1859 = vadd.xlane.f32.xlu0 %v1858
    %v1860 = vpop.xlane.xlu0 %1859
    %v1861 = vsel %vm1725, %v1851, 0.0
    %1862 = vadd.xlane.f32.xlu0 %v1861
    %v1863 = vpop.xlane.xlu0 %1862
    %v1864 = vmul.f32 %v1854, %v1839
    %v1865 = vmul.f32 %v1857, %v1839
    %v1866 = vmul.f32 %v1860, %v1839
    %v1867 = vmul.f32 %v1863, %v1839
    %v1868 = vadd.f32 %v1864, 1e-05
    %v1869 = vadd.f32 %v1865, 1e-05
    %v1870 = vadd.f32 %v1866, 1e-05
    %v1871 = vadd.f32 %v1867, 1e-05
    %v1872 = vrsqrt.pop %v1868
    %v1873 = vrsqrt.pop %v1869
    %v1874 = vrsqrt.pop %v1870
    %v1875 = vrsqrt.pop %v1871
    %v1876 = vmul.f32 %v1844, %v1872
    %v1877 = vmul.f32 %v1845, %v1873
    %v1878 = vmul.f32 %v1846, %v1874
    %v1879 = vmul.f32 %v1847, %v1875
    %v1880 = vld [vmem:[%s11] sm:$0x1]
    %v1882 = vlaneseq
    %v1883 = vshrl.u32 %v1882, 7
    %v1884 = vsub.s32 0, %v1883
    %v1885 = vrot.slane %v1880, %v1884
    %v1887 = vmul.f32 %v1876, %v1885
    %v1888 = vmul.f32 %v1877, %v1885
    %v1889 = vmul.f32 %v1878, %v1885
    %v1890 = vmul.f32 %v1879, %v1885
    %v1891 = vld [vmem:[%s12] sm:$0x1]
    %v1893 = vlaneseq
    %v1894 = vshrl.u32 %v1893, 7
    %v1895 = vsub.s32 0, %v1894
    %v1896 = vrot.slane %v1891, %v1895
    %v1898 = vadd.f32 %v1887, %v1896
    %v1899 = vadd.f32 %v1888, %v1896
    %v1900 = vadd.f32 %v1889, %v1896
    %v1901 = vadd.f32 %v1890, %v1896
    %v1902 = vld [vmem:[#allocation2] sm:$0xff]
    %v1903 = vld [vmem:[#allocation2 + $0x8] sm:$0xff]
    %v1904 = vld [vmem:[#allocation2 + $0x10] sm:$0xff]
    %v1905 = vld [vmem:[#allocation2 + $0x18] sm:$0xff]
    %v1906 = vld [vmem:[#allocation2 + $0x20] sm:$0xff]
    %v1907 = vld [vmem:[#allocation2 + $0x28] sm:$0xff]
    %v1908 = vld [vmem:[#allocation2 + $0x30] sm:$0xff]
    %v1909 = vld [vmem:[#allocation2 + $0x38] sm:$0xff]
    %v1910 = vld [vmem:[#allocation2 + $0x40] sm:$0xff]
    %v1911 = vld [vmem:[#allocation2 + $0x48] sm:$0xff]
    %v1912 = vld [vmem:[#allocation2 + $0x50] sm:$0xff]
    %v1913 = vld [vmem:[#allocation2 + $0x58] sm:$0xff]
    %v1914 = vld [vmem:[#allocation2 + $0x60] sm:$0xff]
    %v1915 = vld [vmem:[#allocation2 + $0x68] sm:$0xff]
    %v1916 = vld [vmem:[#allocation2 + $0x70] sm:$0xff]
    %v1917 = vld [vmem:[#allocation2 + $0x78] sm:$0xff]
    %v1918 = vld [vmem:[#allocation2 + $0x80] sm:$0xff]
    %v1919 = vld [vmem:[#allocation2 + $0x88] sm:$0xff]
    %v1920 = vld [vmem:[#allocation2 + $0x90] sm:$0xff]
    %v1921 = vld [vmem:[#allocation2 + $0x98] sm:$0xff]
    %v1922 = vld [vmem:[#allocation2 + $0xa0] sm:$0xff]
    %v1923 = vld [vmem:[#allocation2 + $0xa8] sm:$0xff]
    %v1924 = vld [vmem:[#allocation2 + $0xb0] sm:$0xff]
    %v1925 = vld [vmem:[#allocation2 + $0xb8] sm:$0xff]
    %v1926 = vld [vmem:[#allocation2 + $0xc0] sm:$0xff]
    %v1927 = vld [vmem:[#allocation2 + $0xc8] sm:$0xff]
    %v1928 = vld [vmem:[#allocation2 + $0xd0] sm:$0xff]
    %v1929 = vld [vmem:[#allocation2 + $0xd8] sm:$0xff]
    %v1930 = vld [vmem:[#allocation2 + $0xe0] sm:$0xff]
    %v1931 = vld [vmem:[#allocation2 + $0xe8] sm:$0xff]
    %v1932 = vld [vmem:[#allocation2 + $0xf0] sm:$0xff]
    %v1933 = vld [vmem:[#allocation2 + $0xf8] sm:$0xff]
    %v1934 = vld [vmem:[#allocation5] sm:$0xff]
    %v1935 = vld [vmem:[#allocation5 + $0x8] sm:$0xff]
    %v1936 = vld [vmem:[#allocation5 + $0x10] sm:$0xff]
    %v1937 = vld [vmem:[#allocation5 + $0x18] sm:$0xff]
    %v1938 = vld [vmem:[#allocation5 + $0x20] sm:$0xff]
    %v1939 = vld [vmem:[#allocation5 + $0x28] sm:$0xff]
    %v1940 = vld [vmem:[#allocation5 + $0x30] sm:$0xff]
    %v1941 = vld [vmem:[#allocation5 + $0x38] sm:$0xff]
    %v1942 = vld [vmem:[#allocation5 + $0x40] sm:$0xff]
    %v1943 = vld [vmem:[#allocation5 + $0x48] sm:$0xff]
    %v1944 = vld [vmem:[#allocation5 + $0x50] sm:$0xff]
    %v1945 = vld [vmem:[#allocation5 + $0x58] sm:$0xff]
    %v1946 = vld [vmem:[#allocation5 + $0x60] sm:$0xff]
    %v1947 = vld [vmem:[#allocation5 + $0x68] sm:$0xff]
    %v1948 = vld [vmem:[#allocation5 + $0x70] sm:$0xff]
    %v1949 = vld [vmem:[#allocation5 + $0x78] sm:$0xff]
    %v1950 = vld [vmem:[#allocation5 + $0x80] sm:$0xff]
    %v1951 = vld [vmem:[#allocation5 + $0x88] sm:$0xff]
    %v1952 = vld [vmem:[#allocation5 + $0x90] sm:$0xff]
    %v1953 = vld [vmem:[#allocation5 + $0x98] sm:$0xff]
    %v1954 = vld [vmem:[#allocation5 + $0xa0] sm:$0xff]
    %v1955 = vld [vmem:[#allocation5 + $0xa8] sm:$0xff]
    %v1956 = vld [vmem:[#allocation5 + $0xb0] sm:$0xff]
    %v1957 = vld [vmem:[#allocation5 + $0xb8] sm:$0xff]
    %v1958 = vld [vmem:[#allocation5 + $0xc0] sm:$0xff]
    %v1959 = vld [vmem:[#allocation5 + $0xc8] sm:$0xff]
    %v1960 = vld [vmem:[#allocation5 + $0xd0] sm:$0xff]
    %v1961 = vld [vmem:[#allocation5 + $0xd8] sm:$0xff]
    %v1962 = vld [vmem:[#allocation5 + $0xe0] sm:$0xff]
    %v1963 = vld [vmem:[#allocation5 + $0xe8] sm:$0xff]
    %v1964 = vld [vmem:[#allocation5 + $0xf0] sm:$0xff]
    %v1965 = vld [vmem:[#allocation5 + $0xf8] sm:$0xff]
    %v1966 = vld [vmem:[%s15] sm:$0x1]
    %v1968 = vlaneseq
    %v1969 = vshrl.u32 %v1968, 7
    %v1970 = vsub.s32 0, %v1969
    %v1971 = vrot.slane %v1966, %v1970
    %v1975 = vrot.slane %v1899, 7
    %vm1976 = vcmask 1041409
    %v1977 = vsel %vm1976, %v1975, %v1898
    %v1978 = vsel %vm1725, %v1977, 0
    %1980 = vmatprep.subr.mxu0 0.0
    %1981 = vmatpush1.msra.mxu0 %v1902
    %1982 = vmatprep.subr.mxu0 0.0
    %1983 = vmatpush1.msra.mxu0 %v1903
    %1984 = vmatprep.subr.mxu0 0.0
    %1985 = vmatpush1.msra.mxu0 %v1904
    %1986 = vmatprep.subr.mxu0 0.0
    %1987 = vmatpush1.msra.mxu0 %v1905
    %1988 = vmatprep.subr.mxu0 0.0
    %1989 = vmatpush1.msra.mxu0 0.0
    %1990 = vmatprep.subr.mxu0 0.0
    %1991 = vmatpush1.msra.mxu0 0.0
    %1992 = vmatprep.subr.mxu0 0.0
    %1993 = vmatpush1.msra.mxu0 0.0
    %1994 = vmatprep.subr.mxu0 0.0
    %1995 = vmatpush1.msra.mxu0 0.0
    %1996 = vmatprep.subr.mxu0 0.0
    %1997 = vmatpush1.msra.mxu0 0.0
    %1998 = vmatprep.subr.mxu0 0.0
    %1999 = vmatpush1.msra.mxu0 0.0
    %2000 = vmatprep.subr.mxu0 0.0
    %2001 = vmatpush1.msra.mxu0 0.0
    %2002 = vmatprep.subr.mxu0 0.0
    %2003 = vmatpush1.msra.mxu0 0.0
    %2004 = vmatprep.subr.mxu0 0.0
    %2005 = vmatpush1.msra.mxu0 0.0
    %2006 = vmatprep.subr.mxu0 0.0
    %2007 = vmatpush1.msra.mxu0 0.0
    %2008 = vmatprep.subr.mxu0 0.0
    %2009 = vmatpush1.msra.mxu0 0.0
    %2010 = vmatprep.subr.mxu0 0.0
    %2011 = vmatpush1.msra.mxu0 0.0
    %2012 = vmatprep.subr.mxu0 0.0
    %2013 = vmatpush1.msra.mxu0 0.0
    %2014 = vmatprep.subr.mxu0 0.0
    %2015 = vmatpush1.msra.mxu0 0.0
    %2016 = vmatprep.subr.mxu0 0.0
    %2017 = vmatpush1.msra.mxu0 0.0
    %2018 = vmatprep.subr.mxu0 0.0
    %2019 = vmatpush1.msra.mxu0 0.0
    %2020 = vmatprep.subr.mxu0 0.0
    %2021 = vmatpush1.msra.mxu0 0.0
    %2022 = vmatprep.subr.mxu0 0.0
    %2023 = vmatpush1.msra.mxu0 0.0
    %2024 = vmatprep.subr.mxu0 0.0
    %2025 = vmatpush1.msra.mxu0 0.0
    %2026 = vmatprep.subr.mxu0 0.0
    %2027 = vmatpush1.msra.mxu0 0.0
    %2028 = vmatprep.subr.mxu0 0.0
    %2029 = vmatpush1.msra.mxu0 0.0
    %2030 = vmatprep.subr.mxu0 0.0
    %2031 = vmatpush1.msra.mxu0 0.0
    %2032 = vmatprep.subr.mxu0 0.0
    %2033 = vmatpush1.msra.mxu0 0.0
    %2034 = vmatprep.subr.mxu0 0.0
    %2035 = vmatpush1.msra.mxu0 0.0
    %2036 = vmatprep.subr.mxu0 0.0
    %2037 = vmatpush1.msra.mxu0 0.0
    %2038 = vmatprep.subr.mxu0 0.0
    %2039 = vmatpush1.msra.mxu0 0.0
    %2040 = vmatprep.subr.mxu0 0.0
    %2041 = vmatpush1.msra.mxu0 0.0
    %2042 = vmatprep.subr.mxu0 0.0
    %2043 = vmatpush1.msra.mxu0 0.0
    %2044 = vmatprep.mubr.f32.mxu0 0.0
    %2045 = vmatmul.mubr.f32.gmra.mrb[0].mxu0 %v1978
    %v2046 = vpop.f32.mrb[0].mxu0
    %v2047 = vadd.f32 0.0, %v2046
    %v2048 = vpop.f32.mrb[0].mxu0
    %2049 = vdwg.mxu0
    %v2050 = vadd.f32 %v1971, %v2047
    %v2053 = vrot.slane %v1901, 7
    %v2054 = vsel %vm1976, %v2053, %v1900
    %v2055 = vsel %vm1725, %v2054, 0
    %2057 = vmatprep.subr.mxu0 0.0
    %2058 = vmatpush1.msra.mxu0 %v1934
    %2059 = vmatprep.subr.mxu0 0.0
    %2060 = vmatpush1.msra.mxu0 %v1935
    %2061 = vmatprep.subr.mxu0 0.0
    %2062 = vmatpush1.msra.mxu0 %v1936
    %2063 = vmatprep.subr.mxu0 0.0
    %2064 = vmatpush1.msra.mxu0 %v1937
    %2065 = vmatprep.subr.mxu0 0.0
    %2066 = vmatpush1.msra.mxu0 0.0
    %2067 = vmatprep.subr.mxu0 0.0
    %2068 = vmatpush1.msra.mxu0 0.0
    %2069 = vmatprep.subr.mxu0 0.0
    %2070 = vmatpush1.msra.mxu0 0.0
    %2071 = vmatprep.subr.mxu0 0.0
    %2072 = vmatpush1.msra.mxu0 0.0
    %2073 = vmatprep.subr.mxu0 0.0
    %2074 = vmatpush1.msra.mxu0 0.0
    %2075 = vmatprep.subr.mxu0 0.0
    %2076 = vmatpush1.msra.mxu0 0.0
    %2077 = vmatprep.subr.mxu0 0.0
    %2078 = vmatpush1.msra.mxu0 0.0
    %2079 = vmatprep.subr.mxu0 0.0
    %2080 = vmatpush1.msra.mxu0 0.0
    %2081 = vmatprep.subr.mxu0 0.0
    %2082 = vmatpush1.msra.mxu0 0.0
    %2083 = vmatprep.subr.mxu0 0.0
    %2084 = vmatpush1.msra.mxu0 0.0
    %2085 = vmatprep.subr.mxu0 0.0
    %2086 = vmatpush1.msra.mxu0 0.0
    %2087 = vmatprep.subr.mxu0 0.0
    %2088 = vmatpush1.msra.mxu0 0.0
    %2089 = vmatprep.subr.mxu0 0.0
    %2090 = vmatpush1.msra.mxu0 0.0
    %2091 = vmatprep.subr.mxu0 0.0
    %2092 = vmatpush1.msra.mxu0 0.0
    %2093 = vmatprep.subr.mxu0 0.0
    %2094 = vmatpush1.msra.mxu0 0.0
    %2095 = vmatprep.subr.mxu0 0.0
    %2096 = vmatpush1.msra.mxu0 0.0
    %2097 = vmatprep.subr.mxu0 0.0
    %2098 = vmatpush1.msra.mxu0 0.0
    %2099 = vmatprep.subr.mxu0 0.0
    %2100 = vmatpush1.msra.mxu0 0.0
    %2101 = vmatprep.subr.mxu0 0.0
    %2102 = vmatpush1.msra.mxu0 0.0
    %2103 = vmatprep.subr.mxu0 0.0
    %2104 = vmatpush1.msra.mxu0 0.0
    %2105 = vmatprep.subr.mxu0 0.0
    %2106 = vmatpush1.msra.mxu0 0.0
    %2107 = vmatprep.subr.mxu0 0.0
    %2108 = vmatpush1.msra.mxu0 0.0
    %2109 = vmatprep.subr.mxu0 0.0
    %2110 = vmatpush1.msra.mxu0 0.0
    %2111 = vmatprep.subr.mxu0 0.0
    %2112 = vmatpush1.msra.mxu0 0.0
    %2113 = vmatprep.subr.mxu0 0.0
    %2114 = vmatpush1.msra.mxu0 0.0
    %2115 = vmatprep.subr.mxu0 0.0
    %2116 = vmatpush1.msra.mxu0 0.0
    %2117 = vmatprep.subr.mxu0 0.0
    %2118 = vmatpush1.msra.mxu0 0.0
    %2119 = vmatprep.subr.mxu0 0.0
    %2120 = vmatpush1.msra.mxu0 0.0
    %2121 = vmatprep.mubr.f32.mxu0 0.0
    %2122 = vmatmul.mubr.f32.gmra.mrb[0].mxu0 %v2055
    %v2123 = vpop.f32.mrb[0].mxu0
    %v2124 = vadd.f32 0.0, %v2123
    %v2125 = vpop.f32.mrb[0].mxu0
    %2126 = vdwg.mxu0
    %v2127 = vadd.f32 %v2050, %v2124
    %v2128 = vrot.slane %v1898, 1
    %v2129 = vsel %vm1976, %v1899, %v2128
    %v2130 = vsel %vm1725, %v2129, 0
    %2132 = vmatprep.subr.mxu0 0.0
    %2133 = vmatpush1.msra.mxu0 %v1906
    %2134 = vmatprep.subr.mxu0 0.0
    %2135 = vmatpush1.msra.mxu0 %v1907
    %2136 = vmatprep.subr.mxu0 0.0
    %2137 = vmatpush1.msra.mxu0 %v1908
    %2138 = vmatprep.subr.mxu0 0.0
    %2139 = vmatpush1.msra.mxu0 %v1909
    %2140 = vmatprep.subr.mxu0 0.0
    %2141 = vmatpush1.msra.mxu0 0.0
    %2142 = vmatprep.subr.mxu0 0.0
    %2143 = vmatpush1.msra.mxu0 0.0
    %2144 = vmatprep.subr.mxu0 0.0
    %2145 = vmatpush1.msra.mxu0 0.0
    %2146 = vmatprep.subr.mxu0 0.0
    %2147 = vmatpush1.msra.mxu0 0.0
    %2148 = vmatprep.subr.mxu0 0.0
    %2149 = vmatpush1.msra.mxu0 0.0
    %2150 = vmatprep.subr.mxu0 0.0
    %2151 = vmatpush1.msra.mxu0 0.0
    %2152 = vmatprep.subr.mxu0 0.0
    %2153 = vmatpush1.msra.mxu0 0.0
    %2154 = vmatprep.subr.mxu0 0.0
    %2155 = vmatpush1.msra.mxu0 0.0
    %2156 = vmatprep.subr.mxu0 0.0
    %2157 = vmatpush1.msra.mxu0 0.0
    %2158 = vmatprep.subr.mxu0 0.0
    %2159 = vmatpush1.msra.mxu0 0.0
    %2160 = vmatprep.subr.mxu0 0.0
    %2161 = vmatpush1.msra.mxu0 0.0
    %2162 = vmatprep.subr.mxu0 0.0
    %2163 = vmatpush1.msra.mxu0 0.0
    %2164 = vmatprep.subr.mxu0 0.0
    %2165 = vmatpush1.msra.mxu0 0.0
    %2166 = vmatprep.subr.mxu0 0.0
    %2167 = vmatpush1.msra.mxu0 0.0
    %2168 = vmatprep.subr.mxu0 0.0
    %2169 = vmatpush1.msra.mxu0 0.0
    %2170 = vmatprep.subr.mxu0 0.0
    %2171 = vmatpush1.msra.mxu0 0.0
    %2172 = vmatprep.subr.mxu0 0.0
    %2173 = vmatpush1.msra.mxu0 0.0
    %2174 = vmatprep.subr.mxu0 0.0
    %2175 = vmatpush1.msra.mxu0 0.0
    %2176 = vmatprep.subr.mxu0 0.0
    %2177 = vmatpush1.msra.mxu0 0.0
    %2178 = vmatprep.subr.mxu0 0.0
    %2179 = vmatpush1.msra.mxu0 0.0
    %2180 = vmatprep.subr.mxu0 0.0
    %2181 = vmatpush1.msra.mxu0 0.0
    %2182 = vmatprep.subr.mxu0 0.0
    %2183 = vmatpush1.msra.mxu0 0.0
    %2184 = vmatprep.subr.mxu0 0.0
    %2185 = vmatpush1.msra.mxu0 0.0
    %2186 = vmatprep.subr.mxu0 0.0
    %2187 = vmatpush1.msra.mxu0 0.0
    %2188 = vmatprep.subr.mxu0 0.0
    %2189 = vmatpush1.msra.mxu0 0.0
    %2190 = vmatprep.subr.mxu0 0.0
    %2191 = vmatpush1.msra.mxu0 0.0
    %2192 = vmatprep.subr.mxu0 0.0
    %2193 = vmatpush1.msra.mxu0 0.0
    %2194 = vmatprep.subr.mxu0 0.0
    %2195 = vmatpush1.msra.mxu0 0.0
    %2196 = vmatprep.mubr.f32.mxu0 0.0
    %2197 = vmatmul.mubr.f32.gmra.mrb[0].mxu0 %v2130
    %v2198 = vpop.f32.mrb[0].mxu0
    %v2199 = vadd.f32 0.0, %v2198
    %v2200 = vpop.f32.mrb[0].mxu0
    %2201 = vdwg.mxu0
    %v2202 = vadd.f32 %v2127, %v2199
    %v2203 = vrot.slane %v1900, 1
    %v2204 = vsel %vm1976, %v1901, %v2203
    %v2205 = vsel %vm1725, %v2204, 0
    %2207 = vmatprep.subr.mxu0 0.0
    %2208 = vmatpush1.msra.mxu0 %v1938
    %2209 = vmatprep.subr.mxu0 0.0
    %2210 = vmatpush1.msra.mxu0 %v1939
    %2211 = vmatprep.subr.mxu0 0.0
    %2212 = vmatpush1.msra.mxu0 %v1940
    %2213 = vmatprep.subr.mxu0 0.0
    %2214 = vmatpush1.msra.mxu0 %v1941
    %2215 = vmatprep.subr.mxu0 0.0
    %2216 = vmatpush1.msra.mxu0 0.0
    %2217 = vmatprep.subr.mxu0 0.0
    %2218 = vmatpush1.msra.mxu0 0.0
    %2219 = vmatprep.subr.mxu0 0.0
    %2220 = vmatpush1.msra.mxu0 0.0
    %2221 = vmatprep.subr.mxu0 0.0
    %2222 = vmatpush1.msra.mxu0 0.0
    %2223 = vmatprep.subr.mxu0 0.0
    %2224 = vmatpush1.msra.mxu0 0.0
    %2225 = vmatprep.subr.mxu0 0.0
    %2226 = vmatpush1.msra.mxu0 0.0
    %2227 = vmatprep.subr.mxu0 0.0
    %2228 = vmatpush1.msra.mxu0 0.0
    %2229 = vmatprep.subr.mxu0 0.0
    %2230 = vmatpush1.msra.mxu0 0.0
    %2231 = vmatprep.subr.mxu0 0.0
    %2232 = vmatpush1.msra.mxu0 0.0
    %2233 = vmatprep.subr.mxu0 0.0
    %2234 = vmatpush1.msra.mxu0 0.0
    %2235 = vmatprep.subr.mxu0 0.0
    %2236 = vmatpush1.msra.mxu0 0.0
    %2237 = vmatprep.subr.mxu0 0.0
    %2238 = vmatpush1.msra.mxu0 0.0
    %2239 = vmatprep.subr.mxu0 0.0
    %2240 = vmatpush1.msra.mxu0 0.0
    %2241 = vmatprep.subr.mxu0 0.0
    %2242 = vmatpush1.msra.mxu0 0.0
    %2243 = vmatprep.subr.mxu0 0.0
    %2244 = vmatpush1.msra.mxu0 0.0
    %2245 = vmatprep.subr.mxu0 0.0
    %2246 = vmatpush1.msra.mxu0 0.0
    %2247 = vmatprep.subr.mxu0 0.0
    %2248 = vmatpush1.msra.mxu0 0.0
    %2249 = vmatprep.subr.mxu0 0.0
    %2250 = vmatpush1.msra.mxu0 0.0
    %2251 = vmatprep.subr.mxu0 0.0
    %2252 = vmatpush1.msra.mxu0 0.0
    %2253 = vmatprep.subr.mxu0 0.0
    %2254 = vmatpush1.msra.mxu0 0.0
    %2255 = vmatprep.subr.mxu0 0.0
    %2256 = vmatpush1.msra.mxu0 0.0
    %2257 = vmatprep.subr.mxu0 0.0
    %2258 = vmatpush1.msra.mxu0 0.0
    %2259 = vmatprep.subr.mxu0 0.0
    %2260 = vmatpush1.msra.mxu0 0.0
    %2261 = vmatprep.subr.mxu0 0.0
    %2262 = vmatpush1.msra.mxu0 0.0
    %2263 = vmatprep.subr.mxu0 0.0
    %2264 = vmatpush1.msra.mxu0 0.0
    %2265 = vmatprep.subr.mxu0 0.0
    %2266 = vmatpush1.msra.mxu0 0.0
    %2267 = vmatprep.subr.mxu0 0.0
    %2268 = vmatpush1.msra.mxu0 0.0
    %2269 = vmatprep.subr.mxu0 0.0
    %2270 = vmatpush1.msra.mxu0 0.0
    %2271 = vmatprep.mubr.f32.mxu0 0.0
    %2272 = vmatmul.mubr.f32.gmra.mrb[0].mxu0 %v2205
    %v2273 = vpop.f32.mrb[0].mxu0
    %v2274 = vadd.f32 0.0, %v2273
    %v2275 = vpop.f32.mrb[0].mxu0
    %2276 = vdwg.mxu0
    %v2277 = vadd.f32 %v2202, %v2274
    %v2278 = vrot.slane %v1898, 2
    %v2279 = vrot.slane %v1899, 1
    %v2280 = vsel %vm1976, %v2279, %v2278
    %v2281 = vsel %vm1725, %v2280, 0
    %2283 = vmatprep.subr.mxu0 0.0
    %2284 = vmatpush1.msra.mxu0 %v1910
    %2285 = vmatprep.subr.mxu0 0.0
    %2286 = vmatpush1.msra.mxu0 %v1911
    %2287 = vmatprep.subr.mxu0 0.0
    %2288 = vmatpush1.msra.mxu0 %v1912
    %2289 = vmatprep.subr.mxu0 0.0
    %2290 = vmatpush1.msra.mxu0 %v1913
    %2291 = vmatprep.subr.mxu0 0.0
    %2292 = vmatpush1.msra.mxu0 0.0
    %2293 = vmatprep.subr.mxu0 0.0
    %2294 = vmatpush1.msra.mxu0 0.0
    %2295 = vmatprep.subr.mxu0 0.0
    %2296 = vmatpush1.msra.mxu0 0.0
    %2297 = vmatprep.subr.mxu0 0.0
    %2298 = vmatpush1.msra.mxu0 0.0
    %2299 = vmatprep.subr.mxu0 0.0
    %2300 = vmatpush1.msra.mxu0 0.0
    %2301 = vmatprep.subr.mxu0 0.0
    %2302 = vmatpush1.msra.mxu0 0.0
    %2303 = vmatprep.subr.mxu0 0.0
    %2304 = vmatpush1.msra.mxu0 0.0
    %2305 = vmatprep.subr.mxu0 0.0
    %2306 = vmatpush1.msra.mxu0 0.0
    %2307 = vmatprep.subr.mxu0 0.0
    %2308 = vmatpush1.msra.mxu0 0.0
    %2309 = vmatprep.subr.mxu0 0.0
    %2310 = vmatpush1.msra.mxu0 0.0
    %2311 = vmatprep.subr.mxu0 0.0
    %2312 = vmatpush1.msra.mxu0 0.0
    %2313 = vmatprep.subr.mxu0 0.0
    %2314 = vmatpush1.msra.mxu0 0.0
    %2315 = vmatprep.subr.mxu0 0.0
    %2316 = vmatpush1.msra.mxu0 0.0
    %2317 = vmatprep.subr.mxu0 0.0
    %2318 = vmatpush1.msra.mxu0 0.0
    %2319 = vmatprep.subr.mxu0 0.0
    %2320 = vmatpush1.msra.mxu0 0.0
    %2321 = vmatprep.subr.mxu0 0.0
    %2322 = vmatpush1.msra.mxu0 0.0
    %2323 = vmatprep.subr.mxu0 0.0
    %2324 = vmatpush1.msra.mxu0 0.0
    %2325 = vmatprep.subr.mxu0 0.0
    %2326 = vmatpush1.msra.mxu0 0.0
    %2327 = vmatprep.subr.mxu0 0.0
    %2328 = vmatpush1.msra.mxu0 0.0
    %2329 = vmatprep.subr.mxu0 0.0
    %2330 = vmatpush1.msra.mxu0 0.0
    %2331 = vmatprep.subr.mxu0 0.0
    %2332 = vmatpush1.msra.mxu0 0.0
    %2333 = vmatprep.subr.mxu0 0.0
    %2334 = vmatpush1.msra.mxu0 0.0
    %2335 = vmatprep.subr.mxu0 0.0
    %2336 = vmatpush1.msra.mxu0 0.0
    %2337 = vmatprep.subr.mxu0 0.0
    %2338 = vmatpush1.msra.mxu0 0.0
    %2339 = vmatprep.subr.mxu0 0.0
    %2340 = vmatpush1.msra.mxu0 0.0
    %2341 = vmatprep.subr.mxu0 0.0
    %2342 = vmatpush1.msra.mxu0 0.0
    %2343 = vmatprep.subr.mxu0 0.0
    %2344 = vmatpush1.msra.mxu0 0.0
    %2345 = vmatprep.subr.mxu0 0.0
    %2346 = vmatpush1.msra.mxu0 0.0
    %2347 = vmatprep.mubr.f32.mxu0 0.0
    %2348 = vmatmul.mubr.f32.gmra.mrb[0].mxu0 %v2281
    %v2349 = vpop.f32.mrb[0].mxu0
    %v2350 = vadd.f32 0.0, %v2349
    %v2351 = vpop.f32.mrb[0].mxu0
    %2352 = vdwg.mxu0
    %v2353 = vadd.f32 %v2277, %v2350
    %v2354 = vrot.slane %v1900, 2
    %v2355 = vrot.slane %v1901, 1
    %v2356 = vsel %vm1976, %v2355, %v2354
    %v2357 = vsel %vm1725, %v2356, 0
    %2359 = vmatprep.subr.mxu0 0.0
    %2360 = vmatpush1.msra.mxu0 %v1942
    %2361 = vmatprep.subr.mxu0 0.0
    %2362 = vmatpush1.msra.mxu0 %v1943
    %2363 = vmatprep.subr.mxu0 0.0
    %2364 = vmatpush1.msra.mxu0 %v1944
    %2365 = vmatprep.subr.mxu0 0.0
    %2366 = vmatpush1.msra.mxu0 %v1945
    %2367 = vmatprep.subr.mxu0 0.0
    %2368 = vmatpush1.msra.mxu0 0.0
    %2369 = vmatprep.subr.mxu0 0.0
    %2370 = vmatpush1.msra.mxu0 0.0
    %2371 = vmatprep.subr.mxu0 0.0
    %2372 = vmatpush1.msra.mxu0 0.0
    %2373 = vmatprep.subr.mxu0 0.0
    %2374 = vmatpush1.msra.mxu0 0.0
    %2375 = vmatprep.subr.mxu0 0.0
    %2376 = vmatpush1.msra.mxu0 0.0
    %2377 = vmatprep.subr.mxu0 0.0
    %2378 = vmatpush1.msra.mxu0 0.0
    %2379 = vmatprep.subr.mxu0 0.0
    %2380 = vmatpush1.msra.mxu0 0.0
    %2381 = vmatprep.subr.mxu0 0.0
    %2382 = vmatpush1.msra.mxu0 0.0
    %2383 = vmatprep.subr.mxu0 0.0
    %2384 = vmatpush1.msra.mxu0 0.0
    %2385 = vmatprep.subr.mxu0 0.0
    %2386 = vmatpush1.msra.mxu0 0.0
    %2387 = vmatprep.subr.mxu0 0.0
    %2388 = vmatpush1.msra.mxu0 0.0
    %2389 = vmatprep.subr.mxu0 0.0
    %2390 = vmatpush1.msra.mxu0 0.0
    %2391 = vmatprep.subr.mxu0 0.0
    %2392 = vmatpush1.msra.mxu0 0.0
    %2393 = vmatprep.subr.mxu0 0.0
    %2394 = vmatpush1.msra.mxu0 0.0
    %2395 = vmatprep.subr.mxu0 0.0
    %2396 = vmatpush1.msra.mxu0 0.0
    %2397 = vmatprep.subr.mxu0 0.0
    %2398 = vmatpush1.msra.mxu0 0.0
    %2399 = vmatprep.subr.mxu0 0.0
    %2400 = vmatpush1.msra.mxu0 0.0
    %2401 = vmatprep.subr.mxu0 0.0
    %2402 = vmatpush1.msra.mxu0 0.0
    %2403 = vmatprep.subr.mxu0 0.0
    %2404 = vmatpush1.msra.mxu0 0.0
    %2405 = vmatprep.subr.mxu0 0.0
    %2406 = vmatpush1.msra.mxu0 0.0
    %2407 = vmatprep.subr.mxu0 0.0
    %2408 = vmatpush1.msra.mxu0 0.0
    %2409 = vmatprep.subr.mxu0 0.0
    %2410 = vmatpush1.msra.mxu0 0.0
    %2411 = vmatprep.subr.mxu0 0.0
    %2412 = vmatpush1.msra.mxu0 0.0
    %2413 = vmatprep.subr.mxu0 0.0
    %2414 = vmatpush1.msra.mxu0 0.0
    %2415 = vmatprep.subr.mxu0 0.0
    %2416 = vmatpush1.msra.mxu0 0.0
    %2417 = vmatprep.subr.mxu0 0.0
    %2418 = vmatpush1.msra.mxu0 0.0
    %2419 = vmatprep.subr.mxu0 0.0
    %2420 = vmatpush1.msra.mxu0 0.0
    %2421 = vmatprep.subr.mxu0 0.0
    %2422 = vmatpush1.msra.mxu0 0.0
    %2423 = vmatprep.mubr.f32.mxu0 0.0
    %2424 = vmatmul.mubr.f32.gmra.mrb[0].mxu0 %v2357
    %v2425 = vpop.f32.mrb[0].mxu0
    %v2426 = vadd.f32 0.0, %v2425
    %v2427 = vpop.f32.mrb[0].mxu0
    %2428 = vdwg.mxu0
    %v2429 = vadd.f32 %v2353, %v2426
    %v2430 = vrot.slane %v1898, 3
    %v2431 = vrot.slane %v1899, 2
    %v2432 = vsel %vm1976, %v2431, %v2430
    %v2433 = vsel %vm1725, %v2432, 0
    %2435 = vmatprep.subr.mxu0 0.0
    %2436 = vmatpush1.msra.mxu0 %v1914
    %2437 = vmatprep.subr.mxu0 0.0
    %2438 = vmatpush1.msra.mxu0 %v1915
    %2439 = vmatprep.subr.mxu0 0.0
    %2440 = vmatpush1.msra.mxu0 %v1916
    %2441 = vmatprep.subr.mxu0 0.0
    %2442 = vmatpush1.msra.mxu0 %v1917
    %2443 = vmatprep.subr.mxu0 0.0
    %2444 = vmatpush1.msra.mxu0 0.0
    %2445 = vmatprep.subr.mxu0 0.0
    %2446 = vmatpush1.msra.mxu0 0.0
    %2447 = vmatprep.subr.mxu0 0.0
    %2448 = vmatpush1.msra.mxu0 0.0
    %2449 = vmatprep.subr.mxu0 0.0
    %2450 = vmatpush1.msra.mxu0 0.0
    %2451 = vmatprep.subr.mxu0 0.0
    %2452 = vmatpush1.msra.mxu0 0.0
    %2453 = vmatprep.subr.mxu0 0.0
    %2454 = vmatpush1.msra.mxu0 0.0
    %2455 = vmatprep.subr.mxu0 0.0
    %2456 = vmatpush1.msra.mxu0 0.0
    %2457 = vmatprep.subr.mxu0 0.0
    %2458 = vmatpush1.msra.mxu0 0.0
    %2459 = vmatprep.subr.mxu0 0.0
    %2460 = vmatpush1.msra.mxu0 0.0
    %2461 = vmatprep.subr.mxu0 0.0
    %2462 = vmatpush1.msra.mxu0 0.0
    %2463 = vmatprep.subr.mxu0 0.0
    %2464 = vmatpush1.msra.mxu0 0.0
    %2465 = vmatprep.subr.mxu0 0.0
    %2466 = vmatpush1.msra.mxu0 0.0
    %2467 = vmatprep.subr.mxu0 0.0
    %2468 = vmatpush1.msra.mxu0 0.0
    %2469 = vmatprep.subr.mxu0 0.0
    %2470 = vmatpush1.msra.mxu0 0.0
    %2471 = vmatprep.subr.mxu0 0.0
    %2472 = vmatpush1.msra.mxu0 0.0
    %2473 = vmatprep.subr.mxu0 0.0
    %2474 = vmatpush1.msra.mxu0 0.0
    %2475 = vmatprep.subr.mxu0 0.0
    %2476 = vmatpush1.msra.mxu0 0.0
    %2477 = vmatprep.subr.mxu0 0.0
    %2478 = vmatpush1.msra.mxu0 0.0
    %2479 = vmatprep.subr.mxu0 0.0
    %2480 = vmatpush1.msra.mxu0 0.0
    %2481 = vmatprep.subr.mxu0 0.0
    %2482 = vmatpush1.msra.mxu0 0.0
    %2483 = vmatprep.subr.mxu0 0.0
    %2484 = vmatpush1.msra.mxu0 0.0
    %2485 = vmatprep.subr.mxu0 0.0
    %2486 = vmatpush1.msra.mxu0 0.0
    %2487 = vmatprep.subr.mxu0 0.0
    %2488 = vmatpush1.msra.mxu0 0.0
    %2489 = vmatprep.subr.mxu0 0.0
    %2490 = vmatpush1.msra.mxu0 0.0
    %2491 = vmatprep.subr.mxu0 0.0
    %2492 = vmatpush1.msra.mxu0 0.0
    %2493 = vmatprep.subr.mxu0 0.0
    %2494 = vmatpush1.msra.mxu0 0.0
    %2495 = vmatprep.subr.mxu0 0.0
    %2496 = vmatpush1.msra.mxu0 0.0
    %2497 = vmatprep.subr.mxu0 0.0
    %2498 = vmatpush1.msra.mxu0 0.0
    %2499 = vmatprep.mubr.f32.mxu0 0.0
    %2500 = vmatmul.mubr.f32.gmra.mrb[0].mxu0 %v2433
    %v2501 = vpop.f32.mrb[0].mxu0
    %v2502 = vadd.f32 0.0, %v2501
    %v2503 = vpop.f32.mrb[0].mxu0
    %2504 = vdwg.mxu0
    %v2505 = vadd.f32 %v2429, %v2502
    %v2506 = vrot.slane %v1900, 3
    %v2507 = vrot.slane %v1901, 2
    %v2508 = vsel %vm1976, %v2507, %v2506
    %v2509 = vsel %vm1725, %v2508, 0
    %2511 = vmatprep.subr.mxu0 0.0
    %2512 = vmatpush1.msra.mxu0 %v1946
    %2513 = vmatprep.subr.mxu0 0.0
    %2514 = vmatpush1.msra.mxu0 %v1947
    %2515 = vmatprep.subr.mxu0 0.0
    %2516 = vmatpush1.msra.mxu0 %v1948
    %2517 = vmatprep.subr.mxu0 0.0
    %2518 = vmatpush1.msra.mxu0 %v1949
    %2519 = vmatprep.subr.mxu0 0.0
    %2520 = vmatpush1.msra.mxu0 0.0
    %2521 = vmatprep.subr.mxu0 0.0
    %2522 = vmatpush1.msra.mxu0 0.0
    %2523 = vmatprep.subr.mxu0 0.0
    %2524 = vmatpush1.msra.mxu0 0.0
    %2525 = vmatprep.subr.mxu0 0.0
    %2526 = vmatpush1.msra.mxu0 0.0
    %2527 = vmatprep.subr.mxu0 0.0
    %2528 = vmatpush1.msra.mxu0 0.0
    %2529 = vmatprep.subr.mxu0 0.0
    %2530 = vmatpush1.msra.mxu0 0.0
    %2531 = vmatprep.subr.mxu0 0.0
    %2532 = vmatpush1.msra.mxu0 0.0
    %2533 = vmatprep.subr.mxu0 0.0
    %2534 = vmatpush1.msra.mxu0 0.0
    %2535 = vmatprep.subr.mxu0 0.0
    %2536 = vmatpush1.msra.mxu0 0.0
    %2537 = vmatprep.subr.mxu0 0.0
    %2538 = vmatpush1.msra.mxu0 0.0
    %2539 = vmatprep.subr.mxu0 0.0
    %2540 = vmatpush1.msra.mxu0 0.0
    %2541 = vmatprep.subr.mxu0 0.0
    %2542 = vmatpush1.msra.mxu0 0.0
    %2543 = vmatprep.subr.mxu0 0.0
    %2544 = vmatpush1.msra.mxu0 0.0
    %2545 = vmatprep.subr.mxu0 0.0
    %2546 = vmatpush1.msra.mxu0 0.0
    %2547 = vmatprep.subr.mxu0 0.0
    %2548 = vmatpush1.msra.mxu0 0.0
    %2549 = vmatprep.subr.mxu0 0.0
    %2550 = vmatpush1.msra.mxu0 0.0
    %2551 = vmatprep.subr.mxu0 0.0
    %2552 = vmatpush1.msra.mxu0 0.0
    %2553 = vmatprep.subr.mxu0 0.0
    %2554 = vmatpush1.msra.mxu0 0.0
    %2555 = vmatprep.subr.mxu0 0.0
    %2556 = vmatpush1.msra.mxu0 0.0
    %2557 = vmatprep.subr.mxu0 0.0
    %2558 = vmatpush1.msra.mxu0 0.0
    %2559 = vmatprep.subr.mxu0 0.0
    %2560 = vmatpush1.msra.mxu0 0.0
    %2561 = vmatprep.subr.mxu0 0.0
    %2562 = vmatpush1.msra.mxu0 0.0
    %2563 = vmatprep.subr.mxu0 0.0
    %2564 = vmatpush1.msra.mxu0 0.0
    %2565 = vmatprep.subr.mxu0 0.0
    %2566 = vmatpush1.msra.mxu0 0.0
    %2567 = vmatprep.subr.mxu0 0.0
    %2568 = vmatpush1.msra.mxu0 0.0
    %2569 = vmatprep.subr.mxu0 0.0
    %2570 = vmatpush1.msra.mxu0 0.0
    %2571 = vmatprep.subr.mxu0 0.0
    %2572 = vmatpush1.msra.mxu0 0.0
    %2573 = vmatprep.subr.mxu0 0.0
    %2574 = vmatpush1.msra.mxu0 0.0
    %2575 = vmatprep.mubr.f32.mxu0 0.0
    %2576 = vmatmul.mubr.f32.gmra.mrb[0].mxu0 %v2509
    %v2577 = vpop.f32.mrb[0].mxu0
    %v2578 = vadd.f32 0.0, %v2577
    %v2579 = vpop.f32.mrb[0].mxu0
    %2580 = vdwg.mxu0
    %v2581 = vadd.f32 %v2505, %v2578
    %v2582 = vrot.slane %v1898, 4
    %v2583 = vrot.slane %v1899, 3
    %v2584 = vsel %vm1976, %v2583, %v2582
    %v2585 = vsel %vm1725, %v2584, 0
    %2587 = vmatprep.subr.mxu0 0.0
    %2588 = vmatpush1.msra.mxu0 %v1918
    %2589 = vmatprep.subr.mxu0 0.0
    %2590 = vmatpush1.msra.mxu0 %v1919
    %2591 = vmatprep.subr.mxu0 0.0
    %2592 = vmatpush1.msra.mxu0 %v1920
    %2593 = vmatprep.subr.mxu0 0.0
    %2594 = vmatpush1.msra.mxu0 %v1921
    %2595 = vmatprep.subr.mxu0 0.0
    %2596 = vmatpush1.msra.mxu0 0.0
    %2597 = vmatprep.subr.mxu0 0.0
    %2598 = vmatpush1.msra.mxu0 0.0
    %2599 = vmatprep.subr.mxu0 0.0
    %2600 = vmatpush1.msra.mxu0 0.0
    %2601 = vmatprep.subr.mxu0 0.0
    %2602 = vmatpush1.msra.mxu0 0.0
    %2603 = vmatprep.subr.mxu0 0.0
    %2604 = vmatpush1.msra.mxu0 0.0
    %2605 = vmatprep.subr.mxu0 0.0
    %2606 = vmatpush1.msra.mxu0 0.0
    %2607 = vmatprep.subr.mxu0 0.0
    %2608 = vmatpush1.msra.mxu0 0.0
    %2609 = vmatprep.subr.mxu0 0.0
    %2610 = vmatpush1.msra.mxu0 0.0
    %2611 = vmatprep.subr.mxu0 0.0
    %2612 = vmatpush1.msra.mxu0 0.0
    %2613 = vmatprep.subr.mxu0 0.0
    %2614 = vmatpush1.msra.mxu0 0.0
    %2615 = vmatprep.subr.mxu0 0.0
    %2616 = vmatpush1.msra.mxu0 0.0
    %2617 = vmatprep.subr.mxu0 0.0
    %2618 = vmatpush1.msra.mxu0 0.0
    %2619 = vmatprep.subr.mxu0 0.0
    %2620 = vmatpush1.msra.mxu0 0.0
    %2621 = vmatprep.subr.mxu0 0.0
    %2622 = vmatpush1.msra.mxu0 0.0
    %2623 = vmatprep.subr.mxu0 0.0
    %2624 = vmatpush1.msra.mxu0 0.0
    %2625 = vmatprep.subr.mxu0 0.0
    %2626 = vmatpush1.msra.mxu0 0.0
    %2627 = vmatprep.subr.mxu0 0.0
    %2628 = vmatpush1.msra.mxu0 0.0
    %2629 = vmatprep.subr.mxu0 0.0
    %2630 = vmatpush1.msra.mxu0 0.0
    %2631 = vmatprep.subr.mxu0 0.0
    %2632 = vmatpush1.msra.mxu0 0.0
    %2633 = vmatprep.subr.mxu0 0.0
    %2634 = vmatpush1.msra.mxu0 0.0
    %2635 = vmatprep.subr.mxu0 0.0
    %2636 = vmatpush1.msra.mxu0 0.0
    %2637 = vmatprep.subr.mxu0 0.0
    %2638 = vmatpush1.msra.mxu0 0.0
    %2639 = vmatprep.subr.mxu0 0.0
    %2640 = vmatpush1.msra.mxu0 0.0
    %2641 = vmatprep.subr.mxu0 0.0
    %2642 = vmatpush1.msra.mxu0 0.0
    %2643 = vmatprep.subr.mxu0 0.0
    %2644 = vmatpush1.msra.mxu0 0.0
    %2645 = vmatprep.subr.mxu0 0.0
    %2646 = vmatpush1.msra.mxu0 0.0
    %2647 = vmatprep.subr.mxu0 0.0
    %2648 = vmatpush1.msra.mxu0 0.0
    %2649 = vmatprep.subr.mxu0 0.0
    %2650 = vmatpush1.msra.mxu0 0.0
    %2651 = vmatprep.mubr.f32.mxu0 0.0
    %2652 = vmatmul.mubr.f32.gmra.mrb[0].mxu0 %v2585
    %v2653 = vpop.f32.mrb[0].mxu0
    %v2654 = vadd.f32 0.0, %v2653
    %v2655 = vpop.f32.mrb[0].mxu0
    %2656 = vdwg.mxu0
    %v2657 = vadd.f32 %v2581, %v2654
    %v2658 = vrot.slane %v1900, 4
    %v2659 = vrot.slane %v1901, 3
    %v2660 = vsel %vm1976, %v2659, %v2658
    %v2661 = vsel %vm1725, %v2660, 0
    %2663 = vmatprep.subr.mxu0 0.0
    %2664 = vmatpush1.msra.mxu0 %v1950
    %2665 = vmatprep.subr.mxu0 0.0
    %2666 = vmatpush1.msra.mxu0 %v1951
    %2667 = vmatprep.subr.mxu0 0.0
    %2668 = vmatpush1.msra.mxu0 %v1952
    %2669 = vmatprep.subr.mxu0 0.0
    %2670 = vmatpush1.msra.mxu0 %v1953
    %2671 = vmatprep.subr.mxu0 0.0
    %2672 = vmatpush1.msra.mxu0 0.0
    %2673 = vmatprep.subr.mxu0 0.0
    %2674 = vmatpush1.msra.mxu0 0.0
    %2675 = vmatprep.subr.mxu0 0.0
    %2676 = vmatpush1.msra.mxu0 0.0
    %2677 = vmatprep.subr.mxu0 0.0
    %2678 = vmatpush1.msra.mxu0 0.0
    %2679 = vmatprep.subr.mxu0 0.0
    %2680 = vmatpush1.msra.mxu0 0.0
    %2681 = vmatprep.subr.mxu0 0.0
    %2682 = vmatpush1.msra.mxu0 0.0
    %2683 = vmatprep.subr.mxu0 0.0
    %2684 = vmatpush1.msra.mxu0 0.0
    %2685 = vmatprep.subr.mxu0 0.0
    %2686 = vmatpush1.msra.mxu0 0.0
    %2687 = vmatprep.subr.mxu0 0.0
    %2688 = vmatpush1.msra.mxu0 0.0
    %2689 = vmatprep.subr.mxu0 0.0
    %2690 = vmatpush1.msra.mxu0 0.0
    %2691 = vmatprep.subr.mxu0 0.0
    %2692 = vmatpush1.msra.mxu0 0.0
    %2693 = vmatprep.subr.mxu0 0.0
    %2694 = vmatpush1.msra.mxu0 0.0
    %2695 = vmatprep.subr.mxu0 0.0
    %2696 = vmatpush1.msra.mxu0 0.0
    %2697 = vmatprep.subr.mxu0 0.0
    %2698 = vmatpush1.msra.mxu0 0.0
    %2699 = vmatprep.subr.mxu0 0.0
    %2700 = vmatpush1.msra.mxu0 0.0
    %2701 = vmatprep.subr.mxu0 0.0
    %2702 = vmatpush1.msra.mxu0 0.0
    %2703 = vmatprep.subr.mxu0 0.0
    %2704 = vmatpush1.msra.mxu0 0.0
    %2705 = vmatprep.subr.mxu0 0.0
    %2706 = vmatpush1.msra.mxu0 0.0
    %2707 = vmatprep.subr.mxu0 0.0
    %2708 = vmatpush1.msra.mxu0 0.0
    %2709 = vmatprep.subr.mxu0 0.0
    %2710 = vmatpush1.msra.mxu0 0.0
    %2711 = vmatprep.subr.mxu0 0.0
    %2712 = vmatpush1.msra.mxu0 0.0
    %2713 = vmatprep.subr.mxu0 0.0
    %2714 = vmatpush1.msra.mxu0 0.0
    %2715 = vmatprep.subr.mxu0 0.0
    %2716 = vmatpush1.msra.mxu0 0.0
    %2717 = vmatprep.subr.mxu0 0.0
    %2718 = vmatpush1.msra.mxu0 0.0
    %2719 = vmatprep.subr.mxu0 0.0
    %2720 = vmatpush1.msra.mxu0 0.0
    %2721 = vmatprep.subr.mxu0 0.0
    %2722 = vmatpush1.msra.mxu0 0.0
    %2723 = vmatprep.subr.mxu0 0.0
    %2724 = vmatpush1.msra.mxu0 0.0
    %2725 = vmatprep.subr.mxu0 0.0
    %2726 = vmatpush1.msra.mxu0 0.0
    %2727 = vmatprep.mubr.f32.mxu0 0.0
    %2728 = vmatmul.mubr.f32.gmra.mrb[0].mxu0 %v2661
    %v2729 = vpop.f32.mrb[0].mxu0
    %v2730 = vadd.f32 0.0, %v2729
    %v2731 = vpop.f32.mrb[0].mxu0
    %2732 = vdwg.mxu0
    %v2733 = vadd.f32 %v2657, %v2730
    %v2734 = vrot.slane %v1898, 5
    %v2735 = vrot.slane %v1899, 4
    %v2736 = vsel %vm1976, %v2735, %v2734
    %v2737 = vsel %vm1725, %v2736, 0
    %2739 = vmatprep.subr.mxu0 0.0
    %2740 = vmatpush1.msra.mxu0 %v1922
    %2741 = vmatprep.subr.mxu0 0.0
    %2742 = vmatpush1.msra.mxu0 %v1923
    %2743 = vmatprep.subr.mxu0 0.0
    %2744 = vmatpush1.msra.mxu0 %v1924
    %2745 = vmatprep.subr.mxu0 0.0
    %2746 = vmatpush1.msra.mxu0 %v1925
    %2747 = vmatprep.subr.mxu0 0.0
    %2748 = vmatpush1.msra.mxu0 0.0
    %2749 = vmatprep.subr.mxu0 0.0
    %2750 = vmatpush1.msra.mxu0 0.0
    %2751 = vmatprep.subr.mxu0 0.0
    %2752 = vmatpush1.msra.mxu0 0.0
    %2753 = vmatprep.subr.mxu0 0.0
    %2754 = vmatpush1.msra.mxu0 0.0
    %2755 = vmatprep.subr.mxu0 0.0
    %2756 = vmatpush1.msra.mxu0 0.0
    %2757 = vmatprep.subr.mxu0 0.0
    %2758 = vmatpush1.msra.mxu0 0.0
    %2759 = vmatprep.subr.mxu0 0.0
    %2760 = vmatpush1.msra.mxu0 0.0
    %2761 = vmatprep.subr.mxu0 0.0
    %2762 = vmatpush1.msra.mxu0 0.0
    %2763 = vmatprep.subr.mxu0 0.0
    %2764 = vmatpush1.msra.mxu0 0.0
    %2765 = vmatprep.subr.mxu0 0.0
    %2766 = vmatpush1.msra.mxu0 0.0
    %2767 = vmatprep.subr.mxu0 0.0
    %2768 = vmatpush1.msra.mxu0 0.0
    %2769 = vmatprep.subr.mxu0 0.0
    %2770 = vmatpush1.msra.mxu0 0.0
    %2771 = vmatprep.subr.mxu0 0.0
    %2772 = vmatpush1.msra.mxu0 0.0
    %2773 = vmatprep.subr.mxu0 0.0
    %2774 = vmatpush1.msra.mxu0 0.0
    %2775 = vmatprep.subr.mxu0 0.0
    %2776 = vmatpush1.msra.mxu0 0.0
    %2777 = vmatprep.subr.mxu0 0.0
    %2778 = vmatpush1.msra.mxu0 0.0
    %2779 = vmatprep.subr.mxu0 0.0
    %2780 = vmatpush1.msra.mxu0 0.0
    %2781 = vmatprep.subr.mxu0 0.0
    %2782 = vmatpush1.msra.mxu0 0.0
    %2783 = vmatprep.subr.mxu0 0.0
    %2784 = vmatpush1.msra.mxu0 0.0
    %2785 = vmatprep.subr.mxu0 0.0
    %2786 = vmatpush1.msra.mxu0 0.0
    %2787 = vmatprep.subr.mxu0 0.0
    %2788 = vmatpush1.msra.mxu0 0.0
    %2789 = vmatprep.subr.mxu0 0.0
    %2790 = vmatpush1.msra.mxu0 0.0
    %2791 = vmatprep.subr.mxu0 0.0
    %2792 = vmatpush1.msra.mxu0 0.0
    %2793 = vmatprep.subr.mxu0 0.0
    %2794 = vmatpush1.msra.mxu0 0.0
    %2795 = vmatprep.subr.mxu0 0.0
    %2796 = vmatpush1.msra.mxu0 0.0
    %2797 = vmatprep.subr.mxu0 0.0
    %2798 = vmatpush1.msra.mxu0 0.0
    %2799 = vmatprep.subr.mxu0 0.0
    %2800 = vmatpush1.msra.mxu0 0.0
    %2801 = vmatprep.subr.mxu0 0.0
    %2802 = vmatpush1.msra.mxu0 0.0
    %2803 = vmatprep.mubr.f32.mxu0 0.0
    %2804 = vmatmul.mubr.f32.gmra.mrb[0].mxu0 %v2737
    %v2805 = vpop.f32.mrb[0].mxu0
    %v2806 = vadd.f32 0.0, %v2805
    %v2807 = vpop.f32.mrb[0].mxu0
    %2808 = vdwg.mxu0
    %v2809 = vadd.f32 %v2733, %v2806
    %v2810 = vrot.slane %v1900, 5
    %v2811 = vrot.slane %v1901, 4
    %v2812 = vsel %vm1976, %v2811, %v2810
    %v2813 = vsel %vm1725, %v2812, 0
    %2815 = vmatprep.subr.mxu0 0.0
    %2816 = vmatpush1.msra.mxu0 %v1954
    %2817 = vmatprep.subr.mxu0 0.0
    %2818 = vmatpush1.msra.mxu0 %v1955
    %2819 = vmatprep.subr.mxu0 0.0
    %2820 = vmatpush1.msra.mxu0 %v1956
    %2821 = vmatprep.subr.mxu0 0.0
    %2822 = vmatpush1.msra.mxu0 %v1957
    %2823 = vmatprep.subr.mxu0 0.0
    %2824 = vmatpush1.msra.mxu0 0.0
    %2825 = vmatprep.subr.mxu0 0.0
    %2826 = vmatpush1.msra.mxu0 0.0
    %2827 = vmatprep.subr.mxu0 0.0
    %2828 = vmatpush1.msra.mxu0 0.0
    %2829 = vmatprep.subr.mxu0 0.0
    %2830 = vmatpush1.msra.mxu0 0.0
    %2831 = vmatprep.subr.mxu0 0.0
    %2832 = vmatpush1.msra.mxu0 0.0
    %2833 = vmatprep.subr.mxu0 0.0
    %2834 = vmatpush1.msra.mxu0 0.0
    %2835 = vmatprep.subr.mxu0 0.0
    %2836 = vmatpush1.msra.mxu0 0.0
    %2837 = vmatprep.subr.mxu0 0.0
    %2838 = vmatpush1.msra.mxu0 0.0
    %2839 = vmatprep.subr.mxu0 0.0
    %2840 = vmatpush1.msra.mxu0 0.0
    %2841 = vmatprep.subr.mxu0 0.0
    %2842 = vmatpush1.msra.mxu0 0.0
    %2843 = vmatprep.subr.mxu0 0.0
    %2844 = vmatpush1.msra.mxu0 0.0
    %2845 = vmatprep.subr.mxu0 0.0
    %2846 = vmatpush1.msra.mxu0 0.0
    %2847 = vmatprep.subr.mxu0 0.0
    %2848 = vmatpush1.msra.mxu0 0.0
    %2849 = vmatprep.subr.mxu0 0.0
    %2850 = vmatpush1.msra.mxu0 0.0
    %2851 = vmatprep.subr.mxu0 0.0
    %2852 = vmatpush1.msra.mxu0 0.0
    %2853 = vmatprep.subr.mxu0 0.0
    %2854 = vmatpush1.msra.mxu0 0.0
    %2855 = vmatprep.subr.mxu0 0.0
    %2856 = vmatpush1.msra.mxu0 0.0
    %2857 = vmatprep.subr.mxu0 0.0
    %2858 = vmatpush1.msra.mxu0 0.0
    %2859 = vmatprep.subr.mxu0 0.0
    %2860 = vmatpush1.msra.mxu0 0.0
    %2861 = vmatprep.subr.mxu0 0.0
    %2862 = vmatpush1.msra.mxu0 0.0
    %2863 = vmatprep.subr.mxu0 0.0
    %2864 = vmatpush1.msra.mxu0 0.0
    %2865 = vmatprep.subr.mxu0 0.0
    %2866 = vmatpush1.msra.mxu0 0.0
    %2867 = vmatprep.subr.mxu0 0.0
    %2868 = vmatpush1.msra.mxu0 0.0
    %2869 = vmatprep.subr.mxu0 0.0
    %2870 = vmatpush1.msra.mxu0 0.0
    %2871 = vmatprep.subr.mxu0 0.0
    %2872 = vmatpush1.msra.mxu0 0.0
    %2873 = vmatprep.subr.mxu0 0.0
    %2874 = vmatpush1.msra.mxu0 0.0
    %2875 = vmatprep.subr.mxu0 0.0
    %2876 = vmatpush1.msra.mxu0 0.0
    %2877 = vmatprep.subr.mxu0 0.0
    %2878 = vmatpush1.msra.mxu0 0.0
    %2879 = vmatprep.mubr.f32.mxu0 0.0
    %2880 = vmatmul.mubr.f32.gmra.mrb[0].mxu0 %v2813
    %v2881 = vpop.f32.mrb[0].mxu0
    %v2882 = vadd.f32 0.0, %v2881
    %v2883 = vpop.f32.mrb[0].mxu0
    %2884 = vdwg.mxu0
    %v2885 = vadd.f32 %v2809, %v2882
    %v2886 = vrot.slane %v1898, 6
    %v2887 = vrot.slane %v1899, 5
    %v2888 = vsel %vm1976, %v2887, %v2886
    %v2889 = vsel %vm1725, %v2888, 0
    %2891 = vmatprep.subr.mxu0 0.0
    %2892 = vmatpush1.msra.mxu0 %v1926
    %2893 = vmatprep.subr.mxu0 0.0
    %2894 = vmatpush1.msra.mxu0 %v1927
    %2895 = vmatprep.subr.mxu0 0.0
    %2896 = vmatpush1.msra.mxu0 %v1928
    %2897 = vmatprep.subr.mxu0 0.0
    %2898 = vmatpush1.msra.mxu0 %v1929
    %2899 = vmatprep.subr.mxu0 0.0
    %2900 = vmatpush1.msra.mxu0 0.0
    %2901 = vmatprep.subr.mxu0 0.0
    %2902 = vmatpush1.msra.mxu0 0.0
    %2903 = vmatprep.subr.mxu0 0.0
    %2904 = vmatpush1.msra.mxu0 0.0
    %2905 = vmatprep.subr.mxu0 0.0
    %2906 = vmatpush1.msra.mxu0 0.0
    %2907 = vmatprep.subr.mxu0 0.0
    %2908 = vmatpush1.msra.mxu0 0.0
    %2909 = vmatprep.subr.mxu0 0.0
    %2910 = vmatpush1.msra.mxu0 0.0
    %2911 = vmatprep.subr.mxu0 0.0
    %2912 = vmatpush1.msra.mxu0 0.0
    %2913 = vmatprep.subr.mxu0 0.0
    %2914 = vmatpush1.msra.mxu0 0.0
    %2915 = vmatprep.subr.mxu0 0.0
    %2916 = vmatpush1.msra.mxu0 0.0
    %2917 = vmatprep.subr.mxu0 0.0
    %2918 = vmatpush1.msra.mxu0 0.0
    %2919 = vmatprep.subr.mxu0 0.0
    %2920 = vmatpush1.msra.mxu0 0.0
    %2921 = vmatprep.subr.mxu0 0.0
    %2922 = vmatpush1.msra.mxu0 0.0
    %2923 = vmatprep.subr.mxu0 0.0
    %2924 = vmatpush1.msra.mxu0 0.0
    %2925 = vmatprep.subr.mxu0 0.0
    %2926 = vmatpush1.msra.mxu0 0.0
    %2927 = vmatprep.subr.mxu0 0.0
    %2928 = vmatpush1.msra.mxu0 0.0
    %2929 = vmatprep.subr.mxu0 0.0
    %2930 = vmatpush1.msra.mxu0 0.0
    %2931 = vmatprep.subr.mxu0 0.0
    %2932 = vmatpush1.msra.mxu0 0.0
    %2933 = vmatprep.subr.mxu0 0.0
    %2934 = vmatpush1.msra.mxu0 0.0
    %2935 = vmatprep.subr.mxu0 0.0
    %2936 = vmatpush1.msra.mxu0 0.0
    %2937 = vmatprep.subr.mxu0 0.0
    %2938 = vmatpush1.msra.mxu0 0.0
    %2939 = vmatprep.subr.mxu0 0.0
    %2940 = vmatpush1.msra.mxu0 0.0
    %2941 = vmatprep.subr.mxu0 0.0
    %2942 = vmatpush1.msra.mxu0 0.0
    %2943 = vmatprep.subr.mxu0 0.0
    %2944 = vmatpush1.msra.mxu0 0.0
    %2945 = vmatprep.subr.mxu0 0.0
    %2946 = vmatpush1.msra.mxu0 0.0
    %2947 = vmatprep.subr.mxu0 0.0
    %2948 = vmatpush1.msra.mxu0 0.0
    %2949 = vmatprep.subr.mxu0 0.0
    %2950 = vmatpush1.msra.mxu0 0.0
    %2951 = vmatprep.subr.mxu0 0.0
    %2952 = vmatpush1.msra.mxu0 0.0
    %2953 = vmatprep.subr.mxu0 0.0
    %2954 = vmatpush1.msra.mxu0 0.0
    %2955 = vmatprep.mubr.f32.mxu0 0.0
    %2956 = vmatmul.mubr.f32.gmra.mrb[0].mxu0 %v2889
    %v2957 = vpop.f32.mrb[0].mxu0
    %v2958 = vadd.f32 0.0, %v2957
    %v2959 = vpop.f32.mrb[0].mxu0
    %2960 = vdwg.mxu0
    %v2961 = vadd.f32 %v2885, %v2958
    %v2962 = vrot.slane %v1900, 6
    %v2963 = vrot.slane %v1901, 5
    %v2964 = vsel %vm1976, %v2963, %v2962
    %v2965 = vsel %vm1725, %v2964, 0
    %2967 = vmatprep.subr.mxu0 0.0
    %2968 = vmatpush1.msra.mxu0 %v1958
    %2969 = vmatprep.subr.mxu0 0.0
    %2970 = vmatpush1.msra.mxu0 %v1959
    %2971 = vmatprep.subr.mxu0 0.0
    %2972 = vmatpush1.msra.mxu0 %v1960
    %2973 = vmatprep.subr.mxu0 0.0
    %2974 = vmatpush1.msra.mxu0 %v1961
    %2975 = vmatprep.subr.mxu0 0.0
    %2976 = vmatpush1.msra.mxu0 0.0
    %2977 = vmatprep.subr.mxu0 0.0
    %2978 = vmatpush1.msra.mxu0 0.0
    %2979 = vmatprep.subr.mxu0 0.0
    %2980 = vmatpush1.msra.mxu0 0.0
    %2981 = vmatprep.subr.mxu0 0.0
    %2982 = vmatpush1.msra.mxu0 0.0
    %2983 = vmatprep.subr.mxu0 0.0
    %2984 = vmatpush1.msra.mxu0 0.0
    %2985 = vmatprep.subr.mxu0 0.0
    %2986 = vmatpush1.msra.mxu0 0.0
    %2987 = vmatprep.subr.mxu0 0.0
    %2988 = vmatpush1.msra.mxu0 0.0
    %2989 = vmatprep.subr.mxu0 0.0
    %2990 = vmatpush1.msra.mxu0 0.0
    %2991 = vmatprep.subr.mxu0 0.0
    %2992 = vmatpush1.msra.mxu0 0.0
    %2993 = vmatprep.subr.mxu0 0.0
    %2994 = vmatpush1.msra.mxu0 0.0
    %2995 = vmatprep.subr.mxu0 0.0
    %2996 = vmatpush1.msra.mxu0 0.0
    %2997 = vmatprep.subr.mxu0 0.0
    %2998 = vmatpush1.msra.mxu0 0.0
    %2999 = vmatprep.subr.mxu0 0.0
    %3000 = vmatpush1.msra.mxu0 0.0
    %3001 = vmatprep.subr.mxu0 0.0
    %3002 = vmatpush1.msra.mxu0 0.0
    %3003 = vmatprep.subr.mxu0 0.0
    %3004 = vmatpush1.msra.mxu0 0.0
    %3005 = vmatprep.subr.mxu0 0.0
    %3006 = vmatpush1.msra.mxu0 0.0
    %3007 = vmatprep.subr.mxu0 0.0
    %3008 = vmatpush1.msra.mxu0 0.0
    %3009 = vmatprep.subr.mxu0 0.0
    %3010 = vmatpush1.msra.mxu0 0.0
    %3011 = vmatprep.subr.mxu0 0.0
    %3012 = vmatpush1.msra.mxu0 0.0
    %3013 = vmatprep.subr.mxu0 0.0
    %3014 = vmatpush1.msra.mxu0 0.0
    %3015 = vmatprep.subr.mxu0 0.0
    %3016 = vmatpush1.msra.mxu0 0.0
    %3017 = vmatprep.subr.mxu0 0.0
    %3018 = vmatpush1.msra.mxu0 0.0
    %3019 = vmatprep.subr.mxu0 0.0
    %3020 = vmatpush1.msra.mxu0 0.0
    %3021 = vmatprep.subr.mxu0 0.0
    %3022 = vmatpush1.msra.mxu0 0.0
    %3023 = vmatprep.subr.mxu0 0.0
    %3024 = vmatpush1.msra.mxu0 0.0
    %3025 = vmatprep.subr.mxu0 0.0
    %3026 = vmatpush1.msra.mxu0 0.0
    %3027 = vmatprep.subr.mxu0 0.0
    %3028 = vmatpush1.msra.mxu0 0.0
    %3029 = vmatprep.subr.mxu0 0.0
    %3030 = vmatpush1.msra.mxu0 0.0
    %3031 = vmatprep.mubr.f32.mxu0 0.0
    %3032 = vmatmul.mubr.f32.gmra.mrb[0].mxu0 %v2965
    %v3033 = vpop.f32.mrb[0].mxu0
    %v3034 = vadd.f32 0.0, %v3033
    %v3035 = vpop.f32.mrb[0].mxu0
    %3036 = vdwg.mxu0
    %v3037 = vadd.f32 %v2961, %v3034
    %v3038 = vrot.slane %v1898, 7
    %v3039 = vrot.slane %v1899, 6
    %v3040 = vsel %vm1976, %v3039, %v3038
    %v3041 = vsel %vm1725, %v3040, 0
    %3043 = vmatprep.subr.mxu0 0.0
    %3044 = vmatpush1.msra.mxu0 %v1930
    %3045 = vmatprep.subr.mxu0 0.0
    %3046 = vmatpush1.msra.mxu0 %v1931
    %3047 = vmatprep.subr.mxu0 0.0
    %3048 = vmatpush1.msra.mxu0 %v1932
    %3049 = vmatprep.subr.mxu0 0.0
    %3050 = vmatpush1.msra.mxu0 %v1933
    %3051 = vmatprep.subr.mxu0 0.0
    %3052 = vmatpush1.msra.mxu0 0.0
    %3053 = vmatprep.subr.mxu0 0.0
    %3054 = vmatpush1.msra.mxu0 0.0
    %3055 = vmatprep.subr.mxu0 0.0
    %3056 = vmatpush1.msra.mxu0 0.0
    %3057 = vmatprep.subr.mxu0 0.0
    %3058 = vmatpush1.msra.mxu0 0.0
    %3059 = vmatprep.subr.mxu0 0.0
    %3060 = vmatpush1.msra.mxu0 0.0
    %3061 = vmatprep.subr.mxu0 0.0
    %3062 = vmatpush1.msra.mxu0 0.0
    %3063 = vmatprep.subr.mxu0 0.0
    %3064 = vmatpush1.msra.mxu0 0.0
    %3065 = vmatprep.subr.mxu0 0.0
    %3066 = vmatpush1.msra.mxu0 0.0
    %3067 = vmatprep.subr.mxu0 0.0
    %3068 = vmatpush1.msra.mxu0 0.0
    %3069 = vmatprep.subr.mxu0 0.0
    %3070 = vmatpush1.msra.mxu0 0.0
    %3071 = vmatprep.subr.mxu0 0.0
    %3072 = vmatpush1.msra.mxu0 0.0
    %3073 = vmatprep.subr.mxu0 0.0
    %3074 = vmatpush1.msra.mxu0 0.0
    %3075 = vmatprep.subr.mxu0 0.0
    %3076 = vmatpush1.msra.mxu0 0.0
    %3077 = vmatprep.subr.mxu0 0.0
    %3078 = vmatpush1.msra.mxu0 0.0
    %3079 = vmatprep.subr.mxu0 0.0
    %3080 = vmatpush1.msra.mxu0 0.0
    %3081 = vmatprep.subr.mxu0 0.0
    %3082 = vmatpush1.msra.mxu0 0.0
    %3083 = vmatprep.subr.mxu0 0.0
    %3084 = vmatpush1.msra.mxu0 0.0
    %3085 = vmatprep.subr.mxu0 0.0
    %3086 = vmatpush1.msra.mxu0 0.0
    %3087 = vmatprep.subr.mxu0 0.0
    %3088 = vmatpush1.msra.mxu0 0.0
    %3089 = vmatprep.subr.mxu0 0.0
    %3090 = vmatpush1.msra.mxu0 0.0
    %3091 = vmatprep.subr.mxu0 0.0
    %3092 = vmatpush1.msra.mxu0 0.0
    %3093 = vmatprep.subr.mxu0 0.0
    %3094 = vmatpush1.msra.mxu0 0.0
    %3095 = vmatprep.subr.mxu0 0.0
    %3096 = vmatpush1.msra.mxu0 0.0
    %3097 = vmatprep.subr.mxu0 0.0
    %3098 = vmatpush1.msra.mxu0 0.0
    %3099 = vmatprep.subr.mxu0 0.0
    %3100 = vmatpush1.msra.mxu0 0.0
    %3101 = vmatprep.subr.mxu0 0.0
    %3102 = vmatpush1.msra.mxu0 0.0
    %3103 = vmatprep.subr.mxu0 0.0
    %3104 = vmatpush1.msra.mxu0 0.0
    %3105 = vmatprep.subr.mxu0 0.0
    %3106 = vmatpush1.msra.mxu0 0.0
    %3107 = vmatprep.mubr.f32.mxu0 0.0
    %3108 = vmatmul.mubr.f32.gmra.mrb[0].mxu0 %v3041
    %v3109 = vpop.f32.mrb[0].mxu0
    %v3110 = vadd.f32 0.0, %v3109
    %v3111 = vpop.f32.mrb[0].mxu0
    %3112 = vdwg.mxu0
    %v3113 = vadd.f32 %v3037, %v3110
    %v3114 = vrot.slane %v1900, 7
    %v3115 = vrot.slane %v1901, 6
    %v3116 = vsel %vm1976, %v3115, %v3114
    %v3117 = vsel %vm1725, %v3116, 0
    %3119 = vmatprep.subr.mxu0 0.0
    %3120 = vmatpush1.msra.mxu0 %v1962
    %3121 = vmatprep.subr.mxu0 0.0
    %3122 = vmatpush1.msra.mxu0 %v1963
    %3123 = vmatprep.subr.mxu0 0.0
    %3124 = vmatpush1.msra.mxu0 %v1964
    %3125 = vmatprep.subr.mxu0 0.0
    %3126 = vmatpush1.msra.mxu0 %v1965
    %3127 = vmatprep.subr.mxu0 0.0
    %3128 = vmatpush1.msra.mxu0 0.0
    %3129 = vmatprep.subr.mxu0 0.0
    %3130 = vmatpush1.msra.mxu0 0.0
    %3131 = vmatprep.subr.mxu0 0.0
    %3132 = vmatpush1.msra.mxu0 0.0
    %3133 = vmatprep.subr.mxu0 0.0
    %3134 = vmatpush1.msra.mxu0 0.0
    %3135 = vmatprep.subr.mxu0 0.0
    %3136 = vmatpush1.msra.mxu0 0.0
    %3137 = vmatprep.subr.mxu0 0.0
    %3138 = vmatpush1.msra.mxu0 0.0
    %3139 = vmatprep.subr.mxu0 0.0
    %3140 = vmatpush1.msra.mxu0 0.0
    %3141 = vmatprep.subr.mxu0 0.0
    %3142 = vmatpush1.msra.mxu0 0.0
    %3143 = vmatprep.subr.mxu0 0.0
    %3144 = vmatpush1.msra.mxu0 0.0
    %3145 = vmatprep.subr.mxu0 0.0
    %3146 = vmatpush1.msra.mxu0 0.0
    %3147 = vmatprep.subr.mxu0 0.0
    %3148 = vmatpush1.msra.mxu0 0.0
    %3149 = vmatprep.subr.mxu0 0.0
    %3150 = vmatpush1.msra.mxu0 0.0
    %3151 = vmatprep.subr.mxu0 0.0
    %3152 = vmatpush1.msra.mxu0 0.0
    %3153 = vmatprep.subr.mxu0 0.0
    %3154 = vmatpush1.msra.mxu0 0.0
    %3155 = vmatprep.subr.mxu0 0.0
    %3156 = vmatpush1.msra.mxu0 0.0
    %3157 = vmatprep.subr.mxu0 0.0
    %3158 = vmatpush1.msra.mxu0 0.0
    %3159 = vmatprep.subr.mxu0 0.0
    %3160 = vmatpush1.msra.mxu0 0.0
    %3161 = vmatprep.subr.mxu0 0.0
    %3162 = vmatpush1.msra.mxu0 0.0
    %3163 = vmatprep.subr.mxu0 0.0
    %3164 = vmatpush1.msra.mxu0 0.0
    %3165 = vmatprep.subr.mxu0 0.0
    %3166 = vmatpush1.msra.mxu0 0.0
    %3167 = vmatprep.subr.mxu0 0.0
    %3168 = vmatpush1.msra.mxu0 0.0
    %3169 = vmatprep.subr.mxu0 0.0
    %3170 = vmatpush1.msra.mxu0 0.0
    %3171 = vmatprep.subr.mxu0 0.0
    %3172 = vmatpush1.msra.mxu0 0.0
    %3173 = vmatprep.subr.mxu0 0.0
    %3174 = vmatpush1.msra.mxu0 0.0
    %3175 = vmatprep.subr.mxu0 0.0
    %3176 = vmatpush1.msra.mxu0 0.0
    %3177 = vmatprep.subr.mxu0 0.0
    %3178 = vmatpush1.msra.mxu0 0.0
    %3179 = vmatprep.subr.mxu0 0.0
    %3180 = vmatpush1.msra.mxu0 0.0
    %3181 = vmatprep.subr.mxu0 0.0
    %3182 = vmatpush1.msra.mxu0 0.0
    %3183 = vmatprep.mubr.f32.mxu0 0.0
    %3184 = vmatmul.mubr.f32.gmra.mrb[0].mxu0 %v3117
    %v3185 = vpop.f32.mrb[0].mxu0
    %v3186 = vadd.f32 0.0, %v3185
    %v3187 = vpop.f32.mrb[0].mxu0
    %3188 = vdwg.mxu0
    %v3189 = vadd.f32 %v3113, %v3186
    %v3190 = vmax.f32 %v3189, 0.0
    %v3191 = vld [vmem:[%s16] sm:$0xff]
    %v3192 = vld [vmem:[%s16 + $0x8] sm:$0xff]
    %v3193 = vld [vmem:[%s17] sm:$0x1]
    %v3195 = vlaneseq
    %v3196 = vshrl.u32 %v3195, 7
    %v3197 = vsub.s32 0, %v3196
    %v3198 = vrot.slane %v3193, %v3197
    %vm3200 = vcmask 130048
    %v3202 = vsel %vm3200, %v3190, 0
    %3204 = vmatprep.subr.mxu0 0.0
    %3205 = vmatpush1.msra.mxu0 %v3191
    %3206 = vmatprep.subr.mxu0 0.0
    %3207 = vmatpush1.msra.mxu0 %v3192
    %3208 = vmatprep.subr.mxu0 0.0
    %3209 = vmatpush1.msra.mxu0 0.0
    %3210 = vmatprep.subr.mxu0 0.0
    %3211 = vmatpush1.msra.mxu0 0.0
    %3212 = vmatprep.subr.mxu0 0.0
    %3213 = vmatpush1.msra.mxu0 0.0
    %3214 = vmatprep.subr.mxu0 0.0
    %3215 = vmatpush1.msra.mxu0 0.0
    %3216 = vmatprep.subr.mxu0 0.0
    %3217 = vmatpush1.msra.mxu0 0.0
    %3218 = vmatprep.subr.mxu0 0.0
    %3219 = vmatpush1.msra.mxu0 0.0
    %3220 = vmatprep.subr.mxu0 0.0
    %3221 = vmatpush1.msra.mxu0 0.0
    %3222 = vmatprep.subr.mxu0 0.0
    %3223 = vmatpush1.msra.mxu0 0.0
    %3224 = vmatprep.subr.mxu0 0.0
    %3225 = vmatpush1.msra.mxu0 0.0
    %3226 = vmatprep.subr.mxu0 0.0
    %3227 = vmatpush1.msra.mxu0 0.0
    %3228 = vmatprep.subr.mxu0 0.0
    %3229 = vmatpush1.msra.mxu0 0.0
    %3230 = vmatprep.subr.mxu0 0.0
    %3231 = vmatpush1.msra.mxu0 0.0
    %3232 = vmatprep.subr.mxu0 0.0
    %3233 = vmatpush1.msra.mxu0 0.0
    %3234 = vmatprep.subr.mxu0 0.0
    %3235 = vmatpush1.msra.mxu0 0.0
    %3236 = vmatprep.subr.mxu0 0.0
    %3237 = vmatpush1.msra.mxu0 0.0
    %3238 = vmatprep.subr.mxu0 0.0
    %3239 = vmatpush1.msra.mxu0 0.0
    %3240 = vmatprep.subr.mxu0 0.0
    %3241 = vmatpush1.msra.mxu0 0.0
    %3242 = vmatprep.subr.mxu0 0.0
    %3243 = vmatpush1.msra.mxu0 0.0
    %3244 = vmatprep.subr.mxu0 0.0
    %3245 = vmatpush1.msra.mxu0 0.0
    %3246 = vmatprep.subr.mxu0 0.0
    %3247 = vmatpush1.msra.mxu0 0.0
    %3248 = vmatprep.subr.mxu0 0.0
    %3249 = vmatpush1.msra.mxu0 0.0
    %3250 = vmatprep.subr.mxu0 0.0
    %3251 = vmatpush1.msra.mxu0 0.0
    %3252 = vmatprep.subr.mxu0 0.0
    %3253 = vmatpush1.msra.mxu0 0.0
    %3254 = vmatprep.subr.mxu0 0.0
    %3255 = vmatpush1.msra.mxu0 0.0
    %3256 = vmatprep.subr.mxu0 0.0
    %3257 = vmatpush1.msra.mxu0 0.0
    %3258 = vmatprep.subr.mxu0 0.0
    %3259 = vmatpush1.msra.mxu0 0.0
    %3260 = vmatprep.subr.mxu0 0.0
    %3261 = vmatpush1.msra.mxu0 0.0
    %3262 = vmatprep.subr.mxu0 0.0
    %3263 = vmatpush1.msra.mxu0 0.0
    %3264 = vmatprep.subr.mxu0 0.0
    %3265 = vmatpush1.msra.mxu0 0.0
    %3266 = vmatprep.subr.mxu0 0.0
    %3267 = vmatpush1.msra.mxu0 0.0
    %3268 = vmatprep.mubr.f32.mxu0 0.0
    %3269 = vmatmul.mubr.f32.gmra.mrb[0].mxu0 %v3202
    %v3270 = vpop.f32.mrb[0].mxu0
    %v3271 = vadd.f32 %v3198, %v3270
    %v3272 = vpop.f32.mrb[0].mxu0
    %3273 = vdwg.mxu0
    %v3274 = vtanh.pop %v3271
    %vm3275 = vcmask 33792
    %3276 = vst.msk [vmem:[#allocation10] sm:$0x3] %vm3275, %v3274
    %v3277 = vld [vmem:[%s3] sm:$0x1f]
    %v3279 = vsel %vm96, %v3274, 0
    %v3282 = vsel %vm100, %v3277, 0
    %3284 = vmatprep.subr.mxu0 0.0
    %3285 = vmatpush1.msra.mxu0 %v3282
    %3286 = vmatprep.subr.mxu0 0.0
    %3287 = vmatpush1.msra.mxu0 0.0
    %3288 = vmatprep.subr.mxu0 0.0
    %3289 = vmatpush1.msra.mxu0 0.0
    %3290 = vmatprep.subr.mxu0 0.0
    %3291 = vmatpush1.msra.mxu0 0.0
    %3292 = vmatprep.subr.mxu0 0.0
    %3293 = vmatpush1.msra.mxu0 0.0
    %3294 = vmatprep.subr.mxu0 0.0
    %3295 = vmatpush1.msra.mxu0 0.0
    %3296 = vmatprep.subr.mxu0 0.0
    %3297 = vmatpush1.msra.mxu0 0.0
    %3298 = vmatprep.subr.mxu0 0.0
    %3299 = vmatpush1.msra.mxu0 0.0
    %3300 = vmatprep.subr.mxu0 0.0
    %3301 = vmatpush1.msra.mxu0 0.0
    %3302 = vmatprep.subr.mxu0 0.0
    %3303 = vmatpush1.msra.mxu0 0.0
    %3304 = vmatprep.subr.mxu0 0.0
    %3305 = vmatpush1.msra.mxu0 0.0
    %3306 = vmatprep.subr.mxu0 0.0
    %3307 = vmatpush1.msra.mxu0 0.0
    %3308 = vmatprep.subr.mxu0 0.0
    %3309 = vmatpush1.msra.mxu0 0.0
    %3310 = vmatprep.subr.mxu0 0.0
    %3311 = vmatpush1.msra.mxu0 0.0
    %3312 = vmatprep.subr.mxu0 0.0
    %3313 = vmatpush1.msra.mxu0 0.0
    %3314 = vmatprep.subr.mxu0 0.0
    %3315 = vmatpush1.msra.mxu0 0.0
    %3316 = vmatprep.subr.mxu0 0.0
    %3317 = vmatpush1.msra.mxu0 0.0
    %3318 = vmatprep.subr.mxu0 0.0
    %3319 = vmatpush1.msra.mxu0 0.0
    %3320 = vmatprep.subr.mxu0 0.0
    %3321 = vmatpush1.msra.mxu0 0.0
    %3322 = vmatprep.subr.mxu0 0.0
    %3323 = vmatpush1.msra.mxu0 0.0
    %3324 = vmatprep.subr.mxu0 0.0
    %3325 = vmatpush1.msra.mxu0 0.0
    %3326 = vmatprep.subr.mxu0 0.0
    %3327 = vmatpush1.msra.mxu0 0.0
    %3328 = vmatprep.subr.mxu0 0.0
    %3329 = vmatpush1.msra.mxu0 0.0
    %3330 = vmatprep.subr.mxu0 0.0
    %3331 = vmatpush1.msra.mxu0 0.0
    %3332 = vmatprep.subr.mxu0 0.0
    %3333 = vmatpush1.msra.mxu0 0.0
    %3334 = vmatprep.subr.mxu0 0.0
    %3335 = vmatpush1.msra.mxu0 0.0
    %3336 = vmatprep.subr.mxu0 0.0
    %3337 = vmatpush1.msra.mxu0 0.0
    %3338 = vmatprep.subr.mxu0 0.0
    %3339 = vmatpush1.msra.mxu0 0.0
    %3340 = vmatprep.subr.mxu0 0.0
    %3341 = vmatpush1.msra.mxu0 0.0
    %3342 = vmatprep.subr.mxu0 0.0
    %3343 = vmatpush1.msra.mxu0 0.0
    %3344 = vmatprep.subr.mxu0 0.0
    %3345 = vmatpush1.msra.mxu0 0.0
    %3346 = vmatprep.subr.mxu0 0.0
    %3347 = vmatpush1.msra.mxu0 0.0
    %3348 = vmatprep.mubr.f32.mxu0 0.0
    %3349 = vmatmul.mubr.f32.gmra.mrb[0].mxu0 %v3279
    %v3350 = vpop.f32.mrb[0].mxu0
    %v3351 = vadd.f32 0.0, %v3350
    %v3352 = vpop.f32.mrb[0].mxu0
    %3353 = vdwg.mxu0
    %v3354 = vld [vmem:[%s4] sm:$0x1f]
    %v3356 = vsel %vm100, %v3354, 0
    %3358 = vmatprep.subr.mxu0 0.0
    %3359 = vmatpush1.msra.mxu0 %v3356
    %3360 = vmatprep.subr.mxu0 0.0
    %3361 = vmatpush1.msra.mxu0 0.0
    %3362 = vmatprep.subr.mxu0 0.0
    %3363 = vmatpush1.msra.mxu0 0.0
    %3364 = vmatprep.subr.mxu0 0.0
    %3365 = vmatpush1.msra.mxu0 0.0
    %3366 = vmatprep.subr.mxu0 0.0
    %3367 = vmatpush1.msra.mxu0 0.0
    %3368 = vmatprep.subr.mxu0 0.0
    %3369 = vmatpush1.msra.mxu0 0.0
    %3370 = vmatprep.subr.mxu0 0.0
    %3371 = vmatpush1.msra.mxu0 0.0
    %3372 = vmatprep.subr.mxu0 0.0
    %3373 = vmatpush1.msra.mxu0 0.0
    %3374 = vmatprep.subr.mxu0 0.0
    %3375 = vmatpush1.msra.mxu0 0.0
    %3376 = vmatprep.subr.mxu0 0.0
    %3377 = vmatpush1.msra.mxu0 0.0
    %3378 = vmatprep.subr.mxu0 0.0
    %3379 = vmatpush1.msra.mxu0 0.0
    %3380 = vmatprep.subr.mxu0 0.0
    %3381 = vmatpush1.msra.mxu0 0.0
    %3382 = vmatprep.subr.mxu0 0.0
    %3383 = vmatpush1.msra.mxu0 0.0
    %3384 = vmatprep.subr.mxu0 0.0
    %3385 = vmatpush1.msra.mxu0 0.0
    %3386 = vmatprep.subr.mxu0 0.0
    %3387 = vmatpush1.msra.mxu0 0.0
    %3388 = vmatprep.subr.mxu0 0.0
    %3389 = vmatpush1.msra.mxu0 0.0
    %3390 = vmatprep.subr.mxu0 0.0
    %3391 = vmatpush1.msra.mxu0 0.0
    %3392 = vmatprep.subr.mxu0 0.0
    %3393 = vmatpush1.msra.mxu0 0.0
    %3394 = vmatprep.subr.mxu0 0.0
    %3395 = vmatpush1.msra.mxu0 0.0
    %3396 = vmatprep.subr.mxu0 0.0
    %3397 = vmatpush1.msra.mxu0 0.0
    %3398 = vmatprep.subr.mxu0 0.0
    %3399 = vmatpush1.msra.mxu0 0.0
    %3400 = vmatprep.subr.mxu0 0.0
    %3401 = vmatpush1.msra.mxu0 0.0
    %3402 = vmatprep.subr.mxu0 0.0
    %3403 = vmatpush1.msra.mxu0 0.0
    %3404 = vmatprep.subr.mxu0 0.0
    %3405 = vmatpush1.msra.mxu0 0.0
    %3406 = vmatprep.subr.mxu0 0.0
    %3407 = vmatpush1.msra.mxu0 0.0
    %3408 = vmatprep.subr.mxu0 0.0
    %3409 = vmatpush1.msra.mxu0 0.0
    %3410 = vmatprep.subr.mxu0 0.0
    %3411 = vmatpush1.msra.mxu0 0.0
    %3412 = vmatprep.subr.mxu0 0.0
    %3413 = vmatpush1.msra.mxu0 0.0
    %3414 = vmatprep.subr.mxu0 0.0
    %3415 = vmatpush1.msra.mxu0 0.0
    %3416 = vmatprep.subr.mxu0 0.0
    %3417 = vmatpush1.msra.mxu0 0.0
    %3418 = vmatprep.subr.mxu0 0.0
    %3419 = vmatpush1.msra.mxu0 0.0
    %3420 = vmatprep.subr.mxu0 0.0
    %3421 = vmatpush1.msra.mxu0 0.0
    %3422 = vmatprep.mubr.f32.mxu0 0.0
    %3423 = vmatmul.mubr.f32.gmra.mrb[0].mxu0 %v3279
    %v3424 = vpop.f32.mrb[0].mxu0
    %v3425 = vadd.f32 0.0, %v3424
    %v3426 = vpop.f32.mrb[0].mxu0
    %3427 = vdwg.mxu0
    %v3428 = vmul.f32 %v3351, 0.02
    %v3429 = vmul.f32 %v3428, 1.442695
    %v3430 = vpow.pop %v3429
    %v3431 = vand.u32 2147483647, %v3351
    %vm3432 = vcmp.lt.f32.partialorder %v3431, 1e-08
    %v3433 = vsel %vm3432, 1.0, %v3351
    %v3434 = vmul.f32 %v3425, 0.02
    %v3435 = vrcp.pop %v3433
    %v3436 = vmul.f32 %v3425, %v3435
    %v3437 = vsub.f32 %v3430, 1.0
    %v3438 = vmul.f32 %v3436, %v3437
    %v3439 = vsel %vm3432, %v3434, %v3438
    %3441 = vset.pattern.permute.xlu0 0
    %3442 = vperm.xlu0 %3441, %v3430
    %v3443 = vpop.permute.xlu0 %3442
    %3445 = vset.pattern.permute.xlu0 1
    %3446 = vperm.xlu0 %3445, %v3430
    %v3447 = vpop.permute.xlu0 %3446
    %3449 = vset.pattern.permute.xlu0 2
    %3450 = vperm.xlu0 %3449, %v3430
    %v3451 = vpop.permute.xlu0 %3450
    %3453 = vset.pattern.permute.xlu0 3
    %3454 = vperm.xlu0 %3453, %v3430
    %v3455 = vpop.permute.xlu0 %3454
    %3457 = vset.pattern.permute.xlu0 4
    %3458 = vperm.xlu0 %3457, %v3430
    %v3459 = vpop.permute.xlu0 %3458
    %3461 = vset.pattern.permute.xlu0 5
    %3462 = vperm.xlu0 %3461, %v3430
    %v3463 = vpop.permute.xlu0 %3462
    %3466 = vset.pattern.permute.xlu0 0
    %3467 = vperm.xlu0 %3466, %v3439
    %v3468 = vpop.permute.xlu0 %3467
    %3470 = vset.pattern.permute.xlu0 1
    %3471 = vperm.xlu0 %3470, %v3439
    %v3472 = vpop.permute.xlu0 %3471
    %3474 = vset.pattern.permute.xlu0 2
    %3475 = vperm.xlu0 %3474, %v3439
    %v3476 = vpop.permute.xlu0 %3475
    %3478 = vset.pattern.permute.xlu0 3
    %3479 = vperm.xlu0 %3478, %v3439
    %v3480 = vpop.permute.xlu0 %3479
    %3482 = vset.pattern.permute.xlu0 4
    %3483 = vperm.xlu0 %3482, %v3439
    %v3484 = vpop.permute.xlu0 %3483
    %3486 = vset.pattern.permute.xlu0 5
    %3487 = vperm.xlu0 %3486, %v3439
    %v3488 = vpop.permute.xlu0 %3487
    %v3490 = vsel %vm315, %v3447, %v3443
    %v3491 = vsel %vm315, %v3472, %v3468
    %v3492 = vsel %vm318, %v3451, %v3490
    %v3493 = vsel %vm318, %v3476, %v3491
    %v3494 = vsel %vm321, %v3455, %v3492
    %v3495 = vsel %vm321, %v3480, %v3493
    %v3496 = vsel %vm324, %v3459, %v3494
    %v3497 = vsel %vm324, %v3484, %v3495
    %v3498 = vsel %vm327, %v3463, %v3496
    %v3499 = vsel %vm327, %v3488, %v3497
    %v3500 = vmul.f32 %v3498, %v314
    %v3501 = vadd.f32 %v3500, %v3499
    %vm3502 = vcmp.ge.f32.partialorder %v3501, 0.16666667
    %v3503 = vsel %vm3502, %v3447, %v3443
    %v3504 = vsel %vm3502, %v3472, %v3468
    %vm3505 = vcmp.ge.f32.partialorder %v3501, 0.33333334
    %v3506 = vsel %vm3505, %v3451, %v3503
    %v3507 = vsel %vm3505, %v3476, %v3504
    %vm3508 = vcmp.ge.f32.partialorder %v3501, 0.5
    %v3509 = vsel %vm3508, %v3455, %v3506
    %v3510 = vsel %vm3508, %v3480, %v3507
    %vm3511 = vcmp.ge.f32.partialorder %v3501, 0.6666667
    %v3512 = vsel %vm3511, %v3459, %v3509
    %v3513 = vsel %vm3511, %v3484, %v3510
    %vm3514 = vcmp.ge.f32.partialorder %v3501, 0.8333333
    %v3515 = vsel %vm3514, %v3463, %v3512
    %v3516 = vsel %vm3514, %v3488, %v3513
    %v3517 = vmul.f32 %v3515, %v3501
    %v3518 = vadd.f32 %v3517, %v3516
    %vm3519 = vcmp.ge.f32.partialorder %v3518, 0.16666667
    %v3520 = vsel %vm3519, %v3447, %v3443
    %v3521 = vsel %vm3519, %v3472, %v3468
    %vm3522 = vcmp.ge.f32.partialorder %v3518, 0.33333334
    %v3523 = vsel %vm3522, %v3451, %v3520
    %v3524 = vsel %vm3522, %v3476, %v3521
    %vm3525 = vcmp.ge.f32.partialorder %v3518, 0.5
    %v3526 = vsel %vm3525, %v3455, %v3523
    %v3527 = vsel %vm3525, %v3480, %v3524
    %vm3528 = vcmp.ge.f32.partialorder %v3518, 0.6666667
    %v3529 = vsel %vm3528, %v3459, %v3526
    %v3530 = vsel %vm3528, %v3484, %v3527
    %vm3531 = vcmp.ge.f32.partialorder %v3518, 0.8333333
    %v3532 = vsel %vm3531, %v3463, %v3529
    %v3533 = vsel %vm3531, %v3488, %v3530
    %v3534 = vmul.f32 %v3532, %v3518
    %v3535 = vadd.f32 %v3534, %v3533
    %vm3536 = vcmp.ge.f32.partialorder %v3535, 0.16666667
    %v3537 = vsel %vm3536, %v3447, %v3443
    %v3538 = vsel %vm3536, %v3472, %v3468
    %vm3539 = vcmp.ge.f32.partialorder %v3535, 0.33333334
    %v3540 = vsel %vm3539, %v3451, %v3537
    %v3541 = vsel %vm3539, %v3476, %v3538
    %vm3542 = vcmp.ge.f32.partialorder %v3535, 0.5
    %v3543 = vsel %vm3542, %v3455, %v3540
    %v3544 = vsel %vm3542, %v3480, %v3541
    %vm3545 = vcmp.ge.f32.partialorder %v3535, 0.6666667
    %v3546 = vsel %vm3545, %v3459, %v3543
    %v3547 = vsel %vm3545, %v3484, %v3544
    %vm3548 = vcmp.ge.f32.partialorder %v3535, 0.8333333
    %v3549 = vsel %vm3548, %v3463, %v3546
    %v3550 = vsel %vm3548, %v3488, %v3547
    %v3551 = vmul.f32 %v3549, %v3535
    %v3552 = vadd.f32 %v3551, %v3550
    %vm3553 = vcmp.ge.f32.partialorder %v3552, 0.16666667
    %v3554 = vsel %vm3553, %v3447, %v3443
    %v3555 = vsel %vm3553, %v3472, %v3468
    %vm3556 = vcmp.ge.f32.partialorder %v3552, 0.33333334
    %v3557 = vsel %vm3556, %v3451, %v3554
    %v3558 = vsel %vm3556, %v3476, %v3555
    %vm3559 = vcmp.ge.f32.partialorder %v3552, 0.5
    %v3560 = vsel %vm3559, %v3455, %v3557
    %v3561 = vsel %vm3559, %v3480, %v3558
    %vm3562 = vcmp.ge.f32.partialorder %v3552, 0.6666667
    %v3563 = vsel %vm3562, %v3459, %v3560
    %v3564 = vsel %vm3562, %v3484, %v3561
    %vm3565 = vcmp.ge.f32.partialorder %v3552, 0.8333333
    %v3566 = vsel %vm3565, %v3463, %v3563
    %v3567 = vsel %vm3565, %v3488, %v3564
    %v3568 = vmul.f32 %v3566, %v3552
    %v3569 = vadd.f32 %v3568, %v3567
    %vm3570 = vcmp.ge.f32.partialorder %v3569, 0.16666667
    %v3571 = vsel %vm3570, %v3447, %v3443
    %v3572 = vsel %vm3570, %v3472, %v3468
    %vm3573 = vcmp.ge.f32.partialorder %v3569, 0.33333334
    %v3574 = vsel %vm3573, %v3451, %v3571
    %v3575 = vsel %vm3573, %v3476, %v3572
    %vm3576 = vcmp.ge.f32.partialorder %v3569, 0.5
    %v3577 = vsel %vm3576, %v3455, %v3574
    %v3578 = vsel %vm3576, %v3480, %v3575
    %vm3579 = vcmp.ge.f32.partialorder %v3569, 0.6666667
    %v3580 = vsel %vm3579, %v3459, %v3577
    %v3581 = vsel %vm3579, %v3484, %v3578
    %vm3582 = vcmp.ge.f32.partialorder %v3569, 0.8333333
    %v3583 = vsel %vm3582, %v3463, %v3580
    %v3584 = vsel %vm3582, %v3488, %v3581
    %v3585 = vmul.f32 %v3583, %v3569
    %v3586 = vadd.f32 %v3585, %v3584
    %vm3587 = vcmp.ge.f32.partialorder %v3586, 0.16666667
    %v3588 = vsel %vm3587, %v3447, %v3443
    %v3589 = vsel %vm3587, %v3472, %v3468
    %vm3590 = vcmp.ge.f32.partialorder %v3586, 0.33333334
    %v3591 = vsel %vm3590, %v3451, %v3588
    %v3592 = vsel %vm3590, %v3476, %v3589
    %vm3593 = vcmp.ge.f32.partialorder %v3586, 0.5
    %v3594 = vsel %vm3593, %v3455, %v3591
    %v3595 = vsel %vm3593, %v3480, %v3592
    %vm3596 = vcmp.ge.f32.partialorder %v3586, 0.6666667
    %v3597 = vsel %vm3596, %v3459, %v3594
    %v3598 = vsel %vm3596, %v3484, %v3595
    %vm3599 = vcmp.ge.f32.partialorder %v3586, 0.8333333
    %v3600 = vsel %vm3599, %v3463, %v3597
    %v3601 = vsel %vm3599, %v3488, %v3598
    %v3602 = vmul.f32 %v3600, %v3586
    %v3603 = vadd.f32 %v3602, %v3601
    %vm3604 = vcmp.ge.f32.partialorder %v3603, 0.16666667
    %v3605 = vsel %vm3604, %v3447, %v3443
    %v3606 = vsel %vm3604, %v3472, %v3468
    %vm3607 = vcmp.ge.f32.partialorder %v3603, 0.33333334
    %v3608 = vsel %vm3607, %v3451, %v3605
    %v3609 = vsel %vm3607, %v3476, %v3606
    %vm3610 = vcmp.ge.f32.partialorder %v3603, 0.5
    %v3611 = vsel %vm3610, %v3455, %v3608
    %v3612 = vsel %vm3610, %v3480, %v3609
    %vm3613 = vcmp.ge.f32.partialorder %v3603, 0.6666667
    %v3614 = vsel %vm3613, %v3459, %v3611
    %v3615 = vsel %vm3613, %v3484, %v3612
    %vm3616 = vcmp.ge.f32.partialorder %v3603, 0.8333333
    %v3617 = vsel %vm3616, %v3463, %v3614
    %v3618 = vsel %vm3616, %v3488, %v3615
    %v3619 = vmul.f32 %v3617, %v3603
    %v3620 = vadd.f32 %v3619, %v3618
    %vm3621 = vcmp.ge.f32.partialorder %v3620, 0.16666667
    %v3622 = vsel %vm3621, %v3447, %v3443
    %v3623 = vsel %vm3621, %v3472, %v3468
    %vm3624 = vcmp.ge.f32.partialorder %v3620, 0.33333334
    %v3625 = vsel %vm3624, %v3451, %v3622
    %v3626 = vsel %vm3624, %v3476, %v3623
    %vm3627 = vcmp.ge.f32.partialorder %v3620, 0.5
    %v3628 = vsel %vm3627, %v3455, %v3625
    %v3629 = vsel %vm3627, %v3480, %v3626
    %vm3630 = vcmp.ge.f32.partialorder %v3620, 0.6666667
    %v3631 = vsel %vm3630, %v3459, %v3628
    %v3632 = vsel %vm3630, %v3484, %v3629
    %vm3633 = vcmp.ge.f32.partialorder %v3620, 0.8333333
    %v3634 = vsel %vm3633, %v3463, %v3631
    %v3635 = vsel %vm3633, %v3488, %v3632
    %v3636 = vmul.f32 %v3634, %v3620
    %v3637 = vadd.f32 %v3636, %v3635
    %vm3638 = vcmp.ge.f32.partialorder %v3637, 0.16666667
    %v3639 = vsel %vm3638, %v3447, %v3443
    %v3640 = vsel %vm3638, %v3472, %v3468
    %vm3641 = vcmp.ge.f32.partialorder %v3637, 0.33333334
    %v3642 = vsel %vm3641, %v3451, %v3639
    %v3643 = vsel %vm3641, %v3476, %v3640
    %vm3644 = vcmp.ge.f32.partialorder %v3637, 0.5
    %v3645 = vsel %vm3644, %v3455, %v3642
    %v3646 = vsel %vm3644, %v3480, %v3643
    %vm3647 = vcmp.ge.f32.partialorder %v3637, 0.6666667
    %v3648 = vsel %vm3647, %v3459, %v3645
    %v3649 = vsel %vm3647, %v3484, %v3646
    %vm3650 = vcmp.ge.f32.partialorder %v3637, 0.8333333
    %v3651 = vsel %vm3650, %v3463, %v3648
    %v3652 = vsel %vm3650, %v3488, %v3649
    %v3653 = vmul.f32 %v3651, %v3637
    %v3654 = vadd.f32 %v3653, %v3652
    %vm3655 = vcmp.ge.f32.partialorder %v3654, 0.16666667
    %v3656 = vsel %vm3655, %v3447, %v3443
    %v3657 = vsel %vm3655, %v3472, %v3468
    %vm3658 = vcmp.ge.f32.partialorder %v3654, 0.33333334
    %v3659 = vsel %vm3658, %v3451, %v3656
    %v3660 = vsel %vm3658, %v3476, %v3657
    %vm3661 = vcmp.ge.f32.partialorder %v3654, 0.5
    %v3662 = vsel %vm3661, %v3455, %v3659
    %v3663 = vsel %vm3661, %v3480, %v3660
    %vm3664 = vcmp.ge.f32.partialorder %v3654, 0.6666667
    %v3665 = vsel %vm3664, %v3459, %v3662
    %v3666 = vsel %vm3664, %v3484, %v3663
    %vm3667 = vcmp.ge.f32.partialorder %v3654, 0.8333333
    %v3668 = vsel %vm3667, %v3463, %v3665
    %v3669 = vsel %vm3667, %v3488, %v3666
    %v3670 = vmul.f32 %v3668, %v3654
    %v3671 = vadd.f32 %v3670, %v3669
    %vm3672 = vcmp.ge.f32.partialorder %v3671, 0.16666667
    %v3673 = vsel %vm3672, %v3447, %v3443
    %v3674 = vsel %vm3672, %v3472, %v3468
    %vm3675 = vcmp.ge.f32.partialorder %v3671, 0.33333334
    %v3676 = vsel %vm3675, %v3451, %v3673
    %v3677 = vsel %vm3675, %v3476, %v3674
    %vm3678 = vcmp.ge.f32.partialorder %v3671, 0.5
    %v3679 = vsel %vm3678, %v3455, %v3676
    %v3680 = vsel %vm3678, %v3480, %v3677
    %vm3681 = vcmp.ge.f32.partialorder %v3671, 0.6666667
    %v3682 = vsel %vm3681, %v3459, %v3679
    %v3683 = vsel %vm3681, %v3484, %v3680
    %vm3684 = vcmp.ge.f32.partialorder %v3671, 0.8333333
    %v3685 = vsel %vm3684, %v3463, %v3682
    %v3686 = vsel %vm3684, %v3488, %v3683
    %v3687 = vmul.f32 %v3685, %v3671
    %v3688 = vadd.f32 %v3687, %v3686
    %vm3689 = vcmp.ge.f32.partialorder %v3688, 0.16666667
    %v3690 = vsel %vm3689, %v3447, %v3443
    %v3691 = vsel %vm3689, %v3472, %v3468
    %vm3692 = vcmp.ge.f32.partialorder %v3688, 0.33333334
    %v3693 = vsel %vm3692, %v3451, %v3690
    %v3694 = vsel %vm3692, %v3476, %v3691
    %vm3695 = vcmp.ge.f32.partialorder %v3688, 0.5
    %v3696 = vsel %vm3695, %v3455, %v3693
    %v3697 = vsel %vm3695, %v3480, %v3694
    %vm3698 = vcmp.ge.f32.partialorder %v3688, 0.6666667
    %v3699 = vsel %vm3698, %v3459, %v3696
    %v3700 = vsel %vm3698, %v3484, %v3697
    %vm3701 = vcmp.ge.f32.partialorder %v3688, 0.8333333
    %v3702 = vsel %vm3701, %v3463, %v3699
    %v3703 = vsel %vm3701, %v3488, %v3700
    %v3704 = vmul.f32 %v3702, %v3688
    %v3705 = vadd.f32 %v3704, %v3703
    %vm3706 = vcmp.ge.f32.partialorder %v3705, 0.16666667
    %v3707 = vsel %vm3706, %v3447, %v3443
    %v3708 = vsel %vm3706, %v3472, %v3468
    %vm3709 = vcmp.ge.f32.partialorder %v3705, 0.33333334
    %v3710 = vsel %vm3709, %v3451, %v3707
    %v3711 = vsel %vm3709, %v3476, %v3708
    %vm3712 = vcmp.ge.f32.partialorder %v3705, 0.5
    %v3713 = vsel %vm3712, %v3455, %v3710
    %v3714 = vsel %vm3712, %v3480, %v3711
    %vm3715 = vcmp.ge.f32.partialorder %v3705, 0.6666667
    %v3716 = vsel %vm3715, %v3459, %v3713
    %v3717 = vsel %vm3715, %v3484, %v3714
    %vm3718 = vcmp.ge.f32.partialorder %v3705, 0.8333333
    %v3719 = vsel %vm3718, %v3463, %v3716
    %v3720 = vsel %vm3718, %v3488, %v3717
    %v3721 = vmul.f32 %v3719, %v3705
    %v3722 = vadd.f32 %v3721, %v3720
    %vm3723 = vcmp.ge.f32.partialorder %v3722, 0.16666667
    %v3724 = vsel %vm3723, %v3447, %v3443
    %v3725 = vsel %vm3723, %v3472, %v3468
    %vm3726 = vcmp.ge.f32.partialorder %v3722, 0.33333334
    %v3727 = vsel %vm3726, %v3451, %v3724
    %v3728 = vsel %vm3726, %v3476, %v3725
    %vm3729 = vcmp.ge.f32.partialorder %v3722, 0.5
    %v3730 = vsel %vm3729, %v3455, %v3727
    %v3731 = vsel %vm3729, %v3480, %v3728
    %vm3732 = vcmp.ge.f32.partialorder %v3722, 0.6666667
    %v3733 = vsel %vm3732, %v3459, %v3730
    %v3734 = vsel %vm3732, %v3484, %v3731
    %vm3735 = vcmp.ge.f32.partialorder %v3722, 0.8333333
    %v3736 = vsel %vm3735, %v3463, %v3733
    %v3737 = vsel %vm3735, %v3488, %v3734
    %v3738 = vmul.f32 %v3736, %v3722
    %v3739 = vadd.f32 %v3738, %v3737
    %vm3740 = vcmp.ge.f32.partialorder %v3739, 0.16666667
    %v3741 = vsel %vm3740, %v3447, %v3443
    %v3742 = vsel %vm3740, %v3472, %v3468
    %vm3743 = vcmp.ge.f32.partialorder %v3739, 0.33333334
    %v3744 = vsel %vm3743, %v3451, %v3741
    %v3745 = vsel %vm3743, %v3476, %v3742
    %vm3746 = vcmp.ge.f32.partialorder %v3739, 0.5
    %v3747 = vsel %vm3746, %v3455, %v3744
    %v3748 = vsel %vm3746, %v3480, %v3745
    %vm3749 = vcmp.ge.f32.partialorder %v3739, 0.6666667
    %v3750 = vsel %vm3749, %v3459, %v3747
    %v3751 = vsel %vm3749, %v3484, %v3748
    %vm3752 = vcmp.ge.f32.partialorder %v3739, 0.8333333
    %v3753 = vsel %vm3752, %v3463, %v3750
    %v3754 = vsel %vm3752, %v3488, %v3751
    %v3755 = vmul.f32 %v3753, %v3739
    %v3756 = vadd.f32 %v3755, %v3754
    %vm3757 = vcmp.ge.f32.partialorder %v3756, 0.16666667
    %v3758 = vsel %vm3757, %v3447, %v3443
    %v3759 = vsel %vm3757, %v3472, %v3468
    %vm3760 = vcmp.ge.f32.partialorder %v3756, 0.33333334
    %v3761 = vsel %vm3760, %v3451, %v3758
    %v3762 = vsel %vm3760, %v3476, %v3759
    %vm3763 = vcmp.ge.f32.partialorder %v3756, 0.5
    %v3764 = vsel %vm3763, %v3455, %v3761
    %v3765 = vsel %vm3763, %v3480, %v3762
    %vm3766 = vcmp.ge.f32.partialorder %v3756, 0.6666667
    %v3767 = vsel %vm3766, %v3459, %v3764
    %v3768 = vsel %vm3766, %v3484, %v3765
    %vm3769 = vcmp.ge.f32.partialorder %v3756, 0.8333333
    %v3770 = vsel %vm3769, %v3463, %v3767
    %v3771 = vsel %vm3769, %v3488, %v3768
    %v3772 = vmul.f32 %v3770, %v3756
    %v3773 = vadd.f32 %v3772, %v3771
    %vm3774 = vcmp.ge.f32.partialorder %v3773, 0.16666667
    %v3775 = vsel %vm3774, %v3447, %v3443
    %v3776 = vsel %vm3774, %v3472, %v3468
    %vm3777 = vcmp.ge.f32.partialorder %v3773, 0.33333334
    %v3778 = vsel %vm3777, %v3451, %v3775
    %v3779 = vsel %vm3777, %v3476, %v3776
    %vm3780 = vcmp.ge.f32.partialorder %v3773, 0.5
    %v3781 = vsel %vm3780, %v3455, %v3778
    %v3782 = vsel %vm3780, %v3480, %v3779
    %vm3783 = vcmp.ge.f32.partialorder %v3773, 0.6666667
    %v3784 = vsel %vm3783, %v3459, %v3781
    %v3785 = vsel %vm3783, %v3484, %v3782
    %vm3786 = vcmp.ge.f32.partialorder %v3773, 0.8333333
    %v3787 = vsel %vm3786, %v3463, %v3784
    %v3788 = vsel %vm3786, %v3488, %v3785
    %v3789 = vmul.f32 %v3787, %v3773
    %v3790 = vadd.f32 %v3789, %v3788
    %vm3791 = vcmp.ge.f32.partialorder %v3790, 0.16666667
    %v3792 = vsel %vm3791, %v3447, %v3443
    %v3793 = vsel %vm3791, %v3472, %v3468
    %vm3794 = vcmp.ge.f32.partialorder %v3790, 0.33333334
    %v3795 = vsel %vm3794, %v3451, %v3792
    %v3796 = vsel %vm3794, %v3476, %v3793
    %vm3797 = vcmp.ge.f32.partialorder %v3790, 0.5
    %v3798 = vsel %vm3797, %v3455, %v3795
    %v3799 = vsel %vm3797, %v3480, %v3796
    %vm3800 = vcmp.ge.f32.partialorder %v3790, 0.6666667
    %v3801 = vsel %vm3800, %v3459, %v3798
    %v3802 = vsel %vm3800, %v3484, %v3799
    %vm3803 = vcmp.ge.f32.partialorder %v3790, 0.8333333
    %v3804 = vsel %vm3803, %v3463, %v3801
    %v3805 = vsel %vm3803, %v3488, %v3802
    %v3806 = vmul.f32 %v3804, %v3790
    %v3807 = vadd.f32 %v3806, %v3805
    %vm3808 = vcmp.ge.f32.partialorder %v3807, 0.16666667
    %v3809 = vsel %vm3808, %v3447, %v3443
    %v3810 = vsel %vm3808, %v3472, %v3468
    %vm3811 = vcmp.ge.f32.partialorder %v3807, 0.33333334
    %v3812 = vsel %vm3811, %v3451, %v3809
    %v3813 = vsel %vm3811, %v3476, %v3810
    %vm3814 = vcmp.ge.f32.partialorder %v3807, 0.5
    %v3815 = vsel %vm3814, %v3455, %v3812
    %v3816 = vsel %vm3814, %v3480, %v3813
    %vm3817 = vcmp.ge.f32.partialorder %v3807, 0.6666667
    %v3818 = vsel %vm3817, %v3459, %v3815
    %v3819 = vsel %vm3817, %v3484, %v3816
    %vm3820 = vcmp.ge.f32.partialorder %v3807, 0.8333333
    %v3821 = vsel %vm3820, %v3463, %v3818
    %v3822 = vsel %vm3820, %v3488, %v3819
    %v3823 = vmul.f32 %v3821, %v3807
    %v3824 = vadd.f32 %v3823, %v3822
    %vm3825 = vcmp.ge.f32.partialorder %v3824, 0.16666667
    %v3826 = vsel %vm3825, %v3447, %v3443
    %v3827 = vsel %vm3825, %v3472, %v3468
    %vm3828 = vcmp.ge.f32.partialorder %v3824, 0.33333334
    %v3829 = vsel %vm3828, %v3451, %v3826
    %v3830 = vsel %vm3828, %v3476, %v3827
    %vm3831 = vcmp.ge.f32.partialorder %v3824, 0.5
    %v3832 = vsel %vm3831, %v3455, %v3829
    %v3833 = vsel %vm3831, %v3480, %v3830
    %vm3834 = vcmp.ge.f32.partialorder %v3824, 0.6666667
    %v3835 = vsel %vm3834, %v3459, %v3832
    %v3836 = vsel %vm3834, %v3484, %v3833
    %vm3837 = vcmp.ge.f32.partialorder %v3824, 0.8333333
    %v3838 = vsel %vm3837, %v3463, %v3835
    %v3839 = vsel %vm3837, %v3488, %v3836
    %v3840 = vmul.f32 %v3838, %v3824
    %v3841 = vadd.f32 %v3840, %v3839
    %vm3842 = vcmp.ge.f32.partialorder %v3841, 0.16666667
    %v3843 = vsel %vm3842, %v3447, %v3443
    %v3844 = vsel %vm3842, %v3472, %v3468
    %vm3845 = vcmp.ge.f32.partialorder %v3841, 0.33333334
    %v3846 = vsel %vm3845, %v3451, %v3843
    %v3847 = vsel %vm3845, %v3476, %v3844
    %vm3848 = vcmp.ge.f32.partialorder %v3841, 0.5
    %v3849 = vsel %vm3848, %v3455, %v3846
    %v3850 = vsel %vm3848, %v3480, %v3847
    %vm3851 = vcmp.ge.f32.partialorder %v3841, 0.6666667
    %v3852 = vsel %vm3851, %v3459, %v3849
    %v3853 = vsel %vm3851, %v3484, %v3850
    %vm3854 = vcmp.ge.f32.partialorder %v3841, 0.8333333
    %v3855 = vsel %vm3854, %v3463, %v3852
    %v3856 = vsel %vm3854, %v3488, %v3853
    %v3857 = vmul.f32 %v3855, %v3841
    %v3858 = vadd.f32 %v3857, %v3856
    %vm3859 = vcmp.ge.f32.partialorder %v3858, 0.16666667
    %v3860 = vsel %vm3859, %v3447, %v3443
    %v3861 = vsel %vm3859, %v3472, %v3468
    %vm3862 = vcmp.ge.f32.partialorder %v3858, 0.33333334
    %v3863 = vsel %vm3862, %v3451, %v3860
    %v3864 = vsel %vm3862, %v3476, %v3861
    %vm3865 = vcmp.ge.f32.partialorder %v3858, 0.5
    %v3866 = vsel %vm3865, %v3455, %v3863
    %v3867 = vsel %vm3865, %v3480, %v3864
    %vm3868 = vcmp.ge.f32.partialorder %v3858, 0.6666667
    %v3869 = vsel %vm3868, %v3459, %v3866
    %v3870 = vsel %vm3868, %v3484, %v3867
    %vm3871 = vcmp.ge.f32.partialorder %v3858, 0.8333333
    %v3872 = vsel %vm3871, %v3463, %v3869
    %v3873 = vsel %vm3871, %v3488, %v3870
    %v3874 = vmul.f32 %v3872, %v3858
    %v3875 = vadd.f32 %v3874, %v3873
    %vm3876 = vcmp.ge.f32.partialorder %v3875, 0.16666667
    %v3877 = vsel %vm3876, %v3447, %v3443
    %v3878 = vsel %vm3876, %v3472, %v3468
    %vm3879 = vcmp.ge.f32.partialorder %v3875, 0.33333334
    %v3880 = vsel %vm3879, %v3451, %v3877
    %v3881 = vsel %vm3879, %v3476, %v3878
    %vm3882 = vcmp.ge.f32.partialorder %v3875, 0.5
    %v3883 = vsel %vm3882, %v3455, %v3880
    %v3884 = vsel %vm3882, %v3480, %v3881
    %vm3885 = vcmp.ge.f32.partialorder %v3875, 0.6666667
    %v3886 = vsel %vm3885, %v3459, %v3883
    %v3887 = vsel %vm3885, %v3484, %v3884
    %vm3888 = vcmp.ge.f32.partialorder %v3875, 0.8333333
    %v3889 = vsel %vm3888, %v3463, %v3886
    %v3890 = vsel %vm3888, %v3488, %v3887
    %v3891 = vmul.f32 %v3889, %v3875
    %v3892 = vadd.f32 %v3891, %v3890
    %vm3893 = vcmp.ge.f32.partialorder %v3892, 0.16666667
    %v3894 = vsel %vm3893, %v3447, %v3443
    %v3895 = vsel %vm3893, %v3472, %v3468
    %vm3896 = vcmp.ge.f32.partialorder %v3892, 0.33333334
    %v3897 = vsel %vm3896, %v3451, %v3894
    %v3898 = vsel %vm3896, %v3476, %v3895
    %vm3899 = vcmp.ge.f32.partialorder %v3892, 0.5
    %v3900 = vsel %vm3899, %v3455, %v3897
    %v3901 = vsel %vm3899, %v3480, %v3898
    %vm3902 = vcmp.ge.f32.partialorder %v3892, 0.6666667
    %v3903 = vsel %vm3902, %v3459, %v3900
    %v3904 = vsel %vm3902, %v3484, %v3901
    %vm3905 = vcmp.ge.f32.partialorder %v3892, 0.8333333
    %v3906 = vsel %vm3905, %v3463, %v3903
    %v3907 = vsel %vm3905, %v3488, %v3904
    %v3908 = vmul.f32 %v3906, %v3892
    %v3909 = vadd.f32 %v3908, %v3907
    %vm3910 = vcmp.ge.f32.partialorder %v3909, 0.16666667
    %v3911 = vsel %vm3910, %v3447, %v3443
    %v3912 = vsel %vm3910, %v3472, %v3468
    %vm3913 = vcmp.ge.f32.partialorder %v3909, 0.33333334
    %v3914 = vsel %vm3913, %v3451, %v3911
    %v3915 = vsel %vm3913, %v3476, %v3912
    %vm3916 = vcmp.ge.f32.partialorder %v3909, 0.5
    %v3917 = vsel %vm3916, %v3455, %v3914
    %v3918 = vsel %vm3916, %v3480, %v3915
    %vm3919 = vcmp.ge.f32.partialorder %v3909, 0.6666667
    %v3920 = vsel %vm3919, %v3459, %v3917
    %v3921 = vsel %vm3919, %v3484, %v3918
    %vm3922 = vcmp.ge.f32.partialorder %v3909, 0.8333333
    %v3923 = vsel %vm3922, %v3463, %v3920
    %v3924 = vsel %vm3922, %v3488, %v3921
    %v3925 = vmul.f32 %v3923, %v3909
    %v3926 = vadd.f32 %v3925, %v3924
    %vm3927 = vcmp.ge.f32.partialorder %v3926, 0.16666667
    %v3928 = vsel %vm3927, %v3447, %v3443
    %v3929 = vsel %vm3927, %v3472, %v3468
    %vm3930 = vcmp.ge.f32.partialorder %v3926, 0.33333334
    %v3931 = vsel %vm3930, %v3451, %v3928
    %v3932 = vsel %vm3930, %v3476, %v3929
    %vm3933 = vcmp.ge.f32.partialorder %v3926, 0.5
    %v3934 = vsel %vm3933, %v3455, %v3931
    %v3935 = vsel %vm3933, %v3480, %v3932
    %vm3936 = vcmp.ge.f32.partialorder %v3926, 0.6666667
    %v3937 = vsel %vm3936, %v3459, %v3934
    %v3938 = vsel %vm3936, %v3484, %v3935
    %vm3939 = vcmp.ge.f32.partialorder %v3926, 0.8333333
    %v3940 = vsel %vm3939, %v3463, %v3937
    %v3941 = vsel %vm3939, %v3488, %v3938
    %v3942 = vmul.f32 %v3940, %v3926
    %v3943 = vadd.f32 %v3942, %v3941
    %vm3944 = vcmp.ge.f32.partialorder %v3943, 0.16666667
    %v3945 = vsel %vm3944, %v3447, %v3443
    %v3946 = vsel %vm3944, %v3472, %v3468
    %vm3947 = vcmp.ge.f32.partialorder %v3943, 0.33333334
    %v3948 = vsel %vm3947, %v3451, %v3945
    %v3949 = vsel %vm3947, %v3476, %v3946
    %vm3950 = vcmp.ge.f32.partialorder %v3943, 0.5
    %v3951 = vsel %vm3950, %v3455, %v3948
    %v3952 = vsel %vm3950, %v3480, %v3949
    %vm3953 = vcmp.ge.f32.partialorder %v3943, 0.6666667
    %v3954 = vsel %vm3953, %v3459, %v3951
    %v3955 = vsel %vm3953, %v3484, %v3952
    %vm3956 = vcmp.ge.f32.partialorder %v3943, 0.8333333
    %v3957 = vsel %vm3956, %v3463, %v3954
    %v3958 = vsel %vm3956, %v3488, %v3955
    %v3959 = vmul.f32 %v3957, %v3943
    %v3960 = vadd.f32 %v3959, %v3958
    %vm3961 = vcmp.ge.f32.partialorder %v3960, 0.16666667
    %v3962 = vsel %vm3961, %v3447, %v3443
    %v3963 = vsel %vm3961, %v3472, %v3468
    %vm3964 = vcmp.ge.f32.partialorder %v3960, 0.33333334
    %v3965 = vsel %vm3964, %v3451, %v3962
    %v3966 = vsel %vm3964, %v3476, %v3963
    %vm3967 = vcmp.ge.f32.partialorder %v3960, 0.5
    %v3968 = vsel %vm3967, %v3455, %v3965
    %v3969 = vsel %vm3967, %v3480, %v3966
    %vm3970 = vcmp.ge.f32.partialorder %v3960, 0.6666667
    %v3971 = vsel %vm3970, %v3459, %v3968
    %v3972 = vsel %vm3970, %v3484, %v3969
    %vm3973 = vcmp.ge.f32.partialorder %v3960, 0.8333333
    %v3974 = vsel %vm3973, %v3463, %v3971
    %v3975 = vsel %vm3973, %v3488, %v3972
    %v3976 = vmul.f32 %v3974, %v3960
    %v3977 = vadd.f32 %v3976, %v3975
    %vm3978 = vcmp.ge.f32.partialorder %v3977, 0.16666667
    %v3979 = vsel %vm3978, %v3447, %v3443
    %v3980 = vsel %vm3978, %v3472, %v3468
    %vm3981 = vcmp.ge.f32.partialorder %v3977, 0.33333334
    %v3982 = vsel %vm3981, %v3451, %v3979
    %v3983 = vsel %vm3981, %v3476, %v3980
    %vm3984 = vcmp.ge.f32.partialorder %v3977, 0.5
    %v3985 = vsel %vm3984, %v3455, %v3982
    %v3986 = vsel %vm3984, %v3480, %v3983
    %vm3987 = vcmp.ge.f32.partialorder %v3977, 0.6666667
    %v3988 = vsel %vm3987, %v3459, %v3985
    %v3989 = vsel %vm3987, %v3484, %v3986
    %vm3990 = vcmp.ge.f32.partialorder %v3977, 0.8333333
    %v3991 = vsel %vm3990, %v3463, %v3988
    %v3992 = vsel %vm3990, %v3488, %v3989
    %v3993 = vmul.f32 %v3991, %v3977
    %v3994 = vadd.f32 %v3993, %v3992
    %vm3995 = vcmp.ge.f32.partialorder %v3994, 0.16666667
    %v3996 = vsel %vm3995, %v3447, %v3443
    %v3997 = vsel %vm3995, %v3472, %v3468
    %vm3998 = vcmp.ge.f32.partialorder %v3994, 0.33333334
    %v3999 = vsel %vm3998, %v3451, %v3996
    %v4000 = vsel %vm3998, %v3476, %v3997
    %vm4001 = vcmp.ge.f32.partialorder %v3994, 0.5
    %v4002 = vsel %vm4001, %v3455, %v3999
    %v4003 = vsel %vm4001, %v3480, %v4000
    %vm4004 = vcmp.ge.f32.partialorder %v3994, 0.6666667
    %v4005 = vsel %vm4004, %v3459, %v4002
    %v4006 = vsel %vm4004, %v3484, %v4003
    %vm4007 = vcmp.ge.f32.partialorder %v3994, 0.8333333
    %v4008 = vsel %vm4007, %v3463, %v4005
    %v4009 = vsel %vm4007, %v3488, %v4006
    %v4010 = vmul.f32 %v4008, %v3994
    %v4011 = vadd.f32 %v4010, %v4009
    %vm4012 = vcmp.ge.f32.partialorder %v4011, 0.16666667
    %v4013 = vsel %vm4012, %v3447, %v3443
    %v4014 = vsel %vm4012, %v3472, %v3468
    %vm4015 = vcmp.ge.f32.partialorder %v4011, 0.33333334
    %v4016 = vsel %vm4015, %v3451, %v4013
    %v4017 = vsel %vm4015, %v3476, %v4014
    %vm4018 = vcmp.ge.f32.partialorder %v4011, 0.5
    %v4019 = vsel %vm4018, %v3455, %v4016
    %v4020 = vsel %vm4018, %v3480, %v4017
    %vm4021 = vcmp.ge.f32.partialorder %v4011, 0.6666667
    %v4022 = vsel %vm4021, %v3459, %v4019
    %v4023 = vsel %vm4021, %v3484, %v4020
    %vm4024 = vcmp.ge.f32.partialorder %v4011, 0.8333333
    %v4025 = vsel %vm4024, %v3463, %v4022
    %v4026 = vsel %vm4024, %v3488, %v4023
    %v4027 = vmul.f32 %v4025, %v4011
    %v4028 = vadd.f32 %v4027, %v4026
    %vm4029 = vcmp.ge.f32.partialorder %v4028, 0.16666667
    %v4030 = vsel %vm4029, %v3447, %v3443
    %v4031 = vsel %vm4029, %v3472, %v3468
    %vm4032 = vcmp.ge.f32.partialorder %v4028, 0.33333334
    %v4033 = vsel %vm4032, %v3451, %v4030
    %v4034 = vsel %vm4032, %v3476, %v4031
    %vm4035 = vcmp.ge.f32.partialorder %v4028, 0.5
    %v4036 = vsel %vm4035, %v3455, %v4033
    %v4037 = vsel %vm4035, %v3480, %v4034
    %vm4038 = vcmp.ge.f32.partialorder %v4028, 0.6666667
    %v4039 = vsel %vm4038, %v3459, %v4036
    %v4040 = vsel %vm4038, %v3484, %v4037
    %vm4041 = vcmp.ge.f32.partialorder %v4028, 0.8333333
    %v4042 = vsel %vm4041, %v3463, %v4039
    %v4043 = vsel %vm4041, %v3488, %v4040
    %v4044 = vmul.f32 %v4042, %v4028
    %v4045 = vadd.f32 %v4044, %v4043
    %vm4046 = vcmp.ge.f32.partialorder %v4045, 0.16666667
    %v4047 = vsel %vm4046, %v3447, %v3443
    %v4048 = vsel %vm4046, %v3472, %v3468
    %vm4049 = vcmp.ge.f32.partialorder %v4045, 0.33333334
    %v4050 = vsel %vm4049, %v3451, %v4047
    %v4051 = vsel %vm4049, %v3476, %v4048
    %vm4052 = vcmp.ge.f32.partialorder %v4045, 0.5
    %v4053 = vsel %vm4052, %v3455, %v4050
    %v4054 = vsel %vm4052, %v3480, %v4051
    %vm4055 = vcmp.ge.f32.partialorder %v4045, 0.6666667
    %v4056 = vsel %vm4055, %v3459, %v4053
    %v4057 = vsel %vm4055, %v3484, %v4054
    %vm4058 = vcmp.ge.f32.partialorder %v4045, 0.8333333
    %v4059 = vsel %vm4058, %v3463, %v4056
    %v4060 = vsel %vm4058, %v3488, %v4057
    %v4061 = vmul.f32 %v4059, %v4045
    %v4062 = vadd.f32 %v4061, %v4060
    %vm4063 = vcmp.ge.f32.partialorder %v4062, 0.16666667
    %v4064 = vsel %vm4063, %v3447, %v3443
    %v4065 = vsel %vm4063, %v3472, %v3468
    %vm4066 = vcmp.ge.f32.partialorder %v4062, 0.33333334
    %v4067 = vsel %vm4066, %v3451, %v4064
    %v4068 = vsel %vm4066, %v3476, %v4065
    %vm4069 = vcmp.ge.f32.partialorder %v4062, 0.5
    %v4070 = vsel %vm4069, %v3455, %v4067
    %v4071 = vsel %vm4069, %v3480, %v4068
    %vm4072 = vcmp.ge.f32.partialorder %v4062, 0.6666667
    %v4073 = vsel %vm4072, %v3459, %v4070
    %v4074 = vsel %vm4072, %v3484, %v4071
    %vm4075 = vcmp.ge.f32.partialorder %v4062, 0.8333333
    %v4076 = vsel %vm4075, %v3463, %v4073
    %v4077 = vsel %vm4075, %v3488, %v4074
    %v4078 = vmul.f32 %v4076, %v4062
    %v4079 = vadd.f32 %v4078, %v4077
    %vm4080 = vcmp.ge.f32.partialorder %v4079, 0.16666667
    %v4081 = vsel %vm4080, %v3447, %v3443
    %v4082 = vsel %vm4080, %v3472, %v3468
    %vm4083 = vcmp.ge.f32.partialorder %v4079, 0.33333334
    %v4084 = vsel %vm4083, %v3451, %v4081
    %v4085 = vsel %vm4083, %v3476, %v4082
    %vm4086 = vcmp.ge.f32.partialorder %v4079, 0.5
    %v4087 = vsel %vm4086, %v3455, %v4084
    %v4088 = vsel %vm4086, %v3480, %v4085
    %vm4089 = vcmp.ge.f32.partialorder %v4079, 0.6666667
    %v4090 = vsel %vm4089, %v3459, %v4087
    %v4091 = vsel %vm4089, %v3484, %v4088
    %vm4092 = vcmp.ge.f32.partialorder %v4079, 0.8333333
    %v4093 = vsel %vm4092, %v3463, %v4090
    %v4094 = vsel %vm4092, %v3488, %v4091
    %v4095 = vmul.f32 %v4093, %v4079
    %v4096 = vadd.f32 %v4095, %v4094
    %vm4097 = vcmp.ge.f32.partialorder %v4096, 0.16666667
    %v4098 = vsel %vm4097, %v3447, %v3443
    %v4099 = vsel %vm4097, %v3472, %v3468
    %vm4100 = vcmp.ge.f32.partialorder %v4096, 0.33333334
    %v4101 = vsel %vm4100, %v3451, %v4098
    %v4102 = vsel %vm4100, %v3476, %v4099
    %vm4103 = vcmp.ge.f32.partialorder %v4096, 0.5
    %v4104 = vsel %vm4103, %v3455, %v4101
    %v4105 = vsel %vm4103, %v3480, %v4102
    %vm4106 = vcmp.ge.f32.partialorder %v4096, 0.6666667
    %v4107 = vsel %vm4106, %v3459, %v4104
    %v4108 = vsel %vm4106, %v3484, %v4105
    %vm4109 = vcmp.ge.f32.partialorder %v4096, 0.8333333
    %v4110 = vsel %vm4109, %v3463, %v4107
    %v4111 = vsel %vm4109, %v3488, %v4108
    %v4112 = vmul.f32 %v4110, %v4096
    %v4113 = vadd.f32 %v4112, %v4111
    %vm4114 = vcmp.ge.f32.partialorder %v4113, 0.16666667
    %v4115 = vsel %vm4114, %v3447, %v3443
    %v4116 = vsel %vm4114, %v3472, %v3468
    %vm4117 = vcmp.ge.f32.partialorder %v4113, 0.33333334
    %v4118 = vsel %vm4117, %v3451, %v4115
    %v4119 = vsel %vm4117, %v3476, %v4116
    %vm4120 = vcmp.ge.f32.partialorder %v4113, 0.5
    %v4121 = vsel %vm4120, %v3455, %v4118
    %v4122 = vsel %vm4120, %v3480, %v4119
    %vm4123 = vcmp.ge.f32.partialorder %v4113, 0.6666667
    %v4124 = vsel %vm4123, %v3459, %v4121
    %v4125 = vsel %vm4123, %v3484, %v4122
    %vm4126 = vcmp.ge.f32.partialorder %v4113, 0.8333333
    %v4127 = vsel %vm4126, %v3463, %v4124
    %v4128 = vsel %vm4126, %v3488, %v4125
    %v4129 = vmul.f32 %v4127, %v4113
    %v4130 = vadd.f32 %v4129, %v4128
    %vm4131 = vcmp.ge.f32.partialorder %v4130, 0.16666667
    %v4132 = vsel %vm4131, %v3447, %v3443
    %v4133 = vsel %vm4131, %v3472, %v3468
    %vm4134 = vcmp.ge.f32.partialorder %v4130, 0.33333334
    %v4135 = vsel %vm4134, %v3451, %v4132
    %v4136 = vsel %vm4134, %v3476, %v4133
    %vm4137 = vcmp.ge.f32.partialorder %v4130, 0.5
    %v4138 = vsel %vm4137, %v3455, %v4135
    %v4139 = vsel %vm4137, %v3480, %v4136
    %vm4140 = vcmp.ge.f32.partialorder %v4130, 0.6666667
    %v4141 = vsel %vm4140, %v3459, %v4138
    %v4142 = vsel %vm4140, %v3484, %v4139
    %vm4143 = vcmp.ge.f32.partialorder %v4130, 0.8333333
    %v4144 = vsel %vm4143, %v3463, %v4141
    %v4145 = vsel %vm4143, %v3488, %v4142
    %v4146 = vmul.f32 %v4144, %v4130
    %v4147 = vadd.f32 %v4146, %v4145
    %vm4148 = vcmp.ge.f32.partialorder %v4147, 0.16666667
    %v4149 = vsel %vm4148, %v3447, %v3443
    %v4150 = vsel %vm4148, %v3472, %v3468
    %vm4151 = vcmp.ge.f32.partialorder %v4147, 0.33333334
    %v4152 = vsel %vm4151, %v3451, %v4149
    %v4153 = vsel %vm4151, %v3476, %v4150
    %vm4154 = vcmp.ge.f32.partialorder %v4147, 0.5
    %v4155 = vsel %vm4154, %v3455, %v4152
    %v4156 = vsel %vm4154, %v3480, %v4153
    %vm4157 = vcmp.ge.f32.partialorder %v4147, 0.6666667
    %v4158 = vsel %vm4157, %v3459, %v4155
    %v4159 = vsel %vm4157, %v3484, %v4156
    %vm4160 = vcmp.ge.f32.partialorder %v4147, 0.8333333
    %v4161 = vsel %vm4160, %v3463, %v4158
    %v4162 = vsel %vm4160, %v3488, %v4159
    %v4163 = vmul.f32 %v4161, %v4147
    %v4164 = vadd.f32 %v4163, %v4162
    %vm4165 = vcmp.ge.f32.partialorder %v4164, 0.16666667
    %v4166 = vsel %vm4165, %v3447, %v3443
    %v4167 = vsel %vm4165, %v3472, %v3468
    %vm4168 = vcmp.ge.f32.partialorder %v4164, 0.33333334
    %v4169 = vsel %vm4168, %v3451, %v4166
    %v4170 = vsel %vm4168, %v3476, %v4167
    %vm4171 = vcmp.ge.f32.partialorder %v4164, 0.5
    %v4172 = vsel %vm4171, %v3455, %v4169
    %v4173 = vsel %vm4171, %v3480, %v4170
    %vm4174 = vcmp.ge.f32.partialorder %v4164, 0.6666667
    %v4175 = vsel %vm4174, %v3459, %v4172
    %v4176 = vsel %vm4174, %v3484, %v4173
    %vm4177 = vcmp.ge.f32.partialorder %v4164, 0.8333333
    %v4178 = vsel %vm4177, %v3463, %v4175
    %v4179 = vsel %vm4177, %v3488, %v4176
    %v4180 = vmul.f32 %v4178, %v4164
    %v4181 = vadd.f32 %v4180, %v4179
    %vm4182 = vcmp.ge.f32.partialorder %v4181, 0.16666667
    %v4183 = vsel %vm4182, %v3447, %v3443
    %v4184 = vsel %vm4182, %v3472, %v3468
    %vm4185 = vcmp.ge.f32.partialorder %v4181, 0.33333334
    %v4186 = vsel %vm4185, %v3451, %v4183
    %v4187 = vsel %vm4185, %v3476, %v4184
    %vm4188 = vcmp.ge.f32.partialorder %v4181, 0.5
    %v4189 = vsel %vm4188, %v3455, %v4186
    %v4190 = vsel %vm4188, %v3480, %v4187
    %vm4191 = vcmp.ge.f32.partialorder %v4181, 0.6666667
    %v4192 = vsel %vm4191, %v3459, %v4189
    %v4193 = vsel %vm4191, %v3484, %v4190
    %vm4194 = vcmp.ge.f32.partialorder %v4181, 0.8333333
    %v4195 = vsel %vm4194, %v3463, %v4192
    %v4196 = vsel %vm4194, %v3488, %v4193
    %v4197 = vmul.f32 %v4195, %v4181
    %v4198 = vadd.f32 %v4197, %v4196
    %vm4199 = vcmp.ge.f32.partialorder %v4198, 0.16666667
    %v4200 = vsel %vm4199, %v3447, %v3443
    %v4201 = vsel %vm4199, %v3472, %v3468
    %vm4202 = vcmp.ge.f32.partialorder %v4198, 0.33333334
    %v4203 = vsel %vm4202, %v3451, %v4200
    %v4204 = vsel %vm4202, %v3476, %v4201
    %vm4205 = vcmp.ge.f32.partialorder %v4198, 0.5
    %v4206 = vsel %vm4205, %v3455, %v4203
    %v4207 = vsel %vm4205, %v3480, %v4204
    %vm4208 = vcmp.ge.f32.partialorder %v4198, 0.6666667
    %v4209 = vsel %vm4208, %v3459, %v4206
    %v4210 = vsel %vm4208, %v3484, %v4207
    %vm4211 = vcmp.ge.f32.partialorder %v4198, 0.8333333
    %v4212 = vsel %vm4211, %v3463, %v4209
    %v4213 = vsel %vm4211, %v3488, %v4210
    %v4214 = vmul.f32 %v4212, %v4198
    %v4215 = vadd.f32 %v4214, %v4213
    %vm4216 = vcmp.ge.f32.partialorder %v4215, 0.16666667
    %v4217 = vsel %vm4216, %v3447, %v3443
    %v4218 = vsel %vm4216, %v3472, %v3468
    %vm4219 = vcmp.ge.f32.partialorder %v4215, 0.33333334
    %v4220 = vsel %vm4219, %v3451, %v4217
    %v4221 = vsel %vm4219, %v3476, %v4218
    %vm4222 = vcmp.ge.f32.partialorder %v4215, 0.5
    %v4223 = vsel %vm4222, %v3455, %v4220
    %v4224 = vsel %vm4222, %v3480, %v4221
    %vm4225 = vcmp.ge.f32.partialorder %v4215, 0.6666667
    %v4226 = vsel %vm4225, %v3459, %v4223
    %v4227 = vsel %vm4225, %v3484, %v4224
    %vm4228 = vcmp.ge.f32.partialorder %v4215, 0.8333333
    %v4229 = vsel %vm4228, %v3463, %v4226
    %v4230 = vsel %vm4228, %v3488, %v4227
    %v4231 = vmul.f32 %v4229, %v4215
    %v4232 = vadd.f32 %v4231, %v4230
    %vm4233 = vcmp.ge.f32.partialorder %v4232, 0.16666667
    %v4234 = vsel %vm4233, %v3447, %v3443
    %v4235 = vsel %vm4233, %v3472, %v3468
    %vm4236 = vcmp.ge.f32.partialorder %v4232, 0.33333334
    %v4237 = vsel %vm4236, %v3451, %v4234
    %v4238 = vsel %vm4236, %v3476, %v4235
    %vm4239 = vcmp.ge.f32.partialorder %v4232, 0.5
    %v4240 = vsel %vm4239, %v3455, %v4237
    %v4241 = vsel %vm4239, %v3480, %v4238
    %vm4242 = vcmp.ge.f32.partialorder %v4232, 0.6666667
    %v4243 = vsel %vm4242, %v3459, %v4240
    %v4244 = vsel %vm4242, %v3484, %v4241
    %vm4245 = vcmp.ge.f32.partialorder %v4232, 0.8333333
    %v4246 = vsel %vm4245, %v3463, %v4243
    %v4247 = vsel %vm4245, %v3488, %v4244
    %v4248 = vmul.f32 %v4246, %v4232
    %v4249 = vadd.f32 %v4248, %v4247
    %vm4250 = vcmp.ge.f32.partialorder %v4249, 0.16666667
    %v4251 = vsel %vm4250, %v3447, %v3443
    %v4252 = vsel %vm4250, %v3472, %v3468
    %vm4253 = vcmp.ge.f32.partialorder %v4249, 0.33333334
    %v4254 = vsel %vm4253, %v3451, %v4251
    %v4255 = vsel %vm4253, %v3476, %v4252
    %vm4256 = vcmp.ge.f32.partialorder %v4249, 0.5
    %v4257 = vsel %vm4256, %v3455, %v4254
    %v4258 = vsel %vm4256, %v3480, %v4255
    %vm4259 = vcmp.ge.f32.partialorder %v4249, 0.6666667
    %v4260 = vsel %vm4259, %v3459, %v4257
    %v4261 = vsel %vm4259, %v3484, %v4258
    %vm4262 = vcmp.ge.f32.partialorder %v4249, 0.8333333
    %v4263 = vsel %vm4262, %v3463, %v4260
    %v4264 = vsel %vm4262, %v3488, %v4261
    %v4265 = vmul.f32 %v4263, %v4249
    %v4266 = vadd.f32 %v4265, %v4264
    %vm4267 = vcmp.ge.f32.partialorder %v4266, 0.16666667
    %v4268 = vsel %vm4267, %v3447, %v3443
    %v4269 = vsel %vm4267, %v3472, %v3468
    %vm4270 = vcmp.ge.f32.partialorder %v4266, 0.33333334
    %v4271 = vsel %vm4270, %v3451, %v4268
    %v4272 = vsel %vm4270, %v3476, %v4269
    %vm4273 = vcmp.ge.f32.partialorder %v4266, 0.5
    %v4274 = vsel %vm4273, %v3455, %v4271
    %v4275 = vsel %vm4273, %v3480, %v4272
    %vm4276 = vcmp.ge.f32.partialorder %v4266, 0.6666667
    %v4277 = vsel %vm4276, %v3459, %v4274
    %v4278 = vsel %vm4276, %v3484, %v4275
    %vm4279 = vcmp.ge.f32.partialorder %v4266, 0.8333333
    %v4280 = vsel %vm4279, %v3463, %v4277
    %v4281 = vsel %vm4279, %v3488, %v4278
    %v4282 = vmul.f32 %v4280, %v4266
    %v4283 = vadd.f32 %v4282, %v4281
    %vm4284 = vcmp.ge.f32.partialorder %v4283, 0.16666667
    %v4285 = vsel %vm4284, %v3447, %v3443
    %v4286 = vsel %vm4284, %v3472, %v3468
    %vm4287 = vcmp.ge.f32.partialorder %v4283, 0.33333334
    %v4288 = vsel %vm4287, %v3451, %v4285
    %v4289 = vsel %vm4287, %v3476, %v4286
    %vm4290 = vcmp.ge.f32.partialorder %v4283, 0.5
    %v4291 = vsel %vm4290, %v3455, %v4288
    %v4292 = vsel %vm4290, %v3480, %v4289
    %vm4293 = vcmp.ge.f32.partialorder %v4283, 0.6666667
    %v4294 = vsel %vm4293, %v3459, %v4291
    %v4295 = vsel %vm4293, %v3484, %v4292
    %vm4296 = vcmp.ge.f32.partialorder %v4283, 0.8333333
    %v4297 = vsel %vm4296, %v3463, %v4294
    %v4298 = vsel %vm4296, %v3488, %v4295
    %v4299 = vmul.f32 %v4297, %v4283
    %v4300 = vadd.f32 %v4299, %v4298
    %vm4301 = vcmp.ge.f32.partialorder %v4300, 0.16666667
    %v4302 = vsel %vm4301, %v3447, %v3443
    %v4303 = vsel %vm4301, %v3472, %v3468
    %vm4304 = vcmp.ge.f32.partialorder %v4300, 0.33333334
    %v4305 = vsel %vm4304, %v3451, %v4302
    %v4306 = vsel %vm4304, %v3476, %v4303
    %vm4307 = vcmp.ge.f32.partialorder %v4300, 0.5
    %v4308 = vsel %vm4307, %v3455, %v4305
    %v4309 = vsel %vm4307, %v3480, %v4306
    %vm4310 = vcmp.ge.f32.partialorder %v4300, 0.6666667
    %v4311 = vsel %vm4310, %v3459, %v4308
    %v4312 = vsel %vm4310, %v3484, %v4309
    %vm4313 = vcmp.ge.f32.partialorder %v4300, 0.8333333
    %v4314 = vsel %vm4313, %v3463, %v4311
    %v4315 = vsel %vm4313, %v3488, %v4312
    %v4316 = vmul.f32 %v4314, %v4300
    %v4317 = vadd.f32 %v4316, %v4315
    %vm4318 = vcmp.ge.f32.partialorder %v4317, 0.16666667
    %v4319 = vsel %vm4318, %v3447, %v3443
    %v4320 = vsel %vm4318, %v3472, %v3468
    %vm4321 = vcmp.ge.f32.partialorder %v4317, 0.33333334
    %v4322 = vsel %vm4321, %v3451, %v4319
    %v4323 = vsel %vm4321, %v3476, %v4320
    %vm4324 = vcmp.ge.f32.partialorder %v4317, 0.5
    %v4325 = vsel %vm4324, %v3455, %v4322
    %v4326 = vsel %vm4324, %v3480, %v4323
    %vm4327 = vcmp.ge.f32.partialorder %v4317, 0.6666667
    %v4328 = vsel %vm4327, %v3459, %v4325
    %v4329 = vsel %vm4327, %v3484, %v4326
    %vm4330 = vcmp.ge.f32.partialorder %v4317, 0.8333333
    %v4331 = vsel %vm4330, %v3463, %v4328
    %v4332 = vsel %vm4330, %v3488, %v4329
    %v4333 = vmul.f32 %v4331, %v4317
    %v4334 = vadd.f32 %v4333, %v4332
    %v4335 = vmul.f32 %v4334, 7.0
    %v4336 = vfloor.f32 %v4335
    %v4337 = vmax.f32 %v4336, 0.0
    %v4338 = vmin.f32 %v4337, 7.0
    %v4339 = vadd.f32 %v4336, 1.0
    %v4340 = vmax.f32 %v4339, 0.0
    %v4341 = vmin.f32 %v4340, 7.0
    %v4342 = vsub.f32 %v4335, %v4338
    %v4343 = vlaneseq
    %v4344 = vshrl.u32 %v4343, 7
    %v4345 = vsub.s32 0, %v4344
    %v4346 = vrot.slane %v4342, %v4345
    %4348 = vbcast.lane.b32.xlu0 %v4346, 256
    %v4349 = vpop.permute.xlu0 %4348
    %v4350 = vlaneseq
    %v4351 = vshrl.u32 %v4350, 7
    %v4352 = vsub.s32 1, %v4351
    %v4353 = vrot.slane %v4342, %v4352
    %4355 = vbcast.lane.b32.xlu0 %v4353, 256
    %v4356 = vpop.permute.xlu0 %4355
    %v4357 = vlaneseq
    %v4358 = vshrl.u32 %v4357, 7
    %v4359 = vsub.s32 0, %v4358
    %v4360 = vrot.slane %v4338, %v4359
    %4362 = vbcast.lane.b32.xlu0 %v4360, 256
    %v4363 = vpop.permute.xlu0 %4362
    %v4364 = vlaneseq
    %v4365 = vshrl.u32 %v4364, 7
    %v4366 = vsub.s32 1, %v4365
    %v4367 = vrot.slane %v4338, %v4366
    %4369 = vbcast.lane.b32.xlu0 %v4367, 256
    %v4370 = vpop.permute.xlu0 %4369
    %vm4371 = vcmp.eq.f32.partialorder %v4363, %v312
    %vm4372 = vcmp.eq.f32.partialorder %v4370, %v312
    %v4373 = vsub.f32 1.0, %v4349
    %v4374 = vsub.f32 1.0, %v4356
    %v4375 = vsel %vm4371, %v4373, 0.0
    %v4376 = vsel %vm4372, %v4374, 0.0
    %v4377 = vlaneseq
    %v4378 = vshrl.u32 %v4377, 7
    %v4379 = vsub.s32 0, %v4378
    %v4380 = vrot.slane %v4341, %v4379
    %4382 = vbcast.lane.b32.xlu0 %v4380, 256
    %v4383 = vpop.permute.xlu0 %4382
    %v4384 = vlaneseq
    %v4385 = vshrl.u32 %v4384, 7
    %v4386 = vsub.s32 1, %v4385
    %v4387 = vrot.slane %v4341, %v4386
    %4389 = vbcast.lane.b32.xlu0 %v4387, 256
    %v4390 = vpop.permute.xlu0 %4389
    %vm4391 = vcmp.eq.f32.partialorder %v4383, %v312
    %vm4392 = vcmp.eq.f32.partialorder %v4390, %v312
    %v4393 = vsel %vm4391, %v4349, 0.0
    %v4394 = vsel %vm4392, %v4356, 0.0
    %v4395 = vadd.f32 %v4375, %v4393
    %v4396 = vadd.f32 %v4376, %v4394
    %v4398 = vsel %vm1227, %v4395, 0
    %4400 = vmatprep.subr.mxu0 0.0
    %4401 = vmatpush1.xpose.msra.mxu0 %v4398
    %4402 = vmatprep.subr.mxu0 0.0
    %4403 = vmatpush1.xpose.msra.mxu0 0.0
    %4404 = vmatprep.subr.mxu0 0.0
    %4405 = vmatpush1.xpose.msra.mxu0 0.0
    %4406 = vmatprep.subr.mxu0 0.0
    %4407 = vmatpush1.xpose.msra.mxu0 0.0
    %4408 = vmatprep.subr.mxu0 0.0
    %4409 = vmatpush1.xpose.msra.mxu0 0.0
    %4410 = vmatprep.subr.mxu0 0.0
    %4411 = vmatpush1.xpose.msra.mxu0 0.0
    %4412 = vmatprep.subr.mxu0 0.0
    %4413 = vmatpush1.xpose.msra.mxu0 0.0
    %4414 = vmatprep.subr.mxu0 0.0
    %4415 = vmatpush1.xpose.msra.mxu0 0.0
    %4416 = vmatprep.subr.mxu0 0.0
    %4417 = vmatpush1.xpose.msra.mxu0 0.0
    %4418 = vmatprep.subr.mxu0 0.0
    %4419 = vmatpush1.xpose.msra.mxu0 0.0
    %4420 = vmatprep.subr.mxu0 0.0
    %4421 = vmatpush1.xpose.msra.mxu0 0.0
    %4422 = vmatprep.subr.mxu0 0.0
    %4423 = vmatpush1.xpose.msra.mxu0 0.0
    %4424 = vmatprep.subr.mxu0 0.0
    %4425 = vmatpush1.xpose.msra.mxu0 0.0
    %4426 = vmatprep.subr.mxu0 0.0
    %4427 = vmatpush1.xpose.msra.mxu0 0.0
    %4428 = vmatprep.subr.mxu0 0.0
    %4429 = vmatpush1.xpose.msra.mxu0 0.0
    %4430 = vmatprep.subr.mxu0 0.0
    %4431 = vmatpush1.xpose.msra.mxu0 0.0
    %4432 = vmatprep.subr.mxu0 0.0
    %4433 = vmatpush1.xpose.msra.mxu0 0.0
    %4434 = vmatprep.subr.mxu0 0.0
    %4435 = vmatpush1.xpose.msra.mxu0 0.0
    %4436 = vmatprep.subr.mxu0 0.0
    %4437 = vmatpush1.xpose.msra.mxu0 0.0
    %4438 = vmatprep.subr.mxu0 0.0
    %4439 = vmatpush1.xpose.msra.mxu0 0.0
    %4440 = vmatprep.subr.mxu0 0.0
    %4441 = vmatpush1.xpose.msra.mxu0 0.0
    %4442 = vmatprep.subr.mxu0 0.0
    %4443 = vmatpush1.xpose.msra.mxu0 0.0
    %4444 = vmatprep.subr.mxu0 0.0
    %4445 = vmatpush1.xpose.msra.mxu0 0.0
    %4446 = vmatprep.subr.mxu0 0.0
    %4447 = vmatpush1.xpose.msra.mxu0 0.0
    %4448 = vmatprep.subr.mxu0 0.0
    %4449 = vmatpush1.xpose.msra.mxu0 0.0
    %4450 = vmatprep.subr.mxu0 0.0
    %4451 = vmatpush1.xpose.msra.mxu0 0.0
    %4452 = vmatprep.subr.mxu0 0.0
    %4453 = vmatpush1.xpose.msra.mxu0 0.0
    %4454 = vmatprep.subr.mxu0 0.0
    %4455 = vmatpush1.xpose.msra.mxu0 0.0
    %4456 = vmatprep.subr.mxu0 0.0
    %4457 = vmatpush1.xpose.msra.mxu0 0.0
    %4458 = vmatprep.subr.mxu0 0.0
    %4459 = vmatpush1.xpose.msra.mxu0 0.0
    %4460 = vmatprep.subr.mxu0 0.0
    %4461 = vmatpush1.xpose.msra.mxu0 0.0
    %4462 = vmatprep.subr.mxu0 0.0
    %4463 = vmatpush1.xpose.msra.mxu0 0.0
    %4464 = vmatprep.mubr.f32.mxu0 0.0
    %4465 = vmatmul.mubr.f32.gmra.mrb[0].mxu0 %v1229
    %v4466 = vpop.f32.mrb[0].mxu0
    %v4467 = vadd.f32 0.0, %v4466
    %v4468 = vpop.f32.mrb[0].mxu0
    %4469 = vdwg.mxu0
    %v4471 = vsel %vm1227, %v4396, 0
    %4473 = vmatprep.subr.mxu0 0.0
    %4474 = vmatpush1.xpose.msra.mxu0 %v4471
    %4475 = vmatprep.subr.mxu0 0.0
    %4476 = vmatpush1.xpose.msra.mxu0 0.0
    %4477 = vmatprep.subr.mxu0 0.0
    %4478 = vmatpush1.xpose.msra.mxu0 0.0
    %4479 = vmatprep.subr.mxu0 0.0
    %4480 = vmatpush1.xpose.msra.mxu0 0.0
    %4481 = vmatprep.subr.mxu0 0.0
    %4482 = vmatpush1.xpose.msra.mxu0 0.0
    %4483 = vmatprep.subr.mxu0 0.0
    %4484 = vmatpush1.xpose.msra.mxu0 0.0
    %4485 = vmatprep.subr.mxu0 0.0
    %4486 = vmatpush1.xpose.msra.mxu0 0.0
    %4487 = vmatprep.subr.mxu0 0.0
    %4488 = vmatpush1.xpose.msra.mxu0 0.0
    %4489 = vmatprep.subr.mxu0 0.0
    %4490 = vmatpush1.xpose.msra.mxu0 0.0
    %4491 = vmatprep.subr.mxu0 0.0
    %4492 = vmatpush1.xpose.msra.mxu0 0.0
    %4493 = vmatprep.subr.mxu0 0.0
    %4494 = vmatpush1.xpose.msra.mxu0 0.0
    %4495 = vmatprep.subr.mxu0 0.0
    %4496 = vmatpush1.xpose.msra.mxu0 0.0
    %4497 = vmatprep.subr.mxu0 0.0
    %4498 = vmatpush1.xpose.msra.mxu0 0.0
    %4499 = vmatprep.subr.mxu0 0.0
    %4500 = vmatpush1.xpose.msra.mxu0 0.0
    %4501 = vmatprep.subr.mxu0 0.0
    %4502 = vmatpush1.xpose.msra.mxu0 0.0
    %4503 = vmatprep.subr.mxu0 0.0
    %4504 = vmatpush1.xpose.msra.mxu0 0.0
    %4505 = vmatprep.subr.mxu0 0.0
    %4506 = vmatpush1.xpose.msra.mxu0 0.0
    %4507 = vmatprep.subr.mxu0 0.0
    %4508 = vmatpush1.xpose.msra.mxu0 0.0
    %4509 = vmatprep.subr.mxu0 0.0
    %4510 = vmatpush1.xpose.msra.mxu0 0.0
    %4511 = vmatprep.subr.mxu0 0.0
    %4512 = vmatpush1.xpose.msra.mxu0 0.0
    %4513 = vmatprep.subr.mxu0 0.0
    %4514 = vmatpush1.xpose.msra.mxu0 0.0
    %4515 = vmatprep.subr.mxu0 0.0
    %4516 = vmatpush1.xpose.msra.mxu0 0.0
    %4517 = vmatprep.subr.mxu0 0.0
    %4518 = vmatpush1.xpose.msra.mxu0 0.0
    %4519 = vmatprep.subr.mxu0 0.0
    %4520 = vmatpush1.xpose.msra.mxu0 0.0
    %4521 = vmatprep.subr.mxu0 0.0
    %4522 = vmatpush1.xpose.msra.mxu0 0.0
    %4523 = vmatprep.subr.mxu0 0.0
    %4524 = vmatpush1.xpose.msra.mxu0 0.0
    %4525 = vmatprep.subr.mxu0 0.0
    %4526 = vmatpush1.xpose.msra.mxu0 0.0
    %4527 = vmatprep.subr.mxu0 0.0
    %4528 = vmatpush1.xpose.msra.mxu0 0.0
    %4529 = vmatprep.subr.mxu0 0.0
    %4530 = vmatpush1.xpose.msra.mxu0 0.0
    %4531 = vmatprep.subr.mxu0 0.0
    %4532 = vmatpush1.xpose.msra.mxu0 0.0
    %4533 = vmatprep.subr.mxu0 0.0
    %4534 = vmatpush1.xpose.msra.mxu0 0.0
    %4535 = vmatprep.subr.mxu0 0.0
    %4536 = vmatpush1.xpose.msra.mxu0 0.0
    %4537 = vmatprep.mubr.f32.mxu0 0.0
    %4538 = vmatmul.mubr.f32.gmra.mrb[0].mxu0 %v1305
    %v4539 = vpop.f32.mrb[0].mxu0
    %v4540 = vadd.f32 0.0, %v4539
    %v4541 = vpop.f32.mrb[0].mxu0
    %4542 = vdwg.mxu0
    %4543 = vst.msk [vmem:[#allocation7] sm:$0xf] %vm1520, %v4467
    %4544 = vst.msk [vmem:[#allocation7 + $0x4] sm:$0xf] %vm1520, %v4540
    // Predicated region
    $region82: #{ssavf_forward.1} parent=1 // pred_check
      _
    $region83: #{ssavf_forward.1} parent=1 // pred_check_branch
      %4546 = sbr.rel (0) target = $region85
    $region84: #{ssavf_forward.1} parent=1 // pred_region
      %s4548 = ssub.s32 128, 128
      %4549 = vsyncadd [#allocation4], %s4548
      %s4550 = sshll.u32 [#allocation7], 4
      %s4551 = int_to_ptr.vmem [resolvable:$true] %s4550
      %4556 = dma.vmem_to_hbm [thread:$0]  %s4551, 128, %s18, [#allocation4], 64, 64, 4
    $region85: #{ssavf_forward.1} parent=1 // pred_fallthru
      _
    // Predicated region
    $region86: #{ssavf_forward.1} parent=1 // pred_check
      _
    $region87: #{ssavf_forward.1} parent=1 // pred_check_branch
      %4558 = sbr.rel (0) target = $region89
    $region88: #{ssavf_forward.1} parent=1 // pred_region
      %s4560 = ssub.s32 128, 128
      %4561 = vsyncadd [#allocation9], %s4560
      %s4562 = sshll.u32 [#allocation8], 4
      %s4563 = int_to_ptr.vmem [resolvable:$true] %s4562
      %4568 = dma.vmem_to_hbm [thread:$0]  %s4563, 128, %s19, [#allocation9], 64, 64, 4
    $region89: #{ssavf_forward.1} parent=1 // pred_fallthru
      _
    // Predicated region
    $region90: #{ssavf_forward.1} parent=1 // pred_check
      _
    $region91: #{ssavf_forward.1} parent=1 // pred_check_branch
      %4570 = sbr.rel (0) target = $region93
    $region92: #{ssavf_forward.1} parent=1 // pred_region
      %s4572 = ssub.s32 32, 32
      %4573 = vsyncadd [#allocation9], %s4572
      %s4575 = sshll.u32 [#allocation10], 4
      %s4576 = int_to_ptr.vmem [resolvable:$true] %s4575
      %4578 = dma.vmem_to_hbm [thread:$0]  %s4576, 32, %s20, [#allocation9]
    $region93: #{ssavf_forward.1} parent=1 // pred_fallthru
      _
    // Predicated region
    $region94: #{ssavf_forward.1} parent=1 // pred_check
      _
    $region95: #{ssavf_forward.1} parent=1 // pred_check_branch
      %4580 = sbr.rel (0) target = $region97
    $region96: #{ssavf_forward.1} parent=1 // pred_region
      %4581 = dma.done [#allocation4], 128
    $region97: #{ssavf_forward.1} parent=1 // pred_fallthru
      _
    // Predicated region
    $region98: #{ssavf_forward.1} parent=1 // pred_check
      _
    $region99: #{ssavf_forward.1} parent=1 // pred_check_branch
      %4583 = sbr.rel (0) target = $region101
    $region100: #{ssavf_forward.1} parent=1 // pred_region
      %4584 = dma.done [#allocation9], 128
    $region101: #{ssavf_forward.1} parent=1 // pred_fallthru
      _
    // Predicated region
    $region102: #{ssavf_forward.1} parent=1 // pred_check
      _
    $region103: #{ssavf_forward.1} parent=1 // pred_check_branch
      %4586 = sbr.rel (0) target = $region105
    $region104: #{ssavf_forward.1} parent=1 // pred_region
      %4587 = dma.done [#allocation9], 32
    $region105: #{ssavf_forward.1} parent=1 // pred_fallthru
      _
    %4588 = vsyncpa [#allocation3], 1
    %4589 = vsyncpa [#allocation6], 1
    %4590 = vsyncpa [#allocation4], 1
    %4591 = vsyncpa [#allocation9], 1

</llo_original>
